<compile_context>
chip_gen: v7x
topology: tpu7x:2x2x1
jax: 0.10.0
libtpu: 0.0.40
codegen_flags: <defaults>
</compile_context>

<pallas_src>
import numpy as np
import jax
import jax.numpy as jnp
from jax.experimental import pallas as pl

# ---------------------------------------------------------------------------
# Configuration (small, consistent with the module's forward pass).
SOS = 1
EOS = 2
BATCH = 2
INPUT_SIZE = 16
HIDDEN = 32
ENC_MAX_LEN = 8            # encoder_max_length == T == attention length L
TARGET_LEN = 4
VOCAB_SIZES = [12, 10]
N_OUT = len(VOCAB_SIZES)
EMB_SIZES = [int(v ** 0.7) for v in VOCAB_SIZES]
EMB_SUM = int(np.sum(EMB_SIZES))
VSUM = int(np.sum(VOCAB_SIZES))


# ---------------------------------------------------------------------------
# Shared in-kernel GRU gate math (PyTorch semantics, gate-fused projections).
#   gi, gh: (B, 3H) with column layout [r | z | n]; gi already holds x@W_ih + b_ih,
#   gh already holds h@W_hh + b_hh (b_hh must stay inside the r* term -> it does).
#   One sigmoid over the contiguous r|z slab + one tanh (2 EUP issues, not 3).
# ---------------------------------------------------------------------------
def _gru_gates(gi, gh, h, H):
    rz = jax.nn.sigmoid(gi[:, 0:2 * H] + gh[:, 0:2 * H])
    r = rz[:, 0:H]
    z = rz[:, H:2 * H]
    n = jnp.tanh(gi[:, 2 * H:3 * H] + r * gh[:, 2 * H:3 * H])
    return (1.0 - z) * n + z * h


def _bigru_layer(gi, whh_bd, bhh, T, B, H):
    """One bidirectional GRU layer, fully unrolled inside the kernel.

    gi     : (T*B, 6H) hoisted input projection (+ b_ih), cols [fr fz fn br bz bn],
             rows in natural time order (t-major, B rows per step).
    whh_bd : (2H, 6H) block-diagonal fused hidden weights (same column order).
    Returns ([y_t (B, 2H) in natural time order], h_fwd_final, h_bwd_final)."""
    gi_f_all = gi[:, 0:3 * H]
    gi_b_all = gi[:, 3 * H:6 * H]
    hf = jnp.zeros((B, H), jnp.float32)
    hb = jnp.zeros((B, H), jnp.float32)
    yf = [None] * T
    yb = [None] * T
    for t in range(T):                                  # fully unrolled recurrence
        h_cat = jnp.concatenate([hf, hb], axis=-1)      # (B, 2H)
        # ONE MXU push for both directions' three gates.
        gh = jnp.dot(h_cat, whh_bd, preferred_element_type=jnp.float32) + bhh    # (B, 6H)
        hf = _gru_gates(gi_f_all[t * B:(t + 1) * B], gh[:, 0:3 * H], hf, H)
        hb = _gru_gates(gi_b_all[(T - 1 - t) * B:(T - t) * B], gh[:, 3 * H:6 * H], hb, H)
        yf[t] = hf                                      # forward output at natural time t
        yb[T - 1 - t] = hb                              # backward output in natural time order
    y_nat = [jnp.concatenate([yf[t], yb[t]], axis=-1) for t in range(T)]          # (B, 2H) each
    return y_nat, hf, hb


# ---------------------------------------------------------------------------
# Encoder: whole EncoderRNN.forward in ONE gridless pallas_call.
# ---------------------------------------------------------------------------
def _encoder_kernel(x_ref, wih0_ref, bih0_ref, whh0_ref, bhh0_ref,
                    wih1_ref, bih1_ref, whh1_ref, bhh1_ref,
                    fcw_ref, fcb_ref,
                    enc_out_ref, hidden_ref):
    T, B, H = ENC_MAX_LEN, BATCH, HIDDEN

    # Layer 0: hoisted input projection (one matmul, both directions, all T steps).
    gi0 = jnp.dot(x_ref[...], wih0_ref[...], preferred_element_type=jnp.float32) + bih0_ref[...]
    y0_nat, hf0, hb0 = _bigru_layer(gi0, whh0_ref[...], bhh0_ref[...], T, B, H)
    y0 = jnp.concatenate(y0_nat, axis=0)                                          # (T*B, 2H)

    # Layer 1: same structure, input is layer 0's output (stays on-chip).
    gi1 = jnp.dot(y0, wih1_ref[...], preferred_element_type=jnp.float32) + bih1_ref[...]
    y1_nat, hf1, hb1 = _bigru_layer(gi1, whh1_ref[...], bhh1_ref[...], T, B, H)

    # Single dense store of the encoder outputs (time-major; tiny transpose in XLA).
    enc_out_ref[...] = jnp.stack(y1_nat, axis=0)                                  # (T, B, 2H)

    # EncoderRNN.fc: tanh(fc(cat(h_fwd, h_bwd))) for both layers in one matmul.
    fc_in = jnp.concatenate([jnp.concatenate([hf0, hb0], axis=-1),
                             jnp.concatenate([hf1, hb1], axis=-1)], axis=0)       # (2B, 2H)
    hidden_ref[...] = jnp.tanh(
        jnp.dot(fc_in, fcw_ref[...], preferred_element_type=jnp.float32) + fcb_ref[...])


def encoder_forward(params, x):
    """EncoderRNN.forward: x (B, T, In) -> enc_out (B, T, 2H), hidden (2B, H)."""
    B, T, In = x.shape
    H = HIDDEN
    eg = params["enc"]
    x_tm = jnp.transpose(x, (1, 0, 2)).reshape(T * B, In)     # time-major flatten (tiny XLA op)
    enc_out_tm, hidden = pl.pallas_call(
        _encoder_kernel,
        out_shape=(jax.ShapeDtypeStruct((T, B, 2 * H), jnp.float32),
                   jax.ShapeDtypeStruct((2 * B, H), jnp.float32)),
    )(x_tm, eg["wih0"], eg["bih0"], eg["whh0"], eg["bhh0"],
      eg["wih1"], eg["bih1"], eg["whh1"], eg["bhh1"],
      eg["fcw"], eg["fcb"])
    enc_out = jnp.transpose(enc_out_tm, (1, 0, 2))            # (B, L, 2H)
    return enc_out, hidden


# ---------------------------------------------------------------------------
# Decoder: whole greedy decode loop in ONE gridless pallas_call.
# ---------------------------------------------------------------------------
def _decoder_kernel(hid_ref, enc_ref, wattn_ref, battn_ref, v_ref, emb_ref,
                    wih0_ref, bih0_ref, whh0_ref, bhh0_ref,
                    wih1_ref, bih1_ref, whh1_ref, bhh1_ref,
                    wout_ref, bout_ref,
                    probs_ref, attn_ref):
    B, H, L = BATCH, HIDDEN, ENC_MAX_LEN
    V0 = VOCAB_SIZES[0]

    # ---- step-invariant work, hoisted before the decode loop ----
    w_top = wattn_ref[0:2 * H, :]                     # attention weight rows for the hidden part
    w_bot = wattn_ref[2 * H:4 * H, :]                 # rows for the encoder-output part
    v_row = v_ref[...]                                # (1, H)
    enc_rows = [enc_ref[b] for b in range(B)]         # each (L, 2H), VMEM resident
    enc_bot = [jnp.dot(enc_rows[b], w_bot, preferred_element_type=jnp.float32) + battn_ref[...]
               for b in range(B)]                     # each (L, H); attn bias applied once here

    h0 = hid_ref[0:B, :]                              # decoder GRU layer 0 initial hidden
    h1 = hid_ref[B:2 * B, :]                          # layer 1 initial hidden
    tok0 = jnp.full((B, 1), SOS, jnp.int32)           # decoder_input = SOS for both heads
    tok1 = jnp.full((B, 1), SOS, jnp.int32)
    eos = jnp.zeros((B, 1), jnp.float32)
    iota_v = jax.lax.broadcasted_iota(jnp.int32, (B, VSUM), 1)

    probs_steps = []
    attn_steps = []
    for di in range(TARGET_LEN):                      # fully unrolled greedy decode
        # torch: `if EOS_labels.sum() == batch_size: break` -> later rows stay zero.
        eos_sum = jnp.sum(eos, axis=0, keepdims=True)                     # (1, 1)
        keep = jnp.where(eos_sum >= (B - 0.5), 0.0, 1.0)                  # (1, 1)

        # ---- fused embeddings: ONE one-hot matmul for both heads ----
        onehot = jnp.logical_or(iota_v == tok0,
                                iota_v == (tok1 + V0)).astype(jnp.float32)        # (B, V0+V1)
        emb = jnp.dot(onehot, emb_ref[...], preferred_element_type=jnp.float32)   # (B, E0+E1)
        # F.dropout(p=0.1, training=False) -> identity at inference.

        # ---- attention (enc projection hoisted; scores via VPU mul + lane reduce) ----
        h_cat = jnp.concatenate([h0, h1], axis=-1)                                 # (B, 2H)
        h_top = jnp.dot(h_cat, w_top, preferred_element_type=jnp.float32)          # (B, H)
        attn_cols = []
        ctx_rows = []
        for b in range(B):                                                         # static unroll, B=2
            energy = jnp.tanh(enc_bot[b] + h_top[b:b + 1, :])                      # (L, H)
            scores = jnp.sum(energy * v_row, axis=-1, keepdims=True)               # (L, 1)
            m = jnp.max(scores, axis=0, keepdims=True)
            e = jnp.exp(scores - m)
            attn_b = e / jnp.sum(e, axis=0, keepdims=True)                         # exact softmax
            attn_cols.append(attn_b)
            ctx_rows.append(jnp.sum(attn_b * enc_rows[b], axis=0, keepdims=True))  # (1, 2H)
        attn_lb = jnp.concatenate(attn_cols, axis=1)                               # (L, B)
        ctx = jnp.concatenate(ctx_rows, axis=0)                                    # (B, 2H)

        # ---- 2-layer decoder GRU step: gate-fused 96-lane dots ----
        rnn_in = jnp.concatenate([emb, ctx], axis=-1)                              # (B, Emb + 2H)
        gi0 = jnp.dot(rnn_in, wih0_ref[...], preferred_element_type=jnp.float32) + bih0_ref[...]
        gh0 = jnp.dot(h0, whh0_ref[...], preferred_element_type=jnp.float32) + bhh0_ref[...]
        h0 = _gru_gates(gi0, gh0, h0, H)
        gi1 = jnp.dot(h0, wih1_ref[...], preferred_element_type=jnp.float32) + bih1_ref[...]
        gh1 = jnp.dot(h1, whh1_ref[...], preferred_element_type=jnp.float32) + bhh1_ref[...]
        h1 = _gru_gates(gi1, gh1, h1, H)

        # ---- fused output heads: one matmul, per-head log_softmax + greedy argmax ----
        out_comb = jnp.concatenate([h1, ctx], axis=-1)                             # (B, 3H)
        logits = (jnp.dot(out_comb, wout_ref[...], preferred_element_type=jnp.float32)
                  + bout_ref[...])                                                 # (B, Vsum)
        logp_parts = []
        preds = []
        off = 0
        for V in VOCAB_SIZES:
            lg = logits[:, off:off + V]                                            # static lane slice
            mm = jnp.max(lg, axis=-1, keepdims=True)
            sh = lg - mm
            lse = jnp.log(jnp.sum(jnp.exp(sh), axis=-1, keepdims=True))
            logp_parts.append(sh - lse)
            vio = jax.lax.broadcasted_iota(jnp.int32, (B, V), 1)
            preds.append(jnp.min(jnp.where(lg >= mm, vio, V), axis=-1, keepdims=True))  # first argmax
            off += V

        probs_steps.append(jnp.concatenate(logp_parts, axis=-1) * keep)            # (B, Vsum)
        attn_steps.append(attn_lb * keep)                                          # (L, B)

        tok0, tok1 = preds[0], preds[1]
        # torch quirk: (x == EOS).nonzero().sum() > 0 sums *indices*, so EOS at head 0
        # alone never sets the flag; only heads >= 1 do.  Reproduced intentionally.
        eos = jnp.maximum(eos, (tok1 == EOS).astype(jnp.float32))

    # Single dense stores at the end of the kernel.
    probs_ref[...] = jnp.stack(probs_steps, axis=0)          # (T_dec, B, Vsum)
    attn_ref[...] = jnp.stack(attn_steps, axis=0)            # (T_dec, L, B)


def run_decoder(params, hidden, enc_out):
    B, L, _ = enc_out.shape
    dp = params["dec"]
    probs_tm, attn_tm = pl.pallas_call(
        _decoder_kernel,
        out_shape=(jax.ShapeDtypeStruct((TARGET_LEN, B, VSUM), jnp.float32),
                   jax.ShapeDtypeStruct((TARGET_LEN, L, B), jnp.float32)),
    )(hidden, enc_out, dp["w_attn"], dp["b_attn"], dp["v"], dp["emb"],
      dp["wih0"], dp["bih0"], dp["whh0"], dp["bhh0"],
      dp["wih1"], dp["bih1"], dp["whh1"], dp["bhh1"],
      dp["wout"], dp["bout"])

    probs_bt = jnp.transpose(probs_tm, (1, 0, 2))            # (B, T_dec, Vsum)
    all_attn = jnp.transpose(attn_tm, (2, 0, 1))             # (B, T_dec, L)
    all_probs = []
    off = 0
    for V in VOCAB_SIZES:
        all_probs.append(probs_bt[:, :, off:off + V])
        off += V
    return all_probs, all_attn


# ---------------------------------------------------------------------------
# Whole forward (teacher_forcing_ratio=0 -> greedy decode), fully jit-able.
# ---------------------------------------------------------------------------
def seq2seq_forward(params, inputs):
    enc_out, hidden = encoder_forward(params, inputs)
    return run_decoder(params, hidden, enc_out)


seq2seq_forward_jit = jax.jit(seq2seq_forward)


# ---------------------------------------------------------------------------
# Deterministic synthetic parameters (module-consistent shapes, fused kernel layouts).
# ---------------------------------------------------------------------------
def _uniform(key, shape, scale):
    return jax.random.uniform(key, shape, jnp.float32, -scale, scale)


def init_params(key):
    keys = iter(jax.random.split(key, 64))
    H = HIDDEN

    def lin(out_f, in_f):
        s = float(np.sqrt(6.0 / (in_f + out_f)))              # xavier_uniform, zero bias
        return _uniform(next(keys), (out_f, in_f), s), jnp.zeros((out_f,), jnp.float32)

    def gru_dir(in_f, h):
        s_i = float(np.sqrt(3.0 / in_f))
        s_h = float(np.sqrt(3.0 / h))
        w_ih = _uniform(next(keys), (3 * h, in_f), s_i)        # torch layout, gate rows [r; z; n]
        w_hh = _uniform(next(keys), (3 * h, h), s_h)
        return w_ih.T, w_hh.T                                  # (In, 3H), (H, 3H), cols [r z n]

    def bi_layer(in_f, h):
        wih_f, whh_f = gru_dir(in_f, h)
        wih_b, whh_b = gru_dir(in_f, h)
        wih = jnp.concatenate([wih_f, wih_b], axis=1)          # (In, 6H): [fr fz fn br bz bn]
        whh = jnp.zeros((2 * h, 6 * h), jnp.float32)           # block-diagonal fused hidden weight
        whh = whh.at[0:h, 0:3 * h].set(whh_f)
        whh = whh.at[h:2 * h, 3 * h:6 * h].set(whh_b)
        return dict(wih=wih, bih=jnp.zeros((1, 6 * h), jnp.float32),
                    whh=whh, bhh=jnp.zeros((1, 6 * h), jnp.float32))

    enc = {}
    l0 = bi_layer(INPUT_SIZE, H)
    l1 = bi_layer(2 * H, H)
    fc_w, fc_b = lin(H, 2 * H)
    enc.update(wih0=l0["wih"], bih0=l0["bih"], whh0=l0["whh"], bhh0=l0["bhh"],
               wih1=l1["wih"], bih1=l1["bih"], whh1=l1["whh"], bhh1=l1["bhh"],
               fcw=fc_w.T, fcb=fc_b[None, :])

    # Decoder: block-diagonal fused embedding table (V0+V1, E0+E1).
    emb = jnp.zeros((VSUM, EMB_SUM), jnp.float32)
    emb = emb.at[0:VOCAB_SIZES[0], 0:EMB_SIZES[0]].set(
        _uniform(next(keys), (VOCAB_SIZES[0], EMB_SIZES[0]), 0.5))
    emb = emb.at[VOCAB_SIZES[0]:, EMB_SIZES[0]:].set(
        _uniform(next(keys), (VOCAB_SIZES[1], EMB_SIZES[1]), 0.5))

    attn_w, attn_b = lin(H, 4 * H)                             # Linear(4H, H)
    v_w, _ = lin(1, H)                                         # Linear(H, 1, bias=False)
    wih0, whh0 = gru_dir(EMB_SUM + 2 * H, H)                   # decoder GRU layer 0
    wih1, whh1 = gru_dir(H, H)                                 # decoder GRU layer 1
    outs = [lin(VOCAB_SIZES[i], 3 * H) for i in range(N_OUT)]

    dec = dict(
        emb=emb,
        w_attn=attn_w.T,                                       # (4H, H): rows 0:2H hidden, 2H:4H encoder
        b_attn=attn_b[None, :],                                # (1, H)
        v=v_w,                                                 # (1, H)
        wih0=wih0, bih0=jnp.zeros((1, 3 * H), jnp.float32),
        whh0=whh0, bhh0=jnp.zeros((1, 3 * H), jnp.float32),
        wih1=wih1, bih1=jnp.zeros((1, 3 * H), jnp.float32),
        whh1=whh1, bhh1=jnp.zeros((1, 3 * H), jnp.float32),
        wout=jnp.concatenate([w.T for (w, _) in outs], axis=1),   # (3H, V0+V1)
        bout=jnp.concatenate([b for (_, b) in outs], axis=0)[None, :],
    )
    return dict(enc=enc, dec=dec)


# ---------------------------------------------------------------------------
if __name__ == "__main__":
    key = jax.random.PRNGKey(0)
    pkey, xkey = jax.random.split(key)
    params = init_params(pkey)
    inputs = jax.random.normal(xkey, (BATCH, ENC_MAX_LEN, INPUT_SIZE), jnp.float32)

    all_probs, all_attn = seq2seq_forward_jit(params, inputs)

    for p in all_probs:
        jax.block_until_ready(p)
    jax.block_until_ready(all_attn)

    assert all_probs[0].shape == (BATCH, TARGET_LEN, VOCAB_SIZES[0])
    assert all_probs[1].shape == (BATCH, TARGET_LEN, VOCAB_SIZES[1])
    assert all_attn.shape == (BATCH, TARGET_LEN, ENC_MAX_LEN)
    assert bool(jnp.all(jnp.isfinite(all_probs[0])))
    assert bool(jnp.all(jnp.isfinite(all_probs[1])))
    assert bool(jnp.all(jnp.isfinite(all_attn)))
    print("KERNEL_OK")
</pallas_src>

<mosaic_0001>
module attributes {stable_mosaic.version = 11 : i64} {
  func.func @_encoder_kernel(%arg0: memref<16x16xf32, #tpu.memory_space<vmem>>, %arg1: memref<16x192xf32, #tpu.memory_space<vmem>>, %arg2: memref<1x192xf32, #tpu.memory_space<vmem>>, %arg3: memref<64x192xf32, #tpu.memory_space<vmem>>, %arg4: memref<1x192xf32, #tpu.memory_space<vmem>>, %arg5: memref<64x192xf32, #tpu.memory_space<vmem>>, %arg6: memref<1x192xf32, #tpu.memory_space<vmem>>, %arg7: memref<64x192xf32, #tpu.memory_space<vmem>>, %arg8: memref<1x192xf32, #tpu.memory_space<vmem>>, %arg9: memref<64x32xf32, #tpu.memory_space<vmem>>, %arg10: memref<1x32xf32, #tpu.memory_space<vmem>>, %arg11: memref<8x2x64xf32, #tpu.memory_space<vmem>>, %arg12: memref<4x32xf32, #tpu.memory_space<vmem>>) attributes {dimension_semantics = [], scalar_prefetch = 0 : i64, scratch_operands = 0 : i64, tpu.core_type = #tpu.core_type<tc>} {
    %c0 = arith.constant 0 : index
    %c0_0 = arith.constant 0 : index
    %0 = vector.load %arg0[%c0, %c0_0] : memref<16x16xf32, #tpu.memory_space<vmem>>, vector<16x16xf32>
    %c0_1 = arith.constant 0 : index
    %c0_2 = arith.constant 0 : index
    %1 = vector.load %arg1[%c0_1, %c0_2] : memref<16x192xf32, #tpu.memory_space<vmem>>, vector<16x192xf32>
    %cst = arith.constant dense<0.000000e+00> : vector<16x192xf32>
    %2 = tpu.matmul %0, %1, %cst {dimension_numbers = #tpu.dot_dimension_numbers<[1], [0], [0], [1], [0, 0, 1, 1], [], []>} : vector<16x16xf32>, vector<16x192xf32>, vector<16x192xf32> -> vector<16x192xf32>
    %c0_3 = arith.constant 0 : index
    %c0_4 = arith.constant 0 : index
    %3 = vector.load %arg2[%c0_3, %c0_4] : memref<1x192xf32, #tpu.memory_space<vmem>>, vector<1x192xf32>
    %4 = vector.broadcast %3 : vector<1x192xf32> to vector<16x192xf32>
    %5 = arith.addf %2, %4 : vector<16x192xf32>
    %c0_5 = arith.constant 0 : index
    %c0_6 = arith.constant 0 : index
    %6 = vector.load %arg3[%c0_5, %c0_6] : memref<64x192xf32, #tpu.memory_space<vmem>>, vector<64x192xf32>
    %c0_7 = arith.constant 0 : index
    %c0_8 = arith.constant 0 : index
    %7 = vector.load %arg4[%c0_7, %c0_8] : memref<1x192xf32, #tpu.memory_space<vmem>>, vector<1x192xf32>
    %8 = vector.extract_strided_slice %5 {offsets = [0, 0], sizes = [16, 96], strides = [1, 1]} : vector<16x192xf32> to vector<16x96xf32>
    %9 = vector.extract_strided_slice %5 {offsets = [0, 96], sizes = [16, 96], strides = [1, 1]} : vector<16x192xf32> to vector<16x96xf32>
    %cst_9 = arith.constant 0.000000e+00 : f32
    %10 = vector.broadcast %cst_9 : f32 to vector<2x32xf32>
    %cst_10 = arith.constant 0.000000e+00 : f32
    %11 = vector.broadcast %cst_10 : f32 to vector<2x32xf32>
    %12 = tpu.concatenate %10, %11 in 1 : vector<2x32xf32>, vector<2x32xf32> -> vector<2x64xf32>
    %cst_11 = arith.constant dense<0.000000e+00> : vector<2x192xf32>
    %13 = tpu.matmul %12, %6, %cst_11 {dimension_numbers = #tpu.dot_dimension_numbers<[1], [0], [0], [1], [0, 0, 1, 1], [], []>} : vector<2x64xf32>, vector<64x192xf32>, vector<2x192xf32> -> vector<2x192xf32>
    %14 = vector.broadcast %7 : vector<1x192xf32> to vector<2x192xf32>
    %15 = arith.addf %13, %14 : vector<2x192xf32>
    %16 = vector.extract_strided_slice %8 {offsets = [0, 0], sizes = [2, 96], strides = [1, 1]} : vector<16x96xf32> to vector<2x96xf32>
    %17 = vector.extract_strided_slice %15 {offsets = [0, 0], sizes = [2, 96], strides = [1, 1]} : vector<2x192xf32> to vector<2x96xf32>
    %18 = vector.extract_strided_slice %16 {offsets = [0, 0], sizes = [2, 64], strides = [1, 1]} : vector<2x96xf32> to vector<2x64xf32>
    %19 = vector.extract_strided_slice %17 {offsets = [0, 0], sizes = [2, 64], strides = [1, 1]} : vector<2x96xf32> to vector<2x64xf32>
    %20 = arith.addf %18, %19 : vector<2x64xf32>
    %21 = arith.negf %20 : vector<2x64xf32>
    %22 = math.exp %21 : vector<2x64xf32>
    %cst_12 = arith.constant 1.000000e+00 : f32
    %23 = vector.broadcast %cst_12 : f32 to vector<2x64xf32>
    %24 = arith.addf %23, %22 : vector<2x64xf32>
    %25 = arith.divf %23, %24 : vector<2x64xf32>
    %26 = vector.extract_strided_slice %25 {offsets = [0, 0], sizes = [2, 32], strides = [1, 1]} : vector<2x64xf32> to vector<2x32xf32>
    %27 = vector.extract_strided_slice %25 {offsets = [0, 32], sizes = [2, 32], strides = [1, 1]} : vector<2x64xf32> to vector<2x32xf32>
    %28 = vector.extract_strided_slice %16 {offsets = [0, 64], sizes = [2, 32], strides = [1, 1]} : vector<2x96xf32> to vector<2x32xf32>
    %29 = vector.extract_strided_slice %17 {offsets = [0, 64], sizes = [2, 32], strides = [1, 1]} : vector<2x96xf32> to vector<2x32xf32>
    %30 = arith.mulf %26, %29 : vector<2x32xf32>
    %31 = arith.addf %28, %30 : vector<2x32xf32>
    %32 = math.tanh %31 : vector<2x32xf32>
    %cst_13 = arith.constant 1.000000e+00 : f32
    %33 = vector.broadcast %cst_13 : f32 to vector<2x32xf32>
    %34 = arith.subf %33, %27 : vector<2x32xf32>
    %35 = arith.mulf %34, %32 : vector<2x32xf32>
    %36 = arith.mulf %27, %10 : vector<2x32xf32>
    %37 = arith.addf %35, %36 : vector<2x32xf32>
    %38 = vector.extract_strided_slice %9 {offsets = [14, 0], sizes = [2, 96], strides = [1, 1]} : vector<16x96xf32> to vector<2x96xf32>
    %39 = vector.extract_strided_slice %15 {offsets = [0, 96], sizes = [2, 96], strides = [1, 1]} : vector<2x192xf32> to vector<2x96xf32>
    %40 = vector.extract_strided_slice %38 {offsets = [0, 0], sizes = [2, 64], strides = [1, 1]} : vector<2x96xf32> to vector<2x64xf32>
    %41 = vector.extract_strided_slice %39 {offsets = [0, 0], sizes = [2, 64], strides = [1, 1]} : vector<2x96xf32> to vector<2x64xf32>
    %42 = arith.addf %40, %41 : vector<2x64xf32>
    %43 = arith.negf %42 : vector<2x64xf32>
    %44 = math.exp %43 : vector<2x64xf32>
    %cst_14 = arith.constant 1.000000e+00 : f32
    %45 = vector.broadcast %cst_14 : f32 to vector<2x64xf32>
    %46 = arith.addf %45, %44 : vector<2x64xf32>
    %47 = arith.divf %45, %46 : vector<2x64xf32>
    %48 = vector.extract_strided_slice %47 {offsets = [0, 0], sizes = [2, 32], strides = [1, 1]} : vector<2x64xf32> to vector<2x32xf32>
    %49 = vector.extract_strided_slice %47 {offsets = [0, 32], sizes = [2, 32], strides = [1, 1]} : vector<2x64xf32> to vector<2x32xf32>
    %50 = vector.extract_strided_slice %38 {offsets = [0, 64], sizes = [2, 32], strides = [1, 1]} : vector<2x96xf32> to vector<2x32xf32>
    %51 = vector.extract_strided_slice %39 {offsets = [0, 64], sizes = [2, 32], strides = [1, 1]} : vector<2x96xf32> to vector<2x32xf32>
    %52 = arith.mulf %48, %51 : vector<2x32xf32>
    %53 = arith.addf %50, %52 : vector<2x32xf32>
    %54 = math.tanh %53 : vector<2x32xf32>
    %cst_15 = arith.constant 1.000000e+00 : f32
    %55 = vector.broadcast %cst_15 : f32 to vector<2x32xf32>
    %56 = arith.subf %55, %49 : vector<2x32xf32>
    %57 = arith.mulf %56, %54 : vector<2x32xf32>
    %58 = arith.mulf %49, %11 : vector<2x32xf32>
    %59 = arith.addf %57, %58 : vector<2x32xf32>
    %60 = tpu.concatenate %37, %59 in 1 : vector<2x32xf32>, vector<2x32xf32> -> vector<2x64xf32>
    %cst_16 = arith.constant dense<0.000000e+00> : vector<2x192xf32>
    %61 = tpu.matmul %60, %6, %cst_16 {dimension_numbers = #tpu.dot_dimension_numbers<[1], [0], [0], [1], [0, 0, 1, 1], [], []>} : vector<2x64xf32>, vector<64x192xf32>, vector<2x192xf32> -> vector<2x192xf32>
    %62 = vector.broadcast %7 : vector<1x192xf32> to vector<2x192xf32>
    %63 = arith.addf %61, %62 : vector<2x192xf32>
    %64 = vector.extract_strided_slice %8 {offsets = [2, 0], sizes = [2, 96], strides = [1, 1]} : vector<16x96xf32> to vector<2x96xf32>
    %65 = vector.extract_strided_slice %63 {offsets = [0, 0], sizes = [2, 96], strides = [1, 1]} : vector<2x192xf32> to vector<2x96xf32>
    %66 = vector.extract_strided_slice %64 {offsets = [0, 0], sizes = [2, 64], strides = [1, 1]} : vector<2x96xf32> to vector<2x64xf32>
    %67 = vector.extract_strided_slice %65 {offsets = [0, 0], sizes = [2, 64], strides = [1, 1]} : vector<2x96xf32> to vector<2x64xf32>
    %68 = arith.addf %66, %67 : vector<2x64xf32>
    %69 = arith.negf %68 : vector<2x64xf32>
    %70 = math.exp %69 : vector<2x64xf32>
    %cst_17 = arith.constant 1.000000e+00 : f32
    %71 = vector.broadcast %cst_17 : f32 to vector<2x64xf32>
    %72 = arith.addf %71, %70 : vector<2x64xf32>
    %73 = arith.divf %71, %72 : vector<2x64xf32>
    %74 = vector.extract_strided_slice %73 {offsets = [0, 0], sizes = [2, 32], strides = [1, 1]} : vector<2x64xf32> to vector<2x32xf32>
    %75 = vector.extract_strided_slice %73 {offsets = [0, 32], sizes = [2, 32], strides = [1, 1]} : vector<2x64xf32> to vector<2x32xf32>
    %76 = vector.extract_strided_slice %64 {offsets = [0, 64], sizes = [2, 32], strides = [1, 1]} : vector<2x96xf32> to vector<2x32xf32>
    %77 = vector.extract_strided_slice %65 {offsets = [0, 64], sizes = [2, 32], strides = [1, 1]} : vector<2x96xf32> to vector<2x32xf32>
    %78 = arith.mulf %74, %77 : vector<2x32xf32>
    %79 = arith.addf %76, %78 : vector<2x32xf32>
    %80 = math.tanh %79 : vector<2x32xf32>
    %cst_18 = arith.constant 1.000000e+00 : f32
    %81 = vector.broadcast %cst_18 : f32 to vector<2x32xf32>
    %82 = arith.subf %81, %75 : vector<2x32xf32>
    %83 = arith.mulf %82, %80 : vector<2x32xf32>
    %84 = arith.mulf %75, %37 : vector<2x32xf32>
    %85 = arith.addf %83, %84 : vector<2x32xf32>
    %86 = vector.extract_strided_slice %9 {offsets = [12, 0], sizes = [2, 96], strides = [1, 1]} : vector<16x96xf32> to vector<2x96xf32>
    %87 = vector.extract_strided_slice %63 {offsets = [0, 96], sizes = [2, 96], strides = [1, 1]} : vector<2x192xf32> to vector<2x96xf32>
    %88 = vector.extract_strided_slice %86 {offsets = [0, 0], sizes = [2, 64], strides = [1, 1]} : vector<2x96xf32> to vector<2x64xf32>
    %89 = vector.extract_strided_slice %87 {offsets = [0, 0], sizes = [2, 64], strides = [1, 1]} : vector<2x96xf32> to vector<2x64xf32>
    %90 = arith.addf %88, %89 : vector<2x64xf32>
    %91 = arith.negf %90 : vector<2x64xf32>
    %92 = math.exp %91 : vector<2x64xf32>
    %cst_19 = arith.constant 1.000000e+00 : f32
    %93 = vector.broadcast %cst_19 : f32 to vector<2x64xf32>
    %94 = arith.addf %93, %92 : vector<2x64xf32>
    %95 = arith.divf %93, %94 : vector<2x64xf32>
    %96 = vector.extract_strided_slice %95 {offsets = [0, 0], sizes = [2, 32], strides = [1, 1]} : vector<2x64xf32> to vector<2x32xf32>
    %97 = vector.extract_strided_slice %95 {offsets = [0, 32], sizes = [2, 32], strides = [1, 1]} : vector<2x64xf32> to vector<2x32xf32>
    %98 = vector.extract_strided_slice %86 {offsets = [0, 64], sizes = [2, 32], strides = [1, 1]} : vector<2x96xf32> to vector<2x32xf32>
    %99 = vector.extract_strided_slice %87 {offsets = [0, 64], sizes = [2, 32], strides = [1, 1]} : vector<2x96xf32> to vector<2x32xf32>
    %100 = arith.mulf %96, %99 : vector<2x32xf32>
    %101 = arith.addf %98, %100 : vector<2x32xf32>
    %102 = math.tanh %101 : vector<2x32xf32>
    %cst_20 = arith.constant 1.000000e+00 : f32
    %103 = vector.broadcast %cst_20 : f32 to vector<2x32xf32>
    %104 = arith.subf %103, %97 : vector<2x32xf32>
    %105 = arith.mulf %104, %102 : vector<2x32xf32>
    %106 = arith.mulf %97, %59 : vector<2x32xf32>
    %107 = arith.addf %105, %106 : vector<2x32xf32>
    %108 = tpu.concatenate %85, %107 in 1 : vector<2x32xf32>, vector<2x32xf32> -> vector<2x64xf32>
    %cst_21 = arith.constant dense<0.000000e+00> : vector<2x192xf32>
    %109 = tpu.matmul %108, %6, %cst_21 {dimension_numbers = #tpu.dot_dimension_numbers<[1], [0], [0], [1], [0, 0, 1, 1], [], []>} : vector<2x64xf32>, vector<64x192xf32>, vector<2x192xf32> -> vector<2x192xf32>
    %110 = vector.broadcast %7 : vector<1x192xf32> to vector<2x192xf32>
    %111 = arith.addf %109, %110 : vector<2x192xf32>
    %112 = vector.extract_strided_slice %8 {offsets = [4, 0], sizes = [2, 96], strides = [1, 1]} : vector<16x96xf32> to vector<2x96xf32>
    %113 = vector.extract_strided_slice %111 {offsets = [0, 0], sizes = [2, 96], strides = [1, 1]} : vector<2x192xf32> to vector<2x96xf32>
    %114 = vector.extract_strided_slice %112 {offsets = [0, 0], sizes = [2, 64], strides = [1, 1]} : vector<2x96xf32> to vector<2x64xf32>
    %115 = vector.extract_strided_slice %113 {offsets = [0, 0], sizes = [2, 64], strides = [1, 1]} : vector<2x96xf32> to vector<2x64xf32>
    %116 = arith.addf %114, %115 : vector<2x64xf32>
    %117 = arith.negf %116 : vector<2x64xf32>
    %118 = math.exp %117 : vector<2x64xf32>
    %cst_22 = arith.constant 1.000000e+00 : f32
    %119 = vector.broadcast %cst_22 : f32 to vector<2x64xf32>
    %120 = arith.addf %119, %118 : vector<2x64xf32>
    %121 = arith.divf %119, %120 : vector<2x64xf32>
    %122 = vector.extract_strided_slice %121 {offsets = [0, 0], sizes = [2, 32], strides = [1, 1]} : vector<2x64xf32> to vector<2x32xf32>
    %123 = vector.extract_strided_slice %121 {offsets = [0, 32], sizes = [2, 32], strides = [1, 1]} : vector<2x64xf32> to vector<2x32xf32>
    %124 = vector.extract_strided_slice %112 {offsets = [0, 64], sizes = [2, 32], strides = [1, 1]} : vector<2x96xf32> to vector<2x32xf32>
    %125 = vector.extract_strided_slice %113 {offsets = [0, 64], sizes = [2, 32], strides = [1, 1]} : vector<2x96xf32> to vector<2x32xf32>
    %126 = arith.mulf %122, %125 : vector<2x32xf32>
    %127 = arith.addf %124, %126 : vector<2x32xf32>
    %128 = math.tanh %127 : vector<2x32xf32>
    %cst_23 = arith.constant 1.000000e+00 : f32
    %129 = vector.broadcast %cst_23 : f32 to vector<2x32xf32>
    %130 = arith.subf %129, %123 : vector<2x32xf32>
    %131 = arith.mulf %130, %128 : vector<2x32xf32>
    %132 = arith.mulf %123, %85 : vector<2x32xf32>
    %133 = arith.addf %131, %132 : vector<2x32xf32>
    %134 = vector.extract_strided_slice %9 {offsets = [10, 0], sizes = [2, 96], strides = [1, 1]} : vector<16x96xf32> to vector<2x96xf32>
    %135 = vector.extract_strided_slice %111 {offsets = [0, 96], sizes = [2, 96], strides = [1, 1]} : vector<2x192xf32> to vector<2x96xf32>
    %136 = vector.extract_strided_slice %134 {offsets = [0, 0], sizes = [2, 64], strides = [1, 1]} : vector<2x96xf32> to vector<2x64xf32>
    %137 = vector.extract_strided_slice %135 {offsets = [0, 0], sizes = [2, 64], strides = [1, 1]} : vector<2x96xf32> to vector<2x64xf32>
    %138 = arith.addf %136, %137 : vector<2x64xf32>
    %139 = arith.negf %138 : vector<2x64xf32>
    %140 = math.exp %139 : vector<2x64xf32>
    %cst_24 = arith.constant 1.000000e+00 : f32
    %141 = vector.broadcast %cst_24 : f32 to vector<2x64xf32>
    %142 = arith.addf %141, %140 : vector<2x64xf32>
    %143 = arith.divf %141, %142 : vector<2x64xf32>
    %144 = vector.extract_strided_slice %143 {offsets = [0, 0], sizes = [2, 32], strides = [1, 1]} : vector<2x64xf32> to vector<2x32xf32>
    %145 = vector.extract_strided_slice %143 {offsets = [0, 32], sizes = [2, 32], strides = [1, 1]} : vector<2x64xf32> to vector<2x32xf32>
    %146 = vector.extract_strided_slice %134 {offsets = [0, 64], sizes = [2, 32], strides = [1, 1]} : vector<2x96xf32> to vector<2x32xf32>
    %147 = vector.extract_strided_slice %135 {offsets = [0, 64], sizes = [2, 32], strides = [1, 1]} : vector<2x96xf32> to vector<2x32xf32>
    %148 = arith.mulf %144, %147 : vector<2x32xf32>
    %149 = arith.addf %146, %148 : vector<2x32xf32>
    %150 = math.tanh %149 : vector<2x32xf32>
    %cst_25 = arith.constant 1.000000e+00 : f32
    %151 = vector.broadcast %cst_25 : f32 to vector<2x32xf32>
    %152 = arith.subf %151, %145 : vector<2x32xf32>
    %153 = arith.mulf %152, %150 : vector<2x32xf32>
    %154 = arith.mulf %145, %107 : vector<2x32xf32>
    %155 = arith.addf %153, %154 : vector<2x32xf32>
    %156 = tpu.concatenate %133, %155 in 1 : vector<2x32xf32>, vector<2x32xf32> -> vector<2x64xf32>
    %cst_26 = arith.constant dense<0.000000e+00> : vector<2x192xf32>
    %157 = tpu.matmul %156, %6, %cst_26 {dimension_numbers = #tpu.dot_dimension_numbers<[1], [0], [0], [1], [0, 0, 1, 1], [], []>} : vector<2x64xf32>, vector<64x192xf32>, vector<2x192xf32> -> vector<2x192xf32>
    %158 = vector.broadcast %7 : vector<1x192xf32> to vector<2x192xf32>
    %159 = arith.addf %157, %158 : vector<2x192xf32>
    %160 = vector.extract_strided_slice %8 {offsets = [6, 0], sizes = [2, 96], strides = [1, 1]} : vector<16x96xf32> to vector<2x96xf32>
    %161 = vector.extract_strided_slice %159 {offsets = [0, 0], sizes = [2, 96], strides = [1, 1]} : vector<2x192xf32> to vector<2x96xf32>
    %162 = vector.extract_strided_slice %160 {offsets = [0, 0], sizes = [2, 64], strides = [1, 1]} : vector<2x96xf32> to vector<2x64xf32>
    %163 = vector.extract_strided_slice %161 {offsets = [0, 0], sizes = [2, 64], strides = [1, 1]} : vector<2x96xf32> to vector<2x64xf32>
    %164 = arith.addf %162, %163 : vector<2x64xf32>
    %165 = arith.negf %164 : vector<2x64xf32>
    %166 = math.exp %165 : vector<2x64xf32>
    %cst_27 = arith.constant 1.000000e+00 : f32
    %167 = vector.broadcast %cst_27 : f32 to vector<2x64xf32>
    %168 = arith.addf %167, %166 : vector<2x64xf32>
    %169 = arith.divf %167, %168 : vector<2x64xf32>
    %170 = vector.extract_strided_slice %169 {offsets = [0, 0], sizes = [2, 32], strides = [1, 1]} : vector<2x64xf32> to vector<2x32xf32>
    %171 = vector.extract_strided_slice %169 {offsets = [0, 32], sizes = [2, 32], strides = [1, 1]} : vector<2x64xf32> to vector<2x32xf32>
    %172 = vector.extract_strided_slice %160 {offsets = [0, 64], sizes = [2, 32], strides = [1, 1]} : vector<2x96xf32> to vector<2x32xf32>
    %173 = vector.extract_strided_slice %161 {offsets = [0, 64], sizes = [2, 32], strides = [1, 1]} : vector<2x96xf32> to vector<2x32xf32>
    %174 = arith.mulf %170, %173 : vector<2x32xf32>
    %175 = arith.addf %172, %174 : vector<2x32xf32>
    %176 = math.tanh %175 : vector<2x32xf32>
    %cst_28 = arith.constant 1.000000e+00 : f32
    %177 = vector.broadcast %cst_28 : f32 to vector<2x32xf32>
    %178 = arith.subf %177, %171 : vector<2x32xf32>
    %179 = arith.mulf %178, %176 : vector<2x32xf32>
    %180 = arith.mulf %171, %133 : vector<2x32xf32>
    %181 = arith.addf %179, %180 : vector<2x32xf32>
    %182 = vector.extract_strided_slice %9 {offsets = [8, 0], sizes = [2, 96], strides = [1, 1]} : vector<16x96xf32> to vector<2x96xf32>
    %183 = vector.extract_strided_slice %159 {offsets = [0, 96], sizes = [2, 96], strides = [1, 1]} : vector<2x192xf32> to vector<2x96xf32>
    %184 = vector.extract_strided_slice %182 {offsets = [0, 0], sizes = [2, 64], strides = [1, 1]} : vector<2x96xf32> to vector<2x64xf32>
    %185 = vector.extract_strided_slice %183 {offsets = [0, 0], sizes = [2, 64], strides = [1, 1]} : vector<2x96xf32> to vector<2x64xf32>
    %186 = arith.addf %184, %185 : vector<2x64xf32>
    %187 = arith.negf %186 : vector<2x64xf32>
    %188 = math.exp %187 : vector<2x64xf32>
    %cst_29 = arith.constant 1.000000e+00 : f32
    %189 = vector.broadcast %cst_29 : f32 to vector<2x64xf32>
    %190 = arith.addf %189, %188 : vector<2x64xf32>
    %191 = arith.divf %189, %190 : vector<2x64xf32>
    %192 = vector.extract_strided_slice %191 {offsets = [0, 0], sizes = [2, 32], strides = [1, 1]} : vector<2x64xf32> to vector<2x32xf32>
    %193 = vector.extract_strided_slice %191 {offsets = [0, 32], sizes = [2, 32], strides = [1, 1]} : vector<2x64xf32> to vector<2x32xf32>
    %194 = vector.extract_strided_slice %182 {offsets = [0, 64], sizes = [2, 32], strides = [1, 1]} : vector<2x96xf32> to vector<2x32xf32>
    %195 = vector.extract_strided_slice %183 {offsets = [0, 64], sizes = [2, 32], strides = [1, 1]} : vector<2x96xf32> to vector<2x32xf32>
    %196 = arith.mulf %192, %195 : vector<2x32xf32>
    %197 = arith.addf %194, %196 : vector<2x32xf32>
    %198 = math.tanh %197 : vector<2x32xf32>
    %cst_30 = arith.constant 1.000000e+00 : f32
    %199 = vector.broadcast %cst_30 : f32 to vector<2x32xf32>
    %200 = arith.subf %199, %193 : vector<2x32xf32>
    %201 = arith.mulf %200, %198 : vector<2x32xf32>
    %202 = arith.mulf %193, %155 : vector<2x32xf32>
    %203 = arith.addf %201, %202 : vector<2x32xf32>
    %204 = tpu.concatenate %181, %203 in 1 : vector<2x32xf32>, vector<2x32xf32> -> vector<2x64xf32>
    %cst_31 = arith.constant dense<0.000000e+00> : vector<2x192xf32>
    %205 = tpu.matmul %204, %6, %cst_31 {dimension_numbers = #tpu.dot_dimension_numbers<[1], [0], [0], [1], [0, 0, 1, 1], [], []>} : vector<2x64xf32>, vector<64x192xf32>, vector<2x192xf32> -> vector<2x192xf32>
    %206 = vector.broadcast %7 : vector<1x192xf32> to vector<2x192xf32>
    %207 = arith.addf %205, %206 : vector<2x192xf32>
    %208 = vector.extract_strided_slice %8 {offsets = [8, 0], sizes = [2, 96], strides = [1, 1]} : vector<16x96xf32> to vector<2x96xf32>
    %209 = vector.extract_strided_slice %207 {offsets = [0, 0], sizes = [2, 96], strides = [1, 1]} : vector<2x192xf32> to vector<2x96xf32>
    %210 = vector.extract_strided_slice %208 {offsets = [0, 0], sizes = [2, 64], strides = [1, 1]} : vector<2x96xf32> to vector<2x64xf32>
    %211 = vector.extract_strided_slice %209 {offsets = [0, 0], sizes = [2, 64], strides = [1, 1]} : vector<2x96xf32> to vector<2x64xf32>
    %212 = arith.addf %210, %211 : vector<2x64xf32>
    %213 = arith.negf %212 : vector<2x64xf32>
    %214 = math.exp %213 : vector<2x64xf32>
    %cst_32 = arith.constant 1.000000e+00 : f32
    %215 = vector.broadcast %cst_32 : f32 to vector<2x64xf32>
    %216 = arith.addf %215, %214 : vector<2x64xf32>
    %217 = arith.divf %215, %216 : vector<2x64xf32>
    %218 = vector.extract_strided_slice %217 {offsets = [0, 0], sizes = [2, 32], strides = [1, 1]} : vector<2x64xf32> to vector<2x32xf32>
    %219 = vector.extract_strided_slice %217 {offsets = [0, 32], sizes = [2, 32], strides = [1, 1]} : vector<2x64xf32> to vector<2x32xf32>
    %220 = vector.extract_strided_slice %208 {offsets = [0, 64], sizes = [2, 32], strides = [1, 1]} : vector<2x96xf32> to vector<2x32xf32>
    %221 = vector.extract_strided_slice %209 {offsets = [0, 64], sizes = [2, 32], strides = [1, 1]} : vector<2x96xf32> to vector<2x32xf32>
    %222 = arith.mulf %218, %221 : vector<2x32xf32>
    %223 = arith.addf %220, %222 : vector<2x32xf32>
    %224 = math.tanh %223 : vector<2x32xf32>
    %cst_33 = arith.constant 1.000000e+00 : f32
    %225 = vector.broadcast %cst_33 : f32 to vector<2x32xf32>
    %226 = arith.subf %225, %219 : vector<2x32xf32>
    %227 = arith.mulf %226, %224 : vector<2x32xf32>
    %228 = arith.mulf %219, %181 : vector<2x32xf32>
    %229 = arith.addf %227, %228 : vector<2x32xf32>
    %230 = vector.extract_strided_slice %9 {offsets = [6, 0], sizes = [2, 96], strides = [1, 1]} : vector<16x96xf32> to vector<2x96xf32>
    %231 = vector.extract_strided_slice %207 {offsets = [0, 96], sizes = [2, 96], strides = [1, 1]} : vector<2x192xf32> to vector<2x96xf32>
    %232 = vector.extract_strided_slice %230 {offsets = [0, 0], sizes = [2, 64], strides = [1, 1]} : vector<2x96xf32> to vector<2x64xf32>
    %233 = vector.extract_strided_slice %231 {offsets = [0, 0], sizes = [2, 64], strides = [1, 1]} : vector<2x96xf32> to vector<2x64xf32>
    %234 = arith.addf %232, %233 : vector<2x64xf32>
    %235 = arith.negf %234 : vector<2x64xf32>
    %236 = math.exp %235 : vector<2x64xf32>
    %cst_34 = arith.constant 1.000000e+00 : f32
    %237 = vector.broadcast %cst_34 : f32 to vector<2x64xf32>
    %238 = arith.addf %237, %236 : vector<2x64xf32>
    %239 = arith.divf %237, %238 : vector<2x64xf32>
    %240 = vector.extract_strided_slice %239 {offsets = [0, 0], sizes = [2, 32], strides = [1, 1]} : vector<2x64xf32> to vector<2x32xf32>
    %241 = vector.extract_strided_slice %239 {offsets = [0, 32], sizes = [2, 32], strides = [1, 1]} : vector<2x64xf32> to vector<2x32xf32>
    %242 = vector.extract_strided_slice %230 {offsets = [0, 64], sizes = [2, 32], strides = [1, 1]} : vector<2x96xf32> to vector<2x32xf32>
    %243 = vector.extract_strided_slice %231 {offsets = [0, 64], sizes = [2, 32], strides = [1, 1]} : vector<2x96xf32> to vector<2x32xf32>
    %244 = arith.mulf %240, %243 : vector<2x32xf32>
    %245 = arith.addf %242, %244 : vector<2x32xf32>
    %246 = math.tanh %245 : vector<2x32xf32>
    %cst_35 = arith.constant 1.000000e+00 : f32
    %247 = vector.broadcast %cst_35 : f32 to vector<2x32xf32>
    %248 = arith.subf %247, %241 : vector<2x32xf32>
    %249 = arith.mulf %248, %246 : vector<2x32xf32>
    %250 = arith.mulf %241, %203 : vector<2x32xf32>
    %251 = arith.addf %249, %250 : vector<2x32xf32>
    %252 = tpu.concatenate %229, %251 in 1 : vector<2x32xf32>, vector<2x32xf32> -> vector<2x64xf32>
    %cst_36 = arith.constant dense<0.000000e+00> : vector<2x192xf32>
    %253 = tpu.matmul %252, %6, %cst_36 {dimension_numbers = #tpu.dot_dimension_numbers<[1], [0], [0], [1], [0, 0, 1, 1], [], []>} : vector<2x64xf32>, vector<64x192xf32>, vector<2x192xf32> -> vector<2x192xf32>
    %254 = vector.broadcast %7 : vector<1x192xf32> to vector<2x192xf32>
    %255 = arith.addf %253, %254 : vector<2x192xf32>
    %256 = vector.extract_strided_slice %8 {offsets = [10, 0], sizes = [2, 96], strides = [1, 1]} : vector<16x96xf32> to vector<2x96xf32>
    %257 = vector.extract_strided_slice %255 {offsets = [0, 0], sizes = [2, 96], strides = [1, 1]} : vector<2x192xf32> to vector<2x96xf32>
    %258 = vector.extract_strided_slice %256 {offsets = [0, 0], sizes = [2, 64], strides = [1, 1]} : vector<2x96xf32> to vector<2x64xf32>
    %259 = vector.extract_strided_slice %257 {offsets = [0, 0], sizes = [2, 64], strides = [1, 1]} : vector<2x96xf32> to vector<2x64xf32>
    %260 = arith.addf %258, %259 : vector<2x64xf32>
    %261 = arith.negf %260 : vector<2x64xf32>
    %262 = math.exp %261 : vector<2x64xf32>
    %cst_37 = arith.constant 1.000000e+00 : f32
    %263 = vector.broadcast %cst_37 : f32 to vector<2x64xf32>
    %264 = arith.addf %263, %262 : vector<2x64xf32>
    %265 = arith.divf %263, %264 : vector<2x64xf32>
    %266 = vector.extract_strided_slice %265 {offsets = [0, 0], sizes = [2, 32], strides = [1, 1]} : vector<2x64xf32> to vector<2x32xf32>
    %267 = vector.extract_strided_slice %265 {offsets = [0, 32], sizes = [2, 32], strides = [1, 1]} : vector<2x64xf32> to vector<2x32xf32>
    %268 = vector.extract_strided_slice %256 {offsets = [0, 64], sizes = [2, 32], strides = [1, 1]} : vector<2x96xf32> to vector<2x32xf32>
    %269 = vector.extract_strided_slice %257 {offsets = [0, 64], sizes = [2, 32], strides = [1, 1]} : vector<2x96xf32> to vector<2x32xf32>
    %270 = arith.mulf %266, %269 : vector<2x32xf32>
    %271 = arith.addf %268, %270 : vector<2x32xf32>
    %272 = math.tanh %271 : vector<2x32xf32>
    %cst_38 = arith.constant 1.000000e+00 : f32
    %273 = vector.broadcast %cst_38 : f32 to vector<2x32xf32>
    %274 = arith.subf %273, %267 : vector<2x32xf32>
    %275 = arith.mulf %274, %272 : vector<2x32xf32>
    %276 = arith.mulf %267, %229 : vector<2x32xf32>
    %277 = arith.addf %275, %276 : vector<2x32xf32>
    %278 = vector.extract_strided_slice %9 {offsets = [4, 0], sizes = [2, 96], strides = [1, 1]} : vector<16x96xf32> to vector<2x96xf32>
    %279 = vector.extract_strided_slice %255 {offsets = [0, 96], sizes = [2, 96], strides = [1, 1]} : vector<2x192xf32> to vector<2x96xf32>
    %280 = vector.extract_strided_slice %278 {offsets = [0, 0], sizes = [2, 64], strides = [1, 1]} : vector<2x96xf32> to vector<2x64xf32>
    %281 = vector.extract_strided_slice %279 {offsets = [0, 0], sizes = [2, 64], strides = [1, 1]} : vector<2x96xf32> to vector<2x64xf32>
    %282 = arith.addf %280, %281 : vector<2x64xf32>
    %283 = arith.negf %282 : vector<2x64xf32>
    %284 = math.exp %283 : vector<2x64xf32>
    %cst_39 = arith.constant 1.000000e+00 : f32
    %285 = vector.broadcast %cst_39 : f32 to vector<2x64xf32>
    %286 = arith.addf %285, %284 : vector<2x64xf32>
    %287 = arith.divf %285, %286 : vector<2x64xf32>
    %288 = vector.extract_strided_slice %287 {offsets = [0, 0], sizes = [2, 32], strides = [1, 1]} : vector<2x64xf32> to vector<2x32xf32>
    %289 = vector.extract_strided_slice %287 {offsets = [0, 32], sizes = [2, 32], strides = [1, 1]} : vector<2x64xf32> to vector<2x32xf32>
    %290 = vector.extract_strided_slice %278 {offsets = [0, 64], sizes = [2, 32], strides = [1, 1]} : vector<2x96xf32> to vector<2x32xf32>
    %291 = vector.extract_strided_slice %279 {offsets = [0, 64], sizes = [2, 32], strides = [1, 1]} : vector<2x96xf32> to vector<2x32xf32>
    %292 = arith.mulf %288, %291 : vector<2x32xf32>
    %293 = arith.addf %290, %292 : vector<2x32xf32>
    %294 = math.tanh %293 : vector<2x32xf32>
    %cst_40 = arith.constant 1.000000e+00 : f32
    %295 = vector.broadcast %cst_40 : f32 to vector<2x32xf32>
    %296 = arith.subf %295, %289 : vector<2x32xf32>
    %297 = arith.mulf %296, %294 : vector<2x32xf32>
    %298 = arith.mulf %289, %251 : vector<2x32xf32>
    %299 = arith.addf %297, %298 : vector<2x32xf32>
    %300 = tpu.concatenate %277, %299 in 1 : vector<2x32xf32>, vector<2x32xf32> -> vector<2x64xf32>
    %cst_41 = arith.constant dense<0.000000e+00> : vector<2x192xf32>
    %301 = tpu.matmul %300, %6, %cst_41 {dimension_numbers = #tpu.dot_dimension_numbers<[1], [0], [0], [1], [0, 0, 1, 1], [], []>} : vector<2x64xf32>, vector<64x192xf32>, vector<2x192xf32> -> vector<2x192xf32>
    %302 = vector.broadcast %7 : vector<1x192xf32> to vector<2x192xf32>
    %303 = arith.addf %301, %302 : vector<2x192xf32>
    %304 = vector.extract_strided_slice %8 {offsets = [12, 0], sizes = [2, 96], strides = [1, 1]} : vector<16x96xf32> to vector<2x96xf32>
    %305 = vector.extract_strided_slice %303 {offsets = [0, 0], sizes = [2, 96], strides = [1, 1]} : vector<2x192xf32> to vector<2x96xf32>
    %306 = vector.extract_strided_slice %304 {offsets = [0, 0], sizes = [2, 64], strides = [1, 1]} : vector<2x96xf32> to vector<2x64xf32>
    %307 = vector.extract_strided_slice %305 {offsets = [0, 0], sizes = [2, 64], strides = [1, 1]} : vector<2x96xf32> to vector<2x64xf32>
    %308 = arith.addf %306, %307 : vector<2x64xf32>
    %309 = arith.negf %308 : vector<2x64xf32>
    %310 = math.exp %309 : vector<2x64xf32>
    %cst_42 = arith.constant 1.000000e+00 : f32
    %311 = vector.broadcast %cst_42 : f32 to vector<2x64xf32>
    %312 = arith.addf %311, %310 : vector<2x64xf32>
    %313 = arith.divf %311, %312 : vector<2x64xf32>
    %314 = vector.extract_strided_slice %313 {offsets = [0, 0], sizes = [2, 32], strides = [1, 1]} : vector<2x64xf32> to vector<2x32xf32>
    %315 = vector.extract_strided_slice %313 {offsets = [0, 32], sizes = [2, 32], strides = [1, 1]} : vector<2x64xf32> to vector<2x32xf32>
    %316 = vector.extract_strided_slice %304 {offsets = [0, 64], sizes = [2, 32], strides = [1, 1]} : vector<2x96xf32> to vector<2x32xf32>
    %317 = vector.extract_strided_slice %305 {offsets = [0, 64], sizes = [2, 32], strides = [1, 1]} : vector<2x96xf32> to vector<2x32xf32>
    %318 = arith.mulf %314, %317 : vector<2x32xf32>
    %319 = arith.addf %316, %318 : vector<2x32xf32>
    %320 = math.tanh %319 : vector<2x32xf32>
    %cst_43 = arith.constant 1.000000e+00 : f32
    %321 = vector.broadcast %cst_43 : f32 to vector<2x32xf32>
    %322 = arith.subf %321, %315 : vector<2x32xf32>
    %323 = arith.mulf %322, %320 : vector<2x32xf32>
    %324 = arith.mulf %315, %277 : vector<2x32xf32>
    %325 = arith.addf %323, %324 : vector<2x32xf32>
    %326 = vector.extract_strided_slice %9 {offsets = [2, 0], sizes = [2, 96], strides = [1, 1]} : vector<16x96xf32> to vector<2x96xf32>
    %327 = vector.extract_strided_slice %303 {offsets = [0, 96], sizes = [2, 96], strides = [1, 1]} : vector<2x192xf32> to vector<2x96xf32>
    %328 = vector.extract_strided_slice %326 {offsets = [0, 0], sizes = [2, 64], strides = [1, 1]} : vector<2x96xf32> to vector<2x64xf32>
    %329 = vector.extract_strided_slice %327 {offsets = [0, 0], sizes = [2, 64], strides = [1, 1]} : vector<2x96xf32> to vector<2x64xf32>
    %330 = arith.addf %328, %329 : vector<2x64xf32>
    %331 = arith.negf %330 : vector<2x64xf32>
    %332 = math.exp %331 : vector<2x64xf32>
    %cst_44 = arith.constant 1.000000e+00 : f32
    %333 = vector.broadcast %cst_44 : f32 to vector<2x64xf32>
    %334 = arith.addf %333, %332 : vector<2x64xf32>
    %335 = arith.divf %333, %334 : vector<2x64xf32>
    %336 = vector.extract_strided_slice %335 {offsets = [0, 0], sizes = [2, 32], strides = [1, 1]} : vector<2x64xf32> to vector<2x32xf32>
    %337 = vector.extract_strided_slice %335 {offsets = [0, 32], sizes = [2, 32], strides = [1, 1]} : vector<2x64xf32> to vector<2x32xf32>
    %338 = vector.extract_strided_slice %326 {offsets = [0, 64], sizes = [2, 32], strides = [1, 1]} : vector<2x96xf32> to vector<2x32xf32>
    %339 = vector.extract_strided_slice %327 {offsets = [0, 64], sizes = [2, 32], strides = [1, 1]} : vector<2x96xf32> to vector<2x32xf32>
    %340 = arith.mulf %336, %339 : vector<2x32xf32>
    %341 = arith.addf %338, %340 : vector<2x32xf32>
    %342 = math.tanh %341 : vector<2x32xf32>
    %cst_45 = arith.constant 1.000000e+00 : f32
    %343 = vector.broadcast %cst_45 : f32 to vector<2x32xf32>
    %344 = arith.subf %343, %337 : vector<2x32xf32>
    %345 = arith.mulf %344, %342 : vector<2x32xf32>
    %346 = arith.mulf %337, %299 : vector<2x32xf32>
    %347 = arith.addf %345, %346 : vector<2x32xf32>
    %348 = tpu.concatenate %325, %347 in 1 : vector<2x32xf32>, vector<2x32xf32> -> vector<2x64xf32>
    %cst_46 = arith.constant dense<0.000000e+00> : vector<2x192xf32>
    %349 = tpu.matmul %348, %6, %cst_46 {dimension_numbers = #tpu.dot_dimension_numbers<[1], [0], [0], [1], [0, 0, 1, 1], [], []>} : vector<2x64xf32>, vector<64x192xf32>, vector<2x192xf32> -> vector<2x192xf32>
    %350 = vector.broadcast %7 : vector<1x192xf32> to vector<2x192xf32>
    %351 = arith.addf %349, %350 : vector<2x192xf32>
    %352 = vector.extract_strided_slice %8 {offsets = [14, 0], sizes = [2, 96], strides = [1, 1]} : vector<16x96xf32> to vector<2x96xf32>
    %353 = vector.extract_strided_slice %351 {offsets = [0, 0], sizes = [2, 96], strides = [1, 1]} : vector<2x192xf32> to vector<2x96xf32>
    %354 = vector.extract_strided_slice %352 {offsets = [0, 0], sizes = [2, 64], strides = [1, 1]} : vector<2x96xf32> to vector<2x64xf32>
    %355 = vector.extract_strided_slice %353 {offsets = [0, 0], sizes = [2, 64], strides = [1, 1]} : vector<2x96xf32> to vector<2x64xf32>
    %356 = arith.addf %354, %355 : vector<2x64xf32>
    %357 = arith.negf %356 : vector<2x64xf32>
    %358 = math.exp %357 : vector<2x64xf32>
    %cst_47 = arith.constant 1.000000e+00 : f32
    %359 = vector.broadcast %cst_47 : f32 to vector<2x64xf32>
    %360 = arith.addf %359, %358 : vector<2x64xf32>
    %361 = arith.divf %359, %360 : vector<2x64xf32>
    %362 = vector.extract_strided_slice %361 {offsets = [0, 0], sizes = [2, 32], strides = [1, 1]} : vector<2x64xf32> to vector<2x32xf32>
    %363 = vector.extract_strided_slice %361 {offsets = [0, 32], sizes = [2, 32], strides = [1, 1]} : vector<2x64xf32> to vector<2x32xf32>
    %364 = vector.extract_strided_slice %352 {offsets = [0, 64], sizes = [2, 32], strides = [1, 1]} : vector<2x96xf32> to vector<2x32xf32>
    %365 = vector.extract_strided_slice %353 {offsets = [0, 64], sizes = [2, 32], strides = [1, 1]} : vector<2x96xf32> to vector<2x32xf32>
    %366 = arith.mulf %362, %365 : vector<2x32xf32>
    %367 = arith.addf %364, %366 : vector<2x32xf32>
    %368 = math.tanh %367 : vector<2x32xf32>
    %cst_48 = arith.constant 1.000000e+00 : f32
    %369 = vector.broadcast %cst_48 : f32 to vector<2x32xf32>
    %370 = arith.subf %369, %363 : vector<2x32xf32>
    %371 = arith.mulf %370, %368 : vector<2x32xf32>
    %372 = arith.mulf %363, %325 : vector<2x32xf32>
    %373 = arith.addf %371, %372 : vector<2x32xf32>
    %374 = vector.extract_strided_slice %9 {offsets = [0, 0], sizes = [2, 96], strides = [1, 1]} : vector<16x96xf32> to vector<2x96xf32>
    %375 = vector.extract_strided_slice %351 {offsets = [0, 96], sizes = [2, 96], strides = [1, 1]} : vector<2x192xf32> to vector<2x96xf32>
    %376 = vector.extract_strided_slice %374 {offsets = [0, 0], sizes = [2, 64], strides = [1, 1]} : vector<2x96xf32> to vector<2x64xf32>
    %377 = vector.extract_strided_slice %375 {offsets = [0, 0], sizes = [2, 64], strides = [1, 1]} : vector<2x96xf32> to vector<2x64xf32>
    %378 = arith.addf %376, %377 : vector<2x64xf32>
    %379 = arith.negf %378 : vector<2x64xf32>
    %380 = math.exp %379 : vector<2x64xf32>
    %cst_49 = arith.constant 1.000000e+00 : f32
    %381 = vector.broadcast %cst_49 : f32 to vector<2x64xf32>
    %382 = arith.addf %381, %380 : vector<2x64xf32>
    %383 = arith.divf %381, %382 : vector<2x64xf32>
    %384 = vector.extract_strided_slice %383 {offsets = [0, 0], sizes = [2, 32], strides = [1, 1]} : vector<2x64xf32> to vector<2x32xf32>
    %385 = vector.extract_strided_slice %383 {offsets = [0, 32], sizes = [2, 32], strides = [1, 1]} : vector<2x64xf32> to vector<2x32xf32>
    %386 = vector.extract_strided_slice %374 {offsets = [0, 64], sizes = [2, 32], strides = [1, 1]} : vector<2x96xf32> to vector<2x32xf32>
    %387 = vector.extract_strided_slice %375 {offsets = [0, 64], sizes = [2, 32], strides = [1, 1]} : vector<2x96xf32> to vector<2x32xf32>
    %388 = arith.mulf %384, %387 : vector<2x32xf32>
    %389 = arith.addf %386, %388 : vector<2x32xf32>
    %390 = math.tanh %389 : vector<2x32xf32>
    %cst_50 = arith.constant 1.000000e+00 : f32
    %391 = vector.broadcast %cst_50 : f32 to vector<2x32xf32>
    %392 = arith.subf %391, %385 : vector<2x32xf32>
    %393 = arith.mulf %392, %390 : vector<2x32xf32>
    %394 = arith.mulf %385, %347 : vector<2x32xf32>
    %395 = arith.addf %393, %394 : vector<2x32xf32>
    %396 = tpu.concatenate %37, %395 in 1 : vector<2x32xf32>, vector<2x32xf32> -> vector<2x64xf32>
    %397 = tpu.concatenate %85, %347 in 1 : vector<2x32xf32>, vector<2x32xf32> -> vector<2x64xf32>
    %398 = tpu.concatenate %133, %299 in 1 : vector<2x32xf32>, vector<2x32xf32> -> vector<2x64xf32>
    %399 = tpu.concatenate %181, %251 in 1 : vector<2x32xf32>, vector<2x32xf32> -> vector<2x64xf32>
    %400 = tpu.concatenate %229, %203 in 1 : vector<2x32xf32>, vector<2x32xf32> -> vector<2x64xf32>
    %401 = tpu.concatenate %277, %155 in 1 : vector<2x32xf32>, vector<2x32xf32> -> vector<2x64xf32>
    %402 = tpu.concatenate %325, %107 in 1 : vector<2x32xf32>, vector<2x32xf32> -> vector<2x64xf32>
    %403 = tpu.concatenate %373, %59 in 1 : vector<2x32xf32>, vector<2x32xf32> -> vector<2x64xf32>
    %404 = tpu.concatenate %396, %397, %398, %399, %400, %401, %402, %403 in 0 : vector<2x64xf32>, vector<2x64xf32>, vector<2x64xf32>, vector<2x64xf32>, vector<2x64xf32>, vector<2x64xf32>, vector<2x64xf32>, vector<2x64xf32> -> vector<16x64xf32>
    %c0_51 = arith.constant 0 : index
    %c0_52 = arith.constant 0 : index
    %405 = vector.load %arg5[%c0_51, %c0_52] : memref<64x192xf32, #tpu.memory_space<vmem>>, vector<64x192xf32>
    %cst_53 = arith.constant dense<0.000000e+00> : vector<16x192xf32>
    %406 = tpu.matmul %404, %405, %cst_53 {dimension_numbers = #tpu.dot_dimension_numbers<[1], [0], [0], [1], [0, 0, 1, 1], [], []>} : vector<16x64xf32>, vector<64x192xf32>, vector<16x192xf32> -> vector<16x192xf32>
    %c0_54 = arith.constant 0 : index
    %c0_55 = arith.constant 0 : index
    %407 = vector.load %arg6[%c0_54, %c0_55] : memref<1x192xf32, #tpu.memory_space<vmem>>, vector<1x192xf32>
    %408 = vector.broadcast %407 : vector<1x192xf32> to vector<16x192xf32>
    %409 = arith.addf %406, %408 : vector<16x192xf32>
    %c0_56 = arith.constant 0 : index
    %c0_57 = arith.constant 0 : index
    %410 = vector.load %arg7[%c0_56, %c0_57] : memref<64x192xf32, #tpu.memory_space<vmem>>, vector<64x192xf32>
    %c0_58 = arith.constant 0 : index
    %c0_59 = arith.constant 0 : index
    %411 = vector.load %arg8[%c0_58, %c0_59] : memref<1x192xf32, #tpu.memory_space<vmem>>, vector<1x192xf32>
    %412 = vector.extract_strided_slice %409 {offsets = [0, 0], sizes = [16, 96], strides = [1, 1]} : vector<16x192xf32> to vector<16x96xf32>
    %413 = vector.extract_strided_slice %409 {offsets = [0, 96], sizes = [16, 96], strides = [1, 1]} : vector<16x192xf32> to vector<16x96xf32>
    %cst_60 = arith.constant 0.000000e+00 : f32
    %414 = vector.broadcast %cst_60 : f32 to vector<2x32xf32>
    %cst_61 = arith.constant 0.000000e+00 : f32
    %415 = vector.broadcast %cst_61 : f32 to vector<2x32xf32>
    %416 = tpu.concatenate %414, %415 in 1 : vector<2x32xf32>, vector<2x32xf32> -> vector<2x64xf32>
    %cst_62 = arith.constant dense<0.000000e+00> : vector<2x192xf32>
    %417 = tpu.matmul %416, %410, %cst_62 {dimension_numbers = #tpu.dot_dimension_numbers<[1], [0], [0], [1], [0, 0, 1, 1], [], []>} : vector<2x64xf32>, vector<64x192xf32>, vector<2x192xf32> -> vector<2x192xf32>
    %418 = vector.broadcast %411 : vector<1x192xf32> to vector<2x192xf32>
    %419 = arith.addf %417, %418 : vector<2x192xf32>
    %420 = vector.extract_strided_slice %412 {offsets = [0, 0], sizes = [2, 96], strides = [1, 1]} : vector<16x96xf32> to vector<2x96xf32>
    %421 = vector.extract_strided_slice %419 {offsets = [0, 0], sizes = [2, 96], strides = [1, 1]} : vector<2x192xf32> to vector<2x96xf32>
    %422 = vector.extract_strided_slice %420 {offsets = [0, 0], sizes = [2, 64], strides = [1, 1]} : vector<2x96xf32> to vector<2x64xf32>
    %423 = vector.extract_strided_slice %421 {offsets = [0, 0], sizes = [2, 64], strides = [1, 1]} : vector<2x96xf32> to vector<2x64xf32>
    %424 = arith.addf %422, %423 : vector<2x64xf32>
    %425 = arith.negf %424 : vector<2x64xf32>
    %426 = math.exp %425 : vector<2x64xf32>
    %cst_63 = arith.constant 1.000000e+00 : f32
    %427 = vector.broadcast %cst_63 : f32 to vector<2x64xf32>
    %428 = arith.addf %427, %426 : vector<2x64xf32>
    %429 = arith.divf %427, %428 : vector<2x64xf32>
    %430 = vector.extract_strided_slice %429 {offsets = [0, 0], sizes = [2, 32], strides = [1, 1]} : vector<2x64xf32> to vector<2x32xf32>
    %431 = vector.extract_strided_slice %429 {offsets = [0, 32], sizes = [2, 32], strides = [1, 1]} : vector<2x64xf32> to vector<2x32xf32>
    %432 = vector.extract_strided_slice %420 {offsets = [0, 64], sizes = [2, 32], strides = [1, 1]} : vector<2x96xf32> to vector<2x32xf32>
    %433 = vector.extract_strided_slice %421 {offsets = [0, 64], sizes = [2, 32], strides = [1, 1]} : vector<2x96xf32> to vector<2x32xf32>
    %434 = arith.mulf %430, %433 : vector<2x32xf32>
    %435 = arith.addf %432, %434 : vector<2x32xf32>
    %436 = math.tanh %435 : vector<2x32xf32>
    %cst_64 = arith.constant 1.000000e+00 : f32
    %437 = vector.broadcast %cst_64 : f32 to vector<2x32xf32>
    %438 = arith.subf %437, %431 : vector<2x32xf32>
    %439 = arith.mulf %438, %436 : vector<2x32xf32>
    %440 = arith.mulf %431, %414 : vector<2x32xf32>
    %441 = arith.addf %439, %440 : vector<2x32xf32>
    %442 = vector.extract_strided_slice %413 {offsets = [14, 0], sizes = [2, 96], strides = [1, 1]} : vector<16x96xf32> to vector<2x96xf32>
    %443 = vector.extract_strided_slice %419 {offsets = [0, 96], sizes = [2, 96], strides = [1, 1]} : vector<2x192xf32> to vector<2x96xf32>
    %444 = vector.extract_strided_slice %442 {offsets = [0, 0], sizes = [2, 64], strides = [1, 1]} : vector<2x96xf32> to vector<2x64xf32>
    %445 = vector.extract_strided_slice %443 {offsets = [0, 0], sizes = [2, 64], strides = [1, 1]} : vector<2x96xf32> to vector<2x64xf32>
    %446 = arith.addf %444, %445 : vector<2x64xf32>
    %447 = arith.negf %446 : vector<2x64xf32>
    %448 = math.exp %447 : vector<2x64xf32>
    %cst_65 = arith.constant 1.000000e+00 : f32
    %449 = vector.broadcast %cst_65 : f32 to vector<2x64xf32>
    %450 = arith.addf %449, %448 : vector<2x64xf32>
    %451 = arith.divf %449, %450 : vector<2x64xf32>
    %452 = vector.extract_strided_slice %451 {offsets = [0, 0], sizes = [2, 32], strides = [1, 1]} : vector<2x64xf32> to vector<2x32xf32>
    %453 = vector.extract_strided_slice %451 {offsets = [0, 32], sizes = [2, 32], strides = [1, 1]} : vector<2x64xf32> to vector<2x32xf32>
    %454 = vector.extract_strided_slice %442 {offsets = [0, 64], sizes = [2, 32], strides = [1, 1]} : vector<2x96xf32> to vector<2x32xf32>
    %455 = vector.extract_strided_slice %443 {offsets = [0, 64], sizes = [2, 32], strides = [1, 1]} : vector<2x96xf32> to vector<2x32xf32>
    %456 = arith.mulf %452, %455 : vector<2x32xf32>
    %457 = arith.addf %454, %456 : vector<2x32xf32>
    %458 = math.tanh %457 : vector<2x32xf32>
    %cst_66 = arith.constant 1.000000e+00 : f32
    %459 = vector.broadcast %cst_66 : f32 to vector<2x32xf32>
    %460 = arith.subf %459, %453 : vector<2x32xf32>
    %461 = arith.mulf %460, %458 : vector<2x32xf32>
    %462 = arith.mulf %453, %415 : vector<2x32xf32>
    %463 = arith.addf %461, %462 : vector<2x32xf32>
    %464 = tpu.concatenate %441, %463 in 1 : vector<2x32xf32>, vector<2x32xf32> -> vector<2x64xf32>
    %cst_67 = arith.constant dense<0.000000e+00> : vector<2x192xf32>
    %465 = tpu.matmul %464, %410, %cst_67 {dimension_numbers = #tpu.dot_dimension_numbers<[1], [0], [0], [1], [0, 0, 1, 1], [], []>} : vector<2x64xf32>, vector<64x192xf32>, vector<2x192xf32> -> vector<2x192xf32>
    %466 = vector.broadcast %411 : vector<1x192xf32> to vector<2x192xf32>
    %467 = arith.addf %465, %466 : vector<2x192xf32>
    %468 = vector.extract_strided_slice %412 {offsets = [2, 0], sizes = [2, 96], strides = [1, 1]} : vector<16x96xf32> to vector<2x96xf32>
    %469 = vector.extract_strided_slice %467 {offsets = [0, 0], sizes = [2, 96], strides = [1, 1]} : vector<2x192xf32> to vector<2x96xf32>
    %470 = vector.extract_strided_slice %468 {offsets = [0, 0], sizes = [2, 64], strides = [1, 1]} : vector<2x96xf32> to vector<2x64xf32>
    %471 = vector.extract_strided_slice %469 {offsets = [0, 0], sizes = [2, 64], strides = [1, 1]} : vector<2x96xf32> to vector<2x64xf32>
    %472 = arith.addf %470, %471 : vector<2x64xf32>
    %473 = arith.negf %472 : vector<2x64xf32>
    %474 = math.exp %473 : vector<2x64xf32>
    %cst_68 = arith.constant 1.000000e+00 : f32
    %475 = vector.broadcast %cst_68 : f32 to vector<2x64xf32>
    %476 = arith.addf %475, %474 : vector<2x64xf32>
    %477 = arith.divf %475, %476 : vector<2x64xf32>
    %478 = vector.extract_strided_slice %477 {offsets = [0, 0], sizes = [2, 32], strides = [1, 1]} : vector<2x64xf32> to vector<2x32xf32>
    %479 = vector.extract_strided_slice %477 {offsets = [0, 32], sizes = [2, 32], strides = [1, 1]} : vector<2x64xf32> to vector<2x32xf32>
    %480 = vector.extract_strided_slice %468 {offsets = [0, 64], sizes = [2, 32], strides = [1, 1]} : vector<2x96xf32> to vector<2x32xf32>
    %481 = vector.extract_strided_slice %469 {offsets = [0, 64], sizes = [2, 32], strides = [1, 1]} : vector<2x96xf32> to vector<2x32xf32>
    %482 = arith.mulf %478, %481 : vector<2x32xf32>
    %483 = arith.addf %480, %482 : vector<2x32xf32>
    %484 = math.tanh %483 : vector<2x32xf32>
    %cst_69 = arith.constant 1.000000e+00 : f32
    %485 = vector.broadcast %cst_69 : f32 to vector<2x32xf32>
    %486 = arith.subf %485, %479 : vector<2x32xf32>
    %487 = arith.mulf %486, %484 : vector<2x32xf32>
    %488 = arith.mulf %479, %441 : vector<2x32xf32>
    %489 = arith.addf %487, %488 : vector<2x32xf32>
    %490 = vector.extract_strided_slice %413 {offsets = [12, 0], sizes = [2, 96], strides = [1, 1]} : vector<16x96xf32> to vector<2x96xf32>
    %491 = vector.extract_strided_slice %467 {offsets = [0, 96], sizes = [2, 96], strides = [1, 1]} : vector<2x192xf32> to vector<2x96xf32>
    %492 = vector.extract_strided_slice %490 {offsets = [0, 0], sizes = [2, 64], strides = [1, 1]} : vector<2x96xf32> to vector<2x64xf32>
    %493 = vector.extract_strided_slice %491 {offsets = [0, 0], sizes = [2, 64], strides = [1, 1]} : vector<2x96xf32> to vector<2x64xf32>
    %494 = arith.addf %492, %493 : vector<2x64xf32>
    %495 = arith.negf %494 : vector<2x64xf32>
    %496 = math.exp %495 : vector<2x64xf32>
    %cst_70 = arith.constant 1.000000e+00 : f32
    %497 = vector.broadcast %cst_70 : f32 to vector<2x64xf32>
    %498 = arith.addf %497, %496 : vector<2x64xf32>
    %499 = arith.divf %497, %498 : vector<2x64xf32>
    %500 = vector.extract_strided_slice %499 {offsets = [0, 0], sizes = [2, 32], strides = [1, 1]} : vector<2x64xf32> to vector<2x32xf32>
    %501 = vector.extract_strided_slice %499 {offsets = [0, 32], sizes = [2, 32], strides = [1, 1]} : vector<2x64xf32> to vector<2x32xf32>
    %502 = vector.extract_strided_slice %490 {offsets = [0, 64], sizes = [2, 32], strides = [1, 1]} : vector<2x96xf32> to vector<2x32xf32>
    %503 = vector.extract_strided_slice %491 {offsets = [0, 64], sizes = [2, 32], strides = [1, 1]} : vector<2x96xf32> to vector<2x32xf32>
    %504 = arith.mulf %500, %503 : vector<2x32xf32>
    %505 = arith.addf %502, %504 : vector<2x32xf32>
    %506 = math.tanh %505 : vector<2x32xf32>
    %cst_71 = arith.constant 1.000000e+00 : f32
    %507 = vector.broadcast %cst_71 : f32 to vector<2x32xf32>
    %508 = arith.subf %507, %501 : vector<2x32xf32>
    %509 = arith.mulf %508, %506 : vector<2x32xf32>
    %510 = arith.mulf %501, %463 : vector<2x32xf32>
    %511 = arith.addf %509, %510 : vector<2x32xf32>
    %512 = tpu.concatenate %489, %511 in 1 : vector<2x32xf32>, vector<2x32xf32> -> vector<2x64xf32>
    %cst_72 = arith.constant dense<0.000000e+00> : vector<2x192xf32>
    %513 = tpu.matmul %512, %410, %cst_72 {dimension_numbers = #tpu.dot_dimension_numbers<[1], [0], [0], [1], [0, 0, 1, 1], [], []>} : vector<2x64xf32>, vector<64x192xf32>, vector<2x192xf32> -> vector<2x192xf32>
    %514 = vector.broadcast %411 : vector<1x192xf32> to vector<2x192xf32>
    %515 = arith.addf %513, %514 : vector<2x192xf32>
    %516 = vector.extract_strided_slice %412 {offsets = [4, 0], sizes = [2, 96], strides = [1, 1]} : vector<16x96xf32> to vector<2x96xf32>
    %517 = vector.extract_strided_slice %515 {offsets = [0, 0], sizes = [2, 96], strides = [1, 1]} : vector<2x192xf32> to vector<2x96xf32>
    %518 = vector.extract_strided_slice %516 {offsets = [0, 0], sizes = [2, 64], strides = [1, 1]} : vector<2x96xf32> to vector<2x64xf32>
    %519 = vector.extract_strided_slice %517 {offsets = [0, 0], sizes = [2, 64], strides = [1, 1]} : vector<2x96xf32> to vector<2x64xf32>
    %520 = arith.addf %518, %519 : vector<2x64xf32>
    %521 = arith.negf %520 : vector<2x64xf32>
    %522 = math.exp %521 : vector<2x64xf32>
    %cst_73 = arith.constant 1.000000e+00 : f32
    %523 = vector.broadcast %cst_73 : f32 to vector<2x64xf32>
    %524 = arith.addf %523, %522 : vector<2x64xf32>
    %525 = arith.divf %523, %524 : vector<2x64xf32>
    %526 = vector.extract_strided_slice %525 {offsets = [0, 0], sizes = [2, 32], strides = [1, 1]} : vector<2x64xf32> to vector<2x32xf32>
    %527 = vector.extract_strided_slice %525 {offsets = [0, 32], sizes = [2, 32], strides = [1, 1]} : vector<2x64xf32> to vector<2x32xf32>
    %528 = vector.extract_strided_slice %516 {offsets = [0, 64], sizes = [2, 32], strides = [1, 1]} : vector<2x96xf32> to vector<2x32xf32>
    %529 = vector.extract_strided_slice %517 {offsets = [0, 64], sizes = [2, 32], strides = [1, 1]} : vector<2x96xf32> to vector<2x32xf32>
    %530 = arith.mulf %526, %529 : vector<2x32xf32>
    %531 = arith.addf %528, %530 : vector<2x32xf32>
    %532 = math.tanh %531 : vector<2x32xf32>
    %cst_74 = arith.constant 1.000000e+00 : f32
    %533 = vector.broadcast %cst_74 : f32 to vector<2x32xf32>
    %534 = arith.subf %533, %527 : vector<2x32xf32>
    %535 = arith.mulf %534, %532 : vector<2x32xf32>
    %536 = arith.mulf %527, %489 : vector<2x32xf32>
    %537 = arith.addf %535, %536 : vector<2x32xf32>
    %538 = vector.extract_strided_slice %413 {offsets = [10, 0], sizes = [2, 96], strides = [1, 1]} : vector<16x96xf32> to vector<2x96xf32>
    %539 = vector.extract_strided_slice %515 {offsets = [0, 96], sizes = [2, 96], strides = [1, 1]} : vector<2x192xf32> to vector<2x96xf32>
    %540 = vector.extract_strided_slice %538 {offsets = [0, 0], sizes = [2, 64], strides = [1, 1]} : vector<2x96xf32> to vector<2x64xf32>
    %541 = vector.extract_strided_slice %539 {offsets = [0, 0], sizes = [2, 64], strides = [1, 1]} : vector<2x96xf32> to vector<2x64xf32>
    %542 = arith.addf %540, %541 : vector<2x64xf32>
    %543 = arith.negf %542 : vector<2x64xf32>
    %544 = math.exp %543 : vector<2x64xf32>
    %cst_75 = arith.constant 1.000000e+00 : f32
    %545 = vector.broadcast %cst_75 : f32 to vector<2x64xf32>
    %546 = arith.addf %545, %544 : vector<2x64xf32>
    %547 = arith.divf %545, %546 : vector<2x64xf32>
    %548 = vector.extract_strided_slice %547 {offsets = [0, 0], sizes = [2, 32], strides = [1, 1]} : vector<2x64xf32> to vector<2x32xf32>
    %549 = vector.extract_strided_slice %547 {offsets = [0, 32], sizes = [2, 32], strides = [1, 1]} : vector<2x64xf32> to vector<2x32xf32>
    %550 = vector.extract_strided_slice %538 {offsets = [0, 64], sizes = [2, 32], strides = [1, 1]} : vector<2x96xf32> to vector<2x32xf32>
    %551 = vector.extract_strided_slice %539 {offsets = [0, 64], sizes = [2, 32], strides = [1, 1]} : vector<2x96xf32> to vector<2x32xf32>
    %552 = arith.mulf %548, %551 : vector<2x32xf32>
    %553 = arith.addf %550, %552 : vector<2x32xf32>
    %554 = math.tanh %553 : vector<2x32xf32>
    %cst_76 = arith.constant 1.000000e+00 : f32
    %555 = vector.broadcast %cst_76 : f32 to vector<2x32xf32>
    %556 = arith.subf %555, %549 : vector<2x32xf32>
    %557 = arith.mulf %556, %554 : vector<2x32xf32>
    %558 = arith.mulf %549, %511 : vector<2x32xf32>
    %559 = arith.addf %557, %558 : vector<2x32xf32>
    %560 = tpu.concatenate %537, %559 in 1 : vector<2x32xf32>, vector<2x32xf32> -> vector<2x64xf32>
    %cst_77 = arith.constant dense<0.000000e+00> : vector<2x192xf32>
    %561 = tpu.matmul %560, %410, %cst_77 {dimension_numbers = #tpu.dot_dimension_numbers<[1], [0], [0], [1], [0, 0, 1, 1], [], []>} : vector<2x64xf32>, vector<64x192xf32>, vector<2x192xf32> -> vector<2x192xf32>
    %562 = vector.broadcast %411 : vector<1x192xf32> to vector<2x192xf32>
    %563 = arith.addf %561, %562 : vector<2x192xf32>
    %564 = vector.extract_strided_slice %412 {offsets = [6, 0], sizes = [2, 96], strides = [1, 1]} : vector<16x96xf32> to vector<2x96xf32>
    %565 = vector.extract_strided_slice %563 {offsets = [0, 0], sizes = [2, 96], strides = [1, 1]} : vector<2x192xf32> to vector<2x96xf32>
    %566 = vector.extract_strided_slice %564 {offsets = [0, 0], sizes = [2, 64], strides = [1, 1]} : vector<2x96xf32> to vector<2x64xf32>
    %567 = vector.extract_strided_slice %565 {offsets = [0, 0], sizes = [2, 64], strides = [1, 1]} : vector<2x96xf32> to vector<2x64xf32>
    %568 = arith.addf %566, %567 : vector<2x64xf32>
    %569 = arith.negf %568 : vector<2x64xf32>
    %570 = math.exp %569 : vector<2x64xf32>
    %cst_78 = arith.constant 1.000000e+00 : f32
    %571 = vector.broadcast %cst_78 : f32 to vector<2x64xf32>
    %572 = arith.addf %571, %570 : vector<2x64xf32>
    %573 = arith.divf %571, %572 : vector<2x64xf32>
    %574 = vector.extract_strided_slice %573 {offsets = [0, 0], sizes = [2, 32], strides = [1, 1]} : vector<2x64xf32> to vector<2x32xf32>
    %575 = vector.extract_strided_slice %573 {offsets = [0, 32], sizes = [2, 32], strides = [1, 1]} : vector<2x64xf32> to vector<2x32xf32>
    %576 = vector.extract_strided_slice %564 {offsets = [0, 64], sizes = [2, 32], strides = [1, 1]} : vector<2x96xf32> to vector<2x32xf32>
    %577 = vector.extract_strided_slice %565 {offsets = [0, 64], sizes = [2, 32], strides = [1, 1]} : vector<2x96xf32> to vector<2x32xf32>
    %578 = arith.mulf %574, %577 : vector<2x32xf32>
    %579 = arith.addf %576, %578 : vector<2x32xf32>
    %580 = math.tanh %579 : vector<2x32xf32>
    %cst_79 = arith.constant 1.000000e+00 : f32
    %581 = vector.broadcast %cst_79 : f32 to vector<2x32xf32>
    %582 = arith.subf %581, %575 : vector<2x32xf32>
    %583 = arith.mulf %582, %580 : vector<2x32xf32>
    %584 = arith.mulf %575, %537 : vector<2x32xf32>
    %585 = arith.addf %583, %584 : vector<2x32xf32>
    %586 = vector.extract_strided_slice %413 {offsets = [8, 0], sizes = [2, 96], strides = [1, 1]} : vector<16x96xf32> to vector<2x96xf32>
    %587 = vector.extract_strided_slice %563 {offsets = [0, 96], sizes = [2, 96], strides = [1, 1]} : vector<2x192xf32> to vector<2x96xf32>
    %588 = vector.extract_strided_slice %586 {offsets = [0, 0], sizes = [2, 64], strides = [1, 1]} : vector<2x96xf32> to vector<2x64xf32>
    %589 = vector.extract_strided_slice %587 {offsets = [0, 0], sizes = [2, 64], strides = [1, 1]} : vector<2x96xf32> to vector<2x64xf32>
    %590 = arith.addf %588, %589 : vector<2x64xf32>
    %591 = arith.negf %590 : vector<2x64xf32>
    %592 = math.exp %591 : vector<2x64xf32>
    %cst_80 = arith.constant 1.000000e+00 : f32
    %593 = vector.broadcast %cst_80 : f32 to vector<2x64xf32>
    %594 = arith.addf %593, %592 : vector<2x64xf32>
    %595 = arith.divf %593, %594 : vector<2x64xf32>
    %596 = vector.extract_strided_slice %595 {offsets = [0, 0], sizes = [2, 32], strides = [1, 1]} : vector<2x64xf32> to vector<2x32xf32>
    %597 = vector.extract_strided_slice %595 {offsets = [0, 32], sizes = [2, 32], strides = [1, 1]} : vector<2x64xf32> to vector<2x32xf32>
    %598 = vector.extract_strided_slice %586 {offsets = [0, 64], sizes = [2, 32], strides = [1, 1]} : vector<2x96xf32> to vector<2x32xf32>
    %599 = vector.extract_strided_slice %587 {offsets = [0, 64], sizes = [2, 32], strides = [1, 1]} : vector<2x96xf32> to vector<2x32xf32>
    %600 = arith.mulf %596, %599 : vector<2x32xf32>
    %601 = arith.addf %598, %600 : vector<2x32xf32>
    %602 = math.tanh %601 : vector<2x32xf32>
    %cst_81 = arith.constant 1.000000e+00 : f32
    %603 = vector.broadcast %cst_81 : f32 to vector<2x32xf32>
    %604 = arith.subf %603, %597 : vector<2x32xf32>
    %605 = arith.mulf %604, %602 : vector<2x32xf32>
    %606 = arith.mulf %597, %559 : vector<2x32xf32>
    %607 = arith.addf %605, %606 : vector<2x32xf32>
    %608 = tpu.concatenate %585, %607 in 1 : vector<2x32xf32>, vector<2x32xf32> -> vector<2x64xf32>
    %cst_82 = arith.constant dense<0.000000e+00> : vector<2x192xf32>
    %609 = tpu.matmul %608, %410, %cst_82 {dimension_numbers = #tpu.dot_dimension_numbers<[1], [0], [0], [1], [0, 0, 1, 1], [], []>} : vector<2x64xf32>, vector<64x192xf32>, vector<2x192xf32> -> vector<2x192xf32>
    %610 = vector.broadcast %411 : vector<1x192xf32> to vector<2x192xf32>
    %611 = arith.addf %609, %610 : vector<2x192xf32>
    %612 = vector.extract_strided_slice %412 {offsets = [8, 0], sizes = [2, 96], strides = [1, 1]} : vector<16x96xf32> to vector<2x96xf32>
    %613 = vector.extract_strided_slice %611 {offsets = [0, 0], sizes = [2, 96], strides = [1, 1]} : vector<2x192xf32> to vector<2x96xf32>
    %614 = vector.extract_strided_slice %612 {offsets = [0, 0], sizes = [2, 64], strides = [1, 1]} : vector<2x96xf32> to vector<2x64xf32>
    %615 = vector.extract_strided_slice %613 {offsets = [0, 0], sizes = [2, 64], strides = [1, 1]} : vector<2x96xf32> to vector<2x64xf32>
    %616 = arith.addf %614, %615 : vector<2x64xf32>
    %617 = arith.negf %616 : vector<2x64xf32>
    %618 = math.exp %617 : vector<2x64xf32>
    %cst_83 = arith.constant 1.000000e+00 : f32
    %619 = vector.broadcast %cst_83 : f32 to vector<2x64xf32>
    %620 = arith.addf %619, %618 : vector<2x64xf32>
    %621 = arith.divf %619, %620 : vector<2x64xf32>
    %622 = vector.extract_strided_slice %621 {offsets = [0, 0], sizes = [2, 32], strides = [1, 1]} : vector<2x64xf32> to vector<2x32xf32>
    %623 = vector.extract_strided_slice %621 {offsets = [0, 32], sizes = [2, 32], strides = [1, 1]} : vector<2x64xf32> to vector<2x32xf32>
    %624 = vector.extract_strided_slice %612 {offsets = [0, 64], sizes = [2, 32], strides = [1, 1]} : vector<2x96xf32> to vector<2x32xf32>
    %625 = vector.extract_strided_slice %613 {offsets = [0, 64], sizes = [2, 32], strides = [1, 1]} : vector<2x96xf32> to vector<2x32xf32>
    %626 = arith.mulf %622, %625 : vector<2x32xf32>
    %627 = arith.addf %624, %626 : vector<2x32xf32>
    %628 = math.tanh %627 : vector<2x32xf32>
    %cst_84 = arith.constant 1.000000e+00 : f32
    %629 = vector.broadcast %cst_84 : f32 to vector<2x32xf32>
    %630 = arith.subf %629, %623 : vector<2x32xf32>
    %631 = arith.mulf %630, %628 : vector<2x32xf32>
    %632 = arith.mulf %623, %585 : vector<2x32xf32>
    %633 = arith.addf %631, %632 : vector<2x32xf32>
    %634 = vector.extract_strided_slice %413 {offsets = [6, 0], sizes = [2, 96], strides = [1, 1]} : vector<16x96xf32> to vector<2x96xf32>
    %635 = vector.extract_strided_slice %611 {offsets = [0, 96], sizes = [2, 96], strides = [1, 1]} : vector<2x192xf32> to vector<2x96xf32>
    %636 = vector.extract_strided_slice %634 {offsets = [0, 0], sizes = [2, 64], strides = [1, 1]} : vector<2x96xf32> to vector<2x64xf32>
    %637 = vector.extract_strided_slice %635 {offsets = [0, 0], sizes = [2, 64], strides = [1, 1]} : vector<2x96xf32> to vector<2x64xf32>
    %638 = arith.addf %636, %637 : vector<2x64xf32>
    %639 = arith.negf %638 : vector<2x64xf32>
    %640 = math.exp %639 : vector<2x64xf32>
    %cst_85 = arith.constant 1.000000e+00 : f32
    %641 = vector.broadcast %cst_85 : f32 to vector<2x64xf32>
    %642 = arith.addf %641, %640 : vector<2x64xf32>
    %643 = arith.divf %641, %642 : vector<2x64xf32>
    %644 = vector.extract_strided_slice %643 {offsets = [0, 0], sizes = [2, 32], strides = [1, 1]} : vector<2x64xf32> to vector<2x32xf32>
    %645 = vector.extract_strided_slice %643 {offsets = [0, 32], sizes = [2, 32], strides = [1, 1]} : vector<2x64xf32> to vector<2x32xf32>
    %646 = vector.extract_strided_slice %634 {offsets = [0, 64], sizes = [2, 32], strides = [1, 1]} : vector<2x96xf32> to vector<2x32xf32>
    %647 = vector.extract_strided_slice %635 {offsets = [0, 64], sizes = [2, 32], strides = [1, 1]} : vector<2x96xf32> to vector<2x32xf32>
    %648 = arith.mulf %644, %647 : vector<2x32xf32>
    %649 = arith.addf %646, %648 : vector<2x32xf32>
    %650 = math.tanh %649 : vector<2x32xf32>
    %cst_86 = arith.constant 1.000000e+00 : f32
    %651 = vector.broadcast %cst_86 : f32 to vector<2x32xf32>
    %652 = arith.subf %651, %645 : vector<2x32xf32>
    %653 = arith.mulf %652, %650 : vector<2x32xf32>
    %654 = arith.mulf %645, %607 : vector<2x32xf32>
    %655 = arith.addf %653, %654 : vector<2x32xf32>
    %656 = tpu.concatenate %633, %655 in 1 : vector<2x32xf32>, vector<2x32xf32> -> vector<2x64xf32>
    %cst_87 = arith.constant dense<0.000000e+00> : vector<2x192xf32>
    %657 = tpu.matmul %656, %410, %cst_87 {dimension_numbers = #tpu.dot_dimension_numbers<[1], [0], [0], [1], [0, 0, 1, 1], [], []>} : vector<2x64xf32>, vector<64x192xf32>, vector<2x192xf32> -> vector<2x192xf32>
    %658 = vector.broadcast %411 : vector<1x192xf32> to vector<2x192xf32>
    %659 = arith.addf %657, %658 : vector<2x192xf32>
    %660 = vector.extract_strided_slice %412 {offsets = [10, 0], sizes = [2, 96], strides = [1, 1]} : vector<16x96xf32> to vector<2x96xf32>
    %661 = vector.extract_strided_slice %659 {offsets = [0, 0], sizes = [2, 96], strides = [1, 1]} : vector<2x192xf32> to vector<2x96xf32>
    %662 = vector.extract_strided_slice %660 {offsets = [0, 0], sizes = [2, 64], strides = [1, 1]} : vector<2x96xf32> to vector<2x64xf32>
    %663 = vector.extract_strided_slice %661 {offsets = [0, 0], sizes = [2, 64], strides = [1, 1]} : vector<2x96xf32> to vector<2x64xf32>
    %664 = arith.addf %662, %663 : vector<2x64xf32>
    %665 = arith.negf %664 : vector<2x64xf32>
    %666 = math.exp %665 : vector<2x64xf32>
    %cst_88 = arith.constant 1.000000e+00 : f32
    %667 = vector.broadcast %cst_88 : f32 to vector<2x64xf32>
    %668 = arith.addf %667, %666 : vector<2x64xf32>
    %669 = arith.divf %667, %668 : vector<2x64xf32>
    %670 = vector.extract_strided_slice %669 {offsets = [0, 0], sizes = [2, 32], strides = [1, 1]} : vector<2x64xf32> to vector<2x32xf32>
    %671 = vector.extract_strided_slice %669 {offsets = [0, 32], sizes = [2, 32], strides = [1, 1]} : vector<2x64xf32> to vector<2x32xf32>
    %672 = vector.extract_strided_slice %660 {offsets = [0, 64], sizes = [2, 32], strides = [1, 1]} : vector<2x96xf32> to vector<2x32xf32>
    %673 = vector.extract_strided_slice %661 {offsets = [0, 64], sizes = [2, 32], strides = [1, 1]} : vector<2x96xf32> to vector<2x32xf32>
    %674 = arith.mulf %670, %673 : vector<2x32xf32>
    %675 = arith.addf %672, %674 : vector<2x32xf32>
    %676 = math.tanh %675 : vector<2x32xf32>
    %cst_89 = arith.constant 1.000000e+00 : f32
    %677 = vector.broadcast %cst_89 : f32 to vector<2x32xf32>
    %678 = arith.subf %677, %671 : vector<2x32xf32>
    %679 = arith.mulf %678, %676 : vector<2x32xf32>
    %680 = arith.mulf %671, %633 : vector<2x32xf32>
    %681 = arith.addf %679, %680 : vector<2x32xf32>
    %682 = vector.extract_strided_slice %413 {offsets = [4, 0], sizes = [2, 96], strides = [1, 1]} : vector<16x96xf32> to vector<2x96xf32>
    %683 = vector.extract_strided_slice %659 {offsets = [0, 96], sizes = [2, 96], strides = [1, 1]} : vector<2x192xf32> to vector<2x96xf32>
    %684 = vector.extract_strided_slice %682 {offsets = [0, 0], sizes = [2, 64], strides = [1, 1]} : vector<2x96xf32> to vector<2x64xf32>
    %685 = vector.extract_strided_slice %683 {offsets = [0, 0], sizes = [2, 64], strides = [1, 1]} : vector<2x96xf32> to vector<2x64xf32>
    %686 = arith.addf %684, %685 : vector<2x64xf32>
    %687 = arith.negf %686 : vector<2x64xf32>
    %688 = math.exp %687 : vector<2x64xf32>
    %cst_90 = arith.constant 1.000000e+00 : f32
    %689 = vector.broadcast %cst_90 : f32 to vector<2x64xf32>
    %690 = arith.addf %689, %688 : vector<2x64xf32>
    %691 = arith.divf %689, %690 : vector<2x64xf32>
    %692 = vector.extract_strided_slice %691 {offsets = [0, 0], sizes = [2, 32], strides = [1, 1]} : vector<2x64xf32> to vector<2x32xf32>
    %693 = vector.extract_strided_slice %691 {offsets = [0, 32], sizes = [2, 32], strides = [1, 1]} : vector<2x64xf32> to vector<2x32xf32>
    %694 = vector.extract_strided_slice %682 {offsets = [0, 64], sizes = [2, 32], strides = [1, 1]} : vector<2x96xf32> to vector<2x32xf32>
    %695 = vector.extract_strided_slice %683 {offsets = [0, 64], sizes = [2, 32], strides = [1, 1]} : vector<2x96xf32> to vector<2x32xf32>
    %696 = arith.mulf %692, %695 : vector<2x32xf32>
    %697 = arith.addf %694, %696 : vector<2x32xf32>
    %698 = math.tanh %697 : vector<2x32xf32>
    %cst_91 = arith.constant 1.000000e+00 : f32
    %699 = vector.broadcast %cst_91 : f32 to vector<2x32xf32>
    %700 = arith.subf %699, %693 : vector<2x32xf32>
    %701 = arith.mulf %700, %698 : vector<2x32xf32>
    %702 = arith.mulf %693, %655 : vector<2x32xf32>
    %703 = arith.addf %701, %702 : vector<2x32xf32>
    %704 = tpu.concatenate %681, %703 in 1 : vector<2x32xf32>, vector<2x32xf32> -> vector<2x64xf32>
    %cst_92 = arith.constant dense<0.000000e+00> : vector<2x192xf32>
    %705 = tpu.matmul %704, %410, %cst_92 {dimension_numbers = #tpu.dot_dimension_numbers<[1], [0], [0], [1], [0, 0, 1, 1], [], []>} : vector<2x64xf32>, vector<64x192xf32>, vector<2x192xf32> -> vector<2x192xf32>
    %706 = vector.broadcast %411 : vector<1x192xf32> to vector<2x192xf32>
    %707 = arith.addf %705, %706 : vector<2x192xf32>
    %708 = vector.extract_strided_slice %412 {offsets = [12, 0], sizes = [2, 96], strides = [1, 1]} : vector<16x96xf32> to vector<2x96xf32>
    %709 = vector.extract_strided_slice %707 {offsets = [0, 0], sizes = [2, 96], strides = [1, 1]} : vector<2x192xf32> to vector<2x96xf32>
    %710 = vector.extract_strided_slice %708 {offsets = [0, 0], sizes = [2, 64], strides = [1, 1]} : vector<2x96xf32> to vector<2x64xf32>
    %711 = vector.extract_strided_slice %709 {offsets = [0, 0], sizes = [2, 64], strides = [1, 1]} : vector<2x96xf32> to vector<2x64xf32>
    %712 = arith.addf %710, %711 : vector<2x64xf32>
    %713 = arith.negf %712 : vector<2x64xf32>
    %714 = math.exp %713 : vector<2x64xf32>
    %cst_93 = arith.constant 1.000000e+00 : f32
    %715 = vector.broadcast %cst_93 : f32 to vector<2x64xf32>
    %716 = arith.addf %715, %714 : vector<2x64xf32>
    %717 = arith.divf %715, %716 : vector<2x64xf32>
    %718 = vector.extract_strided_slice %717 {offsets = [0, 0], sizes = [2, 32], strides = [1, 1]} : vector<2x64xf32> to vector<2x32xf32>
    %719 = vector.extract_strided_slice %717 {offsets = [0, 32], sizes = [2, 32], strides = [1, 1]} : vector<2x64xf32> to vector<2x32xf32>
    %720 = vector.extract_strided_slice %708 {offsets = [0, 64], sizes = [2, 32], strides = [1, 1]} : vector<2x96xf32> to vector<2x32xf32>
    %721 = vector.extract_strided_slice %709 {offsets = [0, 64], sizes = [2, 32], strides = [1, 1]} : vector<2x96xf32> to vector<2x32xf32>
    %722 = arith.mulf %718, %721 : vector<2x32xf32>
    %723 = arith.addf %720, %722 : vector<2x32xf32>
    %724 = math.tanh %723 : vector<2x32xf32>
    %cst_94 = arith.constant 1.000000e+00 : f32
    %725 = vector.broadcast %cst_94 : f32 to vector<2x32xf32>
    %726 = arith.subf %725, %719 : vector<2x32xf32>
    %727 = arith.mulf %726, %724 : vector<2x32xf32>
    %728 = arith.mulf %719, %681 : vector<2x32xf32>
    %729 = arith.addf %727, %728 : vector<2x32xf32>
    %730 = vector.extract_strided_slice %413 {offsets = [2, 0], sizes = [2, 96], strides = [1, 1]} : vector<16x96xf32> to vector<2x96xf32>
    %731 = vector.extract_strided_slice %707 {offsets = [0, 96], sizes = [2, 96], strides = [1, 1]} : vector<2x192xf32> to vector<2x96xf32>
    %732 = vector.extract_strided_slice %730 {offsets = [0, 0], sizes = [2, 64], strides = [1, 1]} : vector<2x96xf32> to vector<2x64xf32>
    %733 = vector.extract_strided_slice %731 {offsets = [0, 0], sizes = [2, 64], strides = [1, 1]} : vector<2x96xf32> to vector<2x64xf32>
    %734 = arith.addf %732, %733 : vector<2x64xf32>
    %735 = arith.negf %734 : vector<2x64xf32>
    %736 = math.exp %735 : vector<2x64xf32>
    %cst_95 = arith.constant 1.000000e+00 : f32
    %737 = vector.broadcast %cst_95 : f32 to vector<2x64xf32>
    %738 = arith.addf %737, %736 : vector<2x64xf32>
    %739 = arith.divf %737, %738 : vector<2x64xf32>
    %740 = vector.extract_strided_slice %739 {offsets = [0, 0], sizes = [2, 32], strides = [1, 1]} : vector<2x64xf32> to vector<2x32xf32>
    %741 = vector.extract_strided_slice %739 {offsets = [0, 32], sizes = [2, 32], strides = [1, 1]} : vector<2x64xf32> to vector<2x32xf32>
    %742 = vector.extract_strided_slice %730 {offsets = [0, 64], sizes = [2, 32], strides = [1, 1]} : vector<2x96xf32> to vector<2x32xf32>
    %743 = vector.extract_strided_slice %731 {offsets = [0, 64], sizes = [2, 32], strides = [1, 1]} : vector<2x96xf32> to vector<2x32xf32>
    %744 = arith.mulf %740, %743 : vector<2x32xf32>
    %745 = arith.addf %742, %744 : vector<2x32xf32>
    %746 = math.tanh %745 : vector<2x32xf32>
    %cst_96 = arith.constant 1.000000e+00 : f32
    %747 = vector.broadcast %cst_96 : f32 to vector<2x32xf32>
    %748 = arith.subf %747, %741 : vector<2x32xf32>
    %749 = arith.mulf %748, %746 : vector<2x32xf32>
    %750 = arith.mulf %741, %703 : vector<2x32xf32>
    %751 = arith.addf %749, %750 : vector<2x32xf32>
    %752 = tpu.concatenate %729, %751 in 1 : vector<2x32xf32>, vector<2x32xf32> -> vector<2x64xf32>
    %cst_97 = arith.constant dense<0.000000e+00> : vector<2x192xf32>
    %753 = tpu.matmul %752, %410, %cst_97 {dimension_numbers = #tpu.dot_dimension_numbers<[1], [0], [0], [1], [0, 0, 1, 1], [], []>} : vector<2x64xf32>, vector<64x192xf32>, vector<2x192xf32> -> vector<2x192xf32>
    %754 = vector.broadcast %411 : vector<1x192xf32> to vector<2x192xf32>
    %755 = arith.addf %753, %754 : vector<2x192xf32>
    %756 = vector.extract_strided_slice %412 {offsets = [14, 0], sizes = [2, 96], strides = [1, 1]} : vector<16x96xf32> to vector<2x96xf32>
    %757 = vector.extract_strided_slice %755 {offsets = [0, 0], sizes = [2, 96], strides = [1, 1]} : vector<2x192xf32> to vector<2x96xf32>
    %758 = vector.extract_strided_slice %756 {offsets = [0, 0], sizes = [2, 64], strides = [1, 1]} : vector<2x96xf32> to vector<2x64xf32>
    %759 = vector.extract_strided_slice %757 {offsets = [0, 0], sizes = [2, 64], strides = [1, 1]} : vector<2x96xf32> to vector<2x64xf32>
    %760 = arith.addf %758, %759 : vector<2x64xf32>
    %761 = arith.negf %760 : vector<2x64xf32>
    %762 = math.exp %761 : vector<2x64xf32>
    %cst_98 = arith.constant 1.000000e+00 : f32
    %763 = vector.broadcast %cst_98 : f32 to vector<2x64xf32>
    %764 = arith.addf %763, %762 : vector<2x64xf32>
    %765 = arith.divf %763, %764 : vector<2x64xf32>
    %766 = vector.extract_strided_slice %765 {offsets = [0, 0], sizes = [2, 32], strides = [1, 1]} : vector<2x64xf32> to vector<2x32xf32>
    %767 = vector.extract_strided_slice %765 {offsets = [0, 32], sizes = [2, 32], strides = [1, 1]} : vector<2x64xf32> to vector<2x32xf32>
    %768 = vector.extract_strided_slice %756 {offsets = [0, 64], sizes = [2, 32], strides = [1, 1]} : vector<2x96xf32> to vector<2x32xf32>
    %769 = vector.extract_strided_slice %757 {offsets = [0, 64], sizes = [2, 32], strides = [1, 1]} : vector<2x96xf32> to vector<2x32xf32>
    %770 = arith.mulf %766, %769 : vector<2x32xf32>
    %771 = arith.addf %768, %770 : vector<2x32xf32>
    %772 = math.tanh %771 : vector<2x32xf32>
    %cst_99 = arith.constant 1.000000e+00 : f32
    %773 = vector.broadcast %cst_99 : f32 to vector<2x32xf32>
    %774 = arith.subf %773, %767 : vector<2x32xf32>
    %775 = arith.mulf %774, %772 : vector<2x32xf32>
    %776 = arith.mulf %767, %729 : vector<2x32xf32>
    %777 = arith.addf %775, %776 : vector<2x32xf32>
    %778 = vector.extract_strided_slice %413 {offsets = [0, 0], sizes = [2, 96], strides = [1, 1]} : vector<16x96xf32> to vector<2x96xf32>
    %779 = vector.extract_strided_slice %755 {offsets = [0, 96], sizes = [2, 96], strides = [1, 1]} : vector<2x192xf32> to vector<2x96xf32>
    %780 = vector.extract_strided_slice %778 {offsets = [0, 0], sizes = [2, 64], strides = [1, 1]} : vector<2x96xf32> to vector<2x64xf32>
    %781 = vector.extract_strided_slice %779 {offsets = [0, 0], sizes = [2, 64], strides = [1, 1]} : vector<2x96xf32> to vector<2x64xf32>
    %782 = arith.addf %780, %781 : vector<2x64xf32>
    %783 = arith.negf %782 : vector<2x64xf32>
    %784 = math.exp %783 : vector<2x64xf32>
    %cst_100 = arith.constant 1.000000e+00 : f32
    %785 = vector.broadcast %cst_100 : f32 to vector<2x64xf32>
    %786 = arith.addf %785, %784 : vector<2x64xf32>
    %787 = arith.divf %785, %786 : vector<2x64xf32>
    %788 = vector.extract_strided_slice %787 {offsets = [0, 0], sizes = [2, 32], strides = [1, 1]} : vector<2x64xf32> to vector<2x32xf32>
    %789 = vector.extract_strided_slice %787 {offsets = [0, 32], sizes = [2, 32], strides = [1, 1]} : vector<2x64xf32> to vector<2x32xf32>
    %790 = vector.extract_strided_slice %778 {offsets = [0, 64], sizes = [2, 32], strides = [1, 1]} : vector<2x96xf32> to vector<2x32xf32>
    %791 = vector.extract_strided_slice %779 {offsets = [0, 64], sizes = [2, 32], strides = [1, 1]} : vector<2x96xf32> to vector<2x32xf32>
    %792 = arith.mulf %788, %791 : vector<2x32xf32>
    %793 = arith.addf %790, %792 : vector<2x32xf32>
    %794 = math.tanh %793 : vector<2x32xf32>
    %cst_101 = arith.constant 1.000000e+00 : f32
    %795 = vector.broadcast %cst_101 : f32 to vector<2x32xf32>
    %796 = arith.subf %795, %789 : vector<2x32xf32>
    %797 = arith.mulf %796, %794 : vector<2x32xf32>
    %798 = arith.mulf %789, %751 : vector<2x32xf32>
    %799 = arith.addf %797, %798 : vector<2x32xf32>
    %800 = tpu.concatenate %441, %799 in 1 : vector<2x32xf32>, vector<2x32xf32> -> vector<2x64xf32>
    %801 = tpu.concatenate %489, %751 in 1 : vector<2x32xf32>, vector<2x32xf32> -> vector<2x64xf32>
    %802 = tpu.concatenate %537, %703 in 1 : vector<2x32xf32>, vector<2x32xf32> -> vector<2x64xf32>
    %803 = tpu.concatenate %585, %655 in 1 : vector<2x32xf32>, vector<2x32xf32> -> vector<2x64xf32>
    %804 = tpu.concatenate %633, %607 in 1 : vector<2x32xf32>, vector<2x32xf32> -> vector<2x64xf32>
    %805 = tpu.concatenate %681, %559 in 1 : vector<2x32xf32>, vector<2x32xf32> -> vector<2x64xf32>
    %806 = tpu.concatenate %729, %511 in 1 : vector<2x32xf32>, vector<2x32xf32> -> vector<2x64xf32>
    %807 = tpu.concatenate %777, %463 in 1 : vector<2x32xf32>, vector<2x32xf32> -> vector<2x64xf32>
    %808 = vector.shape_cast %800 : vector<2x64xf32> to vector<1x2x64xf32>
    %809 = vector.shape_cast %801 : vector<2x64xf32> to vector<1x2x64xf32>
    %810 = vector.shape_cast %802 : vector<2x64xf32> to vector<1x2x64xf32>
    %811 = vector.shape_cast %803 : vector<2x64xf32> to vector<1x2x64xf32>
    %812 = vector.shape_cast %804 : vector<2x64xf32> to vector<1x2x64xf32>
    %813 = vector.shape_cast %805 : vector<2x64xf32> to vector<1x2x64xf32>
    %814 = vector.shape_cast %806 : vector<2x64xf32> to vector<1x2x64xf32>
    %815 = vector.shape_cast %807 : vector<2x64xf32> to vector<1x2x64xf32>
    %816 = tpu.concatenate %808, %809, %810, %811, %812, %813, %814, %815 in 0 : vector<1x2x64xf32>, vector<1x2x64xf32>, vector<1x2x64xf32>, vector<1x2x64xf32>, vector<1x2x64xf32>, vector<1x2x64xf32>, vector<1x2x64xf32>, vector<1x2x64xf32> -> vector<8x2x64xf32>
    %c0_102 = arith.constant 0 : index
    %c0_103 = arith.constant 0 : index
    %c0_104 = arith.constant 0 : index
    %817 = vector.load %arg11[%c0_102, %c0_103, %c0_104] : memref<8x2x64xf32, #tpu.memory_space<vmem>>, vector<8x2x64xf32>
    tpu.vector_store %arg11[%c0_102, %c0_103, %c0_104], %816 {strides = array<i32>} : memref<8x2x64xf32, #tpu.memory_space<vmem>>, vector<8x2x64xf32>,
    %818 = tpu.concatenate %373, %395 in 1 : vector<2x32xf32>, vector<2x32xf32> -> vector<2x64xf32>
    %819 = tpu.concatenate %777, %799 in 1 : vector<2x32xf32>, vector<2x32xf32> -> vector<2x64xf32>
    %820 = tpu.concatenate %818, %819 in 0 : vector<2x64xf32>, vector<2x64xf32> -> vector<4x64xf32>
    %c0_105 = arith.constant 0 : index
    %c0_106 = arith.constant 0 : index
    %821 = vector.load %arg9[%c0_105, %c0_106] : memref<64x32xf32, #tpu.memory_space<vmem>>, vector<64x32xf32>
    %cst_107 = arith.constant dense<0.000000e+00> : vector<4x32xf32>
    %822 = tpu.matmul %820, %821, %cst_107 {dimension_numbers = #tpu.dot_dimension_numbers<[1], [0], [0], [1], [0, 0, 1, 1], [], []>} : vector<4x64xf32>, vector<64x32xf32>, vector<4x32xf32> -> vector<4x32xf32>
    %c0_108 = arith.constant 0 : index
    %c0_109 = arith.constant 0 : index
    %823 = vector.load %arg10[%c0_108, %c0_109] : memref<1x32xf32, #tpu.memory_space<vmem>>, vector<1x32xf32>
    %824 = vector.broadcast %823 : vector<1x32xf32> to vector<4x32xf32>
    %825 = arith.addf %822, %824 : vector<4x32xf32>
    %826 = math.tanh %825 : vector<4x32xf32>
    %c0_110 = arith.constant 0 : index
    %c0_111 = arith.constant 0 : index
    %827 = vector.load %arg12[%c0_110, %c0_111] : memref<4x32xf32, #tpu.memory_space<vmem>>, vector<4x32xf32>
    tpu.vector_store %arg12[%c0_110, %c0_111], %826 {strides = array<i32>} : memref<4x32xf32, #tpu.memory_space<vmem>>, vector<4x32xf32>,
    return
  }
}

module attributes {stable_mosaic.version = 11 : i64} {
  func.func @_decoder_kernel(%arg0: memref<4x32xf32, #tpu.memory_space<vmem>>, %arg1: memref<2x8x64xf32, #tpu.memory_space<vmem>>, %arg2: memref<128x32xf32, #tpu.memory_space<vmem>>, %arg3: memref<1x32xf32, #tpu.memory_space<vmem>>, %arg4: memref<1x32xf32, #tpu.memory_space<vmem>>, %arg5: memref<22x10xf32, #tpu.memory_space<vmem>>, %arg6: memref<74x96xf32, #tpu.memory_space<vmem>>, %arg7: memref<1x96xf32, #tpu.memory_space<vmem>>, %arg8: memref<32x96xf32, #tpu.memory_space<vmem>>, %arg9: memref<1x96xf32, #tpu.memory_space<vmem>>, %arg10: memref<32x96xf32, #tpu.memory_space<vmem>>, %arg11: memref<1x96xf32, #tpu.memory_space<vmem>>, %arg12: memref<32x96xf32, #tpu.memory_space<vmem>>, %arg13: memref<1x96xf32, #tpu.memory_space<vmem>>, %arg14: memref<96x22xf32, #tpu.memory_space<vmem>>, %arg15: memref<1x22xf32, #tpu.memory_space<vmem>>, %arg16: memref<4x2x22xf32, #tpu.memory_space<vmem>>, %arg17: memref<4x8x2xf32, #tpu.memory_space<vmem>>) attributes {dimension_semantics = [], scalar_prefetch = 0 : i64, scratch_operands = 0 : i64, tpu.core_type = #tpu.core_type<tc>} {
    %c0 = arith.constant 0 : index
    %c0_0 = arith.constant 0 : index
    %0 = vector.load %arg2[%c0, %c0_0] : memref<128x32xf32, #tpu.memory_space<vmem>>, vector<64x32xf32>
    %c64 = arith.constant 64 : index
    %c0_1 = arith.constant 0 : index
    %1 = vector.load %arg2[%c64, %c0_1] : memref<128x32xf32, #tpu.memory_space<vmem>>, vector<64x32xf32>
    %c0_2 = arith.constant 0 : index
    %c0_3 = arith.constant 0 : index
    %2 = vector.load %arg4[%c0_2, %c0_3] : memref<1x32xf32, #tpu.memory_space<vmem>>, vector<1x32xf32>
    %c0_4 = arith.constant 0 : index
    %c0_5 = arith.constant 0 : index
    %c0_6 = arith.constant 0 : index
    %3 = vector.load %arg1[%c0_4, %c0_5, %c0_6] : memref<2x8x64xf32, #tpu.memory_space<vmem>>, vector<1x8x64xf32>
    %4 = vector.shape_cast %3 : vector<1x8x64xf32> to vector<8x64xf32>
    %c1 = arith.constant 1 : index
    %c0_7 = arith.constant 0 : index
    %c0_8 = arith.constant 0 : index
    %5 = vector.load %arg1[%c1, %c0_7, %c0_8] : memref<2x8x64xf32, #tpu.memory_space<vmem>>, vector<1x8x64xf32>
    %6 = vector.shape_cast %5 : vector<1x8x64xf32> to vector<8x64xf32>
    %cst = arith.constant dense<0.000000e+00> : vector<8x32xf32>
    %7 = tpu.matmul %4, %1, %cst {dimension_numbers = #tpu.dot_dimension_numbers<[1], [0], [0], [1], [0, 0, 1, 1], [], []>} : vector<8x64xf32>, vector<64x32xf32>, vector<8x32xf32> -> vector<8x32xf32>
    %c0_9 = arith.constant 0 : index
    %c0_10 = arith.constant 0 : index
    %8 = vector.load %arg3[%c0_9, %c0_10] : memref<1x32xf32, #tpu.memory_space<vmem>>, vector<1x32xf32>
    %9 = vector.broadcast %8 : vector<1x32xf32> to vector<8x32xf32>
    %10 = arith.addf %7, %9 : vector<8x32xf32>
    %cst_11 = arith.constant dense<0.000000e+00> : vector<8x32xf32>
    %11 = tpu.matmul %6, %1, %cst_11 {dimension_numbers = #tpu.dot_dimension_numbers<[1], [0], [0], [1], [0, 0, 1, 1], [], []>} : vector<8x64xf32>, vector<64x32xf32>, vector<8x32xf32> -> vector<8x32xf32>
    %c0_12 = arith.constant 0 : index
    %c0_13 = arith.constant 0 : index
    %12 = vector.load %arg3[%c0_12, %c0_13] : memref<1x32xf32, #tpu.memory_space<vmem>>, vector<1x32xf32>
    %13 = vector.broadcast %12 : vector<1x32xf32> to vector<8x32xf32>
    %14 = arith.addf %11, %13 : vector<8x32xf32>
    %c0_14 = arith.constant 0 : index
    %c0_15 = arith.constant 0 : index
    %15 = vector.load %arg0[%c0_14, %c0_15] : memref<4x32xf32, #tpu.memory_space<vmem>>, vector<2x32xf32>
    %c2 = arith.constant 2 : index
    %c0_16 = arith.constant 0 : index
    %16 = vector.load %arg0[%c2, %c0_16] : memref<4x32xf32, #tpu.memory_space<vmem>>, vector<2x32xf32>
    %c1_i32 = arith.constant 1 : i32
    %17 = vector.broadcast %c1_i32 : i32 to vector<2x1xi32>
    %c1_i32_17 = arith.constant 1 : i32
    %18 = vector.broadcast %c1_i32_17 : i32 to vector<2x1xi32>
    %cst_18 = arith.constant 0.000000e+00 : f32
    %19 = vector.broadcast %cst_18 : f32 to vector<2x1xf32>
    %20 = tpu.iota {dimensions = array<i32: 1>} : vector<2x22xi32>
    %cst_19 = arith.constant dense<0.000000e+00> : vector<1xf32>
    %21 = vector.multi_reduction <add>, %19, %cst_19 [0] : vector<2x1xf32> to vector<1xf32>
    %22 = vector.shape_cast %21 : vector<1xf32> to vector<1x1xf32>
    %cst_20 = arith.constant 1.500000e+00 : f32
    %23 = vector.broadcast %cst_20 : f32 to vector<1x1xf32>
    %24 = arith.cmpf oge, %22, %23 : vector<1x1xf32>
    %cst_21 = arith.constant 0.000000e+00 : f32
    %cst_22 = arith.constant 1.000000e+00 : f32
    %25 = vector.broadcast %cst_21 : f32 to vector<1x1xf32>
    %26 = vector.broadcast %cst_22 : f32 to vector<1x1xf32>
    %27 = arith.select %24, %25, %26 : vector<1x1xi1>, vector<1x1xf32>
    %28 = vector.broadcast %17 : vector<2x1xi32> to vector<2x22xi32>
    %29 = arith.cmpi eq, %20, %28 : vector<2x22xi32>
    %c12_i32 = arith.constant 12 : i32
    %30 = vector.broadcast %c12_i32 : i32 to vector<2x1xi32>
    %31 = arith.addi %18, %30 : vector<2x1xi32>
    %32 = vector.broadcast %31 : vector<2x1xi32> to vector<2x22xi32>
    %33 = arith.cmpi eq, %20, %32 : vector<2x22xi32>
    %34 = arith.ori %29, %33 : vector<2x22xi1>
    %35 = arith.extui %34 : vector<2x22xi1> to vector<2x22xi32>
    %36 = arith.sitofp %35 : vector<2x22xi32> to vector<2x22xf32>
    %c0_23 = arith.constant 0 : index
    %c0_24 = arith.constant 0 : index
    %37 = vector.load %arg5[%c0_23, %c0_24] : memref<22x10xf32, #tpu.memory_space<vmem>>, vector<22x10xf32>
    %cst_25 = arith.constant dense<0.000000e+00> : vector<2x10xf32>
    %38 = tpu.matmul %36, %37, %cst_25 {dimension_numbers = #tpu.dot_dimension_numbers<[1], [0], [0], [1], [0, 0, 1, 1], [], []>} : vector<2x22xf32>, vector<22x10xf32>, vector<2x10xf32> -> vector<2x10xf32>
    %39 = tpu.concatenate %15, %16 in 1 : vector<2x32xf32>, vector<2x32xf32> -> vector<2x64xf32>
    %cst_26 = arith.constant dense<0.000000e+00> : vector<2x32xf32>
    %40 = tpu.matmul %39, %0, %cst_26 {dimension_numbers = #tpu.dot_dimension_numbers<[1], [0], [0], [1], [0, 0, 1, 1], [], []>} : vector<2x64xf32>, vector<64x32xf32>, vector<2x32xf32> -> vector<2x32xf32>
    %41 = vector.extract_strided_slice %40 {offsets = [0, 0], sizes = [1, 32], strides = [1, 1]} : vector<2x32xf32> to vector<1x32xf32>
    %42 = vector.broadcast %41 : vector<1x32xf32> to vector<8x32xf32>
    %43 = arith.addf %10, %42 : vector<8x32xf32>
    %44 = math.tanh %43 : vector<8x32xf32>
    %45 = vector.broadcast %2 : vector<1x32xf32> to vector<8x32xf32>
    %46 = arith.mulf %44, %45 : vector<8x32xf32>
    %cst_27 = arith.constant dense<0.000000e+00> : vector<8xf32>
    %47 = vector.multi_reduction <add>, %46, %cst_27 [1] : vector<8x32xf32> to vector<8xf32>
    %48 = vector.shape_cast %47 : vector<8xf32> to vector<8x1xf32>
    %cst_28 = arith.constant dense<0xFF800000> : vector<1xf32>
    %49 = vector.multi_reduction <maximumf>, %48, %cst_28 [0] : vector<8x1xf32> to vector<1xf32>
    %50 = vector.shape_cast %49 : vector<1xf32> to vector<1x1xf32>
    %51 = vector.broadcast %50 : vector<1x1xf32> to vector<8x1xf32>
    %52 = arith.subf %48, %51 : vector<8x1xf32>
    %53 = math.exp %52 : vector<8x1xf32>
    %cst_29 = arith.constant dense<0.000000e+00> : vector<1xf32>
    %54 = vector.multi_reduction <add>, %53, %cst_29 [0] : vector<8x1xf32> to vector<1xf32>
    %55 = vector.shape_cast %54 : vector<1xf32> to vector<1x1xf32>
    %56 = vector.broadcast %55 : vector<1x1xf32> to vector<8x1xf32>
    %57 = arith.divf %53, %56 : vector<8x1xf32>
    %58 = vector.broadcast %57 : vector<8x1xf32> to vector<8x64xf32>
    %59 = arith.mulf %58, %4 : vector<8x64xf32>
    %cst_30 = arith.constant dense<0.000000e+00> : vector<64xf32>
    %60 = vector.multi_reduction <add>, %59, %cst_30 [0] : vector<8x64xf32> to vector<64xf32>
    %61 = vector.shape_cast %60 : vector<64xf32> to vector<1x64xf32>
    %62 = vector.extract_strided_slice %40 {offsets = [1, 0], sizes = [1, 32], strides = [1, 1]} : vector<2x32xf32> to vector<1x32xf32>
    %63 = vector.broadcast %62 : vector<1x32xf32> to vector<8x32xf32>
    %64 = arith.addf %14, %63 : vector<8x32xf32>
    %65 = math.tanh %64 : vector<8x32xf32>
    %66 = vector.broadcast %2 : vector<1x32xf32> to vector<8x32xf32>
    %67 = arith.mulf %65, %66 : vector<8x32xf32>
    %cst_31 = arith.constant dense<0.000000e+00> : vector<8xf32>
    %68 = vector.multi_reduction <add>, %67, %cst_31 [1] : vector<8x32xf32> to vector<8xf32>
    %69 = vector.shape_cast %68 : vector<8xf32> to vector<8x1xf32>
    %cst_32 = arith.constant dense<0xFF800000> : vector<1xf32>
    %70 = vector.multi_reduction <maximumf>, %69, %cst_32 [0] : vector<8x1xf32> to vector<1xf32>
    %71 = vector.shape_cast %70 : vector<1xf32> to vector<1x1xf32>
    %72 = vector.broadcast %71 : vector<1x1xf32> to vector<8x1xf32>
    %73 = arith.subf %69, %72 : vector<8x1xf32>
    %74 = math.exp %73 : vector<8x1xf32>
    %cst_33 = arith.constant dense<0.000000e+00> : vector<1xf32>
    %75 = vector.multi_reduction <add>, %74, %cst_33 [0] : vector<8x1xf32> to vector<1xf32>
    %76 = vector.shape_cast %75 : vector<1xf32> to vector<1x1xf32>
    %77 = vector.broadcast %76 : vector<1x1xf32> to vector<8x1xf32>
    %78 = arith.divf %74, %77 : vector<8x1xf32>
    %79 = vector.broadcast %78 : vector<8x1xf32> to vector<8x64xf32>
    %80 = arith.mulf %79, %6 : vector<8x64xf32>
    %cst_34 = arith.constant dense<0.000000e+00> : vector<64xf32>
    %81 = vector.multi_reduction <add>, %80, %cst_34 [0] : vector<8x64xf32> to vector<64xf32>
    %82 = vector.shape_cast %81 : vector<64xf32> to vector<1x64xf32>
    %83 = tpu.concatenate %57, %78 in 1 : vector<8x1xf32>, vector<8x1xf32> -> vector<8x2xf32>
    %84 = tpu.concatenate %61, %82 in 0 : vector<1x64xf32>, vector<1x64xf32> -> vector<2x64xf32>
    %85 = tpu.concatenate %38, %84 in 1 : vector<2x10xf32>, vector<2x64xf32> -> vector<2x74xf32>
    %c0_35 = arith.constant 0 : index
    %c0_36 = arith.constant 0 : index
    %86 = vector.load %arg6[%c0_35, %c0_36] : memref<74x96xf32, #tpu.memory_space<vmem>>, vector<74x96xf32>
    %cst_37 = arith.constant dense<0.000000e+00> : vector<2x96xf32>
    %87 = tpu.matmul %85, %86, %cst_37 {dimension_numbers = #tpu.dot_dimension_numbers<[1], [0], [0], [1], [0, 0, 1, 1], [], []>} : vector<2x74xf32>, vector<74x96xf32>, vector<2x96xf32> -> vector<2x96xf32>
    %c0_38 = arith.constant 0 : index
    %c0_39 = arith.constant 0 : index
    %88 = vector.load %arg7[%c0_38, %c0_39] : memref<1x96xf32, #tpu.memory_space<vmem>>, vector<1x96xf32>
    %89 = vector.broadcast %88 : vector<1x96xf32> to vector<2x96xf32>
    %90 = arith.addf %87, %89 : vector<2x96xf32>
    %c0_40 = arith.constant 0 : index
    %c0_41 = arith.constant 0 : index
    %91 = vector.load %arg8[%c0_40, %c0_41] : memref<32x96xf32, #tpu.memory_space<vmem>>, vector<32x96xf32>
    %cst_42 = arith.constant dense<0.000000e+00> : vector<2x96xf32>
    %92 = tpu.matmul %15, %91, %cst_42 {dimension_numbers = #tpu.dot_dimension_numbers<[1], [0], [0], [1], [0, 0, 1, 1], [], []>} : vector<2x32xf32>, vector<32x96xf32>, vector<2x96xf32> -> vector<2x96xf32>
    %c0_43 = arith.constant 0 : index
    %c0_44 = arith.constant 0 : index
    %93 = vector.load %arg9[%c0_43, %c0_44] : memref<1x96xf32, #tpu.memory_space<vmem>>, vector<1x96xf32>
    %94 = vector.broadcast %93 : vector<1x96xf32> to vector<2x96xf32>
    %95 = arith.addf %92, %94 : vector<2x96xf32>
    %96 = vector.extract_strided_slice %90 {offsets = [0, 0], sizes = [2, 64], strides = [1, 1]} : vector<2x96xf32> to vector<2x64xf32>
    %97 = vector.extract_strided_slice %95 {offsets = [0, 0], sizes = [2, 64], strides = [1, 1]} : vector<2x96xf32> to vector<2x64xf32>
    %98 = arith.addf %96, %97 : vector<2x64xf32>
    %99 = arith.negf %98 : vector<2x64xf32>
    %100 = math.exp %99 : vector<2x64xf32>
    %cst_45 = arith.constant 1.000000e+00 : f32
    %101 = vector.broadcast %cst_45 : f32 to vector<2x64xf32>
    %102 = arith.addf %101, %100 : vector<2x64xf32>
    %103 = arith.divf %101, %102 : vector<2x64xf32>
    %104 = vector.extract_strided_slice %103 {offsets = [0, 0], sizes = [2, 32], strides = [1, 1]} : vector<2x64xf32> to vector<2x32xf32>
    %105 = vector.extract_strided_slice %103 {offsets = [0, 32], sizes = [2, 32], strides = [1, 1]} : vector<2x64xf32> to vector<2x32xf32>
    %106 = vector.extract_strided_slice %90 {offsets = [0, 64], sizes = [2, 32], strides = [1, 1]} : vector<2x96xf32> to vector<2x32xf32>
    %107 = vector.extract_strided_slice %95 {offsets = [0, 64], sizes = [2, 32], strides = [1, 1]} : vector<2x96xf32> to vector<2x32xf32>
    %108 = arith.mulf %104, %107 : vector<2x32xf32>
    %109 = arith.addf %106, %108 : vector<2x32xf32>
    %110 = math.tanh %109 : vector<2x32xf32>
    %cst_46 = arith.constant 1.000000e+00 : f32
    %111 = vector.broadcast %cst_46 : f32 to vector<2x32xf32>
    %112 = arith.subf %111, %105 : vector<2x32xf32>
    %113 = arith.mulf %112, %110 : vector<2x32xf32>
    %114 = arith.mulf %105, %15 : vector<2x32xf32>
    %115 = arith.addf %113, %114 : vector<2x32xf32>
    %c0_47 = arith.constant 0 : index
    %c0_48 = arith.constant 0 : index
    %116 = vector.load %arg10[%c0_47, %c0_48] : memref<32x96xf32, #tpu.memory_space<vmem>>, vector<32x96xf32>
    %cst_49 = arith.constant dense<0.000000e+00> : vector<2x96xf32>
    %117 = tpu.matmul %115, %116, %cst_49 {dimension_numbers = #tpu.dot_dimension_numbers<[1], [0], [0], [1], [0, 0, 1, 1], [], []>} : vector<2x32xf32>, vector<32x96xf32>, vector<2x96xf32> -> vector<2x96xf32>
    %c0_50 = arith.constant 0 : index
    %c0_51 = arith.constant 0 : index
    %118 = vector.load %arg11[%c0_50, %c0_51] : memref<1x96xf32, #tpu.memory_space<vmem>>, vector<1x96xf32>
    %119 = vector.broadcast %118 : vector<1x96xf32> to vector<2x96xf32>
    %120 = arith.addf %117, %119 : vector<2x96xf32>
    %c0_52 = arith.constant 0 : index
    %c0_53 = arith.constant 0 : index
    %121 = vector.load %arg12[%c0_52, %c0_53] : memref<32x96xf32, #tpu.memory_space<vmem>>, vector<32x96xf32>
    %cst_54 = arith.constant dense<0.000000e+00> : vector<2x96xf32>
    %122 = tpu.matmul %16, %121, %cst_54 {dimension_numbers = #tpu.dot_dimension_numbers<[1], [0], [0], [1], [0, 0, 1, 1], [], []>} : vector<2x32xf32>, vector<32x96xf32>, vector<2x96xf32> -> vector<2x96xf32>
    %c0_55 = arith.constant 0 : index
    %c0_56 = arith.constant 0 : index
    %123 = vector.load %arg13[%c0_55, %c0_56] : memref<1x96xf32, #tpu.memory_space<vmem>>, vector<1x96xf32>
    %124 = vector.broadcast %123 : vector<1x96xf32> to vector<2x96xf32>
    %125 = arith.addf %122, %124 : vector<2x96xf32>
    %126 = vector.extract_strided_slice %120 {offsets = [0, 0], sizes = [2, 64], strides = [1, 1]} : vector<2x96xf32> to vector<2x64xf32>
    %127 = vector.extract_strided_slice %125 {offsets = [0, 0], sizes = [2, 64], strides = [1, 1]} : vector<2x96xf32> to vector<2x64xf32>
    %128 = arith.addf %126, %127 : vector<2x64xf32>
    %129 = arith.negf %128 : vector<2x64xf32>
    %130 = math.exp %129 : vector<2x64xf32>
    %cst_57 = arith.constant 1.000000e+00 : f32
    %131 = vector.broadcast %cst_57 : f32 to vector<2x64xf32>
    %132 = arith.addf %131, %130 : vector<2x64xf32>
    %133 = arith.divf %131, %132 : vector<2x64xf32>
    %134 = vector.extract_strided_slice %133 {offsets = [0, 0], sizes = [2, 32], strides = [1, 1]} : vector<2x64xf32> to vector<2x32xf32>
    %135 = vector.extract_strided_slice %133 {offsets = [0, 32], sizes = [2, 32], strides = [1, 1]} : vector<2x64xf32> to vector<2x32xf32>
    %136 = vector.extract_strided_slice %120 {offsets = [0, 64], sizes = [2, 32], strides = [1, 1]} : vector<2x96xf32> to vector<2x32xf32>
    %137 = vector.extract_strided_slice %125 {offsets = [0, 64], sizes = [2, 32], strides = [1, 1]} : vector<2x96xf32> to vector<2x32xf32>
    %138 = arith.mulf %134, %137 : vector<2x32xf32>
    %139 = arith.addf %136, %138 : vector<2x32xf32>
    %140 = math.tanh %139 : vector<2x32xf32>
    %cst_58 = arith.constant 1.000000e+00 : f32
    %141 = vector.broadcast %cst_58 : f32 to vector<2x32xf32>
    %142 = arith.subf %141, %135 : vector<2x32xf32>
    %143 = arith.mulf %142, %140 : vector<2x32xf32>
    %144 = arith.mulf %135, %16 : vector<2x32xf32>
    %145 = arith.addf %143, %144 : vector<2x32xf32>
    %146 = tpu.concatenate %145, %84 in 1 : vector<2x32xf32>, vector<2x64xf32> -> vector<2x96xf32>
    %c0_59 = arith.constant 0 : index
    %c0_60 = arith.constant 0 : index
    %147 = vector.load %arg14[%c0_59, %c0_60] : memref<96x22xf32, #tpu.memory_space<vmem>>, vector<96x22xf32>
    %cst_61 = arith.constant dense<0.000000e+00> : vector<2x22xf32>
    %148 = tpu.matmul %146, %147, %cst_61 {dimension_numbers = #tpu.dot_dimension_numbers<[1], [0], [0], [1], [0, 0, 1, 1], [], []>} : vector<2x96xf32>, vector<96x22xf32>, vector<2x22xf32> -> vector<2x22xf32>
    %c0_62 = arith.constant 0 : index
    %c0_63 = arith.constant 0 : index
    %149 = vector.load %arg15[%c0_62, %c0_63] : memref<1x22xf32, #tpu.memory_space<vmem>>, vector<1x22xf32>
    %150 = vector.broadcast %149 : vector<1x22xf32> to vector<2x22xf32>
    %151 = arith.addf %148, %150 : vector<2x22xf32>
    %152 = vector.extract_strided_slice %151 {offsets = [0, 0], sizes = [2, 12], strides = [1, 1]} : vector<2x22xf32> to vector<2x12xf32>
    %cst_64 = arith.constant dense<0xFF800000> : vector<2xf32>
    %153 = vector.multi_reduction <maximumf>, %152, %cst_64 [1] : vector<2x12xf32> to vector<2xf32>
    %154 = vector.shape_cast %153 : vector<2xf32> to vector<2x1xf32>
    %155 = vector.broadcast %154 : vector<2x1xf32> to vector<2x12xf32>
    %156 = arith.subf %152, %155 : vector<2x12xf32>
    %157 = math.exp %156 : vector<2x12xf32>
    %cst_65 = arith.constant dense<0.000000e+00> : vector<2xf32>
    %158 = vector.multi_reduction <add>, %157, %cst_65 [1] : vector<2x12xf32> to vector<2xf32>
    %159 = vector.shape_cast %158 : vector<2xf32> to vector<2x1xf32>
    %160 = math.log %159 : vector<2x1xf32>
    %161 = vector.broadcast %160 : vector<2x1xf32> to vector<2x12xf32>
    %162 = arith.subf %156, %161 : vector<2x12xf32>
    %163 = tpu.iota {dimensions = array<i32: 1>} : vector<2x12xi32>
    %164 = vector.broadcast %154 : vector<2x1xf32> to vector<2x12xf32>
    %165 = arith.cmpf oge, %152, %164 : vector<2x12xf32>
    %c12_i32_66 = arith.constant 12 : i32
    %166 = vector.broadcast %c12_i32_66 : i32 to vector<2x12xi32>
    %167 = arith.select %165, %163, %166 : vector<2x12xi1>, vector<2x12xi32>
    %cst_67 = arith.constant dense<2147483647> : vector<2xi32>
    %168 = vector.multi_reduction <minsi>, %167, %cst_67 [1] : vector<2x12xi32> to vector<2xi32>
    %169 = vector.shape_cast %168 : vector<2xi32> to vector<2x1xi32>
    %170 = vector.extract_strided_slice %151 {offsets = [0, 12], sizes = [2, 10], strides = [1, 1]} : vector<2x22xf32> to vector<2x10xf32>
    %cst_68 = arith.constant dense<0xFF800000> : vector<2xf32>
    %171 = vector.multi_reduction <maximumf>, %170, %cst_68 [1] : vector<2x10xf32> to vector<2xf32>
    %172 = vector.shape_cast %171 : vector<2xf32> to vector<2x1xf32>
    %173 = vector.broadcast %172 : vector<2x1xf32> to vector<2x10xf32>
    %174 = arith.subf %170, %173 : vector<2x10xf32>
    %175 = math.exp %174 : vector<2x10xf32>
    %cst_69 = arith.constant dense<0.000000e+00> : vector<2xf32>
    %176 = vector.multi_reduction <add>, %175, %cst_69 [1] : vector<2x10xf32> to vector<2xf32>
    %177 = vector.shape_cast %176 : vector<2xf32> to vector<2x1xf32>
    %178 = math.log %177 : vector<2x1xf32>
    %179 = vector.broadcast %178 : vector<2x1xf32> to vector<2x10xf32>
    %180 = arith.subf %174, %179 : vector<2x10xf32>
    %181 = tpu.iota {dimensions = array<i32: 1>} : vector<2x10xi32>
    %182 = vector.broadcast %172 : vector<2x1xf32> to vector<2x10xf32>
    %183 = arith.cmpf oge, %170, %182 : vector<2x10xf32>
    %c10_i32 = arith.constant 10 : i32
    %184 = vector.broadcast %c10_i32 : i32 to vector<2x10xi32>
    %185 = arith.select %183, %181, %184 : vector<2x10xi1>, vector<2x10xi32>
    %cst_70 = arith.constant dense<2147483647> : vector<2xi32>
    %186 = vector.multi_reduction <minsi>, %185, %cst_70 [1] : vector<2x10xi32> to vector<2xi32>
    %187 = vector.shape_cast %186 : vector<2xi32> to vector<2x1xi32>
    %188 = tpu.concatenate %162, %180 in 1 : vector<2x12xf32>, vector<2x10xf32> -> vector<2x22xf32>
    %189 = vector.broadcast %27 : vector<1x1xf32> to vector<2x22xf32>
    %190 = arith.mulf %188, %189 : vector<2x22xf32>
    %191 = vector.broadcast %27 : vector<1x1xf32> to vector<8x2xf32>
    %192 = arith.mulf %83, %191 : vector<8x2xf32>
    %c2_i32 = arith.constant 2 : i32
    %193 = vector.broadcast %c2_i32 : i32 to vector<2x1xi32>
    %194 = arith.cmpi eq, %187, %193 : vector<2x1xi32>
    %195 = arith.extui %194 : vector<2x1xi1> to vector<2x1xi32>
    %196 = arith.sitofp %195 : vector<2x1xi32> to vector<2x1xf32>
    %197 = arith.maximumf %19, %196 : vector<2x1xf32>
    %cst_71 = arith.constant dense<0.000000e+00> : vector<1xf32>
    %198 = vector.multi_reduction <add>, %197, %cst_71 [0] : vector<2x1xf32> to vector<1xf32>
    %199 = vector.shape_cast %198 : vector<1xf32> to vector<1x1xf32>
    %cst_72 = arith.constant 1.500000e+00 : f32
    %200 = vector.broadcast %cst_72 : f32 to vector<1x1xf32>
    %201 = arith.cmpf oge, %199, %200 : vector<1x1xf32>
    %cst_73 = arith.constant 0.000000e+00 : f32
    %cst_74 = arith.constant 1.000000e+00 : f32
    %202 = vector.broadcast %cst_73 : f32 to vector<1x1xf32>
    %203 = vector.broadcast %cst_74 : f32 to vector<1x1xf32>
    %204 = arith.select %201, %202, %203 : vector<1x1xi1>, vector<1x1xf32>
    %205 = vector.broadcast %169 : vector<2x1xi32> to vector<2x22xi32>
    %206 = arith.cmpi eq, %20, %205 : vector<2x22xi32>
    %c12_i32_75 = arith.constant 12 : i32
    %207 = vector.broadcast %c12_i32_75 : i32 to vector<2x1xi32>
    %208 = arith.addi %187, %207 : vector<2x1xi32>
    %209 = vector.broadcast %208 : vector<2x1xi32> to vector<2x22xi32>
    %210 = arith.cmpi eq, %20, %209 : vector<2x22xi32>
    %211 = arith.ori %206, %210 : vector<2x22xi1>
    %212 = arith.extui %211 : vector<2x22xi1> to vector<2x22xi32>
    %213 = arith.sitofp %212 : vector<2x22xi32> to vector<2x22xf32>
    %c0_76 = arith.constant 0 : index
    %c0_77 = arith.constant 0 : index
    %214 = vector.load %arg5[%c0_76, %c0_77] : memref<22x10xf32, #tpu.memory_space<vmem>>, vector<22x10xf32>
    %cst_78 = arith.constant dense<0.000000e+00> : vector<2x10xf32>
    %215 = tpu.matmul %213, %214, %cst_78 {dimension_numbers = #tpu.dot_dimension_numbers<[1], [0], [0], [1], [0, 0, 1, 1], [], []>} : vector<2x22xf32>, vector<22x10xf32>, vector<2x10xf32> -> vector<2x10xf32>
    %216 = tpu.concatenate %115, %145 in 1 : vector<2x32xf32>, vector<2x32xf32> -> vector<2x64xf32>
    %cst_79 = arith.constant dense<0.000000e+00> : vector<2x32xf32>
    %217 = tpu.matmul %216, %0, %cst_79 {dimension_numbers = #tpu.dot_dimension_numbers<[1], [0], [0], [1], [0, 0, 1, 1], [], []>} : vector<2x64xf32>, vector<64x32xf32>, vector<2x32xf32> -> vector<2x32xf32>
    %218 = vector.extract_strided_slice %217 {offsets = [0, 0], sizes = [1, 32], strides = [1, 1]} : vector<2x32xf32> to vector<1x32xf32>
    %219 = vector.broadcast %218 : vector<1x32xf32> to vector<8x32xf32>
    %220 = arith.addf %10, %219 : vector<8x32xf32>
    %221 = math.tanh %220 : vector<8x32xf32>
    %222 = vector.broadcast %2 : vector<1x32xf32> to vector<8x32xf32>
    %223 = arith.mulf %221, %222 : vector<8x32xf32>
    %cst_80 = arith.constant dense<0.000000e+00> : vector<8xf32>
    %224 = vector.multi_reduction <add>, %223, %cst_80 [1] : vector<8x32xf32> to vector<8xf32>
    %225 = vector.shape_cast %224 : vector<8xf32> to vector<8x1xf32>
    %cst_81 = arith.constant dense<0xFF800000> : vector<1xf32>
    %226 = vector.multi_reduction <maximumf>, %225, %cst_81 [0] : vector<8x1xf32> to vector<1xf32>
    %227 = vector.shape_cast %226 : vector<1xf32> to vector<1x1xf32>
    %228 = vector.broadcast %227 : vector<1x1xf32> to vector<8x1xf32>
    %229 = arith.subf %225, %228 : vector<8x1xf32>
    %230 = math.exp %229 : vector<8x1xf32>
    %cst_82 = arith.constant dense<0.000000e+00> : vector<1xf32>
    %231 = vector.multi_reduction <add>, %230, %cst_82 [0] : vector<8x1xf32> to vector<1xf32>
    %232 = vector.shape_cast %231 : vector<1xf32> to vector<1x1xf32>
    %233 = vector.broadcast %232 : vector<1x1xf32> to vector<8x1xf32>
    %234 = arith.divf %230, %233 : vector<8x1xf32>
    %235 = vector.broadcast %234 : vector<8x1xf32> to vector<8x64xf32>
    %236 = arith.mulf %235, %4 : vector<8x64xf32>
    %cst_83 = arith.constant dense<0.000000e+00> : vector<64xf32>
    %237 = vector.multi_reduction <add>, %236, %cst_83 [0] : vector<8x64xf32> to vector<64xf32>
    %238 = vector.shape_cast %237 : vector<64xf32> to vector<1x64xf32>
    %239 = vector.extract_strided_slice %217 {offsets = [1, 0], sizes = [1, 32], strides = [1, 1]} : vector<2x32xf32> to vector<1x32xf32>
    %240 = vector.broadcast %239 : vector<1x32xf32> to vector<8x32xf32>
    %241 = arith.addf %14, %240 : vector<8x32xf32>
    %242 = math.tanh %241 : vector<8x32xf32>
    %243 = vector.broadcast %2 : vector<1x32xf32> to vector<8x32xf32>
    %244 = arith.mulf %242, %243 : vector<8x32xf32>
    %cst_84 = arith.constant dense<0.000000e+00> : vector<8xf32>
    %245 = vector.multi_reduction <add>, %244, %cst_84 [1] : vector<8x32xf32> to vector<8xf32>
    %246 = vector.shape_cast %245 : vector<8xf32> to vector<8x1xf32>
    %cst_85 = arith.constant dense<0xFF800000> : vector<1xf32>
    %247 = vector.multi_reduction <maximumf>, %246, %cst_85 [0] : vector<8x1xf32> to vector<1xf32>
    %248 = vector.shape_cast %247 : vector<1xf32> to vector<1x1xf32>
    %249 = vector.broadcast %248 : vector<1x1xf32> to vector<8x1xf32>
    %250 = arith.subf %246, %249 : vector<8x1xf32>
    %251 = math.exp %250 : vector<8x1xf32>
    %cst_86 = arith.constant dense<0.000000e+00> : vector<1xf32>
    %252 = vector.multi_reduction <add>, %251, %cst_86 [0] : vector<8x1xf32> to vector<1xf32>
    %253 = vector.shape_cast %252 : vector<1xf32> to vector<1x1xf32>
    %254 = vector.broadcast %253 : vector<1x1xf32> to vector<8x1xf32>
    %255 = arith.divf %251, %254 : vector<8x1xf32>
    %256 = vector.broadcast %255 : vector<8x1xf32> to vector<8x64xf32>
    %257 = arith.mulf %256, %6 : vector<8x64xf32>
    %cst_87 = arith.constant dense<0.000000e+00> : vector<64xf32>
    %258 = vector.multi_reduction <add>, %257, %cst_87 [0] : vector<8x64xf32> to vector<64xf32>
    %259 = vector.shape_cast %258 : vector<64xf32> to vector<1x64xf32>
    %260 = tpu.concatenate %234, %255 in 1 : vector<8x1xf32>, vector<8x1xf32> -> vector<8x2xf32>
    %261 = tpu.concatenate %238, %259 in 0 : vector<1x64xf32>, vector<1x64xf32> -> vector<2x64xf32>
    %262 = tpu.concatenate %215, %261 in 1 : vector<2x10xf32>, vector<2x64xf32> -> vector<2x74xf32>
    %c0_88 = arith.constant 0 : index
    %c0_89 = arith.constant 0 : index
    %263 = vector.load %arg6[%c0_88, %c0_89] : memref<74x96xf32, #tpu.memory_space<vmem>>, vector<74x96xf32>
    %cst_90 = arith.constant dense<0.000000e+00> : vector<2x96xf32>
    %264 = tpu.matmul %262, %263, %cst_90 {dimension_numbers = #tpu.dot_dimension_numbers<[1], [0], [0], [1], [0, 0, 1, 1], [], []>} : vector<2x74xf32>, vector<74x96xf32>, vector<2x96xf32> -> vector<2x96xf32>
    %c0_91 = arith.constant 0 : index
    %c0_92 = arith.constant 0 : index
    %265 = vector.load %arg7[%c0_91, %c0_92] : memref<1x96xf32, #tpu.memory_space<vmem>>, vector<1x96xf32>
    %266 = vector.broadcast %265 : vector<1x96xf32> to vector<2x96xf32>
    %267 = arith.addf %264, %266 : vector<2x96xf32>
    %c0_93 = arith.constant 0 : index
    %c0_94 = arith.constant 0 : index
    %268 = vector.load %arg8[%c0_93, %c0_94] : memref<32x96xf32, #tpu.memory_space<vmem>>, vector<32x96xf32>
    %cst_95 = arith.constant dense<0.000000e+00> : vector<2x96xf32>
    %269 = tpu.matmul %115, %268, %cst_95 {dimension_numbers = #tpu.dot_dimension_numbers<[1], [0], [0], [1], [0, 0, 1, 1], [], []>} : vector<2x32xf32>, vector<32x96xf32>, vector<2x96xf32> -> vector<2x96xf32>
    %c0_96 = arith.constant 0 : index
    %c0_97 = arith.constant 0 : index
    %270 = vector.load %arg9[%c0_96, %c0_97] : memref<1x96xf32, #tpu.memory_space<vmem>>, vector<1x96xf32>
    %271 = vector.broadcast %270 : vector<1x96xf32> to vector<2x96xf32>
    %272 = arith.addf %269, %271 : vector<2x96xf32>
    %273 = vector.extract_strided_slice %267 {offsets = [0, 0], sizes = [2, 64], strides = [1, 1]} : vector<2x96xf32> to vector<2x64xf32>
    %274 = vector.extract_strided_slice %272 {offsets = [0, 0], sizes = [2, 64], strides = [1, 1]} : vector<2x96xf32> to vector<2x64xf32>
    %275 = arith.addf %273, %274 : vector<2x64xf32>
    %276 = arith.negf %275 : vector<2x64xf32>
    %277 = math.exp %276 : vector<2x64xf32>
    %cst_98 = arith.constant 1.000000e+00 : f32
    %278 = vector.broadcast %cst_98 : f32 to vector<2x64xf32>
    %279 = arith.addf %278, %277 : vector<2x64xf32>
    %280 = arith.divf %278, %279 : vector<2x64xf32>
    %281 = vector.extract_strided_slice %280 {offsets = [0, 0], sizes = [2, 32], strides = [1, 1]} : vector<2x64xf32> to vector<2x32xf32>
    %282 = vector.extract_strided_slice %280 {offsets = [0, 32], sizes = [2, 32], strides = [1, 1]} : vector<2x64xf32> to vector<2x32xf32>
    %283 = vector.extract_strided_slice %267 {offsets = [0, 64], sizes = [2, 32], strides = [1, 1]} : vector<2x96xf32> to vector<2x32xf32>
    %284 = vector.extract_strided_slice %272 {offsets = [0, 64], sizes = [2, 32], strides = [1, 1]} : vector<2x96xf32> to vector<2x32xf32>
    %285 = arith.mulf %281, %284 : vector<2x32xf32>
    %286 = arith.addf %283, %285 : vector<2x32xf32>
    %287 = math.tanh %286 : vector<2x32xf32>
    %cst_99 = arith.constant 1.000000e+00 : f32
    %288 = vector.broadcast %cst_99 : f32 to vector<2x32xf32>
    %289 = arith.subf %288, %282 : vector<2x32xf32>
    %290 = arith.mulf %289, %287 : vector<2x32xf32>
    %291 = arith.mulf %282, %115 : vector<2x32xf32>
    %292 = arith.addf %290, %291 : vector<2x32xf32>
    %c0_100 = arith.constant 0 : index
    %c0_101 = arith.constant 0 : index
    %293 = vector.load %arg10[%c0_100, %c0_101] : memref<32x96xf32, #tpu.memory_space<vmem>>, vector<32x96xf32>
    %cst_102 = arith.constant dense<0.000000e+00> : vector<2x96xf32>
    %294 = tpu.matmul %292, %293, %cst_102 {dimension_numbers = #tpu.dot_dimension_numbers<[1], [0], [0], [1], [0, 0, 1, 1], [], []>} : vector<2x32xf32>, vector<32x96xf32>, vector<2x96xf32> -> vector<2x96xf32>
    %c0_103 = arith.constant 0 : index
    %c0_104 = arith.constant 0 : index
    %295 = vector.load %arg11[%c0_103, %c0_104] : memref<1x96xf32, #tpu.memory_space<vmem>>, vector<1x96xf32>
    %296 = vector.broadcast %295 : vector<1x96xf32> to vector<2x96xf32>
    %297 = arith.addf %294, %296 : vector<2x96xf32>
    %c0_105 = arith.constant 0 : index
    %c0_106 = arith.constant 0 : index
    %298 = vector.load %arg12[%c0_105, %c0_106] : memref<32x96xf32, #tpu.memory_space<vmem>>, vector<32x96xf32>
    %cst_107 = arith.constant dense<0.000000e+00> : vector<2x96xf32>
    %299 = tpu.matmul %145, %298, %cst_107 {dimension_numbers = #tpu.dot_dimension_numbers<[1], [0], [0], [1], [0, 0, 1, 1], [], []>} : vector<2x32xf32>, vector<32x96xf32>, vector<2x96xf32> -> vector<2x96xf32>
    %c0_108 = arith.constant 0 : index
    %c0_109 = arith.constant 0 : index
    %300 = vector.load %arg13[%c0_108, %c0_109] : memref<1x96xf32, #tpu.memory_space<vmem>>, vector<1x96xf32>
    %301 = vector.broadcast %300 : vector<1x96xf32> to vector<2x96xf32>
    %302 = arith.addf %299, %301 : vector<2x96xf32>
    %303 = vector.extract_strided_slice %297 {offsets = [0, 0], sizes = [2, 64], strides = [1, 1]} : vector<2x96xf32> to vector<2x64xf32>
    %304 = vector.extract_strided_slice %302 {offsets = [0, 0], sizes = [2, 64], strides = [1, 1]} : vector<2x96xf32> to vector<2x64xf32>
    %305 = arith.addf %303, %304 : vector<2x64xf32>
    %306 = arith.negf %305 : vector<2x64xf32>
    %307 = math.exp %306 : vector<2x64xf32>
    %cst_110 = arith.constant 1.000000e+00 : f32
    %308 = vector.broadcast %cst_110 : f32 to vector<2x64xf32>
    %309 = arith.addf %308, %307 : vector<2x64xf32>
    %310 = arith.divf %308, %309 : vector<2x64xf32>
    %311 = vector.extract_strided_slice %310 {offsets = [0, 0], sizes = [2, 32], strides = [1, 1]} : vector<2x64xf32> to vector<2x32xf32>
    %312 = vector.extract_strided_slice %310 {offsets = [0, 32], sizes = [2, 32], strides = [1, 1]} : vector<2x64xf32> to vector<2x32xf32>
    %313 = vector.extract_strided_slice %297 {offsets = [0, 64], sizes = [2, 32], strides = [1, 1]} : vector<2x96xf32> to vector<2x32xf32>
    %314 = vector.extract_strided_slice %302 {offsets = [0, 64], sizes = [2, 32], strides = [1, 1]} : vector<2x96xf32> to vector<2x32xf32>
    %315 = arith.mulf %311, %314 : vector<2x32xf32>
    %316 = arith.addf %313, %315 : vector<2x32xf32>
    %317 = math.tanh %316 : vector<2x32xf32>
    %cst_111 = arith.constant 1.000000e+00 : f32
    %318 = vector.broadcast %cst_111 : f32 to vector<2x32xf32>
    %319 = arith.subf %318, %312 : vector<2x32xf32>
    %320 = arith.mulf %319, %317 : vector<2x32xf32>
    %321 = arith.mulf %312, %145 : vector<2x32xf32>
    %322 = arith.addf %320, %321 : vector<2x32xf32>
    %323 = tpu.concatenate %322, %261 in 1 : vector<2x32xf32>, vector<2x64xf32> -> vector<2x96xf32>
    %c0_112 = arith.constant 0 : index
    %c0_113 = arith.constant 0 : index
    %324 = vector.load %arg14[%c0_112, %c0_113] : memref<96x22xf32, #tpu.memory_space<vmem>>, vector<96x22xf32>
    %cst_114 = arith.constant dense<0.000000e+00> : vector<2x22xf32>
    %325 = tpu.matmul %323, %324, %cst_114 {dimension_numbers = #tpu.dot_dimension_numbers<[1], [0], [0], [1], [0, 0, 1, 1], [], []>} : vector<2x96xf32>, vector<96x22xf32>, vector<2x22xf32> -> vector<2x22xf32>
    %c0_115 = arith.constant 0 : index
    %c0_116 = arith.constant 0 : index
    %326 = vector.load %arg15[%c0_115, %c0_116] : memref<1x22xf32, #tpu.memory_space<vmem>>, vector<1x22xf32>
    %327 = vector.broadcast %326 : vector<1x22xf32> to vector<2x22xf32>
    %328 = arith.addf %325, %327 : vector<2x22xf32>
    %329 = vector.extract_strided_slice %328 {offsets = [0, 0], sizes = [2, 12], strides = [1, 1]} : vector<2x22xf32> to vector<2x12xf32>
    %cst_117 = arith.constant dense<0xFF800000> : vector<2xf32>
    %330 = vector.multi_reduction <maximumf>, %329, %cst_117 [1] : vector<2x12xf32> to vector<2xf32>
    %331 = vector.shape_cast %330 : vector<2xf32> to vector<2x1xf32>
    %332 = vector.broadcast %331 : vector<2x1xf32> to vector<2x12xf32>
    %333 = arith.subf %329, %332 : vector<2x12xf32>
    %334 = math.exp %333 : vector<2x12xf32>
    %cst_118 = arith.constant dense<0.000000e+00> : vector<2xf32>
    %335 = vector.multi_reduction <add>, %334, %cst_118 [1] : vector<2x12xf32> to vector<2xf32>
    %336 = vector.shape_cast %335 : vector<2xf32> to vector<2x1xf32>
    %337 = math.log %336 : vector<2x1xf32>
    %338 = vector.broadcast %337 : vector<2x1xf32> to vector<2x12xf32>
    %339 = arith.subf %333, %338 : vector<2x12xf32>
    %340 = tpu.iota {dimensions = array<i32: 1>} : vector<2x12xi32>
    %341 = vector.broadcast %331 : vector<2x1xf32> to vector<2x12xf32>
    %342 = arith.cmpf oge, %329, %341 : vector<2x12xf32>
    %c12_i32_119 = arith.constant 12 : i32
    %343 = vector.broadcast %c12_i32_119 : i32 to vector<2x12xi32>
    %344 = arith.select %342, %340, %343 : vector<2x12xi1>, vector<2x12xi32>
    %cst_120 = arith.constant dense<2147483647> : vector<2xi32>
    %345 = vector.multi_reduction <minsi>, %344, %cst_120 [1] : vector<2x12xi32> to vector<2xi32>
    %346 = vector.shape_cast %345 : vector<2xi32> to vector<2x1xi32>
    %347 = vector.extract_strided_slice %328 {offsets = [0, 12], sizes = [2, 10], strides = [1, 1]} : vector<2x22xf32> to vector<2x10xf32>
    %cst_121 = arith.constant dense<0xFF800000> : vector<2xf32>
    %348 = vector.multi_reduction <maximumf>, %347, %cst_121 [1] : vector<2x10xf32> to vector<2xf32>
    %349 = vector.shape_cast %348 : vector<2xf32> to vector<2x1xf32>
    %350 = vector.broadcast %349 : vector<2x1xf32> to vector<2x10xf32>
    %351 = arith.subf %347, %350 : vector<2x10xf32>
    %352 = math.exp %351 : vector<2x10xf32>
    %cst_122 = arith.constant dense<0.000000e+00> : vector<2xf32>
    %353 = vector.multi_reduction <add>, %352, %cst_122 [1] : vector<2x10xf32> to vector<2xf32>
    %354 = vector.shape_cast %353 : vector<2xf32> to vector<2x1xf32>
    %355 = math.log %354 : vector<2x1xf32>
    %356 = vector.broadcast %355 : vector<2x1xf32> to vector<2x10xf32>
    %357 = arith.subf %351, %356 : vector<2x10xf32>
    %358 = tpu.iota {dimensions = array<i32: 1>} : vector<2x10xi32>
    %359 = vector.broadcast %349 : vector<2x1xf32> to vector<2x10xf32>
    %360 = arith.cmpf oge, %347, %359 : vector<2x10xf32>
    %c10_i32_123 = arith.constant 10 : i32
    %361 = vector.broadcast %c10_i32_123 : i32 to vector<2x10xi32>
    %362 = arith.select %360, %358, %361 : vector<2x10xi1>, vector<2x10xi32>
    %cst_124 = arith.constant dense<2147483647> : vector<2xi32>
    %363 = vector.multi_reduction <minsi>, %362, %cst_124 [1] : vector<2x10xi32> to vector<2xi32>
    %364 = vector.shape_cast %363 : vector<2xi32> to vector<2x1xi32>
    %365 = tpu.concatenate %339, %357 in 1 : vector<2x12xf32>, vector<2x10xf32> -> vector<2x22xf32>
    %366 = vector.broadcast %204 : vector<1x1xf32> to vector<2x22xf32>
    %367 = arith.mulf %365, %366 : vector<2x22xf32>
    %368 = vector.broadcast %204 : vector<1x1xf32> to vector<8x2xf32>
    %369 = arith.mulf %260, %368 : vector<8x2xf32>
    %c2_i32_125 = arith.constant 2 : i32
    %370 = vector.broadcast %c2_i32_125 : i32 to vector<2x1xi32>
    %371 = arith.cmpi eq, %364, %370 : vector<2x1xi32>
    %372 = arith.extui %371 : vector<2x1xi1> to vector<2x1xi32>
    %373 = arith.sitofp %372 : vector<2x1xi32> to vector<2x1xf32>
    %374 = arith.maximumf %197, %373 : vector<2x1xf32>
    %cst_126 = arith.constant dense<0.000000e+00> : vector<1xf32>
    %375 = vector.multi_reduction <add>, %374, %cst_126 [0] : vector<2x1xf32> to vector<1xf32>
    %376 = vector.shape_cast %375 : vector<1xf32> to vector<1x1xf32>
    %cst_127 = arith.constant 1.500000e+00 : f32
    %377 = vector.broadcast %cst_127 : f32 to vector<1x1xf32>
    %378 = arith.cmpf oge, %376, %377 : vector<1x1xf32>
    %cst_128 = arith.constant 0.000000e+00 : f32
    %cst_129 = arith.constant 1.000000e+00 : f32
    %379 = vector.broadcast %cst_128 : f32 to vector<1x1xf32>
    %380 = vector.broadcast %cst_129 : f32 to vector<1x1xf32>
    %381 = arith.select %378, %379, %380 : vector<1x1xi1>, vector<1x1xf32>
    %382 = vector.broadcast %346 : vector<2x1xi32> to vector<2x22xi32>
    %383 = arith.cmpi eq, %20, %382 : vector<2x22xi32>
    %c12_i32_130 = arith.constant 12 : i32
    %384 = vector.broadcast %c12_i32_130 : i32 to vector<2x1xi32>
    %385 = arith.addi %364, %384 : vector<2x1xi32>
    %386 = vector.broadcast %385 : vector<2x1xi32> to vector<2x22xi32>
    %387 = arith.cmpi eq, %20, %386 : vector<2x22xi32>
    %388 = arith.ori %383, %387 : vector<2x22xi1>
    %389 = arith.extui %388 : vector<2x22xi1> to vector<2x22xi32>
    %390 = arith.sitofp %389 : vector<2x22xi32> to vector<2x22xf32>
    %c0_131 = arith.constant 0 : index
    %c0_132 = arith.constant 0 : index
    %391 = vector.load %arg5[%c0_131, %c0_132] : memref<22x10xf32, #tpu.memory_space<vmem>>, vector<22x10xf32>
    %cst_133 = arith.constant dense<0.000000e+00> : vector<2x10xf32>
    %392 = tpu.matmul %390, %391, %cst_133 {dimension_numbers = #tpu.dot_dimension_numbers<[1], [0], [0], [1], [0, 0, 1, 1], [], []>} : vector<2x22xf32>, vector<22x10xf32>, vector<2x10xf32> -> vector<2x10xf32>
    %393 = tpu.concatenate %292, %322 in 1 : vector<2x32xf32>, vector<2x32xf32> -> vector<2x64xf32>
    %cst_134 = arith.constant dense<0.000000e+00> : vector<2x32xf32>
    %394 = tpu.matmul %393, %0, %cst_134 {dimension_numbers = #tpu.dot_dimension_numbers<[1], [0], [0], [1], [0, 0, 1, 1], [], []>} : vector<2x64xf32>, vector<64x32xf32>, vector<2x32xf32> -> vector<2x32xf32>
    %395 = vector.extract_strided_slice %394 {offsets = [0, 0], sizes = [1, 32], strides = [1, 1]} : vector<2x32xf32> to vector<1x32xf32>
    %396 = vector.broadcast %395 : vector<1x32xf32> to vector<8x32xf32>
    %397 = arith.addf %10, %396 : vector<8x32xf32>
    %398 = math.tanh %397 : vector<8x32xf32>
    %399 = vector.broadcast %2 : vector<1x32xf32> to vector<8x32xf32>
    %400 = arith.mulf %398, %399 : vector<8x32xf32>
    %cst_135 = arith.constant dense<0.000000e+00> : vector<8xf32>
    %401 = vector.multi_reduction <add>, %400, %cst_135 [1] : vector<8x32xf32> to vector<8xf32>
    %402 = vector.shape_cast %401 : vector<8xf32> to vector<8x1xf32>
    %cst_136 = arith.constant dense<0xFF800000> : vector<1xf32>
    %403 = vector.multi_reduction <maximumf>, %402, %cst_136 [0] : vector<8x1xf32> to vector<1xf32>
    %404 = vector.shape_cast %403 : vector<1xf32> to vector<1x1xf32>
    %405 = vector.broadcast %404 : vector<1x1xf32> to vector<8x1xf32>
    %406 = arith.subf %402, %405 : vector<8x1xf32>
    %407 = math.exp %406 : vector<8x1xf32>
    %cst_137 = arith.constant dense<0.000000e+00> : vector<1xf32>
    %408 = vector.multi_reduction <add>, %407, %cst_137 [0] : vector<8x1xf32> to vector<1xf32>
    %409 = vector.shape_cast %408 : vector<1xf32> to vector<1x1xf32>
    %410 = vector.broadcast %409 : vector<1x1xf32> to vector<8x1xf32>
    %411 = arith.divf %407, %410 : vector<8x1xf32>
    %412 = vector.broadcast %411 : vector<8x1xf32> to vector<8x64xf32>
    %413 = arith.mulf %412, %4 : vector<8x64xf32>
    %cst_138 = arith.constant dense<0.000000e+00> : vector<64xf32>
    %414 = vector.multi_reduction <add>, %413, %cst_138 [0] : vector<8x64xf32> to vector<64xf32>
    %415 = vector.shape_cast %414 : vector<64xf32> to vector<1x64xf32>
    %416 = vector.extract_strided_slice %394 {offsets = [1, 0], sizes = [1, 32], strides = [1, 1]} : vector<2x32xf32> to vector<1x32xf32>
    %417 = vector.broadcast %416 : vector<1x32xf32> to vector<8x32xf32>
    %418 = arith.addf %14, %417 : vector<8x32xf32>
    %419 = math.tanh %418 : vector<8x32xf32>
    %420 = vector.broadcast %2 : vector<1x32xf32> to vector<8x32xf32>
    %421 = arith.mulf %419, %420 : vector<8x32xf32>
    %cst_139 = arith.constant dense<0.000000e+00> : vector<8xf32>
    %422 = vector.multi_reduction <add>, %421, %cst_139 [1] : vector<8x32xf32> to vector<8xf32>
    %423 = vector.shape_cast %422 : vector<8xf32> to vector<8x1xf32>
    %cst_140 = arith.constant dense<0xFF800000> : vector<1xf32>
    %424 = vector.multi_reduction <maximumf>, %423, %cst_140 [0] : vector<8x1xf32> to vector<1xf32>
    %425 = vector.shape_cast %424 : vector<1xf32> to vector<1x1xf32>
    %426 = vector.broadcast %425 : vector<1x1xf32> to vector<8x1xf32>
    %427 = arith.subf %423, %426 : vector<8x1xf32>
    %428 = math.exp %427 : vector<8x1xf32>
    %cst_141 = arith.constant dense<0.000000e+00> : vector<1xf32>
    %429 = vector.multi_reduction <add>, %428, %cst_141 [0] : vector<8x1xf32> to vector<1xf32>
    %430 = vector.shape_cast %429 : vector<1xf32> to vector<1x1xf32>
    %431 = vector.broadcast %430 : vector<1x1xf32> to vector<8x1xf32>
    %432 = arith.divf %428, %431 : vector<8x1xf32>
    %433 = vector.broadcast %432 : vector<8x1xf32> to vector<8x64xf32>
    %434 = arith.mulf %433, %6 : vector<8x64xf32>
    %cst_142 = arith.constant dense<0.000000e+00> : vector<64xf32>
    %435 = vector.multi_reduction <add>, %434, %cst_142 [0] : vector<8x64xf32> to vector<64xf32>
    %436 = vector.shape_cast %435 : vector<64xf32> to vector<1x64xf32>
    %437 = tpu.concatenate %411, %432 in 1 : vector<8x1xf32>, vector<8x1xf32> -> vector<8x2xf32>
    %438 = tpu.concatenate %415, %436 in 0 : vector<1x64xf32>, vector<1x64xf32> -> vector<2x64xf32>
    %439 = tpu.concatenate %392, %438 in 1 : vector<2x10xf32>, vector<2x64xf32> -> vector<2x74xf32>
    %c0_143 = arith.constant 0 : index
    %c0_144 = arith.constant 0 : index
    %440 = vector.load %arg6[%c0_143, %c0_144] : memref<74x96xf32, #tpu.memory_space<vmem>>, vector<74x96xf32>
    %cst_145 = arith.constant dense<0.000000e+00> : vector<2x96xf32>
    %441 = tpu.matmul %439, %440, %cst_145 {dimension_numbers = #tpu.dot_dimension_numbers<[1], [0], [0], [1], [0, 0, 1, 1], [], []>} : vector<2x74xf32>, vector<74x96xf32>, vector<2x96xf32> -> vector<2x96xf32>
    %c0_146 = arith.constant 0 : index
    %c0_147 = arith.constant 0 : index
    %442 = vector.load %arg7[%c0_146, %c0_147] : memref<1x96xf32, #tpu.memory_space<vmem>>, vector<1x96xf32>
    %443 = vector.broadcast %442 : vector<1x96xf32> to vector<2x96xf32>
    %444 = arith.addf %441, %443 : vector<2x96xf32>
    %c0_148 = arith.constant 0 : index
    %c0_149 = arith.constant 0 : index
    %445 = vector.load %arg8[%c0_148, %c0_149] : memref<32x96xf32, #tpu.memory_space<vmem>>, vector<32x96xf32>
    %cst_150 = arith.constant dense<0.000000e+00> : vector<2x96xf32>
    %446 = tpu.matmul %292, %445, %cst_150 {dimension_numbers = #tpu.dot_dimension_numbers<[1], [0], [0], [1], [0, 0, 1, 1], [], []>} : vector<2x32xf32>, vector<32x96xf32>, vector<2x96xf32> -> vector<2x96xf32>
    %c0_151 = arith.constant 0 : index
    %c0_152 = arith.constant 0 : index
    %447 = vector.load %arg9[%c0_151, %c0_152] : memref<1x96xf32, #tpu.memory_space<vmem>>, vector<1x96xf32>
    %448 = vector.broadcast %447 : vector<1x96xf32> to vector<2x96xf32>
    %449 = arith.addf %446, %448 : vector<2x96xf32>
    %450 = vector.extract_strided_slice %444 {offsets = [0, 0], sizes = [2, 64], strides = [1, 1]} : vector<2x96xf32> to vector<2x64xf32>
    %451 = vector.extract_strided_slice %449 {offsets = [0, 0], sizes = [2, 64], strides = [1, 1]} : vector<2x96xf32> to vector<2x64xf32>
    %452 = arith.addf %450, %451 : vector<2x64xf32>
    %453 = arith.negf %452 : vector<2x64xf32>
    %454 = math.exp %453 : vector<2x64xf32>
    %cst_153 = arith.constant 1.000000e+00 : f32
    %455 = vector.broadcast %cst_153 : f32 to vector<2x64xf32>
    %456 = arith.addf %455, %454 : vector<2x64xf32>
    %457 = arith.divf %455, %456 : vector<2x64xf32>
    %458 = vector.extract_strided_slice %457 {offsets = [0, 0], sizes = [2, 32], strides = [1, 1]} : vector<2x64xf32> to vector<2x32xf32>
    %459 = vector.extract_strided_slice %457 {offsets = [0, 32], sizes = [2, 32], strides = [1, 1]} : vector<2x64xf32> to vector<2x32xf32>
    %460 = vector.extract_strided_slice %444 {offsets = [0, 64], sizes = [2, 32], strides = [1, 1]} : vector<2x96xf32> to vector<2x32xf32>
    %461 = vector.extract_strided_slice %449 {offsets = [0, 64], sizes = [2, 32], strides = [1, 1]} : vector<2x96xf32> to vector<2x32xf32>
    %462 = arith.mulf %458, %461 : vector<2x32xf32>
    %463 = arith.addf %460, %462 : vector<2x32xf32>
    %464 = math.tanh %463 : vector<2x32xf32>
    %cst_154 = arith.constant 1.000000e+00 : f32
    %465 = vector.broadcast %cst_154 : f32 to vector<2x32xf32>
    %466 = arith.subf %465, %459 : vector<2x32xf32>
    %467 = arith.mulf %466, %464 : vector<2x32xf32>
    %468 = arith.mulf %459, %292 : vector<2x32xf32>
    %469 = arith.addf %467, %468 : vector<2x32xf32>
    %c0_155 = arith.constant 0 : index
    %c0_156 = arith.constant 0 : index
    %470 = vector.load %arg10[%c0_155, %c0_156] : memref<32x96xf32, #tpu.memory_space<vmem>>, vector<32x96xf32>
    %cst_157 = arith.constant dense<0.000000e+00> : vector<2x96xf32>
    %471 = tpu.matmul %469, %470, %cst_157 {dimension_numbers = #tpu.dot_dimension_numbers<[1], [0], [0], [1], [0, 0, 1, 1], [], []>} : vector<2x32xf32>, vector<32x96xf32>, vector<2x96xf32> -> vector<2x96xf32>
    %c0_158 = arith.constant 0 : index
    %c0_159 = arith.constant 0 : index
    %472 = vector.load %arg11[%c0_158, %c0_159] : memref<1x96xf32, #tpu.memory_space<vmem>>, vector<1x96xf32>
    %473 = vector.broadcast %472 : vector<1x96xf32> to vector<2x96xf32>
    %474 = arith.addf %471, %473 : vector<2x96xf32>
    %c0_160 = arith.constant 0 : index
    %c0_161 = arith.constant 0 : index
    %475 = vector.load %arg12[%c0_160, %c0_161] : memref<32x96xf32, #tpu.memory_space<vmem>>, vector<32x96xf32>
    %cst_162 = arith.constant dense<0.000000e+00> : vector<2x96xf32>
    %476 = tpu.matmul %322, %475, %cst_162 {dimension_numbers = #tpu.dot_dimension_numbers<[1], [0], [0], [1], [0, 0, 1, 1], [], []>} : vector<2x32xf32>, vector<32x96xf32>, vector<2x96xf32> -> vector<2x96xf32>
    %c0_163 = arith.constant 0 : index
    %c0_164 = arith.constant 0 : index
    %477 = vector.load %arg13[%c0_163, %c0_164] : memref<1x96xf32, #tpu.memory_space<vmem>>, vector<1x96xf32>
    %478 = vector.broadcast %477 : vector<1x96xf32> to vector<2x96xf32>
    %479 = arith.addf %476, %478 : vector<2x96xf32>
    %480 = vector.extract_strided_slice %474 {offsets = [0, 0], sizes = [2, 64], strides = [1, 1]} : vector<2x96xf32> to vector<2x64xf32>
    %481 = vector.extract_strided_slice %479 {offsets = [0, 0], sizes = [2, 64], strides = [1, 1]} : vector<2x96xf32> to vector<2x64xf32>
    %482 = arith.addf %480, %481 : vector<2x64xf32>
    %483 = arith.negf %482 : vector<2x64xf32>
    %484 = math.exp %483 : vector<2x64xf32>
    %cst_165 = arith.constant 1.000000e+00 : f32
    %485 = vector.broadcast %cst_165 : f32 to vector<2x64xf32>
    %486 = arith.addf %485, %484 : vector<2x64xf32>
    %487 = arith.divf %485, %486 : vector<2x64xf32>
    %488 = vector.extract_strided_slice %487 {offsets = [0, 0], sizes = [2, 32], strides = [1, 1]} : vector<2x64xf32> to vector<2x32xf32>
    %489 = vector.extract_strided_slice %487 {offsets = [0, 32], sizes = [2, 32], strides = [1, 1]} : vector<2x64xf32> to vector<2x32xf32>
    %490 = vector.extract_strided_slice %474 {offsets = [0, 64], sizes = [2, 32], strides = [1, 1]} : vector<2x96xf32> to vector<2x32xf32>
    %491 = vector.extract_strided_slice %479 {offsets = [0, 64], sizes = [2, 32], strides = [1, 1]} : vector<2x96xf32> to vector<2x32xf32>
    %492 = arith.mulf %488, %491 : vector<2x32xf32>
    %493 = arith.addf %490, %492 : vector<2x32xf32>
    %494 = math.tanh %493 : vector<2x32xf32>
    %cst_166 = arith.constant 1.000000e+00 : f32
    %495 = vector.broadcast %cst_166 : f32 to vector<2x32xf32>
    %496 = arith.subf %495, %489 : vector<2x32xf32>
    %497 = arith.mulf %496, %494 : vector<2x32xf32>
    %498 = arith.mulf %489, %322 : vector<2x32xf32>
    %499 = arith.addf %497, %498 : vector<2x32xf32>
    %500 = tpu.concatenate %499, %438 in 1 : vector<2x32xf32>, vector<2x64xf32> -> vector<2x96xf32>
    %c0_167 = arith.constant 0 : index
    %c0_168 = arith.constant 0 : index
    %501 = vector.load %arg14[%c0_167, %c0_168] : memref<96x22xf32, #tpu.memory_space<vmem>>, vector<96x22xf32>
    %cst_169 = arith.constant dense<0.000000e+00> : vector<2x22xf32>
    %502 = tpu.matmul %500, %501, %cst_169 {dimension_numbers = #tpu.dot_dimension_numbers<[1], [0], [0], [1], [0, 0, 1, 1], [], []>} : vector<2x96xf32>, vector<96x22xf32>, vector<2x22xf32> -> vector<2x22xf32>
    %c0_170 = arith.constant 0 : index
    %c0_171 = arith.constant 0 : index
    %503 = vector.load %arg15[%c0_170, %c0_171] : memref<1x22xf32, #tpu.memory_space<vmem>>, vector<1x22xf32>
    %504 = vector.broadcast %503 : vector<1x22xf32> to vector<2x22xf32>
    %505 = arith.addf %502, %504 : vector<2x22xf32>
    %506 = vector.extract_strided_slice %505 {offsets = [0, 0], sizes = [2, 12], strides = [1, 1]} : vector<2x22xf32> to vector<2x12xf32>
    %cst_172 = arith.constant dense<0xFF800000> : vector<2xf32>
    %507 = vector.multi_reduction <maximumf>, %506, %cst_172 [1] : vector<2x12xf32> to vector<2xf32>
    %508 = vector.shape_cast %507 : vector<2xf32> to vector<2x1xf32>
    %509 = vector.broadcast %508 : vector<2x1xf32> to vector<2x12xf32>
    %510 = arith.subf %506, %509 : vector<2x12xf32>
    %511 = math.exp %510 : vector<2x12xf32>
    %cst_173 = arith.constant dense<0.000000e+00> : vector<2xf32>
    %512 = vector.multi_reduction <add>, %511, %cst_173 [1] : vector<2x12xf32> to vector<2xf32>
    %513 = vector.shape_cast %512 : vector<2xf32> to vector<2x1xf32>
    %514 = math.log %513 : vector<2x1xf32>
    %515 = vector.broadcast %514 : vector<2x1xf32> to vector<2x12xf32>
    %516 = arith.subf %510, %515 : vector<2x12xf32>
    %517 = tpu.iota {dimensions = array<i32: 1>} : vector<2x12xi32>
    %518 = vector.broadcast %508 : vector<2x1xf32> to vector<2x12xf32>
    %519 = arith.cmpf oge, %506, %518 : vector<2x12xf32>
    %c12_i32_174 = arith.constant 12 : i32
    %520 = vector.broadcast %c12_i32_174 : i32 to vector<2x12xi32>
    %521 = arith.select %519, %517, %520 : vector<2x12xi1>, vector<2x12xi32>
    %cst_175 = arith.constant dense<2147483647> : vector<2xi32>
    %522 = vector.multi_reduction <minsi>, %521, %cst_175 [1] : vector<2x12xi32> to vector<2xi32>
    %523 = vector.shape_cast %522 : vector<2xi32> to vector<2x1xi32>
    %524 = vector.extract_strided_slice %505 {offsets = [0, 12], sizes = [2, 10], strides = [1, 1]} : vector<2x22xf32> to vector<2x10xf32>
    %cst_176 = arith.constant dense<0xFF800000> : vector<2xf32>
    %525 = vector.multi_reduction <maximumf>, %524, %cst_176 [1] : vector<2x10xf32> to vector<2xf32>
    %526 = vector.shape_cast %525 : vector<2xf32> to vector<2x1xf32>
    %527 = vector.broadcast %526 : vector<2x1xf32> to vector<2x10xf32>
    %528 = arith.subf %524, %527 : vector<2x10xf32>
    %529 = math.exp %528 : vector<2x10xf32>
    %cst_177 = arith.constant dense<0.000000e+00> : vector<2xf32>
    %530 = vector.multi_reduction <add>, %529, %cst_177 [1] : vector<2x10xf32> to vector<2xf32>
    %531 = vector.shape_cast %530 : vector<2xf32> to vector<2x1xf32>
    %532 = math.log %531 : vector<2x1xf32>
    %533 = vector.broadcast %532 : vector<2x1xf32> to vector<2x10xf32>
    %534 = arith.subf %528, %533 : vector<2x10xf32>
    %535 = tpu.iota {dimensions = array<i32: 1>} : vector<2x10xi32>
    %536 = vector.broadcast %526 : vector<2x1xf32> to vector<2x10xf32>
    %537 = arith.cmpf oge, %524, %536 : vector<2x10xf32>
    %c10_i32_178 = arith.constant 10 : i32
    %538 = vector.broadcast %c10_i32_178 : i32 to vector<2x10xi32>
    %539 = arith.select %537, %535, %538 : vector<2x10xi1>, vector<2x10xi32>
    %cst_179 = arith.constant dense<2147483647> : vector<2xi32>
    %540 = vector.multi_reduction <minsi>, %539, %cst_179 [1] : vector<2x10xi32> to vector<2xi32>
    %541 = vector.shape_cast %540 : vector<2xi32> to vector<2x1xi32>
    %542 = tpu.concatenate %516, %534 in 1 : vector<2x12xf32>, vector<2x10xf32> -> vector<2x22xf32>
    %543 = vector.broadcast %381 : vector<1x1xf32> to vector<2x22xf32>
    %544 = arith.mulf %542, %543 : vector<2x22xf32>
    %545 = vector.broadcast %381 : vector<1x1xf32> to vector<8x2xf32>
    %546 = arith.mulf %437, %545 : vector<8x2xf32>
    %c2_i32_180 = arith.constant 2 : i32
    %547 = vector.broadcast %c2_i32_180 : i32 to vector<2x1xi32>
    %548 = arith.cmpi eq, %541, %547 : vector<2x1xi32>
    %549 = arith.extui %548 : vector<2x1xi1> to vector<2x1xi32>
    %550 = arith.sitofp %549 : vector<2x1xi32> to vector<2x1xf32>
    %551 = arith.maximumf %374, %550 : vector<2x1xf32>
    %cst_181 = arith.constant dense<0.000000e+00> : vector<1xf32>
    %552 = vector.multi_reduction <add>, %551, %cst_181 [0] : vector<2x1xf32> to vector<1xf32>
    %553 = vector.shape_cast %552 : vector<1xf32> to vector<1x1xf32>
    %cst_182 = arith.constant 1.500000e+00 : f32
    %554 = vector.broadcast %cst_182 : f32 to vector<1x1xf32>
    %555 = arith.cmpf oge, %553, %554 : vector<1x1xf32>
    %cst_183 = arith.constant 0.000000e+00 : f32
    %cst_184 = arith.constant 1.000000e+00 : f32
    %556 = vector.broadcast %cst_183 : f32 to vector<1x1xf32>
    %557 = vector.broadcast %cst_184 : f32 to vector<1x1xf32>
    %558 = arith.select %555, %556, %557 : vector<1x1xi1>, vector<1x1xf32>
    %559 = vector.broadcast %523 : vector<2x1xi32> to vector<2x22xi32>
    %560 = arith.cmpi eq, %20, %559 : vector<2x22xi32>
    %c12_i32_185 = arith.constant 12 : i32
    %561 = vector.broadcast %c12_i32_185 : i32 to vector<2x1xi32>
    %562 = arith.addi %541, %561 : vector<2x1xi32>
    %563 = vector.broadcast %562 : vector<2x1xi32> to vector<2x22xi32>
    %564 = arith.cmpi eq, %20, %563 : vector<2x22xi32>
    %565 = arith.ori %560, %564 : vector<2x22xi1>
    %566 = arith.extui %565 : vector<2x22xi1> to vector<2x22xi32>
    %567 = arith.sitofp %566 : vector<2x22xi32> to vector<2x22xf32>
    %c0_186 = arith.constant 0 : index
    %c0_187 = arith.constant 0 : index
    %568 = vector.load %arg5[%c0_186, %c0_187] : memref<22x10xf32, #tpu.memory_space<vmem>>, vector<22x10xf32>
    %cst_188 = arith.constant dense<0.000000e+00> : vector<2x10xf32>
    %569 = tpu.matmul %567, %568, %cst_188 {dimension_numbers = #tpu.dot_dimension_numbers<[1], [0], [0], [1], [0, 0, 1, 1], [], []>} : vector<2x22xf32>, vector<22x10xf32>, vector<2x10xf32> -> vector<2x10xf32>
    %570 = tpu.concatenate %469, %499 in 1 : vector<2x32xf32>, vector<2x32xf32> -> vector<2x64xf32>
    %cst_189 = arith.constant dense<0.000000e+00> : vector<2x32xf32>
    %571 = tpu.matmul %570, %0, %cst_189 {dimension_numbers = #tpu.dot_dimension_numbers<[1], [0], [0], [1], [0, 0, 1, 1], [], []>} : vector<2x64xf32>, vector<64x32xf32>, vector<2x32xf32> -> vector<2x32xf32>
    %572 = vector.extract_strided_slice %571 {offsets = [0, 0], sizes = [1, 32], strides = [1, 1]} : vector<2x32xf32> to vector<1x32xf32>
    %573 = vector.broadcast %572 : vector<1x32xf32> to vector<8x32xf32>
    %574 = arith.addf %10, %573 : vector<8x32xf32>
    %575 = math.tanh %574 : vector<8x32xf32>
    %576 = vector.broadcast %2 : vector<1x32xf32> to vector<8x32xf32>
    %577 = arith.mulf %575, %576 : vector<8x32xf32>
    %cst_190 = arith.constant dense<0.000000e+00> : vector<8xf32>
    %578 = vector.multi_reduction <add>, %577, %cst_190 [1] : vector<8x32xf32> to vector<8xf32>
    %579 = vector.shape_cast %578 : vector<8xf32> to vector<8x1xf32>
    %cst_191 = arith.constant dense<0xFF800000> : vector<1xf32>
    %580 = vector.multi_reduction <maximumf>, %579, %cst_191 [0] : vector<8x1xf32> to vector<1xf32>
    %581 = vector.shape_cast %580 : vector<1xf32> to vector<1x1xf32>
    %582 = vector.broadcast %581 : vector<1x1xf32> to vector<8x1xf32>
    %583 = arith.subf %579, %582 : vector<8x1xf32>
    %584 = math.exp %583 : vector<8x1xf32>
    %cst_192 = arith.constant dense<0.000000e+00> : vector<1xf32>
    %585 = vector.multi_reduction <add>, %584, %cst_192 [0] : vector<8x1xf32> to vector<1xf32>
    %586 = vector.shape_cast %585 : vector<1xf32> to vector<1x1xf32>
    %587 = vector.broadcast %586 : vector<1x1xf32> to vector<8x1xf32>
    %588 = arith.divf %584, %587 : vector<8x1xf32>
    %589 = vector.broadcast %588 : vector<8x1xf32> to vector<8x64xf32>
    %590 = arith.mulf %589, %4 : vector<8x64xf32>
    %cst_193 = arith.constant dense<0.000000e+00> : vector<64xf32>
    %591 = vector.multi_reduction <add>, %590, %cst_193 [0] : vector<8x64xf32> to vector<64xf32>
    %592 = vector.shape_cast %591 : vector<64xf32> to vector<1x64xf32>
    %593 = vector.extract_strided_slice %571 {offsets = [1, 0], sizes = [1, 32], strides = [1, 1]} : vector<2x32xf32> to vector<1x32xf32>
    %594 = vector.broadcast %593 : vector<1x32xf32> to vector<8x32xf32>
    %595 = arith.addf %14, %594 : vector<8x32xf32>
    %596 = math.tanh %595 : vector<8x32xf32>
    %597 = vector.broadcast %2 : vector<1x32xf32> to vector<8x32xf32>
    %598 = arith.mulf %596, %597 : vector<8x32xf32>
    %cst_194 = arith.constant dense<0.000000e+00> : vector<8xf32>
    %599 = vector.multi_reduction <add>, %598, %cst_194 [1] : vector<8x32xf32> to vector<8xf32>
    %600 = vector.shape_cast %599 : vector<8xf32> to vector<8x1xf32>
    %cst_195 = arith.constant dense<0xFF800000> : vector<1xf32>
    %601 = vector.multi_reduction <maximumf>, %600, %cst_195 [0] : vector<8x1xf32> to vector<1xf32>
    %602 = vector.shape_cast %601 : vector<1xf32> to vector<1x1xf32>
    %603 = vector.broadcast %602 : vector<1x1xf32> to vector<8x1xf32>
    %604 = arith.subf %600, %603 : vector<8x1xf32>
    %605 = math.exp %604 : vector<8x1xf32>
    %cst_196 = arith.constant dense<0.000000e+00> : vector<1xf32>
    %606 = vector.multi_reduction <add>, %605, %cst_196 [0] : vector<8x1xf32> to vector<1xf32>
    %607 = vector.shape_cast %606 : vector<1xf32> to vector<1x1xf32>
    %608 = vector.broadcast %607 : vector<1x1xf32> to vector<8x1xf32>
    %609 = arith.divf %605, %608 : vector<8x1xf32>
    %610 = vector.broadcast %609 : vector<8x1xf32> to vector<8x64xf32>
    %611 = arith.mulf %610, %6 : vector<8x64xf32>
    %cst_197 = arith.constant dense<0.000000e+00> : vector<64xf32>
    %612 = vector.multi_reduction <add>, %611, %cst_197 [0] : vector<8x64xf32> to vector<64xf32>
    %613 = vector.shape_cast %612 : vector<64xf32> to vector<1x64xf32>
    %614 = tpu.concatenate %588, %609 in 1 : vector<8x1xf32>, vector<8x1xf32> -> vector<8x2xf32>
    %615 = tpu.concatenate %592, %613 in 0 : vector<1x64xf32>, vector<1x64xf32> -> vector<2x64xf32>
    %616 = tpu.concatenate %569, %615 in 1 : vector<2x10xf32>, vector<2x64xf32> -> vector<2x74xf32>
    %c0_198 = arith.constant 0 : index
    %c0_199 = arith.constant 0 : index
    %617 = vector.load %arg6[%c0_198, %c0_199] : memref<74x96xf32, #tpu.memory_space<vmem>>, vector<74x96xf32>
    %cst_200 = arith.constant dense<0.000000e+00> : vector<2x96xf32>
    %618 = tpu.matmul %616, %617, %cst_200 {dimension_numbers = #tpu.dot_dimension_numbers<[1], [0], [0], [1], [0, 0, 1, 1], [], []>} : vector<2x74xf32>, vector<74x96xf32>, vector<2x96xf32> -> vector<2x96xf32>
    %c0_201 = arith.constant 0 : index
    %c0_202 = arith.constant 0 : index
    %619 = vector.load %arg7[%c0_201, %c0_202] : memref<1x96xf32, #tpu.memory_space<vmem>>, vector<1x96xf32>
    %620 = vector.broadcast %619 : vector<1x96xf32> to vector<2x96xf32>
    %621 = arith.addf %618, %620 : vector<2x96xf32>
    %c0_203 = arith.constant 0 : index
    %c0_204 = arith.constant 0 : index
    %622 = vector.load %arg8[%c0_203, %c0_204] : memref<32x96xf32, #tpu.memory_space<vmem>>, vector<32x96xf32>
    %cst_205 = arith.constant dense<0.000000e+00> : vector<2x96xf32>
    %623 = tpu.matmul %469, %622, %cst_205 {dimension_numbers = #tpu.dot_dimension_numbers<[1], [0], [0], [1], [0, 0, 1, 1], [], []>} : vector<2x32xf32>, vector<32x96xf32>, vector<2x96xf32> -> vector<2x96xf32>
    %c0_206 = arith.constant 0 : index
    %c0_207 = arith.constant 0 : index
    %624 = vector.load %arg9[%c0_206, %c0_207] : memref<1x96xf32, #tpu.memory_space<vmem>>, vector<1x96xf32>
    %625 = vector.broadcast %624 : vector<1x96xf32> to vector<2x96xf32>
    %626 = arith.addf %623, %625 : vector<2x96xf32>
    %627 = vector.extract_strided_slice %621 {offsets = [0, 0], sizes = [2, 64], strides = [1, 1]} : vector<2x96xf32> to vector<2x64xf32>
    %628 = vector.extract_strided_slice %626 {offsets = [0, 0], sizes = [2, 64], strides = [1, 1]} : vector<2x96xf32> to vector<2x64xf32>
    %629 = arith.addf %627, %628 : vector<2x64xf32>
    %630 = arith.negf %629 : vector<2x64xf32>
    %631 = math.exp %630 : vector<2x64xf32>
    %cst_208 = arith.constant 1.000000e+00 : f32
    %632 = vector.broadcast %cst_208 : f32 to vector<2x64xf32>
    %633 = arith.addf %632, %631 : vector<2x64xf32>
    %634 = arith.divf %632, %633 : vector<2x64xf32>
    %635 = vector.extract_strided_slice %634 {offsets = [0, 0], sizes = [2, 32], strides = [1, 1]} : vector<2x64xf32> to vector<2x32xf32>
    %636 = vector.extract_strided_slice %634 {offsets = [0, 32], sizes = [2, 32], strides = [1, 1]} : vector<2x64xf32> to vector<2x32xf32>
    %637 = vector.extract_strided_slice %621 {offsets = [0, 64], sizes = [2, 32], strides = [1, 1]} : vector<2x96xf32> to vector<2x32xf32>
    %638 = vector.extract_strided_slice %626 {offsets = [0, 64], sizes = [2, 32], strides = [1, 1]} : vector<2x96xf32> to vector<2x32xf32>
    %639 = arith.mulf %635, %638 : vector<2x32xf32>
    %640 = arith.addf %637, %639 : vector<2x32xf32>
    %641 = math.tanh %640 : vector<2x32xf32>
    %cst_209 = arith.constant 1.000000e+00 : f32
    %642 = vector.broadcast %cst_209 : f32 to vector<2x32xf32>
    %643 = arith.subf %642, %636 : vector<2x32xf32>
    %644 = arith.mulf %643, %641 : vector<2x32xf32>
    %645 = arith.mulf %636, %469 : vector<2x32xf32>
    %646 = arith.addf %644, %645 : vector<2x32xf32>
    %c0_210 = arith.constant 0 : index
    %c0_211 = arith.constant 0 : index
    %647 = vector.load %arg10[%c0_210, %c0_211] : memref<32x96xf32, #tpu.memory_space<vmem>>, vector<32x96xf32>
    %cst_212 = arith.constant dense<0.000000e+00> : vector<2x96xf32>
    %648 = tpu.matmul %646, %647, %cst_212 {dimension_numbers = #tpu.dot_dimension_numbers<[1], [0], [0], [1], [0, 0, 1, 1], [], []>} : vector<2x32xf32>, vector<32x96xf32>, vector<2x96xf32> -> vector<2x96xf32>
    %c0_213 = arith.constant 0 : index
    %c0_214 = arith.constant 0 : index
    %649 = vector.load %arg11[%c0_213, %c0_214] : memref<1x96xf32, #tpu.memory_space<vmem>>, vector<1x96xf32>
    %650 = vector.broadcast %649 : vector<1x96xf32> to vector<2x96xf32>
    %651 = arith.addf %648, %650 : vector<2x96xf32>
    %c0_215 = arith.constant 0 : index
    %c0_216 = arith.constant 0 : index
    %652 = vector.load %arg12[%c0_215, %c0_216] : memref<32x96xf32, #tpu.memory_space<vmem>>, vector<32x96xf32>
    %cst_217 = arith.constant dense<0.000000e+00> : vector<2x96xf32>
    %653 = tpu.matmul %499, %652, %cst_217 {dimension_numbers = #tpu.dot_dimension_numbers<[1], [0], [0], [1], [0, 0, 1, 1], [], []>} : vector<2x32xf32>, vector<32x96xf32>, vector<2x96xf32> -> vector<2x96xf32>
    %c0_218 = arith.constant 0 : index
    %c0_219 = arith.constant 0 : index
    %654 = vector.load %arg13[%c0_218, %c0_219] : memref<1x96xf32, #tpu.memory_space<vmem>>, vector<1x96xf32>
    %655 = vector.broadcast %654 : vector<1x96xf32> to vector<2x96xf32>
    %656 = arith.addf %653, %655 : vector<2x96xf32>
    %657 = vector.extract_strided_slice %651 {offsets = [0, 0], sizes = [2, 64], strides = [1, 1]} : vector<2x96xf32> to vector<2x64xf32>
    %658 = vector.extract_strided_slice %656 {offsets = [0, 0], sizes = [2, 64], strides = [1, 1]} : vector<2x96xf32> to vector<2x64xf32>
    %659 = arith.addf %657, %658 : vector<2x64xf32>
    %660 = arith.negf %659 : vector<2x64xf32>
    %661 = math.exp %660 : vector<2x64xf32>
    %cst_220 = arith.constant 1.000000e+00 : f32
    %662 = vector.broadcast %cst_220 : f32 to vector<2x64xf32>
    %663 = arith.addf %662, %661 : vector<2x64xf32>
    %664 = arith.divf %662, %663 : vector<2x64xf32>
    %665 = vector.extract_strided_slice %664 {offsets = [0, 0], sizes = [2, 32], strides = [1, 1]} : vector<2x64xf32> to vector<2x32xf32>
    %666 = vector.extract_strided_slice %664 {offsets = [0, 32], sizes = [2, 32], strides = [1, 1]} : vector<2x64xf32> to vector<2x32xf32>
    %667 = vector.extract_strided_slice %651 {offsets = [0, 64], sizes = [2, 32], strides = [1, 1]} : vector<2x96xf32> to vector<2x32xf32>
    %668 = vector.extract_strided_slice %656 {offsets = [0, 64], sizes = [2, 32], strides = [1, 1]} : vector<2x96xf32> to vector<2x32xf32>
    %669 = arith.mulf %665, %668 : vector<2x32xf32>
    %670 = arith.addf %667, %669 : vector<2x32xf32>
    %671 = math.tanh %670 : vector<2x32xf32>
    %cst_221 = arith.constant 1.000000e+00 : f32
    %672 = vector.broadcast %cst_221 : f32 to vector<2x32xf32>
    %673 = arith.subf %672, %666 : vector<2x32xf32>
    %674 = arith.mulf %673, %671 : vector<2x32xf32>
    %675 = arith.mulf %666, %499 : vector<2x32xf32>
    %676 = arith.addf %674, %675 : vector<2x32xf32>
    %677 = tpu.concatenate %676, %615 in 1 : vector<2x32xf32>, vector<2x64xf32> -> vector<2x96xf32>
    %c0_222 = arith.constant 0 : index
    %c0_223 = arith.constant 0 : index
    %678 = vector.load %arg14[%c0_222, %c0_223] : memref<96x22xf32, #tpu.memory_space<vmem>>, vector<96x22xf32>
    %cst_224 = arith.constant dense<0.000000e+00> : vector<2x22xf32>
    %679 = tpu.matmul %677, %678, %cst_224 {dimension_numbers = #tpu.dot_dimension_numbers<[1], [0], [0], [1], [0, 0, 1, 1], [], []>} : vector<2x96xf32>, vector<96x22xf32>, vector<2x22xf32> -> vector<2x22xf32>
    %c0_225 = arith.constant 0 : index
    %c0_226 = arith.constant 0 : index
    %680 = vector.load %arg15[%c0_225, %c0_226] : memref<1x22xf32, #tpu.memory_space<vmem>>, vector<1x22xf32>
    %681 = vector.broadcast %680 : vector<1x22xf32> to vector<2x22xf32>
    %682 = arith.addf %679, %681 : vector<2x22xf32>
    %683 = vector.extract_strided_slice %682 {offsets = [0, 0], sizes = [2, 12], strides = [1, 1]} : vector<2x22xf32> to vector<2x12xf32>
    %cst_227 = arith.constant dense<0xFF800000> : vector<2xf32>
    %684 = vector.multi_reduction <maximumf>, %683, %cst_227 [1] : vector<2x12xf32> to vector<2xf32>
    %685 = vector.shape_cast %684 : vector<2xf32> to vector<2x1xf32>
    %686 = vector.broadcast %685 : vector<2x1xf32> to vector<2x12xf32>
    %687 = arith.subf %683, %686 : vector<2x12xf32>
    %688 = math.exp %687 : vector<2x12xf32>
    %cst_228 = arith.constant dense<0.000000e+00> : vector<2xf32>
    %689 = vector.multi_reduction <add>, %688, %cst_228 [1] : vector<2x12xf32> to vector<2xf32>
    %690 = vector.shape_cast %689 : vector<2xf32> to vector<2x1xf32>
    %691 = math.log %690 : vector<2x1xf32>
    %692 = vector.broadcast %691 : vector<2x1xf32> to vector<2x12xf32>
    %693 = arith.subf %687, %692 : vector<2x12xf32>
    %694 = vector.extract_strided_slice %682 {offsets = [0, 12], sizes = [2, 10], strides = [1, 1]} : vector<2x22xf32> to vector<2x10xf32>
    %cst_229 = arith.constant dense<0xFF800000> : vector<2xf32>
    %695 = vector.multi_reduction <maximumf>, %694, %cst_229 [1] : vector<2x10xf32> to vector<2xf32>
    %696 = vector.shape_cast %695 : vector<2xf32> to vector<2x1xf32>
    %697 = vector.broadcast %696 : vector<2x1xf32> to vector<2x10xf32>
    %698 = arith.subf %694, %697 : vector<2x10xf32>
    %699 = math.exp %698 : vector<2x10xf32>
    %cst_230 = arith.constant dense<0.000000e+00> : vector<2xf32>
    %700 = vector.multi_reduction <add>, %699, %cst_230 [1] : vector<2x10xf32> to vector<2xf32>
    %701 = vector.shape_cast %700 : vector<2xf32> to vector<2x1xf32>
    %702 = math.log %701 : vector<2x1xf32>
    %703 = vector.broadcast %702 : vector<2x1xf32> to vector<2x10xf32>
    %704 = arith.subf %698, %703 : vector<2x10xf32>
    %705 = tpu.concatenate %693, %704 in 1 : vector<2x12xf32>, vector<2x10xf32> -> vector<2x22xf32>
    %706 = vector.broadcast %558 : vector<1x1xf32> to vector<2x22xf32>
    %707 = arith.mulf %705, %706 : vector<2x22xf32>
    %708 = vector.broadcast %558 : vector<1x1xf32> to vector<8x2xf32>
    %709 = arith.mulf %614, %708 : vector<8x2xf32>
    %710 = vector.shape_cast %190 : vector<2x22xf32> to vector<1x2x22xf32>
    %711 = vector.shape_cast %367 : vector<2x22xf32> to vector<1x2x22xf32>
    %712 = vector.shape_cast %544 : vector<2x22xf32> to vector<1x2x22xf32>
    %713 = vector.shape_cast %707 : vector<2x22xf32> to vector<1x2x22xf32>
    %714 = tpu.concatenate %710, %711, %712, %713 in 0 : vector<1x2x22xf32>, vector<1x2x22xf32>, vector<1x2x22xf32>, vector<1x2x22xf32> -> vector<4x2x22xf32>
    %c0_231 = arith.constant 0 : index
    %c0_232 = arith.constant 0 : index
    %c0_233 = arith.constant 0 : index
    %715 = vector.load %arg16[%c0_231, %c0_232, %c0_233] : memref<4x2x22xf32, #tpu.memory_space<vmem>>, vector<4x2x22xf32>
    tpu.vector_store %arg16[%c0_231, %c0_232, %c0_233], %714 {strides = array<i32>} : memref<4x2x22xf32, #tpu.memory_space<vmem>>, vector<4x2x22xf32>,
    %716 = vector.shape_cast %192 : vector<8x2xf32> to vector<1x8x2xf32>
    %717 = vector.shape_cast %369 : vector<8x2xf32> to vector<1x8x2xf32>
    %718 = vector.shape_cast %546 : vector<8x2xf32> to vector<1x8x2xf32>
    %719 = vector.shape_cast %709 : vector<8x2xf32> to vector<1x8x2xf32>
    %720 = tpu.concatenate %716, %717, %718, %719 in 0 : vector<1x8x2xf32>, vector<1x8x2xf32>, vector<1x8x2xf32>, vector<1x8x2xf32> -> vector<4x8x2xf32>
    %c0_234 = arith.constant 0 : index
    %c0_235 = arith.constant 0 : index
    %c0_236 = arith.constant 0 : index
    %721 = vector.load %arg17[%c0_234, %c0_235, %c0_236] : memref<4x8x2xf32, #tpu.memory_space<vmem>>, vector<4x8x2xf32>
    tpu.vector_store %arg17[%c0_234, %c0_235, %c0_236], %720 {strides = array<i32>} : memref<4x8x2xf32, #tpu.memory_space<vmem>>, vector<4x8x2xf32>,
    return
  }
}

</mosaic_0001>

<llo_original>
// kernel: seq2seq_forward.2
$region0: #{seq2seq_forward.2}
  #allocation0 [shape = 'u32[]', space=smem, size = 0x4, offset = 0x4, fixed_abs, tag = 'smem constant byte address 0x4 - core index']
  #allocation1 [shape = 'u32[144,128]{1,0:T(1,128)}', space=vmem, size = 0x12000, scoped, tag = 'internal scratch']
  %s0 = inlined_call_operand.vmem [shape: f32[16,16], index: 0, kind: input, shape index: {}]
  %s1 = inlined_call_operand.hbm [shape: f32[16,192], index: 1, kind: input, shape index: {}]
  %s2 = inlined_call_operand.vmem [shape: f32[1,192], index: 2, kind: input, shape index: {}]
  %s3 = inlined_call_operand.vmem [shape: f32[64,192], index: 3, kind: input, shape index: {}]
  %s4 = inlined_call_operand.hbm [shape: f32[1,192], index: 4, kind: input, shape index: {}]
  %s5 = inlined_call_operand.vmem [shape: f32[64,192], index: 5, kind: input, shape index: {}]
  %s6 = inlined_call_operand.hbm [shape: f32[1,192], index: 6, kind: input, shape index: {}]
  %s7 = inlined_call_operand.hbm [shape: f32[64,192], index: 7, kind: input, shape index: {}]
  %s8 = inlined_call_operand.hbm [shape: f32[1,192], index: 8, kind: input, shape index: {}]
  %s9 = inlined_call_operand.vmem [shape: f32[64,32], index: 9, kind: input, shape index: {}]
  %s10 = inlined_call_operand.hbm [shape: f32[1,32], index: 10, kind: input, shape index: {}]
  %s11 = inlined_call_operand.vmem [shape: f32[8,2,64], index: 11, kind: output, shape index: {0}]
  %s12 = inlined_call_operand.vmem [shape: f32[4,32], index: 12, kind: output, shape index: {1}]
  %13 = xla_tuple %s11, %s12
  %s14 = sld [smem:[#allocation0]]
  $region86: #{seq2seq_forward.2} parent=0
    _
  %s16 = ssub.s32 1, %s14
  %s17 = scalar_select 0, %s16, %s14
  $region1: #{seq2seq_forward.2} parent=0
    #allocation2 [shape = 'u8[16384]{0}', space=vmem, size = 0x4000, scoped, tag = 'input window, operand 1, single buffered']
    #allocation3 [shape = 's32[1]{0}', space=sflag, size = 0x4, scoped, tag = 'scoped memory for seq2seq_forward.2']
    #allocation4 [shape = 'u8[1024]{0}', space=vmem, size = 0x400, scoped, tag = 'input window, operand 4, single buffered']
    #allocation5 [shape = 's32[1]{0}', space=sflag, size = 0x4, scoped, tag = 'scoped memory for seq2seq_forward.2']
    #allocation6 [shape = 'u8[1024]{0}', space=vmem, size = 0x400, scoped, tag = 'input window, operand 6, single buffered']
    #allocation7 [shape = 'u8[65536]{0}', space=vmem, size = 0x10000, scoped, tag = 'input window, operand 7, single buffered']
    #allocation8 [shape = 's32[1]{0}', space=sflag, size = 0x4, scoped, tag = 'scoped memory for seq2seq_forward.2']
    #allocation9 [shape = 'u8[1024]{0}', space=vmem, size = 0x400, scoped, tag = 'input window, operand 8, single buffered']
    #allocation10 [shape = 'u8[512]{0}', space=vmem, size = 0x400, scoped, tag = 'input window, operand 10, single buffered']
    #allocation11 [shape = 's32[1]{0}', space=sflag, size = 0x4, scoped, tag = 'scoped memory for seq2seq_forward.2']
    %18 = vsyncpa [#allocation3], 0
    %19 = vsyncpa [#allocation5], 0
    %20 = vsyncpa [#allocation8], 0
    %21 = vsyncpa [#allocation11], 0
    // Predicated region
    $region2: #{seq2seq_forward.2} parent=1 // pred_check
      _
    $region3: #{seq2seq_forward.2} parent=1 // pred_check_branch
      %23 = sbr.rel (0) target = $region5
    $region4: #{seq2seq_forward.2} parent=1 // pred_region
      _
    $region5: #{seq2seq_forward.2} parent=1 // pred_fallthru
      _
    // Predicated region
    $region6: #{seq2seq_forward.2} parent=1 // pred_check
      _
    $region7: #{seq2seq_forward.2} parent=1 // pred_check_branch
      %25 = sbr.rel (0) target = $region9
    $region8: #{seq2seq_forward.2} parent=1 // pred_region
      %s27 = ssub.s32 512, 512
      %28 = vsyncadd [#allocation3], %s27
      %s29 = sshll.u32 [#allocation2], 4
      %s30 = int_to_ptr.vmem [resolvable:$true] %s29
      %35 = dma.hbm_to_vmem [thread:$0]  %s1, 512, %s30, [#allocation3], 256, 256, 16
    $region9: #{seq2seq_forward.2} parent=1 // pred_fallthru
      _
    // Predicated region
    $region10: #{seq2seq_forward.2} parent=1 // pred_check
      _
    $region11: #{seq2seq_forward.2} parent=1 // pred_check_branch
      %37 = sbr.rel (0) target = $region13
    $region12: #{seq2seq_forward.2} parent=1 // pred_region
      _
    $region13: #{seq2seq_forward.2} parent=1 // pred_fallthru
      _
    // Predicated region
    $region14: #{seq2seq_forward.2} parent=1 // pred_check
      _
    $region15: #{seq2seq_forward.2} parent=1 // pred_check_branch
      %39 = sbr.rel (0) target = $region17
    $region16: #{seq2seq_forward.2} parent=1 // pred_region
      _
    $region17: #{seq2seq_forward.2} parent=1 // pred_fallthru
      _
    // Predicated region
    $region18: #{seq2seq_forward.2} parent=1 // pred_check
      _
    $region19: #{seq2seq_forward.2} parent=1 // pred_check_branch
      %41 = sbr.rel (0) target = $region21
    $region20: #{seq2seq_forward.2} parent=1 // pred_region
      %s43 = ssub.s32 32, 32
      %44 = vsyncadd [#allocation5], %s43
      %s46 = sshll.u32 [#allocation4], 4
      %s47 = int_to_ptr.vmem [resolvable:$true] %s46
      %49 = dma.hbm_to_vmem [thread:$0]  %s4, 32, %s47, [#allocation5]
    $region21: #{seq2seq_forward.2} parent=1 // pred_fallthru
      _
    // Predicated region
    $region22: #{seq2seq_forward.2} parent=1 // pred_check
      _
    $region23: #{seq2seq_forward.2} parent=1 // pred_check_branch
      %51 = sbr.rel (0) target = $region25
    $region24: #{seq2seq_forward.2} parent=1 // pred_region
      _
    $region25: #{seq2seq_forward.2} parent=1 // pred_fallthru
      _
    // Predicated region
    $region26: #{seq2seq_forward.2} parent=1 // pred_check
      _
    $region27: #{seq2seq_forward.2} parent=1 // pred_check_branch
      %53 = sbr.rel (0) target = $region29
    $region28: #{seq2seq_forward.2} parent=1 // pred_region
      %s55 = ssub.s32 32, 32
      %56 = vsyncadd [#allocation5], %s55
      %s58 = sshll.u32 [#allocation6], 4
      %s59 = int_to_ptr.vmem [resolvable:$true] %s58
      %61 = dma.hbm_to_vmem [thread:$0]  %s6, 32, %s59, [#allocation5]
    $region29: #{seq2seq_forward.2} parent=1 // pred_fallthru
      _
    // Predicated region
    $region30: #{seq2seq_forward.2} parent=1 // pred_check
      _
    $region31: #{seq2seq_forward.2} parent=1 // pred_check_branch
      %63 = sbr.rel (0) target = $region33
    $region32: #{seq2seq_forward.2} parent=1 // pred_region
      %s65 = ssub.s32 2048, 2048
      %66 = vsyncadd [#allocation8], %s65
      %s67 = sshll.u32 [#allocation7], 4
      %s68 = int_to_ptr.vmem [resolvable:$true] %s67
      %73 = dma.hbm_to_vmem [thread:$0]  %s7, 2048, %s68, [#allocation8], 256, 256, 16
    $region33: #{seq2seq_forward.2} parent=1 // pred_fallthru
      _
    // Predicated region
    $region34: #{seq2seq_forward.2} parent=1 // pred_check
      _
    $region35: #{seq2seq_forward.2} parent=1 // pred_check_branch
      %75 = sbr.rel (0) target = $region37
    $region36: #{seq2seq_forward.2} parent=1 // pred_region
      %s77 = ssub.s32 32, 32
      %78 = vsyncadd [#allocation8], %s77
      %s80 = sshll.u32 [#allocation9], 4
      %s81 = int_to_ptr.vmem [resolvable:$true] %s80
      %83 = dma.hbm_to_vmem [thread:$0]  %s8, 32, %s81, [#allocation8]
    $region37: #{seq2seq_forward.2} parent=1 // pred_fallthru
      _
    // Predicated region
    $region38: #{seq2seq_forward.2} parent=1 // pred_check
      _
    $region39: #{seq2seq_forward.2} parent=1 // pred_check_branch
      %85 = sbr.rel (0) target = $region41
    $region40: #{seq2seq_forward.2} parent=1 // pred_region
      _
    $region41: #{seq2seq_forward.2} parent=1 // pred_fallthru
      _
    // Predicated region
    $region42: #{seq2seq_forward.2} parent=1 // pred_check
      _
    $region43: #{seq2seq_forward.2} parent=1 // pred_check_branch
      %87 = sbr.rel (0) target = $region45
    $region44: #{seq2seq_forward.2} parent=1 // pred_region
      %s89 = ssub.s32 16, 16
      %90 = vsyncadd [#allocation11], %s89
      %s92 = sshll.u32 [#allocation10], 4
      %s93 = int_to_ptr.vmem [resolvable:$true] %s92
      %95 = dma.hbm_to_vmem [thread:$0]  %s10, 16, %s93, [#allocation11]
    $region45: #{seq2seq_forward.2} parent=1 // pred_fallthru
      _
    // Predicated region
    $region46: #{seq2seq_forward.2} parent=1 // pred_check
      _
    $region47: #{seq2seq_forward.2} parent=1 // pred_check_branch
      %97 = sbr.rel (0) target = $region49
    $region48: #{seq2seq_forward.2} parent=1 // pred_region
      %98 = dma.done [#allocation3], 512
    $region49: #{seq2seq_forward.2} parent=1 // pred_fallthru
      _
    // Predicated region
    $region50: #{seq2seq_forward.2} parent=1 // pred_check
      _
    $region51: #{seq2seq_forward.2} parent=1 // pred_check_branch
      %100 = sbr.rel (0) target = $region53
    $region52: #{seq2seq_forward.2} parent=1 // pred_region
      %101 = dma.done [#allocation5], 32
    $region53: #{seq2seq_forward.2} parent=1 // pred_fallthru
      _
    // Predicated region
    $region54: #{seq2seq_forward.2} parent=1 // pred_check
      _
    $region55: #{seq2seq_forward.2} parent=1 // pred_check_branch
      %103 = sbr.rel (0) target = $region57
    $region56: #{seq2seq_forward.2} parent=1 // pred_region
      %104 = dma.done [#allocation5], 32
    $region57: #{seq2seq_forward.2} parent=1 // pred_fallthru
      _
    // Predicated region
    $region58: #{seq2seq_forward.2} parent=1 // pred_check
      _
    $region59: #{seq2seq_forward.2} parent=1 // pred_check_branch
      %106 = sbr.rel (0) target = $region61
    $region60: #{seq2seq_forward.2} parent=1 // pred_region
      %107 = dma.done [#allocation8], 2048
    $region61: #{seq2seq_forward.2} parent=1 // pred_fallthru
      _
    // Predicated region
    $region62: #{seq2seq_forward.2} parent=1 // pred_check
      _
    $region63: #{seq2seq_forward.2} parent=1 // pred_check_branch
      %109 = sbr.rel (0) target = $region65
    $region64: #{seq2seq_forward.2} parent=1 // pred_region
      %110 = dma.done [#allocation8], 32
    $region65: #{seq2seq_forward.2} parent=1 // pred_fallthru
      _
    // Predicated region
    $region66: #{seq2seq_forward.2} parent=1 // pred_check
      _
    $region67: #{seq2seq_forward.2} parent=1 // pred_check_branch
      %112 = sbr.rel (0) target = $region69
    $region68: #{seq2seq_forward.2} parent=1 // pred_region
      %113 = dma.done [#allocation11], 16
    $region69: #{seq2seq_forward.2} parent=1 // pred_fallthru
      _
    %v114 = vld [vmem:[%s0] sm:$0xff]
    %v115 = vld [vmem:[%s0 + $0x8] sm:$0xff]
    %v116 = vld [vmem:[#allocation2] sm:$0xff]
    %v117 = vld [vmem:[#allocation2 + $0x8] sm:$0xff]
    %v118 = vld [vmem:[#allocation2 + $0x10] sm:$0xff]
    %v119 = vld [vmem:[#allocation2 + $0x18] sm:$0xff]
    %v120 = vld [vmem:[%s2] sm:$0x3]
    %v122 = vlaneseq
    %v123 = vshrl.u32 %v122, 7
    %v124 = vsub.s32 0, %v123
    %v125 = vrot.slane %v120, %v124
    %v126 = vlaneseq
    %v127 = vshrl.u32 %v126, 7
    %v128 = vsub.s32 1, %v127
    %v129 = vrot.slane %v120, %v128
    %vm132 = vcmask 130048
    %v134 = vsel %vm132, %v114, 0
    %v137 = vsel %vm132, %v115, 0
    %139 = vmatprep.subr.mxu0 %v117
    %140 = vmatpush1.msra.mxu0 %v116
    %141 = vmatprep.subr.mxu0 %v119
    %142 = vmatpush1.msra.mxu0 %v118
    %143 = vmatprep.subr.mxu0 0.0
    %144 = vmatpush1.msra.mxu0 0.0
    %145 = vmatprep.subr.mxu0 0.0
    %146 = vmatpush1.msra.mxu0 0.0
    %147 = vmatprep.subr.mxu0 0.0
    %148 = vmatpush1.msra.mxu0 0.0
    %149 = vmatprep.subr.mxu0 0.0
    %150 = vmatpush1.msra.mxu0 0.0
    %151 = vmatprep.subr.mxu0 0.0
    %152 = vmatpush1.msra.mxu0 0.0
    %153 = vmatprep.subr.mxu0 0.0
    %154 = vmatpush1.msra.mxu0 0.0
    %155 = vmatprep.subr.mxu0 0.0
    %156 = vmatpush1.msra.mxu0 0.0
    %157 = vmatprep.subr.mxu0 0.0
    %158 = vmatpush1.msra.mxu0 0.0
    %159 = vmatprep.subr.mxu0 0.0
    %160 = vmatpush1.msra.mxu0 0.0
    %161 = vmatprep.subr.mxu0 0.0
    %162 = vmatpush1.msra.mxu0 0.0
    %163 = vmatprep.subr.mxu0 0.0
    %164 = vmatpush1.msra.mxu0 0.0
    %165 = vmatprep.subr.mxu0 0.0
    %166 = vmatpush1.msra.mxu0 0.0
    %167 = vmatprep.subr.mxu0 0.0
    %168 = vmatpush1.msra.mxu0 0.0
    %169 = vmatprep.subr.mxu0 0.0
    %170 = vmatpush1.msra.mxu0 0.0
    %171 = vmatprep.subr.mxu0 0.0
    %172 = vmatpush1.msra.mxu0 0.0
    %173 = vmatprep.subr.mxu0 0.0
    %174 = vmatpush1.msra.mxu0 0.0
    %175 = vmatprep.subr.mxu0 0.0
    %176 = vmatpush1.msra.mxu0 0.0
    %177 = vmatprep.subr.mxu0 0.0
    %178 = vmatpush1.msra.mxu0 0.0
    %179 = vmatprep.subr.mxu0 0.0
    %180 = vmatpush1.msra.mxu0 0.0
    %181 = vmatprep.subr.mxu0 0.0
    %182 = vmatpush1.msra.mxu0 0.0
    %183 = vmatprep.subr.mxu0 0.0
    %184 = vmatpush1.msra.mxu0 0.0
    %185 = vmatprep.subr.mxu0 0.0
    %186 = vmatpush1.msra.mxu0 0.0
    %187 = vmatprep.subr.mxu0 0.0
    %188 = vmatpush1.msra.mxu0 0.0
    %189 = vmatprep.subr.mxu0 0.0
    %190 = vmatpush1.msra.mxu0 0.0
    %191 = vmatprep.subr.mxu0 0.0
    %192 = vmatpush1.msra.mxu0 0.0
    %193 = vmatprep.subr.mxu0 0.0
    %194 = vmatpush1.msra.mxu0 0.0
    %195 = vmatprep.subr.mxu0 0.0
    %196 = vmatpush1.msra.mxu0 0.0
    %197 = vmatprep.subr.mxu0 0.0
    %198 = vmatpush1.msra.mxu0 0.0
    %199 = vmatprep.subr.mxu0 0.0
    %200 = vmatpush1.msra.mxu0 0.0
    %201 = vmatprep.subr.mxu0 0.0
    %202 = vmatpush1.msra.mxu0 0.0
    %203 = vmatprep.mubr.f32.mxu0 0.0
    %204 = vmatmul.mubr.f32.gmra.mrb[0].mxu0 %v134
    %v205 = vpop.f32.mrb[0].mxu0
    %v206 = vadd.f32 %v125, %v205
    %v207 = vpop.f32.mrb[0].mxu0
    %v208 = vadd.f32 %v129, %v207
    %209 = vmatprep.mubr.f32.mxu0 0.0
    %210 = vmatmul.mubr.f32.gmra.mrb[0].mxu0 %v137
    %v211 = vpop.f32.mrb[0].mxu0
    %v212 = vadd.f32 %v125, %v211
    %v213 = vpop.f32.mrb[0].mxu0
    %v214 = vadd.f32 %v129, %v213
    %215 = vdwg.mxu0
    %v216 = vld [vmem:[%s3] sm:$0xff]
    %v217 = vld [vmem:[%s3 + $0x8] sm:$0xff]
    %v218 = vld [vmem:[%s3 + $0x10] sm:$0xff]
    %v219 = vld [vmem:[%s3 + $0x18] sm:$0xff]
    %v220 = vld [vmem:[%s3 + $0x20] sm:$0xff]
    %v221 = vld [vmem:[%s3 + $0x28] sm:$0xff]
    %v222 = vld [vmem:[%s3 + $0x30] sm:$0xff]
    %v223 = vld [vmem:[%s3 + $0x38] sm:$0xff]
    %v224 = vld [vmem:[%s3 + $0x40] sm:$0xff]
    %v225 = vld [vmem:[%s3 + $0x48] sm:$0xff]
    %v226 = vld [vmem:[%s3 + $0x50] sm:$0xff]
    %v227 = vld [vmem:[%s3 + $0x58] sm:$0xff]
    %v228 = vld [vmem:[%s3 + $0x60] sm:$0xff]
    %v229 = vld [vmem:[%s3 + $0x68] sm:$0xff]
    %v230 = vld [vmem:[%s3 + $0x70] sm:$0xff]
    %v231 = vld [vmem:[%s3 + $0x78] sm:$0xff]
    %v232 = vld [vmem:[#allocation4] sm:$0x3]
    %v234 = vlaneseq
    %v235 = vshrl.u32 %v234, 7
    %v236 = vsub.s32 0, %v235
    %v237 = vrot.slane %v232, %v236
    %v238 = vlaneseq
    %v239 = vshrl.u32 %v238, 7
    %v240 = vsub.s32 1, %v239
    %v241 = vrot.slane %v232, %v240
    %vm244 = vcmask 523264
    %v246 = vsel %vm244, 0.0, 0
    %248 = vmatprep.subr.mxu0 %v217
    %249 = vmatpush1.msra.mxu0 %v216
    %250 = vmatprep.subr.mxu0 %v219
    %251 = vmatpush1.msra.mxu0 %v218
    %252 = vmatprep.subr.mxu0 %v221
    %253 = vmatpush1.msra.mxu0 %v220
    %254 = vmatprep.subr.mxu0 %v223
    %255 = vmatpush1.msra.mxu0 %v222
    %256 = vmatprep.subr.mxu0 %v225
    %257 = vmatpush1.msra.mxu0 %v224
    %258 = vmatprep.subr.mxu0 %v227
    %259 = vmatpush1.msra.mxu0 %v226
    %260 = vmatprep.subr.mxu0 %v229
    %261 = vmatpush1.msra.mxu0 %v228
    %262 = vmatprep.subr.mxu0 %v231
    %263 = vmatpush1.msra.mxu0 %v230
    %264 = vmatprep.subr.mxu0 0.0
    %265 = vmatpush1.msra.mxu0 0.0
    %266 = vmatprep.subr.mxu0 0.0
    %267 = vmatpush1.msra.mxu0 0.0
    %268 = vmatprep.subr.mxu0 0.0
    %269 = vmatpush1.msra.mxu0 0.0
    %270 = vmatprep.subr.mxu0 0.0
    %271 = vmatpush1.msra.mxu0 0.0
    %272 = vmatprep.subr.mxu0 0.0
    %273 = vmatpush1.msra.mxu0 0.0
    %274 = vmatprep.subr.mxu0 0.0
    %275 = vmatpush1.msra.mxu0 0.0
    %276 = vmatprep.subr.mxu0 0.0
    %277 = vmatpush1.msra.mxu0 0.0
    %278 = vmatprep.subr.mxu0 0.0
    %279 = vmatpush1.msra.mxu0 0.0
    %280 = vmatprep.subr.mxu0 0.0
    %281 = vmatpush1.msra.mxu0 0.0
    %282 = vmatprep.subr.mxu0 0.0
    %283 = vmatpush1.msra.mxu0 0.0
    %284 = vmatprep.subr.mxu0 0.0
    %285 = vmatpush1.msra.mxu0 0.0
    %286 = vmatprep.subr.mxu0 0.0
    %287 = vmatpush1.msra.mxu0 0.0
    %288 = vmatprep.subr.mxu0 0.0
    %289 = vmatpush1.msra.mxu0 0.0
    %290 = vmatprep.subr.mxu0 0.0
    %291 = vmatpush1.msra.mxu0 0.0
    %292 = vmatprep.subr.mxu0 0.0
    %293 = vmatpush1.msra.mxu0 0.0
    %294 = vmatprep.subr.mxu0 0.0
    %295 = vmatpush1.msra.mxu0 0.0
    %296 = vmatprep.subr.mxu0 0.0
    %297 = vmatpush1.msra.mxu0 0.0
    %298 = vmatprep.subr.mxu0 0.0
    %299 = vmatpush1.msra.mxu0 0.0
    %300 = vmatprep.subr.mxu0 0.0
    %301 = vmatpush1.msra.mxu0 0.0
    %302 = vmatprep.subr.mxu0 0.0
    %303 = vmatpush1.msra.mxu0 0.0
    %304 = vmatprep.subr.mxu0 0.0
    %305 = vmatpush1.msra.mxu0 0.0
    %306 = vmatprep.subr.mxu0 0.0
    %307 = vmatpush1.msra.mxu0 0.0
    %308 = vmatprep.subr.mxu0 0.0
    %309 = vmatpush1.msra.mxu0 0.0
    %310 = vmatprep.subr.mxu0 0.0
    %311 = vmatpush1.msra.mxu0 0.0
    %312 = vmatprep.mubr.f32.mxu0 0.0
    %313 = vmatmul.mubr.f32.gmra.mrb[0].mxu0 %v246
    %v314 = vpop.f32.mrb[0].mxu0
    %v315 = vadd.f32 %v237, %v314
    %v316 = vpop.f32.mrb[0].mxu0
    %v317 = vadd.f32 %v241, %v316
    %318 = vdwg.mxu0
    %v319 = vadd.f32 %v206, %v315
    %v320 = vxor.u32 %v319, 2147483648
    %v321 = vmul.f32 %v320, 1.442695
    %v322 = vpow.pop %v321
    %v323 = vadd.f32 %v322, 1.0
    %v324 = vrcp.pop %v323
    %v325 = vmul.f32 1.0, %v324
    %327 = vrot.lane.b32.xlu0 %v315, 64
    %v328 = vpop.permute.xlu0 %327
    %v330 = vmul.f32 %v325, %v328
    %332 = vrot.lane.b32.xlu0 %v330, 64
    %v333 = vpop.permute.xlu0 %332
    %v335 = vadd.f32 %v206, %v333
    %v336 = vtanh.pop %v335
    %v337 = vsub.f32 1.0, %v325
    %339 = vrot.lane.b32.xlu0 %v336, 96
    %v340 = vpop.permute.xlu0 %339
    %v342 = vmul.f32 %v337, %v340
    %v343 = vmul.f32 %v325, 0.0
    %v344 = vadd.f32 %v342, %v343
    %v346 = vrot.slane %v315, 2
    %v347 = vrot.slane %v317, 2
    %v350 = vadd.f32 %v212, %v346
    %v351 = vadd.f32 %v214, %v347
    %v352 = vxor.u32 %v350, 2147483648
    %v353 = vxor.u32 %v351, 2147483648
    %v354 = vmul.f32 %v352, 1.442695
    %v355 = vpow.pop %v354
    %v356 = vmul.f32 %v353, 1.442695
    %v357 = vpow.pop %v356
    %v358 = vadd.f32 %v355, 1.0
    %v359 = vadd.f32 %v357, 1.0
    %v360 = vrcp.pop %v358
    %v361 = vmul.f32 1.0, %v360
    %v362 = vrcp.pop %v359
    %v363 = vmul.f32 1.0, %v362
    %364 = vrot.lane.b32.xlu0 %v347, 64
    %v365 = vpop.permute.xlu0 %364
    %v367 = vmul.f32 %v361, %v365
    %369 = vrot.lane.b32.xlu0 %v367, 64
    %v370 = vpop.permute.xlu0 %369
    %v372 = vadd.f32 %v214, %v370
    %v373 = vtanh.pop %v372
    %v374 = vsub.f32 1.0, %v363
    %376 = vrot.lane.b32.xlu0 %v373, 96
    %v377 = vpop.permute.xlu0 %376
    %v379 = vmul.f32 %v374, %v377
    %v380 = vmul.f32 %v363, 0.0
    %v381 = vadd.f32 %v379, %v380
    %383 = vrot.lane.b32.xlu0 %v344, 96
    %v384 = vpop.permute.xlu0 %383
    %v387 = vrot.slane %v381, 6
    %388 = vrot.lane.b32.xlu0 %v387, 32
    %v389 = vpop.permute.xlu0 %388
    %vm391 = vcmask 261120
    %v392 = vsel %vm391, %v384, %v389
    %v394 = vsel %vm244, %v392, 0
    %396 = vmatprep.subr.mxu0 %v217
    %397 = vmatpush1.msra.mxu0 %v216
    %398 = vmatprep.subr.mxu0 %v219
    %399 = vmatpush1.msra.mxu0 %v218
    %400 = vmatprep.subr.mxu0 %v221
    %401 = vmatpush1.msra.mxu0 %v220
    %402 = vmatprep.subr.mxu0 %v223
    %403 = vmatpush1.msra.mxu0 %v222
    %404 = vmatprep.subr.mxu0 %v225
    %405 = vmatpush1.msra.mxu0 %v224
    %406 = vmatprep.subr.mxu0 %v227
    %407 = vmatpush1.msra.mxu0 %v226
    %408 = vmatprep.subr.mxu0 %v229
    %409 = vmatpush1.msra.mxu0 %v228
    %410 = vmatprep.subr.mxu0 %v231
    %411 = vmatpush1.msra.mxu0 %v230
    %412 = vmatprep.subr.mxu0 0.0
    %413 = vmatpush1.msra.mxu0 0.0
    %414 = vmatprep.subr.mxu0 0.0
    %415 = vmatpush1.msra.mxu0 0.0
    %416 = vmatprep.subr.mxu0 0.0
    %417 = vmatpush1.msra.mxu0 0.0
    %418 = vmatprep.subr.mxu0 0.0
    %419 = vmatpush1.msra.mxu0 0.0
    %420 = vmatprep.subr.mxu0 0.0
    %421 = vmatpush1.msra.mxu0 0.0
    %422 = vmatprep.subr.mxu0 0.0
    %423 = vmatpush1.msra.mxu0 0.0
    %424 = vmatprep.subr.mxu0 0.0
    %425 = vmatpush1.msra.mxu0 0.0
    %426 = vmatprep.subr.mxu0 0.0
    %427 = vmatpush1.msra.mxu0 0.0
    %428 = vmatprep.subr.mxu0 0.0
    %429 = vmatpush1.msra.mxu0 0.0
    %430 = vmatprep.subr.mxu0 0.0
    %431 = vmatpush1.msra.mxu0 0.0
    %432 = vmatprep.subr.mxu0 0.0
    %433 = vmatpush1.msra.mxu0 0.0
    %434 = vmatprep.subr.mxu0 0.0
    %435 = vmatpush1.msra.mxu0 0.0
    %436 = vmatprep.subr.mxu0 0.0
    %437 = vmatpush1.msra.mxu0 0.0
    %438 = vmatprep.subr.mxu0 0.0
    %439 = vmatpush1.msra.mxu0 0.0
    %440 = vmatprep.subr.mxu0 0.0
    %441 = vmatpush1.msra.mxu0 0.0
    %442 = vmatprep.subr.mxu0 0.0
    %443 = vmatpush1.msra.mxu0 0.0
    %444 = vmatprep.subr.mxu0 0.0
    %445 = vmatpush1.msra.mxu0 0.0
    %446 = vmatprep.subr.mxu0 0.0
    %447 = vmatpush1.msra.mxu0 0.0
    %448 = vmatprep.subr.mxu0 0.0
    %449 = vmatpush1.msra.mxu0 0.0
    %450 = vmatprep.subr.mxu0 0.0
    %451 = vmatpush1.msra.mxu0 0.0
    %452 = vmatprep.subr.mxu0 0.0
    %453 = vmatpush1.msra.mxu0 0.0
    %454 = vmatprep.subr.mxu0 0.0
    %455 = vmatpush1.msra.mxu0 0.0
    %456 = vmatprep.subr.mxu0 0.0
    %457 = vmatpush1.msra.mxu0 0.0
    %458 = vmatprep.subr.mxu0 0.0
    %459 = vmatpush1.msra.mxu0 0.0
    %460 = vmatprep.mubr.f32.mxu0 0.0
    %461 = vmatmul.mubr.f32.gmra.mrb[0].mxu0 %v394
    %v462 = vpop.f32.mrb[0].mxu0
    %v463 = vadd.f32 %v237, %v462
    %v464 = vpop.f32.mrb[0].mxu0
    %v465 = vadd.f32 %v241, %v464
    %466 = vdwg.mxu0
    %v468 = vrot.slane %v463, 6
    %v470 = vadd.f32 %v206, %v468
    %v471 = vxor.u32 %v470, 2147483648
    %v472 = vmul.f32 %v471, 1.442695
    %v473 = vpow.pop %v472
    %v474 = vadd.f32 %v473, 1.0
    %v475 = vrcp.pop %v474
    %v476 = vmul.f32 1.0, %v475
    %477 = vrot.lane.b32.xlu0 %v468, 64
    %v478 = vpop.permute.xlu0 %477
    %v480 = vmul.f32 %v476, %v478
    %482 = vrot.lane.b32.xlu0 %v480, 64
    %v483 = vpop.permute.xlu0 %482
    %v485 = vadd.f32 %v206, %v483
    %v486 = vtanh.pop %v485
    %v487 = vsub.f32 1.0, %v476
    %489 = vrot.lane.b32.xlu0 %v486, 96
    %v490 = vpop.permute.xlu0 %489
    %v492 = vmul.f32 %v487, %v490
    %v493 = vrot.slane %v344, 6
    %v495 = vmul.f32 %v476, %v493
    %v496 = vadd.f32 %v492, %v495
    %v498 = vrot.slane %v463, 4
    %v499 = vrot.slane %v465, 4
    %v502 = vadd.f32 %v212, %v498
    %v503 = vadd.f32 %v214, %v499
    %v504 = vxor.u32 %v502, 2147483648
    %v505 = vxor.u32 %v503, 2147483648
    %v506 = vmul.f32 %v504, 1.442695
    %v507 = vpow.pop %v506
    %v508 = vmul.f32 %v505, 1.442695
    %v509 = vpow.pop %v508
    %v510 = vadd.f32 %v507, 1.0
    %v511 = vadd.f32 %v509, 1.0
    %v512 = vrcp.pop %v510
    %v513 = vmul.f32 1.0, %v512
    %v514 = vrcp.pop %v511
    %v515 = vmul.f32 1.0, %v514
    %516 = vrot.lane.b32.xlu0 %v499, 64
    %v517 = vpop.permute.xlu0 %516
    %v519 = vmul.f32 %v513, %v517
    %521 = vrot.lane.b32.xlu0 %v519, 64
    %v522 = vpop.permute.xlu0 %521
    %v524 = vadd.f32 %v214, %v522
    %v525 = vtanh.pop %v524
    %v526 = vsub.f32 1.0, %v515
    %528 = vrot.lane.b32.xlu0 %v525, 96
    %v529 = vpop.permute.xlu0 %528
    %v531 = vmul.f32 %v526, %v529
    %v532 = vrot.slane %v381, 2
    %v534 = vmul.f32 %v515, %v532
    %v535 = vadd.f32 %v531, %v534
    %537 = vrot.lane.b32.xlu0 %v496, 96
    %v538 = vpop.permute.xlu0 %537
    %v541 = vrot.slane %v535, 2
    %542 = vrot.lane.b32.xlu0 %v541, 32
    %v543 = vpop.permute.xlu0 %542
    %v545 = vsel %vm391, %v538, %v543
    %v547 = vrot.slane %v545, 2
    %v548 = vsel %vm244, %v547, 0
    %550 = vmatprep.subr.mxu0 %v217
    %551 = vmatpush1.msra.mxu0 %v216
    %552 = vmatprep.subr.mxu0 %v219
    %553 = vmatpush1.msra.mxu0 %v218
    %554 = vmatprep.subr.mxu0 %v221
    %555 = vmatpush1.msra.mxu0 %v220
    %556 = vmatprep.subr.mxu0 %v223
    %557 = vmatpush1.msra.mxu0 %v222
    %558 = vmatprep.subr.mxu0 %v225
    %559 = vmatpush1.msra.mxu0 %v224
    %560 = vmatprep.subr.mxu0 %v227
    %561 = vmatpush1.msra.mxu0 %v226
    %562 = vmatprep.subr.mxu0 %v229
    %563 = vmatpush1.msra.mxu0 %v228
    %564 = vmatprep.subr.mxu0 %v231
    %565 = vmatpush1.msra.mxu0 %v230
    %566 = vmatprep.subr.mxu0 0.0
    %567 = vmatpush1.msra.mxu0 0.0
    %568 = vmatprep.subr.mxu0 0.0
    %569 = vmatpush1.msra.mxu0 0.0
    %570 = vmatprep.subr.mxu0 0.0
    %571 = vmatpush1.msra.mxu0 0.0
    %572 = vmatprep.subr.mxu0 0.0
    %573 = vmatpush1.msra.mxu0 0.0
    %574 = vmatprep.subr.mxu0 0.0
    %575 = vmatpush1.msra.mxu0 0.0
    %576 = vmatprep.subr.mxu0 0.0
    %577 = vmatpush1.msra.mxu0 0.0
    %578 = vmatprep.subr.mxu0 0.0
    %579 = vmatpush1.msra.mxu0 0.0
    %580 = vmatprep.subr.mxu0 0.0
    %581 = vmatpush1.msra.mxu0 0.0
    %582 = vmatprep.subr.mxu0 0.0
    %583 = vmatpush1.msra.mxu0 0.0
    %584 = vmatprep.subr.mxu0 0.0
    %585 = vmatpush1.msra.mxu0 0.0
    %586 = vmatprep.subr.mxu0 0.0
    %587 = vmatpush1.msra.mxu0 0.0
    %588 = vmatprep.subr.mxu0 0.0
    %589 = vmatpush1.msra.mxu0 0.0
    %590 = vmatprep.subr.mxu0 0.0
    %591 = vmatpush1.msra.mxu0 0.0
    %592 = vmatprep.subr.mxu0 0.0
    %593 = vmatpush1.msra.mxu0 0.0
    %594 = vmatprep.subr.mxu0 0.0
    %595 = vmatpush1.msra.mxu0 0.0
    %596 = vmatprep.subr.mxu0 0.0
    %597 = vmatpush1.msra.mxu0 0.0
    %598 = vmatprep.subr.mxu0 0.0
    %599 = vmatpush1.msra.mxu0 0.0
    %600 = vmatprep.subr.mxu0 0.0
    %601 = vmatpush1.msra.mxu0 0.0
    %602 = vmatprep.subr.mxu0 0.0
    %603 = vmatpush1.msra.mxu0 0.0
    %604 = vmatprep.subr.mxu0 0.0
    %605 = vmatpush1.msra.mxu0 0.0
    %606 = vmatprep.subr.mxu0 0.0
    %607 = vmatpush1.msra.mxu0 0.0
    %608 = vmatprep.subr.mxu0 0.0
    %609 = vmatpush1.msra.mxu0 0.0
    %610 = vmatprep.subr.mxu0 0.0
    %611 = vmatpush1.msra.mxu0 0.0
    %612 = vmatprep.subr.mxu0 0.0
    %613 = vmatpush1.msra.mxu0 0.0
    %614 = vmatprep.mubr.f32.mxu0 0.0
    %615 = vmatmul.mubr.f32.gmra.mrb[0].mxu0 %v548
    %v616 = vpop.f32.mrb[0].mxu0
    %v617 = vadd.f32 %v237, %v616
    %v618 = vpop.f32.mrb[0].mxu0
    %v619 = vadd.f32 %v241, %v618
    %620 = vdwg.mxu0
    %v622 = vrot.slane %v617, 4
    %v624 = vadd.f32 %v206, %v622
    %v625 = vxor.u32 %v624, 2147483648
    %v626 = vmul.f32 %v625, 1.442695
    %v627 = vpow.pop %v626
    %v628 = vadd.f32 %v627, 1.0
    %v629 = vrcp.pop %v628
    %v630 = vmul.f32 1.0, %v629
    %631 = vrot.lane.b32.xlu0 %v622, 64
    %v632 = vpop.permute.xlu0 %631
    %v634 = vmul.f32 %v630, %v632
    %636 = vrot.lane.b32.xlu0 %v634, 64
    %v637 = vpop.permute.xlu0 %636
    %v639 = vadd.f32 %v206, %v637
    %v640 = vtanh.pop %v639
    %v641 = vsub.f32 1.0, %v630
    %643 = vrot.lane.b32.xlu0 %v640, 96
    %v644 = vpop.permute.xlu0 %643
    %v646 = vmul.f32 %v641, %v644
    %v647 = vrot.slane %v496, 6
    %v649 = vmul.f32 %v630, %v647
    %v650 = vadd.f32 %v646, %v649
    %v652 = vrot.slane %v617, 6
    %v653 = vrot.slane %v619, 6
    %v656 = vadd.f32 %v212, %v652
    %v657 = vadd.f32 %v214, %v653
    %v658 = vxor.u32 %v656, 2147483648
    %v659 = vxor.u32 %v657, 2147483648
    %v660 = vmul.f32 %v658, 1.442695
    %v661 = vpow.pop %v660
    %v662 = vmul.f32 %v659, 1.442695
    %v663 = vpow.pop %v662
    %v664 = vadd.f32 %v661, 1.0
    %v665 = vadd.f32 %v663, 1.0
    %v666 = vrcp.pop %v664
    %v667 = vmul.f32 1.0, %v666
    %v668 = vrcp.pop %v665
    %v669 = vmul.f32 1.0, %v668
    %670 = vrot.lane.b32.xlu0 %v653, 64
    %v671 = vpop.permute.xlu0 %670
    %v673 = vmul.f32 %v667, %v671
    %675 = vrot.lane.b32.xlu0 %v673, 64
    %v676 = vpop.permute.xlu0 %675
    %v678 = vadd.f32 %v214, %v676
    %v679 = vtanh.pop %v678
    %v680 = vsub.f32 1.0, %v669
    %682 = vrot.lane.b32.xlu0 %v679, 96
    %v683 = vpop.permute.xlu0 %682
    %v685 = vmul.f32 %v680, %v683
    %v687 = vmul.f32 %v669, %v541
    %v688 = vadd.f32 %v685, %v687
    %690 = vrot.lane.b32.xlu0 %v650, 96
    %v691 = vpop.permute.xlu0 %690
    %v694 = vrot.slane %v688, 6
    %695 = vrot.lane.b32.xlu0 %v694, 32
    %v696 = vpop.permute.xlu0 %695
    %v698 = vsel %vm391, %v691, %v696
    %v700 = vrot.slane %v698, 4
    %v701 = vsel %vm244, %v700, 0
    %703 = vmatprep.subr.mxu0 %v217
    %704 = vmatpush1.msra.mxu0 %v216
    %705 = vmatprep.subr.mxu0 %v219
    %706 = vmatpush1.msra.mxu0 %v218
    %707 = vmatprep.subr.mxu0 %v221
    %708 = vmatpush1.msra.mxu0 %v220
    %709 = vmatprep.subr.mxu0 %v223
    %710 = vmatpush1.msra.mxu0 %v222
    %711 = vmatprep.subr.mxu0 %v225
    %712 = vmatpush1.msra.mxu0 %v224
    %713 = vmatprep.subr.mxu0 %v227
    %714 = vmatpush1.msra.mxu0 %v226
    %715 = vmatprep.subr.mxu0 %v229
    %716 = vmatpush1.msra.mxu0 %v228
    %717 = vmatprep.subr.mxu0 %v231
    %718 = vmatpush1.msra.mxu0 %v230
    %719 = vmatprep.subr.mxu0 0.0
    %720 = vmatpush1.msra.mxu0 0.0
    %721 = vmatprep.subr.mxu0 0.0
    %722 = vmatpush1.msra.mxu0 0.0
    %723 = vmatprep.subr.mxu0 0.0
    %724 = vmatpush1.msra.mxu0 0.0
    %725 = vmatprep.subr.mxu0 0.0
    %726 = vmatpush1.msra.mxu0 0.0
    %727 = vmatprep.subr.mxu0 0.0
    %728 = vmatpush1.msra.mxu0 0.0
    %729 = vmatprep.subr.mxu0 0.0
    %730 = vmatpush1.msra.mxu0 0.0
    %731 = vmatprep.subr.mxu0 0.0
    %732 = vmatpush1.msra.mxu0 0.0
    %733 = vmatprep.subr.mxu0 0.0
    %734 = vmatpush1.msra.mxu0 0.0
    %735 = vmatprep.subr.mxu0 0.0
    %736 = vmatpush1.msra.mxu0 0.0
    %737 = vmatprep.subr.mxu0 0.0
    %738 = vmatpush1.msra.mxu0 0.0
    %739 = vmatprep.subr.mxu0 0.0
    %740 = vmatpush1.msra.mxu0 0.0
    %741 = vmatprep.subr.mxu0 0.0
    %742 = vmatpush1.msra.mxu0 0.0
    %743 = vmatprep.subr.mxu0 0.0
    %744 = vmatpush1.msra.mxu0 0.0
    %745 = vmatprep.subr.mxu0 0.0
    %746 = vmatpush1.msra.mxu0 0.0
    %747 = vmatprep.subr.mxu0 0.0
    %748 = vmatpush1.msra.mxu0 0.0
    %749 = vmatprep.subr.mxu0 0.0
    %750 = vmatpush1.msra.mxu0 0.0
    %751 = vmatprep.subr.mxu0 0.0
    %752 = vmatpush1.msra.mxu0 0.0
    %753 = vmatprep.subr.mxu0 0.0
    %754 = vmatpush1.msra.mxu0 0.0
    %755 = vmatprep.subr.mxu0 0.0
    %756 = vmatpush1.msra.mxu0 0.0
    %757 = vmatprep.subr.mxu0 0.0
    %758 = vmatpush1.msra.mxu0 0.0
    %759 = vmatprep.subr.mxu0 0.0
    %760 = vmatpush1.msra.mxu0 0.0
    %761 = vmatprep.subr.mxu0 0.0
    %762 = vmatpush1.msra.mxu0 0.0
    %763 = vmatprep.subr.mxu0 0.0
    %764 = vmatpush1.msra.mxu0 0.0
    %765 = vmatprep.subr.mxu0 0.0
    %766 = vmatpush1.msra.mxu0 0.0
    %767 = vmatprep.mubr.f32.mxu0 0.0
    %768 = vmatmul.mubr.f32.gmra.mrb[0].mxu0 %v701
    %v769 = vpop.f32.mrb[0].mxu0
    %v770 = vadd.f32 %v237, %v769
    %v771 = vpop.f32.mrb[0].mxu0
    %v772 = vadd.f32 %v241, %v771
    %773 = vdwg.mxu0
    %v775 = vrot.slane %v770, 2
    %v777 = vadd.f32 %v206, %v775
    %v778 = vxor.u32 %v777, 2147483648
    %v779 = vmul.f32 %v778, 1.442695
    %v780 = vpow.pop %v779
    %v781 = vadd.f32 %v780, 1.0
    %v782 = vrcp.pop %v781
    %v783 = vmul.f32 1.0, %v782
    %784 = vrot.lane.b32.xlu0 %v775, 64
    %v785 = vpop.permute.xlu0 %784
    %v787 = vmul.f32 %v783, %v785
    %789 = vrot.lane.b32.xlu0 %v787, 64
    %v790 = vpop.permute.xlu0 %789
    %v792 = vadd.f32 %v206, %v790
    %v793 = vtanh.pop %v792
    %v794 = vsub.f32 1.0, %v783
    %796 = vrot.lane.b32.xlu0 %v793, 96
    %v797 = vpop.permute.xlu0 %796
    %v799 = vmul.f32 %v794, %v797
    %v800 = vrot.slane %v650, 6
    %v802 = vmul.f32 %v783, %v800
    %v803 = vadd.f32 %v799, %v802
    %v804 = vadd.f32 %v212, %v770
    %v805 = vadd.f32 %v214, %v772
    %v806 = vxor.u32 %v804, 2147483648
    %v807 = vxor.u32 %v805, 2147483648
    %v808 = vmul.f32 %v806, 1.442695
    %v809 = vpow.pop %v808
    %v810 = vmul.f32 %v807, 1.442695
    %v811 = vpow.pop %v810
    %v812 = vadd.f32 %v809, 1.0
    %v813 = vadd.f32 %v811, 1.0
    %v814 = vrcp.pop %v812
    %v815 = vmul.f32 1.0, %v814
    %v816 = vrcp.pop %v813
    %v817 = vmul.f32 1.0, %v816
    %819 = vrot.lane.b32.xlu0 %v772, 64
    %v820 = vpop.permute.xlu0 %819
    %v822 = vmul.f32 %v815, %v820
    %824 = vrot.lane.b32.xlu0 %v822, 64
    %v825 = vpop.permute.xlu0 %824
    %v827 = vadd.f32 %v214, %v825
    %v828 = vtanh.pop %v827
    %v829 = vsub.f32 1.0, %v817
    %831 = vrot.lane.b32.xlu0 %v828, 96
    %v832 = vpop.permute.xlu0 %831
    %v834 = vmul.f32 %v829, %v832
    %v835 = vrot.slane %v688, 2
    %v837 = vmul.f32 %v817, %v835
    %v838 = vadd.f32 %v834, %v837
    %840 = vrot.lane.b32.xlu0 %v803, 96
    %v841 = vpop.permute.xlu0 %840
    %v844 = vrot.slane %v838, 2
    %845 = vrot.lane.b32.xlu0 %v844, 32
    %v846 = vpop.permute.xlu0 %845
    %v848 = vsel %vm391, %v841, %v846
    %v850 = vrot.slane %v848, 6
    %v851 = vsel %vm244, %v850, 0
    %853 = vmatprep.subr.mxu0 %v217
    %854 = vmatpush1.msra.mxu0 %v216
    %855 = vmatprep.subr.mxu0 %v219
    %856 = vmatpush1.msra.mxu0 %v218
    %857 = vmatprep.subr.mxu0 %v221
    %858 = vmatpush1.msra.mxu0 %v220
    %859 = vmatprep.subr.mxu0 %v223
    %860 = vmatpush1.msra.mxu0 %v222
    %861 = vmatprep.subr.mxu0 %v225
    %862 = vmatpush1.msra.mxu0 %v224
    %863 = vmatprep.subr.mxu0 %v227
    %864 = vmatpush1.msra.mxu0 %v226
    %865 = vmatprep.subr.mxu0 %v229
    %866 = vmatpush1.msra.mxu0 %v228
    %867 = vmatprep.subr.mxu0 %v231
    %868 = vmatpush1.msra.mxu0 %v230
    %869 = vmatprep.subr.mxu0 0.0
    %870 = vmatpush1.msra.mxu0 0.0
    %871 = vmatprep.subr.mxu0 0.0
    %872 = vmatpush1.msra.mxu0 0.0
    %873 = vmatprep.subr.mxu0 0.0
    %874 = vmatpush1.msra.mxu0 0.0
    %875 = vmatprep.subr.mxu0 0.0
    %876 = vmatpush1.msra.mxu0 0.0
    %877 = vmatprep.subr.mxu0 0.0
    %878 = vmatpush1.msra.mxu0 0.0
    %879 = vmatprep.subr.mxu0 0.0
    %880 = vmatpush1.msra.mxu0 0.0
    %881 = vmatprep.subr.mxu0 0.0
    %882 = vmatpush1.msra.mxu0 0.0
    %883 = vmatprep.subr.mxu0 0.0
    %884 = vmatpush1.msra.mxu0 0.0
    %885 = vmatprep.subr.mxu0 0.0
    %886 = vmatpush1.msra.mxu0 0.0
    %887 = vmatprep.subr.mxu0 0.0
    %888 = vmatpush1.msra.mxu0 0.0
    %889 = vmatprep.subr.mxu0 0.0
    %890 = vmatpush1.msra.mxu0 0.0
    %891 = vmatprep.subr.mxu0 0.0
    %892 = vmatpush1.msra.mxu0 0.0
    %893 = vmatprep.subr.mxu0 0.0
    %894 = vmatpush1.msra.mxu0 0.0
    %895 = vmatprep.subr.mxu0 0.0
    %896 = vmatpush1.msra.mxu0 0.0
    %897 = vmatprep.subr.mxu0 0.0
    %898 = vmatpush1.msra.mxu0 0.0
    %899 = vmatprep.subr.mxu0 0.0
    %900 = vmatpush1.msra.mxu0 0.0
    %901 = vmatprep.subr.mxu0 0.0
    %902 = vmatpush1.msra.mxu0 0.0
    %903 = vmatprep.subr.mxu0 0.0
    %904 = vmatpush1.msra.mxu0 0.0
    %905 = vmatprep.subr.mxu0 0.0
    %906 = vmatpush1.msra.mxu0 0.0
    %907 = vmatprep.subr.mxu0 0.0
    %908 = vmatpush1.msra.mxu0 0.0
    %909 = vmatprep.subr.mxu0 0.0
    %910 = vmatpush1.msra.mxu0 0.0
    %911 = vmatprep.subr.mxu0 0.0
    %912 = vmatpush1.msra.mxu0 0.0
    %913 = vmatprep.subr.mxu0 0.0
    %914 = vmatpush1.msra.mxu0 0.0
    %915 = vmatprep.subr.mxu0 0.0
    %916 = vmatpush1.msra.mxu0 0.0
    %917 = vmatprep.mubr.f32.mxu0 0.0
    %918 = vmatmul.mubr.f32.gmra.mrb[0].mxu0 %v851
    %v919 = vpop.f32.mrb[0].mxu0
    %v920 = vadd.f32 %v237, %v919
    %v921 = vpop.f32.mrb[0].mxu0
    %v922 = vadd.f32 %v241, %v921
    %923 = vdwg.mxu0
    %v924 = vadd.f32 %v212, %v920
    %v925 = vxor.u32 %v924, 2147483648
    %v926 = vmul.f32 %v925, 1.442695
    %v927 = vpow.pop %v926
    %v928 = vadd.f32 %v927, 1.0
    %v929 = vrcp.pop %v928
    %v930 = vmul.f32 1.0, %v929
    %932 = vrot.lane.b32.xlu0 %v920, 64
    %v933 = vpop.permute.xlu0 %932
    %v935 = vmul.f32 %v930, %v933
    %937 = vrot.lane.b32.xlu0 %v935, 64
    %v938 = vpop.permute.xlu0 %937
    %v940 = vadd.f32 %v212, %v938
    %v941 = vtanh.pop %v940
    %v942 = vsub.f32 1.0, %v930
    %944 = vrot.lane.b32.xlu0 %v941, 96
    %v945 = vpop.permute.xlu0 %944
    %v947 = vmul.f32 %v942, %v945
    %v948 = vrot.slane %v803, 6
    %v950 = vmul.f32 %v930, %v948
    %v951 = vadd.f32 %v947, %v950
    %v953 = vrot.slane %v920, 2
    %v954 = vrot.slane %v922, 2
    %v957 = vadd.f32 %v206, %v953
    %v958 = vadd.f32 %v208, %v954
    %v959 = vxor.u32 %v957, 2147483648
    %v960 = vxor.u32 %v958, 2147483648
    %v961 = vmul.f32 %v959, 1.442695
    %v962 = vpow.pop %v961
    %v963 = vmul.f32 %v960, 1.442695
    %v964 = vpow.pop %v963
    %v965 = vadd.f32 %v962, 1.0
    %v966 = vadd.f32 %v964, 1.0
    %v967 = vrcp.pop %v965
    %v968 = vmul.f32 1.0, %v967
    %v969 = vrcp.pop %v966
    %v970 = vmul.f32 1.0, %v969
    %971 = vrot.lane.b32.xlu0 %v954, 64
    %v972 = vpop.permute.xlu0 %971
    %v974 = vmul.f32 %v968, %v972
    %976 = vrot.lane.b32.xlu0 %v974, 64
    %v977 = vpop.permute.xlu0 %976
    %v979 = vadd.f32 %v208, %v977
    %v980 = vtanh.pop %v979
    %v981 = vsub.f32 1.0, %v970
    %983 = vrot.lane.b32.xlu0 %v980, 96
    %v984 = vpop.permute.xlu0 %983
    %v986 = vmul.f32 %v981, %v984
    %v988 = vmul.f32 %v970, %v844
    %v989 = vadd.f32 %v986, %v988
    %991 = vrot.lane.b32.xlu0 %v951, 96
    %v992 = vpop.permute.xlu0 %991
    %v995 = vrot.slane %v989, 6
    %996 = vrot.lane.b32.xlu0 %v995, 32
    %v997 = vpop.permute.xlu0 %996
    %v999 = vsel %vm391, %v992, %v997
    %v1001 = vsel %vm244, %v999, 0
    %1003 = vmatprep.subr.mxu0 %v217
    %1004 = vmatpush1.msra.mxu0 %v216
    %1005 = vmatprep.subr.mxu0 %v219
    %1006 = vmatpush1.msra.mxu0 %v218
    %1007 = vmatprep.subr.mxu0 %v221
    %1008 = vmatpush1.msra.mxu0 %v220
    %1009 = vmatprep.subr.mxu0 %v223
    %1010 = vmatpush1.msra.mxu0 %v222
    %1011 = vmatprep.subr.mxu0 %v225
    %1012 = vmatpush1.msra.mxu0 %v224
    %1013 = vmatprep.subr.mxu0 %v227
    %1014 = vmatpush1.msra.mxu0 %v226
    %1015 = vmatprep.subr.mxu0 %v229
    %1016 = vmatpush1.msra.mxu0 %v228
    %1017 = vmatprep.subr.mxu0 %v231
    %1018 = vmatpush1.msra.mxu0 %v230
    %1019 = vmatprep.subr.mxu0 0.0
    %1020 = vmatpush1.msra.mxu0 0.0
    %1021 = vmatprep.subr.mxu0 0.0
    %1022 = vmatpush1.msra.mxu0 0.0
    %1023 = vmatprep.subr.mxu0 0.0
    %1024 = vmatpush1.msra.mxu0 0.0
    %1025 = vmatprep.subr.mxu0 0.0
    %1026 = vmatpush1.msra.mxu0 0.0
    %1027 = vmatprep.subr.mxu0 0.0
    %1028 = vmatpush1.msra.mxu0 0.0
    %1029 = vmatprep.subr.mxu0 0.0
    %1030 = vmatpush1.msra.mxu0 0.0
    %1031 = vmatprep.subr.mxu0 0.0
    %1032 = vmatpush1.msra.mxu0 0.0
    %1033 = vmatprep.subr.mxu0 0.0
    %1034 = vmatpush1.msra.mxu0 0.0
    %1035 = vmatprep.subr.mxu0 0.0
    %1036 = vmatpush1.msra.mxu0 0.0
    %1037 = vmatprep.subr.mxu0 0.0
    %1038 = vmatpush1.msra.mxu0 0.0
    %1039 = vmatprep.subr.mxu0 0.0
    %1040 = vmatpush1.msra.mxu0 0.0
    %1041 = vmatprep.subr.mxu0 0.0
    %1042 = vmatpush1.msra.mxu0 0.0
    %1043 = vmatprep.subr.mxu0 0.0
    %1044 = vmatpush1.msra.mxu0 0.0
    %1045 = vmatprep.subr.mxu0 0.0
    %1046 = vmatpush1.msra.mxu0 0.0
    %1047 = vmatprep.subr.mxu0 0.0
    %1048 = vmatpush1.msra.mxu0 0.0
    %1049 = vmatprep.subr.mxu0 0.0
    %1050 = vmatpush1.msra.mxu0 0.0
    %1051 = vmatprep.subr.mxu0 0.0
    %1052 = vmatpush1.msra.mxu0 0.0
    %1053 = vmatprep.subr.mxu0 0.0
    %1054 = vmatpush1.msra.mxu0 0.0
    %1055 = vmatprep.subr.mxu0 0.0
    %1056 = vmatpush1.msra.mxu0 0.0
    %1057 = vmatprep.subr.mxu0 0.0
    %1058 = vmatpush1.msra.mxu0 0.0
    %1059 = vmatprep.subr.mxu0 0.0
    %1060 = vmatpush1.msra.mxu0 0.0
    %1061 = vmatprep.subr.mxu0 0.0
    %1062 = vmatpush1.msra.mxu0 0.0
    %1063 = vmatprep.subr.mxu0 0.0
    %1064 = vmatpush1.msra.mxu0 0.0
    %1065 = vmatprep.subr.mxu0 0.0
    %1066 = vmatpush1.msra.mxu0 0.0
    %1067 = vmatprep.mubr.f32.mxu0 0.0
    %1068 = vmatmul.mubr.f32.gmra.mrb[0].mxu0 %v1001
    %v1069 = vpop.f32.mrb[0].mxu0
    %v1070 = vadd.f32 %v237, %v1069
    %v1071 = vpop.f32.mrb[0].mxu0
    %v1072 = vadd.f32 %v241, %v1071
    %1073 = vdwg.mxu0
    %v1075 = vrot.slane %v1070, 6
    %v1077 = vadd.f32 %v212, %v1075
    %v1078 = vxor.u32 %v1077, 2147483648
    %v1079 = vmul.f32 %v1078, 1.442695
    %v1080 = vpow.pop %v1079
    %v1081 = vadd.f32 %v1080, 1.0
    %v1082 = vrcp.pop %v1081
    %v1083 = vmul.f32 1.0, %v1082
    %1084 = vrot.lane.b32.xlu0 %v1075, 64
    %v1085 = vpop.permute.xlu0 %1084
    %v1087 = vmul.f32 %v1083, %v1085
    %1089 = vrot.lane.b32.xlu0 %v1087, 64
    %v1090 = vpop.permute.xlu0 %1089
    %v1092 = vadd.f32 %v212, %v1090
    %v1093 = vtanh.pop %v1092
    %v1094 = vsub.f32 1.0, %v1083
    %1096 = vrot.lane.b32.xlu0 %v1093, 96
    %v1097 = vpop.permute.xlu0 %1096
    %v1099 = vmul.f32 %v1094, %v1097
    %v1100 = vrot.slane %v951, 6
    %v1102 = vmul.f32 %v1083, %v1100
    %v1103 = vadd.f32 %v1099, %v1102
    %v1105 = vrot.slane %v1070, 4
    %v1106 = vrot.slane %v1072, 4
    %v1109 = vadd.f32 %v206, %v1105
    %v1110 = vadd.f32 %v208, %v1106
    %v1111 = vxor.u32 %v1109, 2147483648
    %v1112 = vxor.u32 %v1110, 2147483648
    %v1113 = vmul.f32 %v1111, 1.442695
    %v1114 = vpow.pop %v1113
    %v1115 = vmul.f32 %v1112, 1.442695
    %v1116 = vpow.pop %v1115
    %v1117 = vadd.f32 %v1114, 1.0
    %v1118 = vadd.f32 %v1116, 1.0
    %v1119 = vrcp.pop %v1117
    %v1120 = vmul.f32 1.0, %v1119
    %v1121 = vrcp.pop %v1118
    %v1122 = vmul.f32 1.0, %v1121
    %1123 = vrot.lane.b32.xlu0 %v1106, 64
    %v1124 = vpop.permute.xlu0 %1123
    %v1126 = vmul.f32 %v1120, %v1124
    %1128 = vrot.lane.b32.xlu0 %v1126, 64
    %v1129 = vpop.permute.xlu0 %1128
    %v1131 = vadd.f32 %v208, %v1129
    %v1132 = vtanh.pop %v1131
    %v1133 = vsub.f32 1.0, %v1122
    %1135 = vrot.lane.b32.xlu0 %v1132, 96
    %v1136 = vpop.permute.xlu0 %1135
    %v1138 = vmul.f32 %v1133, %v1136
    %v1139 = vrot.slane %v989, 2
    %v1141 = vmul.f32 %v1122, %v1139
    %v1142 = vadd.f32 %v1138, %v1141
    %1144 = vrot.lane.b32.xlu0 %v1103, 96
    %v1145 = vpop.permute.xlu0 %1144
    %v1148 = vrot.slane %v1142, 2
    %1149 = vrot.lane.b32.xlu0 %v1148, 32
    %v1150 = vpop.permute.xlu0 %1149
    %v1152 = vsel %vm391, %v1145, %v1150
    %v1154 = vrot.slane %v1152, 2
    %v1155 = vsel %vm244, %v1154, 0
    %1157 = vmatprep.subr.mxu0 %v217
    %1158 = vmatpush1.msra.mxu0 %v216
    %1159 = vmatprep.subr.mxu0 %v219
    %1160 = vmatpush1.msra.mxu0 %v218
    %1161 = vmatprep.subr.mxu0 %v221
    %1162 = vmatpush1.msra.mxu0 %v220
    %1163 = vmatprep.subr.mxu0 %v223
    %1164 = vmatpush1.msra.mxu0 %v222
    %1165 = vmatprep.subr.mxu0 %v225
    %1166 = vmatpush1.msra.mxu0 %v224
    %1167 = vmatprep.subr.mxu0 %v227
    %1168 = vmatpush1.msra.mxu0 %v226
    %1169 = vmatprep.subr.mxu0 %v229
    %1170 = vmatpush1.msra.mxu0 %v228
    %1171 = vmatprep.subr.mxu0 %v231
    %1172 = vmatpush1.msra.mxu0 %v230
    %1173 = vmatprep.subr.mxu0 0.0
    %1174 = vmatpush1.msra.mxu0 0.0
    %1175 = vmatprep.subr.mxu0 0.0
    %1176 = vmatpush1.msra.mxu0 0.0
    %1177 = vmatprep.subr.mxu0 0.0
    %1178 = vmatpush1.msra.mxu0 0.0
    %1179 = vmatprep.subr.mxu0 0.0
    %1180 = vmatpush1.msra.mxu0 0.0
    %1181 = vmatprep.subr.mxu0 0.0
    %1182 = vmatpush1.msra.mxu0 0.0
    %1183 = vmatprep.subr.mxu0 0.0
    %1184 = vmatpush1.msra.mxu0 0.0
    %1185 = vmatprep.subr.mxu0 0.0
    %1186 = vmatpush1.msra.mxu0 0.0
    %1187 = vmatprep.subr.mxu0 0.0
    %1188 = vmatpush1.msra.mxu0 0.0
    %1189 = vmatprep.subr.mxu0 0.0
    %1190 = vmatpush1.msra.mxu0 0.0
    %1191 = vmatprep.subr.mxu0 0.0
    %1192 = vmatpush1.msra.mxu0 0.0
    %1193 = vmatprep.subr.mxu0 0.0
    %1194 = vmatpush1.msra.mxu0 0.0
    %1195 = vmatprep.subr.mxu0 0.0
    %1196 = vmatpush1.msra.mxu0 0.0
    %1197 = vmatprep.subr.mxu0 0.0
    %1198 = vmatpush1.msra.mxu0 0.0
    %1199 = vmatprep.subr.mxu0 0.0
    %1200 = vmatpush1.msra.mxu0 0.0
    %1201 = vmatprep.subr.mxu0 0.0
    %1202 = vmatpush1.msra.mxu0 0.0
    %1203 = vmatprep.subr.mxu0 0.0
    %1204 = vmatpush1.msra.mxu0 0.0
    %1205 = vmatprep.subr.mxu0 0.0
    %1206 = vmatpush1.msra.mxu0 0.0
    %1207 = vmatprep.subr.mxu0 0.0
    %1208 = vmatpush1.msra.mxu0 0.0
    %1209 = vmatprep.subr.mxu0 0.0
    %1210 = vmatpush1.msra.mxu0 0.0
    %1211 = vmatprep.subr.mxu0 0.0
    %1212 = vmatpush1.msra.mxu0 0.0
    %1213 = vmatprep.subr.mxu0 0.0
    %1214 = vmatpush1.msra.mxu0 0.0
    %1215 = vmatprep.subr.mxu0 0.0
    %1216 = vmatpush1.msra.mxu0 0.0
    %1217 = vmatprep.subr.mxu0 0.0
    %1218 = vmatpush1.msra.mxu0 0.0
    %1219 = vmatprep.subr.mxu0 0.0
    %1220 = vmatpush1.msra.mxu0 0.0
    %1221 = vmatprep.mubr.f32.mxu0 0.0
    %1222 = vmatmul.mubr.f32.gmra.mrb[0].mxu0 %v1155
    %v1223 = vpop.f32.mrb[0].mxu0
    %v1224 = vadd.f32 %v237, %v1223
    %v1225 = vpop.f32.mrb[0].mxu0
    %v1226 = vadd.f32 %v241, %v1225
    %1227 = vdwg.mxu0
    %v1229 = vrot.slane %v1224, 4
    %v1231 = vadd.f32 %v212, %v1229
    %v1232 = vxor.u32 %v1231, 2147483648
    %v1233 = vmul.f32 %v1232, 1.442695
    %v1234 = vpow.pop %v1233
    %v1235 = vadd.f32 %v1234, 1.0
    %v1236 = vrcp.pop %v1235
    %v1237 = vmul.f32 1.0, %v1236
    %1238 = vrot.lane.b32.xlu0 %v1229, 64
    %v1239 = vpop.permute.xlu0 %1238
    %v1241 = vmul.f32 %v1237, %v1239
    %1243 = vrot.lane.b32.xlu0 %v1241, 64
    %v1244 = vpop.permute.xlu0 %1243
    %v1246 = vadd.f32 %v212, %v1244
    %v1247 = vtanh.pop %v1246
    %v1248 = vsub.f32 1.0, %v1237
    %1250 = vrot.lane.b32.xlu0 %v1247, 96
    %v1251 = vpop.permute.xlu0 %1250
    %v1253 = vmul.f32 %v1248, %v1251
    %v1254 = vrot.slane %v1103, 6
    %v1256 = vmul.f32 %v1237, %v1254
    %v1257 = vadd.f32 %v1253, %v1256
    %v1259 = vrot.slane %v1224, 6
    %v1260 = vrot.slane %v1226, 6
    %v1263 = vadd.f32 %v206, %v1259
    %v1264 = vadd.f32 %v208, %v1260
    %v1265 = vxor.u32 %v1263, 2147483648
    %v1266 = vxor.u32 %v1264, 2147483648
    %v1267 = vmul.f32 %v1265, 1.442695
    %v1268 = vpow.pop %v1267
    %v1269 = vmul.f32 %v1266, 1.442695
    %v1270 = vpow.pop %v1269
    %v1271 = vadd.f32 %v1268, 1.0
    %v1272 = vadd.f32 %v1270, 1.0
    %v1273 = vrcp.pop %v1271
    %v1274 = vmul.f32 1.0, %v1273
    %v1275 = vrcp.pop %v1272
    %v1276 = vmul.f32 1.0, %v1275
    %1277 = vrot.lane.b32.xlu0 %v1260, 64
    %v1278 = vpop.permute.xlu0 %1277
    %v1280 = vmul.f32 %v1274, %v1278
    %1282 = vrot.lane.b32.xlu0 %v1280, 64
    %v1283 = vpop.permute.xlu0 %1282
    %v1285 = vadd.f32 %v208, %v1283
    %v1286 = vtanh.pop %v1285
    %v1287 = vsub.f32 1.0, %v1276
    %1289 = vrot.lane.b32.xlu0 %v1286, 96
    %v1290 = vpop.permute.xlu0 %1289
    %v1292 = vmul.f32 %v1287, %v1290
    %v1294 = vmul.f32 %v1276, %v1148
    %v1295 = vadd.f32 %v1292, %v1294
    %1297 = vrot.lane.b32.xlu0 %v1257, 96
    %v1298 = vpop.permute.xlu0 %1297
    %v1301 = vrot.slane %v1295, 6
    %1302 = vrot.lane.b32.xlu0 %v1301, 32
    %v1303 = vpop.permute.xlu0 %1302
    %v1305 = vsel %vm391, %v1298, %v1303
    %v1307 = vrot.slane %v1305, 4
    %v1308 = vsel %vm244, %v1307, 0
    %1310 = vmatprep.subr.mxu0 %v217
    %1311 = vmatpush1.msra.mxu0 %v216
    %1312 = vmatprep.subr.mxu0 %v219
    %1313 = vmatpush1.msra.mxu0 %v218
    %1314 = vmatprep.subr.mxu0 %v221
    %1315 = vmatpush1.msra.mxu0 %v220
    %1316 = vmatprep.subr.mxu0 %v223
    %1317 = vmatpush1.msra.mxu0 %v222
    %1318 = vmatprep.subr.mxu0 %v225
    %1319 = vmatpush1.msra.mxu0 %v224
    %1320 = vmatprep.subr.mxu0 %v227
    %1321 = vmatpush1.msra.mxu0 %v226
    %1322 = vmatprep.subr.mxu0 %v229
    %1323 = vmatpush1.msra.mxu0 %v228
    %1324 = vmatprep.subr.mxu0 %v231
    %1325 = vmatpush1.msra.mxu0 %v230
    %1326 = vmatprep.subr.mxu0 0.0
    %1327 = vmatpush1.msra.mxu0 0.0
    %1328 = vmatprep.subr.mxu0 0.0
    %1329 = vmatpush1.msra.mxu0 0.0
    %1330 = vmatprep.subr.mxu0 0.0
    %1331 = vmatpush1.msra.mxu0 0.0
    %1332 = vmatprep.subr.mxu0 0.0
    %1333 = vmatpush1.msra.mxu0 0.0
    %1334 = vmatprep.subr.mxu0 0.0
    %1335 = vmatpush1.msra.mxu0 0.0
    %1336 = vmatprep.subr.mxu0 0.0
    %1337 = vmatpush1.msra.mxu0 0.0
    %1338 = vmatprep.subr.mxu0 0.0
    %1339 = vmatpush1.msra.mxu0 0.0
    %1340 = vmatprep.subr.mxu0 0.0
    %1341 = vmatpush1.msra.mxu0 0.0
    %1342 = vmatprep.subr.mxu0 0.0
    %1343 = vmatpush1.msra.mxu0 0.0
    %1344 = vmatprep.subr.mxu0 0.0
    %1345 = vmatpush1.msra.mxu0 0.0
    %1346 = vmatprep.subr.mxu0 0.0
    %1347 = vmatpush1.msra.mxu0 0.0
    %1348 = vmatprep.subr.mxu0 0.0
    %1349 = vmatpush1.msra.mxu0 0.0
    %1350 = vmatprep.subr.mxu0 0.0
    %1351 = vmatpush1.msra.mxu0 0.0
    %1352 = vmatprep.subr.mxu0 0.0
    %1353 = vmatpush1.msra.mxu0 0.0
    %1354 = vmatprep.subr.mxu0 0.0
    %1355 = vmatpush1.msra.mxu0 0.0
    %1356 = vmatprep.subr.mxu0 0.0
    %1357 = vmatpush1.msra.mxu0 0.0
    %1358 = vmatprep.subr.mxu0 0.0
    %1359 = vmatpush1.msra.mxu0 0.0
    %1360 = vmatprep.subr.mxu0 0.0
    %1361 = vmatpush1.msra.mxu0 0.0
    %1362 = vmatprep.subr.mxu0 0.0
    %1363 = vmatpush1.msra.mxu0 0.0
    %1364 = vmatprep.subr.mxu0 0.0
    %1365 = vmatpush1.msra.mxu0 0.0
    %1366 = vmatprep.subr.mxu0 0.0
    %1367 = vmatpush1.msra.mxu0 0.0
    %1368 = vmatprep.subr.mxu0 0.0
    %1369 = vmatpush1.msra.mxu0 0.0
    %1370 = vmatprep.subr.mxu0 0.0
    %1371 = vmatpush1.msra.mxu0 0.0
    %1372 = vmatprep.subr.mxu0 0.0
    %1373 = vmatpush1.msra.mxu0 0.0
    %1374 = vmatprep.mubr.f32.mxu0 0.0
    %1375 = vmatmul.mubr.f32.gmra.mrb[0].mxu0 %v1308
    %v1376 = vpop.f32.mrb[0].mxu0
    %v1377 = vadd.f32 %v237, %v1376
    %v1378 = vpop.f32.mrb[0].mxu0
    %v1379 = vadd.f32 %v241, %v1378
    %1380 = vdwg.mxu0
    %v1382 = vrot.slane %v1377, 2
    %v1384 = vadd.f32 %v212, %v1382
    %v1385 = vxor.u32 %v1384, 2147483648
    %v1386 = vmul.f32 %v1385, 1.442695
    %v1387 = vpow.pop %v1386
    %v1388 = vadd.f32 %v1387, 1.0
    %v1389 = vrcp.pop %v1388
    %v1390 = vmul.f32 1.0, %v1389
    %1391 = vrot.lane.b32.xlu0 %v1382, 64
    %v1392 = vpop.permute.xlu0 %1391
    %v1394 = vmul.f32 %v1390, %v1392
    %1396 = vrot.lane.b32.xlu0 %v1394, 64
    %v1397 = vpop.permute.xlu0 %1396
    %v1399 = vadd.f32 %v212, %v1397
    %v1400 = vtanh.pop %v1399
    %v1401 = vsub.f32 1.0, %v1390
    %1403 = vrot.lane.b32.xlu0 %v1400, 96
    %v1404 = vpop.permute.xlu0 %1403
    %v1406 = vmul.f32 %v1401, %v1404
    %v1407 = vrot.slane %v1257, 6
    %v1409 = vmul.f32 %v1390, %v1407
    %v1410 = vadd.f32 %v1406, %v1409
    %v1411 = vadd.f32 %v206, %v1377
    %v1412 = vadd.f32 %v208, %v1379
    %v1413 = vxor.u32 %v1411, 2147483648
    %v1414 = vxor.u32 %v1412, 2147483648
    %v1415 = vmul.f32 %v1413, 1.442695
    %v1416 = vpow.pop %v1415
    %v1417 = vmul.f32 %v1414, 1.442695
    %v1418 = vpow.pop %v1417
    %v1419 = vadd.f32 %v1416, 1.0
    %v1420 = vadd.f32 %v1418, 1.0
    %v1421 = vrcp.pop %v1419
    %v1422 = vmul.f32 1.0, %v1421
    %v1423 = vrcp.pop %v1420
    %v1424 = vmul.f32 1.0, %v1423
    %1426 = vrot.lane.b32.xlu0 %v1379, 64
    %v1427 = vpop.permute.xlu0 %1426
    %v1429 = vmul.f32 %v1422, %v1427
    %1431 = vrot.lane.b32.xlu0 %v1429, 64
    %v1432 = vpop.permute.xlu0 %1431
    %v1434 = vadd.f32 %v208, %v1432
    %v1435 = vtanh.pop %v1434
    %v1436 = vsub.f32 1.0, %v1424
    %1438 = vrot.lane.b32.xlu0 %v1435, 96
    %v1439 = vpop.permute.xlu0 %1438
    %v1441 = vmul.f32 %v1436, %v1439
    %v1442 = vrot.slane %v1295, 2
    %v1444 = vmul.f32 %v1424, %v1442
    %v1445 = vadd.f32 %v1441, %v1444
    %1447 = vrot.lane.b32.xlu0 %v1445, 32
    %v1448 = vpop.permute.xlu0 %1447
    %v1450 = vsel %vm391, %v384, %v1448
    %1451 = vrot.lane.b32.xlu0 %v1295, 32
    %v1452 = vpop.permute.xlu0 %1451
    %v1454 = vsel %vm391, %v538, %v1452
    %1455 = vrot.lane.b32.xlu0 %v1142, 32
    %v1456 = vpop.permute.xlu0 %1455
    %v1458 = vsel %vm391, %v691, %v1456
    %1459 = vrot.lane.b32.xlu0 %v989, 32
    %v1460 = vpop.permute.xlu0 %1459
    %v1462 = vsel %vm391, %v841, %v1460
    %1463 = vrot.lane.b32.xlu0 %v838, 32
    %v1464 = vpop.permute.xlu0 %1463
    %v1466 = vsel %vm391, %v992, %v1464
    %1467 = vrot.lane.b32.xlu0 %v688, 32
    %v1468 = vpop.permute.xlu0 %1467
    %v1470 = vsel %vm391, %v1145, %v1468
    %1471 = vrot.lane.b32.xlu0 %v535, 32
    %v1472 = vpop.permute.xlu0 %1471
    %v1474 = vsel %vm391, %v1298, %v1472
    %1476 = vrot.lane.b32.xlu0 %v1410, 96
    %v1477 = vpop.permute.xlu0 %1476
    %1479 = vrot.lane.b32.xlu0 %v381, 32
    %v1480 = vpop.permute.xlu0 %1479
    %v1482 = vsel %vm391, %v1477, %v1480
    %vm1483 = vcmask 1041408
    %v1484 = vsel %vm1483, %v1450, %v1454
    %vm1485 = vcmask 1043456
    %v1486 = vsel %vm1485, %v1484, %v1458
    %vm1487 = vcmask 1045504
    %v1488 = vsel %vm1487, %v1486, %v1462
    %v1489 = vsel %vm1483, %v1466, %v1470
    %v1490 = vsel %vm1485, %v1489, %v1474
    %v1491 = vsel %vm1487, %v1490, %v1482
    %v1492 = vld [vmem:[%s5] sm:$0xff]
    %v1493 = vld [vmem:[%s5 + $0x8] sm:$0xff]
    %v1494 = vld [vmem:[%s5 + $0x10] sm:$0xff]
    %v1495 = vld [vmem:[%s5 + $0x18] sm:$0xff]
    %v1496 = vld [vmem:[%s5 + $0x20] sm:$0xff]
    %v1497 = vld [vmem:[%s5 + $0x28] sm:$0xff]
    %v1498 = vld [vmem:[%s5 + $0x30] sm:$0xff]
    %v1499 = vld [vmem:[%s5 + $0x38] sm:$0xff]
    %v1500 = vld [vmem:[%s5 + $0x40] sm:$0xff]
    %v1501 = vld [vmem:[%s5 + $0x48] sm:$0xff]
    %v1502 = vld [vmem:[%s5 + $0x50] sm:$0xff]
    %v1503 = vld [vmem:[%s5 + $0x58] sm:$0xff]
    %v1504 = vld [vmem:[%s5 + $0x60] sm:$0xff]
    %v1505 = vld [vmem:[%s5 + $0x68] sm:$0xff]
    %v1506 = vld [vmem:[%s5 + $0x70] sm:$0xff]
    %v1507 = vld [vmem:[%s5 + $0x78] sm:$0xff]
    %v1508 = vld [vmem:[#allocation6] sm:$0x3]
    %v1510 = vlaneseq
    %v1511 = vshrl.u32 %v1510, 7
    %v1512 = vsub.s32 0, %v1511
    %v1513 = vrot.slane %v1508, %v1512
    %v1514 = vlaneseq
    %v1515 = vshrl.u32 %v1514, 7
    %v1516 = vsub.s32 1, %v1515
    %v1517 = vrot.slane %v1508, %v1516
    %v1521 = vsel %vm244, %v1488, 0
    %v1524 = vsel %vm244, %v1491, 0
    %1526 = vmatprep.subr.mxu0 %v1493
    %1527 = vmatpush1.msra.mxu0 %v1492
    %1528 = vmatprep.subr.mxu0 %v1495
    %1529 = vmatpush1.msra.mxu0 %v1494
    %1530 = vmatprep.subr.mxu0 %v1497
    %1531 = vmatpush1.msra.mxu0 %v1496
    %1532 = vmatprep.subr.mxu0 %v1499
    %1533 = vmatpush1.msra.mxu0 %v1498
    %1534 = vmatprep.subr.mxu0 %v1501
    %1535 = vmatpush1.msra.mxu0 %v1500
    %1536 = vmatprep.subr.mxu0 %v1503
    %1537 = vmatpush1.msra.mxu0 %v1502
    %1538 = vmatprep.subr.mxu0 %v1505
    %1539 = vmatpush1.msra.mxu0 %v1504
    %1540 = vmatprep.subr.mxu0 %v1507
    %1541 = vmatpush1.msra.mxu0 %v1506
    %1542 = vmatprep.subr.mxu0 0.0
    %1543 = vmatpush1.msra.mxu0 0.0
    %1544 = vmatprep.subr.mxu0 0.0
    %1545 = vmatpush1.msra.mxu0 0.0
    %1546 = vmatprep.subr.mxu0 0.0
    %1547 = vmatpush1.msra.mxu0 0.0
    %1548 = vmatprep.subr.mxu0 0.0
    %1549 = vmatpush1.msra.mxu0 0.0
    %1550 = vmatprep.subr.mxu0 0.0
    %1551 = vmatpush1.msra.mxu0 0.0
    %1552 = vmatprep.subr.mxu0 0.0
    %1553 = vmatpush1.msra.mxu0 0.0
    %1554 = vmatprep.subr.mxu0 0.0
    %1555 = vmatpush1.msra.mxu0 0.0
    %1556 = vmatprep.subr.mxu0 0.0
    %1557 = vmatpush1.msra.mxu0 0.0
    %1558 = vmatprep.subr.mxu0 0.0
    %1559 = vmatpush1.msra.mxu0 0.0
    %1560 = vmatprep.subr.mxu0 0.0
    %1561 = vmatpush1.msra.mxu0 0.0
    %1562 = vmatprep.subr.mxu0 0.0
    %1563 = vmatpush1.msra.mxu0 0.0
    %1564 = vmatprep.subr.mxu0 0.0
    %1565 = vmatpush1.msra.mxu0 0.0
    %1566 = vmatprep.subr.mxu0 0.0
    %1567 = vmatpush1.msra.mxu0 0.0
    %1568 = vmatprep.subr.mxu0 0.0
    %1569 = vmatpush1.msra.mxu0 0.0
    %1570 = vmatprep.subr.mxu0 0.0
    %1571 = vmatpush1.msra.mxu0 0.0
    %1572 = vmatprep.subr.mxu0 0.0
    %1573 = vmatpush1.msra.mxu0 0.0
    %1574 = vmatprep.subr.mxu0 0.0
    %1575 = vmatpush1.msra.mxu0 0.0
    %1576 = vmatprep.subr.mxu0 0.0
    %1577 = vmatpush1.msra.mxu0 0.0
    %1578 = vmatprep.subr.mxu0 0.0
    %1579 = vmatpush1.msra.mxu0 0.0
    %1580 = vmatprep.subr.mxu0 0.0
    %1581 = vmatpush1.msra.mxu0 0.0
    %1582 = vmatprep.subr.mxu0 0.0
    %1583 = vmatpush1.msra.mxu0 0.0
    %1584 = vmatprep.subr.mxu0 0.0
    %1585 = vmatpush1.msra.mxu0 0.0
    %1586 = vmatprep.subr.mxu0 0.0
    %1587 = vmatpush1.msra.mxu0 0.0
    %1588 = vmatprep.subr.mxu0 0.0
    %1589 = vmatpush1.msra.mxu0 0.0
    %1590 = vmatprep.mubr.f32.mxu0 0.0
    %1591 = vmatmul.mubr.f32.gmra.mrb[0].mxu0 %v1521
    %v1592 = vpop.f32.mrb[0].mxu0
    %v1593 = vadd.f32 %v1513, %v1592
    %v1594 = vpop.f32.mrb[0].mxu0
    %v1595 = vadd.f32 %v1517, %v1594
    %1596 = vmatprep.mubr.f32.mxu0 0.0
    %1597 = vmatmul.mubr.f32.gmra.mrb[0].mxu0 %v1524
    %v1598 = vpop.f32.mrb[0].mxu0
    %v1599 = vadd.f32 %v1513, %v1598
    %v1600 = vpop.f32.mrb[0].mxu0
    %v1601 = vadd.f32 %v1517, %v1600
    %1602 = vdwg.mxu0
    %v1603 = vld [vmem:[#allocation7] sm:$0xff]
    %v1604 = vld [vmem:[#allocation7 + $0x8] sm:$0xff]
    %v1605 = vld [vmem:[#allocation7 + $0x10] sm:$0xff]
    %v1606 = vld [vmem:[#allocation7 + $0x18] sm:$0xff]
    %v1607 = vld [vmem:[#allocation7 + $0x20] sm:$0xff]
    %v1608 = vld [vmem:[#allocation7 + $0x28] sm:$0xff]
    %v1609 = vld [vmem:[#allocation7 + $0x30] sm:$0xff]
    %v1610 = vld [vmem:[#allocation7 + $0x38] sm:$0xff]
    %v1611 = vld [vmem:[#allocation7 + $0x40] sm:$0xff]
    %v1612 = vld [vmem:[#allocation7 + $0x48] sm:$0xff]
    %v1613 = vld [vmem:[#allocation7 + $0x50] sm:$0xff]
    %v1614 = vld [vmem:[#allocation7 + $0x58] sm:$0xff]
    %v1615 = vld [vmem:[#allocation7 + $0x60] sm:$0xff]
    %v1616 = vld [vmem:[#allocation7 + $0x68] sm:$0xff]
    %v1617 = vld [vmem:[#allocation7 + $0x70] sm:$0xff]
    %v1618 = vld [vmem:[#allocation7 + $0x78] sm:$0xff]
    %v1619 = vld [vmem:[#allocation9] sm:$0x3]
    %v1621 = vlaneseq
    %v1622 = vshrl.u32 %v1621, 7
    %v1623 = vsub.s32 0, %v1622
    %v1624 = vrot.slane %v1619, %v1623
    %v1625 = vlaneseq
    %v1626 = vshrl.u32 %v1625, 7
    %v1627 = vsub.s32 1, %v1626
    %v1628 = vrot.slane %v1619, %v1627
    %1631 = vmatprep.subr.mxu0 %v1604
    %1632 = vmatpush1.msra.mxu0 %v1603
    %1633 = vmatprep.subr.mxu0 %v1606
    %1634 = vmatpush1.msra.mxu0 %v1605
    %1635 = vmatprep.subr.mxu0 %v1608
    %1636 = vmatpush1.msra.mxu0 %v1607
    %1637 = vmatprep.subr.mxu0 %v1610
    %1638 = vmatpush1.msra.mxu0 %v1609
    %1639 = vmatprep.subr.mxu0 %v1612
    %1640 = vmatpush1.msra.mxu0 %v1611
    %1641 = vmatprep.subr.mxu0 %v1614
    %1642 = vmatpush1.msra.mxu0 %v1613
    %1643 = vmatprep.subr.mxu0 %v1616
    %1644 = vmatpush1.msra.mxu0 %v1615
    %1645 = vmatprep.subr.mxu0 %v1618
    %1646 = vmatpush1.msra.mxu0 %v1617
    %1647 = vmatprep.subr.mxu0 0.0
    %1648 = vmatpush1.msra.mxu0 0.0
    %1649 = vmatprep.subr.mxu0 0.0
    %1650 = vmatpush1.msra.mxu0 0.0
    %1651 = vmatprep.subr.mxu0 0.0
    %1652 = vmatpush1.msra.mxu0 0.0
    %1653 = vmatprep.subr.mxu0 0.0
    %1654 = vmatpush1.msra.mxu0 0.0
    %1655 = vmatprep.subr.mxu0 0.0
    %1656 = vmatpush1.msra.mxu0 0.0
    %1657 = vmatprep.subr.mxu0 0.0
    %1658 = vmatpush1.msra.mxu0 0.0
    %1659 = vmatprep.subr.mxu0 0.0
    %1660 = vmatpush1.msra.mxu0 0.0
    %1661 = vmatprep.subr.mxu0 0.0
    %1662 = vmatpush1.msra.mxu0 0.0
    %1663 = vmatprep.subr.mxu0 0.0
    %1664 = vmatpush1.msra.mxu0 0.0
    %1665 = vmatprep.subr.mxu0 0.0
    %1666 = vmatpush1.msra.mxu0 0.0
    %1667 = vmatprep.subr.mxu0 0.0
    %1668 = vmatpush1.msra.mxu0 0.0
    %1669 = vmatprep.subr.mxu0 0.0
    %1670 = vmatpush1.msra.mxu0 0.0
    %1671 = vmatprep.subr.mxu0 0.0
    %1672 = vmatpush1.msra.mxu0 0.0
    %1673 = vmatprep.subr.mxu0 0.0
    %1674 = vmatpush1.msra.mxu0 0.0
    %1675 = vmatprep.subr.mxu0 0.0
    %1676 = vmatpush1.msra.mxu0 0.0
    %1677 = vmatprep.subr.mxu0 0.0
    %1678 = vmatpush1.msra.mxu0 0.0
    %1679 = vmatprep.subr.mxu0 0.0
    %1680 = vmatpush1.msra.mxu0 0.0
    %1681 = vmatprep.subr.mxu0 0.0
    %1682 = vmatpush1.msra.mxu0 0.0
    %1683 = vmatprep.subr.mxu0 0.0
    %1684 = vmatpush1.msra.mxu0 0.0
    %1685 = vmatprep.subr.mxu0 0.0
    %1686 = vmatpush1.msra.mxu0 0.0
    %1687 = vmatprep.subr.mxu0 0.0
    %1688 = vmatpush1.msra.mxu0 0.0
    %1689 = vmatprep.subr.mxu0 0.0
    %1690 = vmatpush1.msra.mxu0 0.0
    %1691 = vmatprep.subr.mxu0 0.0
    %1692 = vmatpush1.msra.mxu0 0.0
    %1693 = vmatprep.subr.mxu0 0.0
    %1694 = vmatpush1.msra.mxu0 0.0
    %1695 = vmatprep.mubr.f32.mxu0 0.0
    %1696 = vmatmul.mubr.f32.gmra.mrb[0].mxu0 %v246
    %v1697 = vpop.f32.mrb[0].mxu0
    %v1698 = vadd.f32 %v1624, %v1697
    %v1699 = vpop.f32.mrb[0].mxu0
    %v1700 = vadd.f32 %v1628, %v1699
    %1701 = vdwg.mxu0
    %v1702 = vadd.f32 %v1593, %v1698
    %v1703 = vxor.u32 %v1702, 2147483648
    %v1704 = vmul.f32 %v1703, 1.442695
    %v1705 = vpow.pop %v1704
    %v1706 = vadd.f32 %v1705, 1.0
    %v1707 = vrcp.pop %v1706
    %v1708 = vmul.f32 1.0, %v1707
    %1710 = vrot.lane.b32.xlu0 %v1698, 64
    %v1711 = vpop.permute.xlu0 %1710
    %v1713 = vmul.f32 %v1708, %v1711
    %1715 = vrot.lane.b32.xlu0 %v1713, 64
    %v1716 = vpop.permute.xlu0 %1715
    %v1718 = vadd.f32 %v1593, %v1716
    %v1719 = vtanh.pop %v1718
    %v1720 = vsub.f32 1.0, %v1708
    %1722 = vrot.lane.b32.xlu0 %v1719, 96
    %v1723 = vpop.permute.xlu0 %1722
    %v1725 = vmul.f32 %v1720, %v1723
    %v1726 = vmul.f32 %v1708, 0.0
    %v1727 = vadd.f32 %v1725, %v1726
    %v1729 = vrot.slane %v1698, 2
    %v1730 = vrot.slane %v1700, 2
    %v1733 = vadd.f32 %v1599, %v1729
    %v1734 = vadd.f32 %v1601, %v1730
    %v1735 = vxor.u32 %v1733, 2147483648
    %v1736 = vxor.u32 %v1734, 2147483648
    %v1737 = vmul.f32 %v1735, 1.442695
    %v1738 = vpow.pop %v1737
    %v1739 = vmul.f32 %v1736, 1.442695
    %v1740 = vpow.pop %v1739
    %v1741 = vadd.f32 %v1738, 1.0
    %v1742 = vadd.f32 %v1740, 1.0
    %v1743 = vrcp.pop %v1741
    %v1744 = vmul.f32 1.0, %v1743
    %v1745 = vrcp.pop %v1742
    %v1746 = vmul.f32 1.0, %v1745
    %1747 = vrot.lane.b32.xlu0 %v1730, 64
    %v1748 = vpop.permute.xlu0 %1747
    %v1750 = vmul.f32 %v1744, %v1748
    %1752 = vrot.lane.b32.xlu0 %v1750, 64
    %v1753 = vpop.permute.xlu0 %1752
    %v1755 = vadd.f32 %v1601, %v1753
    %v1756 = vtanh.pop %v1755
    %v1757 = vsub.f32 1.0, %v1746
    %1759 = vrot.lane.b32.xlu0 %v1756, 96
    %v1760 = vpop.permute.xlu0 %1759
    %v1762 = vmul.f32 %v1757, %v1760
    %v1763 = vmul.f32 %v1746, 0.0
    %v1764 = vadd.f32 %v1762, %v1763
    %1766 = vrot.lane.b32.xlu0 %v1727, 96
    %v1767 = vpop.permute.xlu0 %1766
    %v1770 = vrot.slane %v1764, 6
    %1771 = vrot.lane.b32.xlu0 %v1770, 32
    %v1772 = vpop.permute.xlu0 %1771
    %v1774 = vsel %vm391, %v1767, %v1772
    %v1776 = vsel %vm244, %v1774, 0
    %1778 = vmatprep.subr.mxu0 %v1604
    %1779 = vmatpush1.msra.mxu0 %v1603
    %1780 = vmatprep.subr.mxu0 %v1606
    %1781 = vmatpush1.msra.mxu0 %v1605
    %1782 = vmatprep.subr.mxu0 %v1608
    %1783 = vmatpush1.msra.mxu0 %v1607
    %1784 = vmatprep.subr.mxu0 %v1610
    %1785 = vmatpush1.msra.mxu0 %v1609
    %1786 = vmatprep.subr.mxu0 %v1612
    %1787 = vmatpush1.msra.mxu0 %v1611
    %1788 = vmatprep.subr.mxu0 %v1614
    %1789 = vmatpush1.msra.mxu0 %v1613
    %1790 = vmatprep.subr.mxu0 %v1616
    %1791 = vmatpush1.msra.mxu0 %v1615
    %1792 = vmatprep.subr.mxu0 %v1618
    %1793 = vmatpush1.msra.mxu0 %v1617
    %1794 = vmatprep.subr.mxu0 0.0
    %1795 = vmatpush1.msra.mxu0 0.0
    %1796 = vmatprep.subr.mxu0 0.0
    %1797 = vmatpush1.msra.mxu0 0.0
    %1798 = vmatprep.subr.mxu0 0.0
    %1799 = vmatpush1.msra.mxu0 0.0
    %1800 = vmatprep.subr.mxu0 0.0
    %1801 = vmatpush1.msra.mxu0 0.0
    %1802 = vmatprep.subr.mxu0 0.0
    %1803 = vmatpush1.msra.mxu0 0.0
    %1804 = vmatprep.subr.mxu0 0.0
    %1805 = vmatpush1.msra.mxu0 0.0
    %1806 = vmatprep.subr.mxu0 0.0
    %1807 = vmatpush1.msra.mxu0 0.0
    %1808 = vmatprep.subr.mxu0 0.0
    %1809 = vmatpush1.msra.mxu0 0.0
    %1810 = vmatprep.subr.mxu0 0.0
    %1811 = vmatpush1.msra.mxu0 0.0
    %1812 = vmatprep.subr.mxu0 0.0
    %1813 = vmatpush1.msra.mxu0 0.0
    %1814 = vmatprep.subr.mxu0 0.0
    %1815 = vmatpush1.msra.mxu0 0.0
    %1816 = vmatprep.subr.mxu0 0.0
    %1817 = vmatpush1.msra.mxu0 0.0
    %1818 = vmatprep.subr.mxu0 0.0
    %1819 = vmatpush1.msra.mxu0 0.0
    %1820 = vmatprep.subr.mxu0 0.0
    %1821 = vmatpush1.msra.mxu0 0.0
    %1822 = vmatprep.subr.mxu0 0.0
    %1823 = vmatpush1.msra.mxu0 0.0
    %1824 = vmatprep.subr.mxu0 0.0
    %1825 = vmatpush1.msra.mxu0 0.0
    %1826 = vmatprep.subr.mxu0 0.0
    %1827 = vmatpush1.msra.mxu0 0.0
    %1828 = vmatprep.subr.mxu0 0.0
    %1829 = vmatpush1.msra.mxu0 0.0
    %1830 = vmatprep.subr.mxu0 0.0
    %1831 = vmatpush1.msra.mxu0 0.0
    %1832 = vmatprep.subr.mxu0 0.0
    %1833 = vmatpush1.msra.mxu0 0.0
    %1834 = vmatprep.subr.mxu0 0.0
    %1835 = vmatpush1.msra.mxu0 0.0
    %1836 = vmatprep.subr.mxu0 0.0
    %1837 = vmatpush1.msra.mxu0 0.0
    %1838 = vmatprep.subr.mxu0 0.0
    %1839 = vmatpush1.msra.mxu0 0.0
    %1840 = vmatprep.subr.mxu0 0.0
    %1841 = vmatpush1.msra.mxu0 0.0
    %1842 = vmatprep.mubr.f32.mxu0 0.0
    %1843 = vmatmul.mubr.f32.gmra.mrb[0].mxu0 %v1776
    %v1844 = vpop.f32.mrb[0].mxu0
    %v1845 = vadd.f32 %v1624, %v1844
    %v1846 = vpop.f32.mrb[0].mxu0
    %v1847 = vadd.f32 %v1628, %v1846
    %1848 = vdwg.mxu0
    %v1850 = vrot.slane %v1845, 6
    %v1852 = vadd.f32 %v1593, %v1850
    %v1853 = vxor.u32 %v1852, 2147483648
    %v1854 = vmul.f32 %v1853, 1.442695
    %v1855 = vpow.pop %v1854
    %v1856 = vadd.f32 %v1855, 1.0
    %v1857 = vrcp.pop %v1856
    %v1858 = vmul.f32 1.0, %v1857
    %1859 = vrot.lane.b32.xlu0 %v1850, 64
    %v1860 = vpop.permute.xlu0 %1859
    %v1862 = vmul.f32 %v1858, %v1860
    %1864 = vrot.lane.b32.xlu0 %v1862, 64
    %v1865 = vpop.permute.xlu0 %1864
    %v1867 = vadd.f32 %v1593, %v1865
    %v1868 = vtanh.pop %v1867
    %v1869 = vsub.f32 1.0, %v1858
    %1871 = vrot.lane.b32.xlu0 %v1868, 96
    %v1872 = vpop.permute.xlu0 %1871
    %v1874 = vmul.f32 %v1869, %v1872
    %v1875 = vrot.slane %v1727, 6
    %v1877 = vmul.f32 %v1858, %v1875
    %v1878 = vadd.f32 %v1874, %v1877
    %v1880 = vrot.slane %v1845, 4
    %v1881 = vrot.slane %v1847, 4
    %v1884 = vadd.f32 %v1599, %v1880
    %v1885 = vadd.f32 %v1601, %v1881
    %v1886 = vxor.u32 %v1884, 2147483648
    %v1887 = vxor.u32 %v1885, 2147483648
    %v1888 = vmul.f32 %v1886, 1.442695
    %v1889 = vpow.pop %v1888
    %v1890 = vmul.f32 %v1887, 1.442695
    %v1891 = vpow.pop %v1890
    %v1892 = vadd.f32 %v1889, 1.0
    %v1893 = vadd.f32 %v1891, 1.0
    %v1894 = vrcp.pop %v1892
    %v1895 = vmul.f32 1.0, %v1894
    %v1896 = vrcp.pop %v1893
    %v1897 = vmul.f32 1.0, %v1896
    %1898 = vrot.lane.b32.xlu0 %v1881, 64
    %v1899 = vpop.permute.xlu0 %1898
    %v1901 = vmul.f32 %v1895, %v1899
    %1903 = vrot.lane.b32.xlu0 %v1901, 64
    %v1904 = vpop.permute.xlu0 %1903
    %v1906 = vadd.f32 %v1601, %v1904
    %v1907 = vtanh.pop %v1906
    %v1908 = vsub.f32 1.0, %v1897
    %1910 = vrot.lane.b32.xlu0 %v1907, 96
    %v1911 = vpop.permute.xlu0 %1910
    %v1913 = vmul.f32 %v1908, %v1911
    %v1914 = vrot.slane %v1764, 2
    %v1916 = vmul.f32 %v1897, %v1914
    %v1917 = vadd.f32 %v1913, %v1916
    %1919 = vrot.lane.b32.xlu0 %v1878, 96
    %v1920 = vpop.permute.xlu0 %1919
    %v1923 = vrot.slane %v1917, 2
    %1924 = vrot.lane.b32.xlu0 %v1923, 32
    %v1925 = vpop.permute.xlu0 %1924
    %v1927 = vsel %vm391, %v1920, %v1925
    %v1929 = vrot.slane %v1927, 2
    %v1930 = vsel %vm244, %v1929, 0
    %1932 = vmatprep.subr.mxu0 %v1604
    %1933 = vmatpush1.msra.mxu0 %v1603
    %1934 = vmatprep.subr.mxu0 %v1606
    %1935 = vmatpush1.msra.mxu0 %v1605
    %1936 = vmatprep.subr.mxu0 %v1608
    %1937 = vmatpush1.msra.mxu0 %v1607
    %1938 = vmatprep.subr.mxu0 %v1610
    %1939 = vmatpush1.msra.mxu0 %v1609
    %1940 = vmatprep.subr.mxu0 %v1612
    %1941 = vmatpush1.msra.mxu0 %v1611
    %1942 = vmatprep.subr.mxu0 %v1614
    %1943 = vmatpush1.msra.mxu0 %v1613
    %1944 = vmatprep.subr.mxu0 %v1616
    %1945 = vmatpush1.msra.mxu0 %v1615
    %1946 = vmatprep.subr.mxu0 %v1618
    %1947 = vmatpush1.msra.mxu0 %v1617
    %1948 = vmatprep.subr.mxu0 0.0
    %1949 = vmatpush1.msra.mxu0 0.0
    %1950 = vmatprep.subr.mxu0 0.0
    %1951 = vmatpush1.msra.mxu0 0.0
    %1952 = vmatprep.subr.mxu0 0.0
    %1953 = vmatpush1.msra.mxu0 0.0
    %1954 = vmatprep.subr.mxu0 0.0
    %1955 = vmatpush1.msra.mxu0 0.0
    %1956 = vmatprep.subr.mxu0 0.0
    %1957 = vmatpush1.msra.mxu0 0.0
    %1958 = vmatprep.subr.mxu0 0.0
    %1959 = vmatpush1.msra.mxu0 0.0
    %1960 = vmatprep.subr.mxu0 0.0
    %1961 = vmatpush1.msra.mxu0 0.0
    %1962 = vmatprep.subr.mxu0 0.0
    %1963 = vmatpush1.msra.mxu0 0.0
    %1964 = vmatprep.subr.mxu0 0.0
    %1965 = vmatpush1.msra.mxu0 0.0
    %1966 = vmatprep.subr.mxu0 0.0
    %1967 = vmatpush1.msra.mxu0 0.0
    %1968 = vmatprep.subr.mxu0 0.0
    %1969 = vmatpush1.msra.mxu0 0.0
    %1970 = vmatprep.subr.mxu0 0.0
    %1971 = vmatpush1.msra.mxu0 0.0
    %1972 = vmatprep.subr.mxu0 0.0
    %1973 = vmatpush1.msra.mxu0 0.0
    %1974 = vmatprep.subr.mxu0 0.0
    %1975 = vmatpush1.msra.mxu0 0.0
    %1976 = vmatprep.subr.mxu0 0.0
    %1977 = vmatpush1.msra.mxu0 0.0
    %1978 = vmatprep.subr.mxu0 0.0
    %1979 = vmatpush1.msra.mxu0 0.0
    %1980 = vmatprep.subr.mxu0 0.0
    %1981 = vmatpush1.msra.mxu0 0.0
    %1982 = vmatprep.subr.mxu0 0.0
    %1983 = vmatpush1.msra.mxu0 0.0
    %1984 = vmatprep.subr.mxu0 0.0
    %1985 = vmatpush1.msra.mxu0 0.0
    %1986 = vmatprep.subr.mxu0 0.0
    %1987 = vmatpush1.msra.mxu0 0.0
    %1988 = vmatprep.subr.mxu0 0.0
    %1989 = vmatpush1.msra.mxu0 0.0
    %1990 = vmatprep.subr.mxu0 0.0
    %1991 = vmatpush1.msra.mxu0 0.0
    %1992 = vmatprep.subr.mxu0 0.0
    %1993 = vmatpush1.msra.mxu0 0.0
    %1994 = vmatprep.subr.mxu0 0.0
    %1995 = vmatpush1.msra.mxu0 0.0
    %1996 = vmatprep.mubr.f32.mxu0 0.0
    %1997 = vmatmul.mubr.f32.gmra.mrb[0].mxu0 %v1930
    %v1998 = vpop.f32.mrb[0].mxu0
    %v1999 = vadd.f32 %v1624, %v1998
    %v2000 = vpop.f32.mrb[0].mxu0
    %v2001 = vadd.f32 %v1628, %v2000
    %2002 = vdwg.mxu0
    %v2004 = vrot.slane %v1999, 4
    %v2006 = vadd.f32 %v1593, %v2004
    %v2007 = vxor.u32 %v2006, 2147483648
    %v2008 = vmul.f32 %v2007, 1.442695
    %v2009 = vpow.pop %v2008
    %v2010 = vadd.f32 %v2009, 1.0
    %v2011 = vrcp.pop %v2010
    %v2012 = vmul.f32 1.0, %v2011
    %2013 = vrot.lane.b32.xlu0 %v2004, 64
    %v2014 = vpop.permute.xlu0 %2013
    %v2016 = vmul.f32 %v2012, %v2014
    %2018 = vrot.lane.b32.xlu0 %v2016, 64
    %v2019 = vpop.permute.xlu0 %2018
    %v2021 = vadd.f32 %v1593, %v2019
    %v2022 = vtanh.pop %v2021
    %v2023 = vsub.f32 1.0, %v2012
    %2025 = vrot.lane.b32.xlu0 %v2022, 96
    %v2026 = vpop.permute.xlu0 %2025
    %v2028 = vmul.f32 %v2023, %v2026
    %v2029 = vrot.slane %v1878, 6
    %v2031 = vmul.f32 %v2012, %v2029
    %v2032 = vadd.f32 %v2028, %v2031
    %v2034 = vrot.slane %v1999, 6
    %v2035 = vrot.slane %v2001, 6
    %v2038 = vadd.f32 %v1599, %v2034
    %v2039 = vadd.f32 %v1601, %v2035
    %v2040 = vxor.u32 %v2038, 2147483648
    %v2041 = vxor.u32 %v2039, 2147483648
    %v2042 = vmul.f32 %v2040, 1.442695
    %v2043 = vpow.pop %v2042
    %v2044 = vmul.f32 %v2041, 1.442695
    %v2045 = vpow.pop %v2044
    %v2046 = vadd.f32 %v2043, 1.0
    %v2047 = vadd.f32 %v2045, 1.0
    %v2048 = vrcp.pop %v2046
    %v2049 = vmul.f32 1.0, %v2048
    %v2050 = vrcp.pop %v2047
    %v2051 = vmul.f32 1.0, %v2050
    %2052 = vrot.lane.b32.xlu0 %v2035, 64
    %v2053 = vpop.permute.xlu0 %2052
    %v2055 = vmul.f32 %v2049, %v2053
    %2057 = vrot.lane.b32.xlu0 %v2055, 64
    %v2058 = vpop.permute.xlu0 %2057
    %v2060 = vadd.f32 %v1601, %v2058
    %v2061 = vtanh.pop %v2060
    %v2062 = vsub.f32 1.0, %v2051
    %2064 = vrot.lane.b32.xlu0 %v2061, 96
    %v2065 = vpop.permute.xlu0 %2064
    %v2067 = vmul.f32 %v2062, %v2065
    %v2069 = vmul.f32 %v2051, %v1923
    %v2070 = vadd.f32 %v2067, %v2069
    %2072 = vrot.lane.b32.xlu0 %v2032, 96
    %v2073 = vpop.permute.xlu0 %2072
    %v2076 = vrot.slane %v2070, 6
    %2077 = vrot.lane.b32.xlu0 %v2076, 32
    %v2078 = vpop.permute.xlu0 %2077
    %v2080 = vsel %vm391, %v2073, %v2078
    %v2082 = vrot.slane %v2080, 4
    %v2083 = vsel %vm244, %v2082, 0
    %2085 = vmatprep.subr.mxu0 %v1604
    %2086 = vmatpush1.msra.mxu0 %v1603
    %2087 = vmatprep.subr.mxu0 %v1606
    %2088 = vmatpush1.msra.mxu0 %v1605
    %2089 = vmatprep.subr.mxu0 %v1608
    %2090 = vmatpush1.msra.mxu0 %v1607
    %2091 = vmatprep.subr.mxu0 %v1610
    %2092 = vmatpush1.msra.mxu0 %v1609
    %2093 = vmatprep.subr.mxu0 %v1612
    %2094 = vmatpush1.msra.mxu0 %v1611
    %2095 = vmatprep.subr.mxu0 %v1614
    %2096 = vmatpush1.msra.mxu0 %v1613
    %2097 = vmatprep.subr.mxu0 %v1616
    %2098 = vmatpush1.msra.mxu0 %v1615
    %2099 = vmatprep.subr.mxu0 %v1618
    %2100 = vmatpush1.msra.mxu0 %v1617
    %2101 = vmatprep.subr.mxu0 0.0
    %2102 = vmatpush1.msra.mxu0 0.0
    %2103 = vmatprep.subr.mxu0 0.0
    %2104 = vmatpush1.msra.mxu0 0.0
    %2105 = vmatprep.subr.mxu0 0.0
    %2106 = vmatpush1.msra.mxu0 0.0
    %2107 = vmatprep.subr.mxu0 0.0
    %2108 = vmatpush1.msra.mxu0 0.0
    %2109 = vmatprep.subr.mxu0 0.0
    %2110 = vmatpush1.msra.mxu0 0.0
    %2111 = vmatprep.subr.mxu0 0.0
    %2112 = vmatpush1.msra.mxu0 0.0
    %2113 = vmatprep.subr.mxu0 0.0
    %2114 = vmatpush1.msra.mxu0 0.0
    %2115 = vmatprep.subr.mxu0 0.0
    %2116 = vmatpush1.msra.mxu0 0.0
    %2117 = vmatprep.subr.mxu0 0.0
    %2118 = vmatpush1.msra.mxu0 0.0
    %2119 = vmatprep.subr.mxu0 0.0
    %2120 = vmatpush1.msra.mxu0 0.0
    %2121 = vmatprep.subr.mxu0 0.0
    %2122 = vmatpush1.msra.mxu0 0.0
    %2123 = vmatprep.subr.mxu0 0.0
    %2124 = vmatpush1.msra.mxu0 0.0
    %2125 = vmatprep.subr.mxu0 0.0
    %2126 = vmatpush1.msra.mxu0 0.0
    %2127 = vmatprep.subr.mxu0 0.0
    %2128 = vmatpush1.msra.mxu0 0.0
    %2129 = vmatprep.subr.mxu0 0.0
    %2130 = vmatpush1.msra.mxu0 0.0
    %2131 = vmatprep.subr.mxu0 0.0
    %2132 = vmatpush1.msra.mxu0 0.0
    %2133 = vmatprep.subr.mxu0 0.0
    %2134 = vmatpush1.msra.mxu0 0.0
    %2135 = vmatprep.subr.mxu0 0.0
    %2136 = vmatpush1.msra.mxu0 0.0
    %2137 = vmatprep.subr.mxu0 0.0
    %2138 = vmatpush1.msra.mxu0 0.0
    %2139 = vmatprep.subr.mxu0 0.0
    %2140 = vmatpush1.msra.mxu0 0.0
    %2141 = vmatprep.subr.mxu0 0.0
    %2142 = vmatpush1.msra.mxu0 0.0
    %2143 = vmatprep.subr.mxu0 0.0
    %2144 = vmatpush1.msra.mxu0 0.0
    %2145 = vmatprep.subr.mxu0 0.0
    %2146 = vmatpush1.msra.mxu0 0.0
    %2147 = vmatprep.subr.mxu0 0.0
    %2148 = vmatpush1.msra.mxu0 0.0
    %2149 = vmatprep.mubr.f32.mxu0 0.0
    %2150 = vmatmul.mubr.f32.gmra.mrb[0].mxu0 %v2083
    %v2151 = vpop.f32.mrb[0].mxu0
    %v2152 = vadd.f32 %v1624, %v2151
    %v2153 = vpop.f32.mrb[0].mxu0
    %v2154 = vadd.f32 %v1628, %v2153
    %2155 = vdwg.mxu0
    %v2157 = vrot.slane %v2152, 2
    %v2159 = vadd.f32 %v1593, %v2157
    %v2160 = vxor.u32 %v2159, 2147483648
    %v2161 = vmul.f32 %v2160, 1.442695
    %v2162 = vpow.pop %v2161
    %v2163 = vadd.f32 %v2162, 1.0
    %v2164 = vrcp.pop %v2163
    %v2165 = vmul.f32 1.0, %v2164
    %2166 = vrot.lane.b32.xlu0 %v2157, 64
    %v2167 = vpop.permute.xlu0 %2166
    %v2169 = vmul.f32 %v2165, %v2167
    %2171 = vrot.lane.b32.xlu0 %v2169, 64
    %v2172 = vpop.permute.xlu0 %2171
    %v2174 = vadd.f32 %v1593, %v2172
    %v2175 = vtanh.pop %v2174
    %v2176 = vsub.f32 1.0, %v2165
    %2178 = vrot.lane.b32.xlu0 %v2175, 96
    %v2179 = vpop.permute.xlu0 %2178
    %v2181 = vmul.f32 %v2176, %v2179
    %v2182 = vrot.slane %v2032, 6
    %v2184 = vmul.f32 %v2165, %v2182
    %v2185 = vadd.f32 %v2181, %v2184
    %v2186 = vadd.f32 %v1599, %v2152
    %v2187 = vadd.f32 %v1601, %v2154
    %v2188 = vxor.u32 %v2186, 2147483648
    %v2189 = vxor.u32 %v2187, 2147483648
    %v2190 = vmul.f32 %v2188, 1.442695
    %v2191 = vpow.pop %v2190
    %v2192 = vmul.f32 %v2189, 1.442695
    %v2193 = vpow.pop %v2192
    %v2194 = vadd.f32 %v2191, 1.0
    %v2195 = vadd.f32 %v2193, 1.0
    %v2196 = vrcp.pop %v2194
    %v2197 = vmul.f32 1.0, %v2196
    %v2198 = vrcp.pop %v2195
    %v2199 = vmul.f32 1.0, %v2198
    %2201 = vrot.lane.b32.xlu0 %v2154, 64
    %v2202 = vpop.permute.xlu0 %2201
    %v2204 = vmul.f32 %v2197, %v2202
    %2206 = vrot.lane.b32.xlu0 %v2204, 64
    %v2207 = vpop.permute.xlu0 %2206
    %v2209 = vadd.f32 %v1601, %v2207
    %v2210 = vtanh.pop %v2209
    %v2211 = vsub.f32 1.0, %v2199
    %2213 = vrot.lane.b32.xlu0 %v2210, 96
    %v2214 = vpop.permute.xlu0 %2213
    %v2216 = vmul.f32 %v2211, %v2214
    %v2217 = vrot.slane %v2070, 2
    %v2219 = vmul.f32 %v2199, %v2217
    %v2220 = vadd.f32 %v2216, %v2219
    %2222 = vrot.lane.b32.xlu0 %v2185, 96
    %v2223 = vpop.permute.xlu0 %2222
    %v2226 = vrot.slane %v2220, 2
    %2227 = vrot.lane.b32.xlu0 %v2226, 32
    %v2228 = vpop.permute.xlu0 %2227
    %v2230 = vsel %vm391, %v2223, %v2228
    %v2232 = vrot.slane %v2230, 6
    %v2233 = vsel %vm244, %v2232, 0
    %2235 = vmatprep.subr.mxu0 %v1604
    %2236 = vmatpush1.msra.mxu0 %v1603
    %2237 = vmatprep.subr.mxu0 %v1606
    %2238 = vmatpush1.msra.mxu0 %v1605
    %2239 = vmatprep.subr.mxu0 %v1608
    %2240 = vmatpush1.msra.mxu0 %v1607
    %2241 = vmatprep.subr.mxu0 %v1610
    %2242 = vmatpush1.msra.mxu0 %v1609
    %2243 = vmatprep.subr.mxu0 %v1612
    %2244 = vmatpush1.msra.mxu0 %v1611
    %2245 = vmatprep.subr.mxu0 %v1614
    %2246 = vmatpush1.msra.mxu0 %v1613
    %2247 = vmatprep.subr.mxu0 %v1616
    %2248 = vmatpush1.msra.mxu0 %v1615
    %2249 = vmatprep.subr.mxu0 %v1618
    %2250 = vmatpush1.msra.mxu0 %v1617
    %2251 = vmatprep.subr.mxu0 0.0
    %2252 = vmatpush1.msra.mxu0 0.0
    %2253 = vmatprep.subr.mxu0 0.0
    %2254 = vmatpush1.msra.mxu0 0.0
    %2255 = vmatprep.subr.mxu0 0.0
    %2256 = vmatpush1.msra.mxu0 0.0
    %2257 = vmatprep.subr.mxu0 0.0
    %2258 = vmatpush1.msra.mxu0 0.0
    %2259 = vmatprep.subr.mxu0 0.0
    %2260 = vmatpush1.msra.mxu0 0.0
    %2261 = vmatprep.subr.mxu0 0.0
    %2262 = vmatpush1.msra.mxu0 0.0
    %2263 = vmatprep.subr.mxu0 0.0
    %2264 = vmatpush1.msra.mxu0 0.0
    %2265 = vmatprep.subr.mxu0 0.0
    %2266 = vmatpush1.msra.mxu0 0.0
    %2267 = vmatprep.subr.mxu0 0.0
    %2268 = vmatpush1.msra.mxu0 0.0
    %2269 = vmatprep.subr.mxu0 0.0
    %2270 = vmatpush1.msra.mxu0 0.0
    %2271 = vmatprep.subr.mxu0 0.0
    %2272 = vmatpush1.msra.mxu0 0.0
    %2273 = vmatprep.subr.mxu0 0.0
    %2274 = vmatpush1.msra.mxu0 0.0
    %2275 = vmatprep.subr.mxu0 0.0
    %2276 = vmatpush1.msra.mxu0 0.0
    %2277 = vmatprep.subr.mxu0 0.0
    %2278 = vmatpush1.msra.mxu0 0.0
    %2279 = vmatprep.subr.mxu0 0.0
    %2280 = vmatpush1.msra.mxu0 0.0
    %2281 = vmatprep.subr.mxu0 0.0
    %2282 = vmatpush1.msra.mxu0 0.0
    %2283 = vmatprep.subr.mxu0 0.0
    %2284 = vmatpush1.msra.mxu0 0.0
    %2285 = vmatprep.subr.mxu0 0.0
    %2286 = vmatpush1.msra.mxu0 0.0
    %2287 = vmatprep.subr.mxu0 0.0
    %2288 = vmatpush1.msra.mxu0 0.0
    %2289 = vmatprep.subr.mxu0 0.0
    %2290 = vmatpush1.msra.mxu0 0.0
    %2291 = vmatprep.subr.mxu0 0.0
    %2292 = vmatpush1.msra.mxu0 0.0
    %2293 = vmatprep.subr.mxu0 0.0
    %2294 = vmatpush1.msra.mxu0 0.0
    %2295 = vmatprep.subr.mxu0 0.0
    %2296 = vmatpush1.msra.mxu0 0.0
    %2297 = vmatprep.subr.mxu0 0.0
    %2298 = vmatpush1.msra.mxu0 0.0
    %2299 = vmatprep.mubr.f32.mxu0 0.0
    %2300 = vmatmul.mubr.f32.gmra.mrb[0].mxu0 %v2233
    %v2301 = vpop.f32.mrb[0].mxu0
    %v2302 = vadd.f32 %v1624, %v2301
    %v2303 = vpop.f32.mrb[0].mxu0
    %v2304 = vadd.f32 %v1628, %v2303
    %2305 = vdwg.mxu0
    %v2306 = vadd.f32 %v1599, %v2302
    %v2307 = vxor.u32 %v2306, 2147483648
    %v2308 = vmul.f32 %v2307, 1.442695
    %v2309 = vpow.pop %v2308
    %v2310 = vadd.f32 %v2309, 1.0
    %v2311 = vrcp.pop %v2310
    %v2312 = vmul.f32 1.0, %v2311
    %2314 = vrot.lane.b32.xlu0 %v2302, 64
    %v2315 = vpop.permute.xlu0 %2314
    %v2317 = vmul.f32 %v2312, %v2315
    %2319 = vrot.lane.b32.xlu0 %v2317, 64
    %v2320 = vpop.permute.xlu0 %2319
    %v2322 = vadd.f32 %v1599, %v2320
    %v2323 = vtanh.pop %v2322
    %v2324 = vsub.f32 1.0, %v2312
    %2326 = vrot.lane.b32.xlu0 %v2323, 96
    %v2327 = vpop.permute.xlu0 %2326
    %v2329 = vmul.f32 %v2324, %v2327
    %v2330 = vrot.slane %v2185, 6
    %v2332 = vmul.f32 %v2312, %v2330
    %v2333 = vadd.f32 %v2329, %v2332
    %v2335 = vrot.slane %v2302, 2
    %v2336 = vrot.slane %v2304, 2
    %v2339 = vadd.f32 %v1593, %v2335
    %v2340 = vadd.f32 %v1595, %v2336
    %v2341 = vxor.u32 %v2339, 2147483648
    %v2342 = vxor.u32 %v2340, 2147483648
    %v2343 = vmul.f32 %v2341, 1.442695
    %v2344 = vpow.pop %v2343
    %v2345 = vmul.f32 %v2342, 1.442695
    %v2346 = vpow.pop %v2345
    %v2347 = vadd.f32 %v2344, 1.0
    %v2348 = vadd.f32 %v2346, 1.0
    %v2349 = vrcp.pop %v2347
    %v2350 = vmul.f32 1.0, %v2349
    %v2351 = vrcp.pop %v2348
    %v2352 = vmul.f32 1.0, %v2351
    %2353 = vrot.lane.b32.xlu0 %v2336, 64
    %v2354 = vpop.permute.xlu0 %2353
    %v2356 = vmul.f32 %v2350, %v2354
    %2358 = vrot.lane.b32.xlu0 %v2356, 64
    %v2359 = vpop.permute.xlu0 %2358
    %v2361 = vadd.f32 %v1595, %v2359
    %v2362 = vtanh.pop %v2361
    %v2363 = vsub.f32 1.0, %v2352
    %2365 = vrot.lane.b32.xlu0 %v2362, 96
    %v2366 = vpop.permute.xlu0 %2365
    %v2368 = vmul.f32 %v2363, %v2366
    %v2370 = vmul.f32 %v2352, %v2226
    %v2371 = vadd.f32 %v2368, %v2370
    %2373 = vrot.lane.b32.xlu0 %v2333, 96
    %v2374 = vpop.permute.xlu0 %2373
    %v2377 = vrot.slane %v2371, 6
    %2378 = vrot.lane.b32.xlu0 %v2377, 32
    %v2379 = vpop.permute.xlu0 %2378
    %v2381 = vsel %vm391, %v2374, %v2379
    %v2383 = vsel %vm244, %v2381, 0
    %2385 = vmatprep.subr.mxu0 %v1604
    %2386 = vmatpush1.msra.mxu0 %v1603
    %2387 = vmatprep.subr.mxu0 %v1606
    %2388 = vmatpush1.msra.mxu0 %v1605
    %2389 = vmatprep.subr.mxu0 %v1608
    %2390 = vmatpush1.msra.mxu0 %v1607
    %2391 = vmatprep.subr.mxu0 %v1610
    %2392 = vmatpush1.msra.mxu0 %v1609
    %2393 = vmatprep.subr.mxu0 %v1612
    %2394 = vmatpush1.msra.mxu0 %v1611
    %2395 = vmatprep.subr.mxu0 %v1614
    %2396 = vmatpush1.msra.mxu0 %v1613
    %2397 = vmatprep.subr.mxu0 %v1616
    %2398 = vmatpush1.msra.mxu0 %v1615
    %2399 = vmatprep.subr.mxu0 %v1618
    %2400 = vmatpush1.msra.mxu0 %v1617
    %2401 = vmatprep.subr.mxu0 0.0
    %2402 = vmatpush1.msra.mxu0 0.0
    %2403 = vmatprep.subr.mxu0 0.0
    %2404 = vmatpush1.msra.mxu0 0.0
    %2405 = vmatprep.subr.mxu0 0.0
    %2406 = vmatpush1.msra.mxu0 0.0
    %2407 = vmatprep.subr.mxu0 0.0
    %2408 = vmatpush1.msra.mxu0 0.0
    %2409 = vmatprep.subr.mxu0 0.0
    %2410 = vmatpush1.msra.mxu0 0.0
    %2411 = vmatprep.subr.mxu0 0.0
    %2412 = vmatpush1.msra.mxu0 0.0
    %2413 = vmatprep.subr.mxu0 0.0
    %2414 = vmatpush1.msra.mxu0 0.0
    %2415 = vmatprep.subr.mxu0 0.0
    %2416 = vmatpush1.msra.mxu0 0.0
    %2417 = vmatprep.subr.mxu0 0.0
    %2418 = vmatpush1.msra.mxu0 0.0
    %2419 = vmatprep.subr.mxu0 0.0
    %2420 = vmatpush1.msra.mxu0 0.0
    %2421 = vmatprep.subr.mxu0 0.0
    %2422 = vmatpush1.msra.mxu0 0.0
    %2423 = vmatprep.subr.mxu0 0.0
    %2424 = vmatpush1.msra.mxu0 0.0
    %2425 = vmatprep.subr.mxu0 0.0
    %2426 = vmatpush1.msra.mxu0 0.0
    %2427 = vmatprep.subr.mxu0 0.0
    %2428 = vmatpush1.msra.mxu0 0.0
    %2429 = vmatprep.subr.mxu0 0.0
    %2430 = vmatpush1.msra.mxu0 0.0
    %2431 = vmatprep.subr.mxu0 0.0
    %2432 = vmatpush1.msra.mxu0 0.0
    %2433 = vmatprep.subr.mxu0 0.0
    %2434 = vmatpush1.msra.mxu0 0.0
    %2435 = vmatprep.subr.mxu0 0.0
    %2436 = vmatpush1.msra.mxu0 0.0
    %2437 = vmatprep.subr.mxu0 0.0
    %2438 = vmatpush1.msra.mxu0 0.0
    %2439 = vmatprep.subr.mxu0 0.0
    %2440 = vmatpush1.msra.mxu0 0.0
    %2441 = vmatprep.subr.mxu0 0.0
    %2442 = vmatpush1.msra.mxu0 0.0
    %2443 = vmatprep.subr.mxu0 0.0
    %2444 = vmatpush1.msra.mxu0 0.0
    %2445 = vmatprep.subr.mxu0 0.0
    %2446 = vmatpush1.msra.mxu0 0.0
    %2447 = vmatprep.subr.mxu0 0.0
    %2448 = vmatpush1.msra.mxu0 0.0
    %2449 = vmatprep.mubr.f32.mxu0 0.0
    %2450 = vmatmul.mubr.f32.gmra.mrb[0].mxu0 %v2383
    %v2451 = vpop.f32.mrb[0].mxu0
    %v2452 = vadd.f32 %v1624, %v2451
    %v2453 = vpop.f32.mrb[0].mxu0
    %v2454 = vadd.f32 %v1628, %v2453
    %2455 = vdwg.mxu0
    %v2457 = vrot.slane %v2452, 6
    %v2459 = vadd.f32 %v1599, %v2457
    %v2460 = vxor.u32 %v2459, 2147483648
    %v2461 = vmul.f32 %v2460, 1.442695
    %v2462 = vpow.pop %v2461
    %v2463 = vadd.f32 %v2462, 1.0
    %v2464 = vrcp.pop %v2463
    %v2465 = vmul.f32 1.0, %v2464
    %2466 = vrot.lane.b32.xlu0 %v2457, 64
    %v2467 = vpop.permute.xlu0 %2466
    %v2469 = vmul.f32 %v2465, %v2467
    %2471 = vrot.lane.b32.xlu0 %v2469, 64
    %v2472 = vpop.permute.xlu0 %2471
    %v2474 = vadd.f32 %v1599, %v2472
    %v2475 = vtanh.pop %v2474
    %v2476 = vsub.f32 1.0, %v2465
    %2478 = vrot.lane.b32.xlu0 %v2475, 96
    %v2479 = vpop.permute.xlu0 %2478
    %v2481 = vmul.f32 %v2476, %v2479
    %v2482 = vrot.slane %v2333, 6
    %v2484 = vmul.f32 %v2465, %v2482
    %v2485 = vadd.f32 %v2481, %v2484
    %v2487 = vrot.slane %v2452, 4
    %v2488 = vrot.slane %v2454, 4
    %v2491 = vadd.f32 %v1593, %v2487
    %v2492 = vadd.f32 %v1595, %v2488
    %v2493 = vxor.u32 %v2491, 2147483648
    %v2494 = vxor.u32 %v2492, 2147483648
    %v2495 = vmul.f32 %v2493, 1.442695
    %v2496 = vpow.pop %v2495
    %v2497 = vmul.f32 %v2494, 1.442695
    %v2498 = vpow.pop %v2497
    %v2499 = vadd.f32 %v2496, 1.0
    %v2500 = vadd.f32 %v2498, 1.0
    %v2501 = vrcp.pop %v2499
    %v2502 = vmul.f32 1.0, %v2501
    %v2503 = vrcp.pop %v2500
    %v2504 = vmul.f32 1.0, %v2503
    %2505 = vrot.lane.b32.xlu0 %v2488, 64
    %v2506 = vpop.permute.xlu0 %2505
    %v2508 = vmul.f32 %v2502, %v2506
    %2510 = vrot.lane.b32.xlu0 %v2508, 64
    %v2511 = vpop.permute.xlu0 %2510
    %v2513 = vadd.f32 %v1595, %v2511
    %v2514 = vtanh.pop %v2513
    %v2515 = vsub.f32 1.0, %v2504
    %2517 = vrot.lane.b32.xlu0 %v2514, 96
    %v2518 = vpop.permute.xlu0 %2517
    %v2520 = vmul.f32 %v2515, %v2518
    %v2521 = vrot.slane %v2371, 2
    %v2523 = vmul.f32 %v2504, %v2521
    %v2524 = vadd.f32 %v2520, %v2523
    %2526 = vrot.lane.b32.xlu0 %v2485, 96
    %v2527 = vpop.permute.xlu0 %2526
    %v2530 = vrot.slane %v2524, 2
    %2531 = vrot.lane.b32.xlu0 %v2530, 32
    %v2532 = vpop.permute.xlu0 %2531
    %v2534 = vsel %vm391, %v2527, %v2532
    %v2536 = vrot.slane %v2534, 2
    %v2537 = vsel %vm244, %v2536, 0
    %2539 = vmatprep.subr.mxu0 %v1604
    %2540 = vmatpush1.msra.mxu0 %v1603
    %2541 = vmatprep.subr.mxu0 %v1606
    %2542 = vmatpush1.msra.mxu0 %v1605
    %2543 = vmatprep.subr.mxu0 %v1608
    %2544 = vmatpush1.msra.mxu0 %v1607
    %2545 = vmatprep.subr.mxu0 %v1610
    %2546 = vmatpush1.msra.mxu0 %v1609
    %2547 = vmatprep.subr.mxu0 %v1612
    %2548 = vmatpush1.msra.mxu0 %v1611
    %2549 = vmatprep.subr.mxu0 %v1614
    %2550 = vmatpush1.msra.mxu0 %v1613
    %2551 = vmatprep.subr.mxu0 %v1616
    %2552 = vmatpush1.msra.mxu0 %v1615
    %2553 = vmatprep.subr.mxu0 %v1618
    %2554 = vmatpush1.msra.mxu0 %v1617
    %2555 = vmatprep.subr.mxu0 0.0
    %2556 = vmatpush1.msra.mxu0 0.0
    %2557 = vmatprep.subr.mxu0 0.0
    %2558 = vmatpush1.msra.mxu0 0.0
    %2559 = vmatprep.subr.mxu0 0.0
    %2560 = vmatpush1.msra.mxu0 0.0
    %2561 = vmatprep.subr.mxu0 0.0
    %2562 = vmatpush1.msra.mxu0 0.0
    %2563 = vmatprep.subr.mxu0 0.0
    %2564 = vmatpush1.msra.mxu0 0.0
    %2565 = vmatprep.subr.mxu0 0.0
    %2566 = vmatpush1.msra.mxu0 0.0
    %2567 = vmatprep.subr.mxu0 0.0
    %2568 = vmatpush1.msra.mxu0 0.0
    %2569 = vmatprep.subr.mxu0 0.0
    %2570 = vmatpush1.msra.mxu0 0.0
    %2571 = vmatprep.subr.mxu0 0.0
    %2572 = vmatpush1.msra.mxu0 0.0
    %2573 = vmatprep.subr.mxu0 0.0
    %2574 = vmatpush1.msra.mxu0 0.0
    %2575 = vmatprep.subr.mxu0 0.0
    %2576 = vmatpush1.msra.mxu0 0.0
    %2577 = vmatprep.subr.mxu0 0.0
    %2578 = vmatpush1.msra.mxu0 0.0
    %2579 = vmatprep.subr.mxu0 0.0
    %2580 = vmatpush1.msra.mxu0 0.0
    %2581 = vmatprep.subr.mxu0 0.0
    %2582 = vmatpush1.msra.mxu0 0.0
    %2583 = vmatprep.subr.mxu0 0.0
    %2584 = vmatpush1.msra.mxu0 0.0
    %2585 = vmatprep.subr.mxu0 0.0
    %2586 = vmatpush1.msra.mxu0 0.0
    %2587 = vmatprep.subr.mxu0 0.0
    %2588 = vmatpush1.msra.mxu0 0.0
    %2589 = vmatprep.subr.mxu0 0.0
    %2590 = vmatpush1.msra.mxu0 0.0
    %2591 = vmatprep.subr.mxu0 0.0
    %2592 = vmatpush1.msra.mxu0 0.0
    %2593 = vmatprep.subr.mxu0 0.0
    %2594 = vmatpush1.msra.mxu0 0.0
    %2595 = vmatprep.subr.mxu0 0.0
    %2596 = vmatpush1.msra.mxu0 0.0
    %2597 = vmatprep.subr.mxu0 0.0
    %2598 = vmatpush1.msra.mxu0 0.0
    %2599 = vmatprep.subr.mxu0 0.0
    %2600 = vmatpush1.msra.mxu0 0.0
    %2601 = vmatprep.subr.mxu0 0.0
    %2602 = vmatpush1.msra.mxu0 0.0
    %2603 = vmatprep.mubr.f32.mxu0 0.0
    %2604 = vmatmul.mubr.f32.gmra.mrb[0].mxu0 %v2537
    %v2605 = vpop.f32.mrb[0].mxu0
    %v2606 = vadd.f32 %v1624, %v2605
    %v2607 = vpop.f32.mrb[0].mxu0
    %v2608 = vadd.f32 %v1628, %v2607
    %2609 = vdwg.mxu0
    %v2611 = vrot.slane %v2606, 4
    %v2613 = vadd.f32 %v1599, %v2611
    %v2614 = vxor.u32 %v2613, 2147483648
    %v2615 = vmul.f32 %v2614, 1.442695
    %v2616 = vpow.pop %v2615
    %v2617 = vadd.f32 %v2616, 1.0
    %v2618 = vrcp.pop %v2617
    %v2619 = vmul.f32 1.0, %v2618
    %2620 = vrot.lane.b32.xlu0 %v2611, 64
    %v2621 = vpop.permute.xlu0 %2620
    %v2623 = vmul.f32 %v2619, %v2621
    %2625 = vrot.lane.b32.xlu0 %v2623, 64
    %v2626 = vpop.permute.xlu0 %2625
    %v2628 = vadd.f32 %v1599, %v2626
    %v2629 = vtanh.pop %v2628
    %v2630 = vsub.f32 1.0, %v2619
    %2632 = vrot.lane.b32.xlu0 %v2629, 96
    %v2633 = vpop.permute.xlu0 %2632
    %v2635 = vmul.f32 %v2630, %v2633
    %v2636 = vrot.slane %v2485, 6
    %v2638 = vmul.f32 %v2619, %v2636
    %v2639 = vadd.f32 %v2635, %v2638
    %v2641 = vrot.slane %v2606, 6
    %v2642 = vrot.slane %v2608, 6
    %v2645 = vadd.f32 %v1593, %v2641
    %v2646 = vadd.f32 %v1595, %v2642
    %v2647 = vxor.u32 %v2645, 2147483648
    %v2648 = vxor.u32 %v2646, 2147483648
    %v2649 = vmul.f32 %v2647, 1.442695
    %v2650 = vpow.pop %v2649
    %v2651 = vmul.f32 %v2648, 1.442695
    %v2652 = vpow.pop %v2651
    %v2653 = vadd.f32 %v2650, 1.0
    %v2654 = vadd.f32 %v2652, 1.0
    %v2655 = vrcp.pop %v2653
    %v2656 = vmul.f32 1.0, %v2655
    %v2657 = vrcp.pop %v2654
    %v2658 = vmul.f32 1.0, %v2657
    %2659 = vrot.lane.b32.xlu0 %v2642, 64
    %v2660 = vpop.permute.xlu0 %2659
    %v2662 = vmul.f32 %v2656, %v2660
    %2664 = vrot.lane.b32.xlu0 %v2662, 64
    %v2665 = vpop.permute.xlu0 %2664
    %v2667 = vadd.f32 %v1595, %v2665
    %v2668 = vtanh.pop %v2667
    %v2669 = vsub.f32 1.0, %v2658
    %2671 = vrot.lane.b32.xlu0 %v2668, 96
    %v2672 = vpop.permute.xlu0 %2671
    %v2674 = vmul.f32 %v2669, %v2672
    %v2676 = vmul.f32 %v2658, %v2530
    %v2677 = vadd.f32 %v2674, %v2676
    %2679 = vrot.lane.b32.xlu0 %v2639, 96
    %v2680 = vpop.permute.xlu0 %2679
    %v2683 = vrot.slane %v2677, 6
    %2684 = vrot.lane.b32.xlu0 %v2683, 32
    %v2685 = vpop.permute.xlu0 %2684
    %v2687 = vsel %vm391, %v2680, %v2685
    %v2689 = vrot.slane %v2687, 4
    %v2690 = vsel %vm244, %v2689, 0
    %2692 = vmatprep.subr.mxu0 %v1604
    %2693 = vmatpush1.msra.mxu0 %v1603
    %2694 = vmatprep.subr.mxu0 %v1606
    %2695 = vmatpush1.msra.mxu0 %v1605
    %2696 = vmatprep.subr.mxu0 %v1608
    %2697 = vmatpush1.msra.mxu0 %v1607
    %2698 = vmatprep.subr.mxu0 %v1610
    %2699 = vmatpush1.msra.mxu0 %v1609
    %2700 = vmatprep.subr.mxu0 %v1612
    %2701 = vmatpush1.msra.mxu0 %v1611
    %2702 = vmatprep.subr.mxu0 %v1614
    %2703 = vmatpush1.msra.mxu0 %v1613
    %2704 = vmatprep.subr.mxu0 %v1616
    %2705 = vmatpush1.msra.mxu0 %v1615
    %2706 = vmatprep.subr.mxu0 %v1618
    %2707 = vmatpush1.msra.mxu0 %v1617
    %2708 = vmatprep.subr.mxu0 0.0
    %2709 = vmatpush1.msra.mxu0 0.0
    %2710 = vmatprep.subr.mxu0 0.0
    %2711 = vmatpush1.msra.mxu0 0.0
    %2712 = vmatprep.subr.mxu0 0.0
    %2713 = vmatpush1.msra.mxu0 0.0
    %2714 = vmatprep.subr.mxu0 0.0
    %2715 = vmatpush1.msra.mxu0 0.0
    %2716 = vmatprep.subr.mxu0 0.0
    %2717 = vmatpush1.msra.mxu0 0.0
    %2718 = vmatprep.subr.mxu0 0.0
    %2719 = vmatpush1.msra.mxu0 0.0
    %2720 = vmatprep.subr.mxu0 0.0
    %2721 = vmatpush1.msra.mxu0 0.0
    %2722 = vmatprep.subr.mxu0 0.0
    %2723 = vmatpush1.msra.mxu0 0.0
    %2724 = vmatprep.subr.mxu0 0.0
    %2725 = vmatpush1.msra.mxu0 0.0
    %2726 = vmatprep.subr.mxu0 0.0
    %2727 = vmatpush1.msra.mxu0 0.0
    %2728 = vmatprep.subr.mxu0 0.0
    %2729 = vmatpush1.msra.mxu0 0.0
    %2730 = vmatprep.subr.mxu0 0.0
    %2731 = vmatpush1.msra.mxu0 0.0
    %2732 = vmatprep.subr.mxu0 0.0
    %2733 = vmatpush1.msra.mxu0 0.0
    %2734 = vmatprep.subr.mxu0 0.0
    %2735 = vmatpush1.msra.mxu0 0.0
    %2736 = vmatprep.subr.mxu0 0.0
    %2737 = vmatpush1.msra.mxu0 0.0
    %2738 = vmatprep.subr.mxu0 0.0
    %2739 = vmatpush1.msra.mxu0 0.0
    %2740 = vmatprep.subr.mxu0 0.0
    %2741 = vmatpush1.msra.mxu0 0.0
    %2742 = vmatprep.subr.mxu0 0.0
    %2743 = vmatpush1.msra.mxu0 0.0
    %2744 = vmatprep.subr.mxu0 0.0
    %2745 = vmatpush1.msra.mxu0 0.0
    %2746 = vmatprep.subr.mxu0 0.0
    %2747 = vmatpush1.msra.mxu0 0.0
    %2748 = vmatprep.subr.mxu0 0.0
    %2749 = vmatpush1.msra.mxu0 0.0
    %2750 = vmatprep.subr.mxu0 0.0
    %2751 = vmatpush1.msra.mxu0 0.0
    %2752 = vmatprep.subr.mxu0 0.0
    %2753 = vmatpush1.msra.mxu0 0.0
    %2754 = vmatprep.subr.mxu0 0.0
    %2755 = vmatpush1.msra.mxu0 0.0
    %2756 = vmatprep.mubr.f32.mxu0 0.0
    %2757 = vmatmul.mubr.f32.gmra.mrb[0].mxu0 %v2690
    %v2758 = vpop.f32.mrb[0].mxu0
    %v2759 = vadd.f32 %v1624, %v2758
    %v2760 = vpop.f32.mrb[0].mxu0
    %v2761 = vadd.f32 %v1628, %v2760
    %2762 = vdwg.mxu0
    %v2764 = vrot.slane %v2759, 2
    %v2766 = vadd.f32 %v1599, %v2764
    %v2767 = vxor.u32 %v2766, 2147483648
    %v2768 = vmul.f32 %v2767, 1.442695
    %v2769 = vpow.pop %v2768
    %v2770 = vadd.f32 %v2769, 1.0
    %v2771 = vrcp.pop %v2770
    %v2772 = vmul.f32 1.0, %v2771
    %2773 = vrot.lane.b32.xlu0 %v2764, 64
    %v2774 = vpop.permute.xlu0 %2773
    %v2776 = vmul.f32 %v2772, %v2774
    %2778 = vrot.lane.b32.xlu0 %v2776, 64
    %v2779 = vpop.permute.xlu0 %2778
    %v2781 = vadd.f32 %v1599, %v2779
    %v2782 = vtanh.pop %v2781
    %v2783 = vsub.f32 1.0, %v2772
    %2785 = vrot.lane.b32.xlu0 %v2782, 96
    %v2786 = vpop.permute.xlu0 %2785
    %v2788 = vmul.f32 %v2783, %v2786
    %v2789 = vrot.slane %v2639, 6
    %v2791 = vmul.f32 %v2772, %v2789
    %v2792 = vadd.f32 %v2788, %v2791
    %v2793 = vadd.f32 %v1593, %v2759
    %v2794 = vadd.f32 %v1595, %v2761
    %v2795 = vxor.u32 %v2793, 2147483648
    %v2796 = vxor.u32 %v2794, 2147483648
    %v2797 = vmul.f32 %v2795, 1.442695
    %v2798 = vpow.pop %v2797
    %v2799 = vmul.f32 %v2796, 1.442695
    %v2800 = vpow.pop %v2799
    %v2801 = vadd.f32 %v2798, 1.0
    %v2802 = vadd.f32 %v2800, 1.0
    %v2803 = vrcp.pop %v2801
    %v2804 = vmul.f32 1.0, %v2803
    %v2805 = vrcp.pop %v2802
    %v2806 = vmul.f32 1.0, %v2805
    %2808 = vrot.lane.b32.xlu0 %v2761, 64
    %v2809 = vpop.permute.xlu0 %2808
    %v2811 = vmul.f32 %v2804, %v2809
    %2813 = vrot.lane.b32.xlu0 %v2811, 64
    %v2814 = vpop.permute.xlu0 %2813
    %v2816 = vadd.f32 %v1595, %v2814
    %v2817 = vtanh.pop %v2816
    %v2818 = vsub.f32 1.0, %v2806
    %2820 = vrot.lane.b32.xlu0 %v2817, 96
    %v2821 = vpop.permute.xlu0 %2820
    %v2823 = vmul.f32 %v2818, %v2821
    %v2824 = vrot.slane %v2677, 2
    %v2826 = vmul.f32 %v2806, %v2824
    %v2827 = vadd.f32 %v2823, %v2826
    %2829 = vrot.lane.b32.xlu0 %v2827, 32
    %v2830 = vpop.permute.xlu0 %2829
    %v2832 = vsel %vm391, %v1767, %v2830
    %2833 = vrot.lane.b32.xlu0 %v2677, 32
    %v2834 = vpop.permute.xlu0 %2833
    %v2836 = vsel %vm391, %v1920, %v2834
    %2837 = vrot.lane.b32.xlu0 %v2524, 32
    %v2838 = vpop.permute.xlu0 %2837
    %v2840 = vsel %vm391, %v2073, %v2838
    %2841 = vrot.lane.b32.xlu0 %v2371, 32
    %v2842 = vpop.permute.xlu0 %2841
    %v2844 = vsel %vm391, %v2223, %v2842
    %2845 = vrot.lane.b32.xlu0 %v2220, 32
    %v2846 = vpop.permute.xlu0 %2845
    %v2848 = vsel %vm391, %v2374, %v2846
    %2849 = vrot.lane.b32.xlu0 %v2070, 32
    %v2850 = vpop.permute.xlu0 %2849
    %v2852 = vsel %vm391, %v2527, %v2850
    %2853 = vrot.lane.b32.xlu0 %v1917, 32
    %v2854 = vpop.permute.xlu0 %2853
    %v2856 = vsel %vm391, %v2680, %v2854
    %2858 = vrot.lane.b32.xlu0 %v2792, 96
    %v2859 = vpop.permute.xlu0 %2858
    %2861 = vrot.lane.b32.xlu0 %v1764, 32
    %v2862 = vpop.permute.xlu0 %2861
    %v2864 = vsel %vm391, %v2859, %v2862
    %v2866 = vrot.slane %v2836, 2
    %v2869 = vrot.slane %v2840, 4
    %v2872 = vrot.slane %v2844, 6
    %v2875 = vrot.slane %v2852, 2
    %v2878 = vrot.slane %v2856, 4
    %v2881 = vrot.slane %v2864, 6
    %vm2883 = vcmask 517120
    %2884 = vst.msk [vmem:[%s11] sm:$0x3] %vm2883, %v2832
    %2885 = vst.msk [vmem:[%s11 + $0x2] sm:$0x3] %vm2883, %v2866
    %2886 = vst.msk [vmem:[%s11 + $0x4] sm:$0x3] %vm2883, %v2869
    %2887 = vst.msk [vmem:[%s11 + $0x6] sm:$0x3] %vm2883, %v2872
    %2888 = vst.msk [vmem:[%s11 + $0x8] sm:$0x3] %vm2883, %v2848
    %2889 = vst.msk [vmem:[%s11 + $0xa] sm:$0x3] %vm2883, %v2875
    %2890 = vst.msk [vmem:[%s11 + $0xc] sm:$0x3] %vm2883, %v2878
    %2891 = vst.msk [vmem:[%s11 + $0xe] sm:$0x3] %vm2883, %v2881
    %v2892 = vrot.slane %v1445, 2
    %2893 = vrot.lane.b32.xlu0 %v2892, 32
    %v2894 = vpop.permute.xlu0 %2893
    %v2896 = vsel %vm391, %v1477, %v2894
    %v2897 = vrot.slane %v2827, 2
    %2898 = vrot.lane.b32.xlu0 %v2897, 32
    %v2899 = vpop.permute.xlu0 %2898
    %v2901 = vsel %vm391, %v2859, %v2899
    %v2903 = vrot.slane %v2896, 6
    %v2906 = vrot.slane %v2901, 4
    %v2908 = vsel %vm1483, %v2903, %v2906
    %v2909 = vld [vmem:[%s9] sm:$0xff]
    %v2910 = vld [vmem:[%s9 + $0x8] sm:$0xff]
    %v2911 = vld [vmem:[%s9 + $0x10] sm:$0xff]
    %v2912 = vld [vmem:[%s9 + $0x18] sm:$0xff]
    %v2913 = vld [vmem:[%s9 + $0x20] sm:$0xff]
    %v2914 = vld [vmem:[%s9 + $0x28] sm:$0xff]
    %v2915 = vld [vmem:[%s9 + $0x30] sm:$0xff]
    %v2916 = vld [vmem:[%s9 + $0x38] sm:$0xff]
    %v2917 = vld [vmem:[#allocation10] sm:$0x1]
    %v2919 = vlaneseq
    %v2920 = vshrl.u32 %v2919, 7
    %v2921 = vsub.s32 0, %v2920
    %v2922 = vrot.slane %v2917, %v2921
    %v2925 = vsel %vm244, %v2908, 0
    %2927 = vmatprep.subr.mxu0 0.0
    %2928 = vmatpush1.msra.mxu0 %v2909
    %2929 = vmatprep.subr.mxu0 0.0
    %2930 = vmatpush1.msra.mxu0 %v2910
    %2931 = vmatprep.subr.mxu0 0.0
    %2932 = vmatpush1.msra.mxu0 %v2911
    %2933 = vmatprep.subr.mxu0 0.0
    %2934 = vmatpush1.msra.mxu0 %v2912
    %2935 = vmatprep.subr.mxu0 0.0
    %2936 = vmatpush1.msra.mxu0 %v2913
    %2937 = vmatprep.subr.mxu0 0.0
    %2938 = vmatpush1.msra.mxu0 %v2914
    %2939 = vmatprep.subr.mxu0 0.0
    %2940 = vmatpush1.msra.mxu0 %v2915
    %2941 = vmatprep.subr.mxu0 0.0
    %2942 = vmatpush1.msra.mxu0 %v2916
    %2943 = vmatprep.subr.mxu0 0.0
    %2944 = vmatpush1.msra.mxu0 0.0
    %2945 = vmatprep.subr.mxu0 0.0
    %2946 = vmatpush1.msra.mxu0 0.0
    %2947 = vmatprep.subr.mxu0 0.0
    %2948 = vmatpush1.msra.mxu0 0.0
    %2949 = vmatprep.subr.mxu0 0.0
    %2950 = vmatpush1.msra.mxu0 0.0
    %2951 = vmatprep.subr.mxu0 0.0
    %2952 = vmatpush1.msra.mxu0 0.0
    %2953 = vmatprep.subr.mxu0 0.0
    %2954 = vmatpush1.msra.mxu0 0.0
    %2955 = vmatprep.subr.mxu0 0.0
    %2956 = vmatpush1.msra.mxu0 0.0
    %2957 = vmatprep.subr.mxu0 0.0
    %2958 = vmatpush1.msra.mxu0 0.0
    %2959 = vmatprep.subr.mxu0 0.0
    %2960 = vmatpush1.msra.mxu0 0.0
    %2961 = vmatprep.subr.mxu0 0.0
    %2962 = vmatpush1.msra.mxu0 0.0
    %2963 = vmatprep.subr.mxu0 0.0
    %2964 = vmatpush1.msra.mxu0 0.0
    %2965 = vmatprep.subr.mxu0 0.0
    %2966 = vmatpush1.msra.mxu0 0.0
    %2967 = vmatprep.subr.mxu0 0.0
    %2968 = vmatpush1.msra.mxu0 0.0
    %2969 = vmatprep.subr.mxu0 0.0
    %2970 = vmatpush1.msra.mxu0 0.0
    %2971 = vmatprep.subr.mxu0 0.0
    %2972 = vmatpush1.msra.mxu0 0.0
    %2973 = vmatprep.subr.mxu0 0.0
    %2974 = vmatpush1.msra.mxu0 0.0
    %2975 = vmatprep.subr.mxu0 0.0
    %2976 = vmatpush1.msra.mxu0 0.0
    %2977 = vmatprep.subr.mxu0 0.0
    %2978 = vmatpush1.msra.mxu0 0.0
    %2979 = vmatprep.subr.mxu0 0.0
    %2980 = vmatpush1.msra.mxu0 0.0
    %2981 = vmatprep.subr.mxu0 0.0
    %2982 = vmatpush1.msra.mxu0 0.0
    %2983 = vmatprep.subr.mxu0 0.0
    %2984 = vmatpush1.msra.mxu0 0.0
    %2985 = vmatprep.subr.mxu0 0.0
    %2986 = vmatpush1.msra.mxu0 0.0
    %2987 = vmatprep.subr.mxu0 0.0
    %2988 = vmatpush1.msra.mxu0 0.0
    %2989 = vmatprep.subr.mxu0 0.0
    %2990 = vmatpush1.msra.mxu0 0.0
    %2991 = vmatprep.mubr.f32.mxu0 0.0
    %2992 = vmatmul.mubr.f32.gmra.mrb[0].mxu0 %v2925
    %v2993 = vpop.f32.mrb[0].mxu0
    %v2994 = vadd.f32 %v2922, %v2993
    %v2995 = vpop.f32.mrb[0].mxu0
    %2996 = vdwg.mxu0
    %v2997 = vtanh.pop %v2994
    %vm2998 = vcmask 257024
    %2999 = vst.msk [vmem:[%s12] sm:$0xf] %vm2998, %v2997
    // Predicated region
    $region70: #{seq2seq_forward.2} parent=1 // pred_check
      _
    $region71: #{seq2seq_forward.2} parent=1 // pred_check_branch
      %3001 = sbr.rel (0) target = $region73
    $region72: #{seq2seq_forward.2} parent=1 // pred_region
      _
    $region73: #{seq2seq_forward.2} parent=1 // pred_fallthru
      _
    // Predicated region
    $region74: #{seq2seq_forward.2} parent=1 // pred_check
      _
    $region75: #{seq2seq_forward.2} parent=1 // pred_check_branch
      %3003 = sbr.rel (0) target = $region77
    $region76: #{seq2seq_forward.2} parent=1 // pred_region
      _
    $region77: #{seq2seq_forward.2} parent=1 // pred_fallthru
      _
    // Predicated region
    $region78: #{seq2seq_forward.2} parent=1 // pred_check
      _
    $region79: #{seq2seq_forward.2} parent=1 // pred_check_branch
      %3005 = sbr.rel (0) target = $region81
    $region80: #{seq2seq_forward.2} parent=1 // pred_region
      _
    $region81: #{seq2seq_forward.2} parent=1 // pred_fallthru
      _
    // Predicated region
    $region82: #{seq2seq_forward.2} parent=1 // pred_check
      _
    $region83: #{seq2seq_forward.2} parent=1 // pred_check_branch
      %3007 = sbr.rel (0) target = $region85
    $region84: #{seq2seq_forward.2} parent=1 // pred_region
      _
    $region85: #{seq2seq_forward.2} parent=1 // pred_fallthru
      _
    %3008 = vsyncpa [#allocation3], 1
    %3009 = vsyncpa [#allocation5], 1
    %3010 = vsyncpa [#allocation8], 1
    %3011 = vsyncpa [#allocation11], 1

// kernel: seq2seq_forward.3
$region0: #{seq2seq_forward.3}
  #allocation0 [shape = 'u32[]', space=smem, size = 0x4, offset = 0x4, fixed_abs, tag = 'smem constant byte address 0x4 - core index']
  #allocation1 [shape = 'u32[144,128]{1,0:T(1,128)}', space=vmem, size = 0x12000, scoped, tag = 'internal scratch']
  %s0 = inlined_call_operand.vmem [shape: f32[4,32], index: 0, kind: input, shape index: {}]
  %s1 = inlined_call_operand.vmem [shape: f32[2,8,64], index: 1, kind: input, shape index: {}]
  %s2 = inlined_call_operand.vmem [shape: f32[128,32], index: 2, kind: input, shape index: {}]
  %s3 = inlined_call_operand.vmem [shape: f32[1,32], index: 3, kind: input, shape index: {}]
  %s4 = inlined_call_operand.vmem [shape: f32[1,32], index: 4, kind: input, shape index: {}]
  %s5 = inlined_call_operand.vmem [shape: f32[22,10], index: 5, kind: input, shape index: {}]
  %s6 = inlined_call_operand.vmem [shape: f32[74,96], index: 6, kind: input, shape index: {}]
  %s7 = inlined_call_operand.vmem [shape: f32[1,96], index: 7, kind: input, shape index: {}]
  %s8 = inlined_call_operand.vmem [shape: f32[32,96], index: 8, kind: input, shape index: {}]
  %s9 = inlined_call_operand.vmem [shape: f32[1,96], index: 9, kind: input, shape index: {}]
  %s10 = inlined_call_operand.vmem [shape: f32[32,96], index: 10, kind: input, shape index: {}]
  %s11 = inlined_call_operand.vmem [shape: f32[1,96], index: 11, kind: input, shape index: {}]
  %s12 = inlined_call_operand.vmem [shape: f32[32,96], index: 12, kind: input, shape index: {}]
  %s13 = inlined_call_operand.vmem [shape: f32[1,96], index: 13, kind: input, shape index: {}]
  %s14 = inlined_call_operand.vmem [shape: f32[96,22], index: 14, kind: input, shape index: {}]
  %s15 = inlined_call_operand.vmem [shape: f32[1,22], index: 15, kind: input, shape index: {}]
  %s16 = inlined_call_operand.vmem [shape: f32[4,2,22], index: 16, kind: output, shape index: {0}]
  %s17 = inlined_call_operand.vmem [shape: f32[4,8,2], index: 17, kind: output, shape index: {1}]
  %18 = xla_tuple %s16, %s17
  %s19 = sld [smem:[#allocation0]]
  $region82: #{seq2seq_forward.3} parent=0
    _
  %s21 = ssub.s32 1, %s19
  %s22 = scalar_select 0, %s21, %s19
  // Predicated region
  $region2: #{seq2seq_forward.3} parent=0 // pred_check
    _
  $region3: #{seq2seq_forward.3} parent=0 // pred_check_branch
    %24 = sbr.rel (0) target = $region5
  $region4: #{seq2seq_forward.3} parent=0 // pred_region
    _
  $region5: #{seq2seq_forward.3} parent=0 // pred_fallthru
    _
  // Predicated region
  $region6: #{seq2seq_forward.3} parent=0 // pred_check
    _
  $region7: #{seq2seq_forward.3} parent=0 // pred_check_branch
    %26 = sbr.rel (0) target = $region9
  $region8: #{seq2seq_forward.3} parent=0 // pred_region
    _
  $region9: #{seq2seq_forward.3} parent=0 // pred_fallthru
    _
  // Predicated region
  $region10: #{seq2seq_forward.3} parent=0 // pred_check
    _
  $region11: #{seq2seq_forward.3} parent=0 // pred_check_branch
    %28 = sbr.rel (0) target = $region13
  $region12: #{seq2seq_forward.3} parent=0 // pred_region
    _
  $region13: #{seq2seq_forward.3} parent=0 // pred_fallthru
    _
  // Predicated region
  $region14: #{seq2seq_forward.3} parent=0 // pred_check
    _
  $region15: #{seq2seq_forward.3} parent=0 // pred_check_branch
    %30 = sbr.rel (0) target = $region17
  $region16: #{seq2seq_forward.3} parent=0 // pred_region
    _
  $region17: #{seq2seq_forward.3} parent=0 // pred_fallthru
    _
  // Predicated region
  $region18: #{seq2seq_forward.3} parent=0 // pred_check
    _
  $region19: #{seq2seq_forward.3} parent=0 // pred_check_branch
    %32 = sbr.rel (0) target = $region21
  $region20: #{seq2seq_forward.3} parent=0 // pred_region
    _
  $region21: #{seq2seq_forward.3} parent=0 // pred_fallthru
    _
  // Predicated region
  $region22: #{seq2seq_forward.3} parent=0 // pred_check
    _
  $region23: #{seq2seq_forward.3} parent=0 // pred_check_branch
    %34 = sbr.rel (0) target = $region25
  $region24: #{seq2seq_forward.3} parent=0 // pred_region
    _
  $region25: #{seq2seq_forward.3} parent=0 // pred_fallthru
    _
  // Predicated region
  $region26: #{seq2seq_forward.3} parent=0 // pred_check
    _
  $region27: #{seq2seq_forward.3} parent=0 // pred_check_branch
    %36 = sbr.rel (0) target = $region29
  $region28: #{seq2seq_forward.3} parent=0 // pred_region
    _
  $region29: #{seq2seq_forward.3} parent=0 // pred_fallthru
    _
  // Predicated region
  $region30: #{seq2seq_forward.3} parent=0 // pred_check
    _
  $region31: #{seq2seq_forward.3} parent=0 // pred_check_branch
    %38 = sbr.rel (0) target = $region33
  $region32: #{seq2seq_forward.3} parent=0 // pred_region
    _
  $region33: #{seq2seq_forward.3} parent=0 // pred_fallthru
    _
  // Predicated region
  $region34: #{seq2seq_forward.3} parent=0 // pred_check
    _
  $region35: #{seq2seq_forward.3} parent=0 // pred_check_branch
    %40 = sbr.rel (0) target = $region37
  $region36: #{seq2seq_forward.3} parent=0 // pred_region
    _
  $region37: #{seq2seq_forward.3} parent=0 // pred_fallthru
    _
  // Predicated region
  $region38: #{seq2seq_forward.3} parent=0 // pred_check
    _
  $region39: #{seq2seq_forward.3} parent=0 // pred_check_branch
    %42 = sbr.rel (0) target = $region41
  $region40: #{seq2seq_forward.3} parent=0 // pred_region
    _
  $region41: #{seq2seq_forward.3} parent=0 // pred_fallthru
    _
  // Predicated region
  $region42: #{seq2seq_forward.3} parent=0 // pred_check
    _
  $region43: #{seq2seq_forward.3} parent=0 // pred_check_branch
    %44 = sbr.rel (0) target = $region45
  $region44: #{seq2seq_forward.3} parent=0 // pred_region
    _
  $region45: #{seq2seq_forward.3} parent=0 // pred_fallthru
    _
  // Predicated region
  $region46: #{seq2seq_forward.3} parent=0 // pred_check
    _
  $region47: #{seq2seq_forward.3} parent=0 // pred_check_branch
    %46 = sbr.rel (0) target = $region49
  $region48: #{seq2seq_forward.3} parent=0 // pred_region
    _
  $region49: #{seq2seq_forward.3} parent=0 // pred_fallthru
    _
  // Predicated region
  $region50: #{seq2seq_forward.3} parent=0 // pred_check
    _
  $region51: #{seq2seq_forward.3} parent=0 // pred_check_branch
    %48 = sbr.rel (0) target = $region53
  $region52: #{seq2seq_forward.3} parent=0 // pred_region
    _
  $region53: #{seq2seq_forward.3} parent=0 // pred_fallthru
    _
  // Predicated region
  $region54: #{seq2seq_forward.3} parent=0 // pred_check
    _
  $region55: #{seq2seq_forward.3} parent=0 // pred_check_branch
    %50 = sbr.rel (0) target = $region57
  $region56: #{seq2seq_forward.3} parent=0 // pred_region
    _
  $region57: #{seq2seq_forward.3} parent=0 // pred_fallthru
    _
  // Predicated region
  $region58: #{seq2seq_forward.3} parent=0 // pred_check
    _
  $region59: #{seq2seq_forward.3} parent=0 // pred_check_branch
    %52 = sbr.rel (0) target = $region61
  $region60: #{seq2seq_forward.3} parent=0 // pred_region
    _
  $region61: #{seq2seq_forward.3} parent=0 // pred_fallthru
    _
  // Predicated region
  $region62: #{seq2seq_forward.3} parent=0 // pred_check
    _
  $region63: #{seq2seq_forward.3} parent=0 // pred_check_branch
    %54 = sbr.rel (0) target = $region65
  $region64: #{seq2seq_forward.3} parent=0 // pred_region
    _
  $region65: #{seq2seq_forward.3} parent=0 // pred_fallthru
    _
  %v55 = vld [vmem:[%s2] sm:$0xff]
  %v56 = vld [vmem:[%s2 + $0x8] sm:$0xff]
  %v57 = vld [vmem:[%s2 + $0x10] sm:$0xff]
  %v58 = vld [vmem:[%s2 + $0x18] sm:$0xff]
  %v59 = vld [vmem:[%s2 + $0x20] sm:$0xff]
  %v60 = vld [vmem:[%s2 + $0x28] sm:$0xff]
  %v61 = vld [vmem:[%s2 + $0x30] sm:$0xff]
  %v62 = vld [vmem:[%s2 + $0x38] sm:$0xff]
  %v63 = vld [vmem:[%s2 + $0x40] sm:$0xff]
  %v64 = vld [vmem:[%s2 + $0x48] sm:$0xff]
  %v65 = vld [vmem:[%s2 + $0x50] sm:$0xff]
  %v66 = vld [vmem:[%s2 + $0x58] sm:$0xff]
  %v67 = vld [vmem:[%s2 + $0x60] sm:$0xff]
  %v68 = vld [vmem:[%s2 + $0x68] sm:$0xff]
  %v69 = vld [vmem:[%s2 + $0x70] sm:$0xff]
  %v70 = vld [vmem:[%s2 + $0x78] sm:$0xff]
  %v71 = vld [vmem:[%s4] sm:$0x1]
  %v72 = vld [vmem:[%s1] sm:$0xff]
  %s73 = scalar_lea.vmem %s1, 8
  %v74 = vld [vmem:[%s73] sm:$0xff]
  %v75 = vld [vmem:[%s3] sm:$0x1]
  %v77 = vlaneseq
  %v78 = vshrl.u32 %v77, 7
  %v79 = vsub.s32 0, %v78
  %v80 = vrot.slane %v75, %v79
  %vm82 = vcmask 523264
  %v84 = vsel %vm82, %v72, 0
  %86 = vmatprep.subr.mxu0 0.0
  %87 = vmatpush1.msra.mxu0 %v63
  %88 = vmatprep.subr.mxu0 0.0
  %89 = vmatpush1.msra.mxu0 %v64
  %90 = vmatprep.subr.mxu0 0.0
  %91 = vmatpush1.msra.mxu0 %v65
  %92 = vmatprep.subr.mxu0 0.0
  %93 = vmatpush1.msra.mxu0 %v66
  %94 = vmatprep.subr.mxu0 0.0
  %95 = vmatpush1.msra.mxu0 %v67
  %96 = vmatprep.subr.mxu0 0.0
  %97 = vmatpush1.msra.mxu0 %v68
  %98 = vmatprep.subr.mxu0 0.0
  %99 = vmatpush1.msra.mxu0 %v69
  %100 = vmatprep.subr.mxu0 0.0
  %101 = vmatpush1.msra.mxu0 %v70
  %102 = vmatprep.subr.mxu0 0.0
  %103 = vmatpush1.msra.mxu0 0.0
  %104 = vmatprep.subr.mxu0 0.0
  %105 = vmatpush1.msra.mxu0 0.0
  %106 = vmatprep.subr.mxu0 0.0
  %107 = vmatpush1.msra.mxu0 0.0
  %108 = vmatprep.subr.mxu0 0.0
  %109 = vmatpush1.msra.mxu0 0.0
  %110 = vmatprep.subr.mxu0 0.0
  %111 = vmatpush1.msra.mxu0 0.0
  %112 = vmatprep.subr.mxu0 0.0
  %113 = vmatpush1.msra.mxu0 0.0
  %114 = vmatprep.subr.mxu0 0.0
  %115 = vmatpush1.msra.mxu0 0.0
  %116 = vmatprep.subr.mxu0 0.0
  %117 = vmatpush1.msra.mxu0 0.0
  %118 = vmatprep.subr.mxu0 0.0
  %119 = vmatpush1.msra.mxu0 0.0
  %120 = vmatprep.subr.mxu0 0.0
  %121 = vmatpush1.msra.mxu0 0.0
  %122 = vmatprep.subr.mxu0 0.0
  %123 = vmatpush1.msra.mxu0 0.0
  %124 = vmatprep.subr.mxu0 0.0
  %125 = vmatpush1.msra.mxu0 0.0
  %126 = vmatprep.subr.mxu0 0.0
  %127 = vmatpush1.msra.mxu0 0.0
  %128 = vmatprep.subr.mxu0 0.0
  %129 = vmatpush1.msra.mxu0 0.0
  %130 = vmatprep.subr.mxu0 0.0
  %131 = vmatpush1.msra.mxu0 0.0
  %132 = vmatprep.subr.mxu0 0.0
  %133 = vmatpush1.msra.mxu0 0.0
  %134 = vmatprep.subr.mxu0 0.0
  %135 = vmatpush1.msra.mxu0 0.0
  %136 = vmatprep.subr.mxu0 0.0
  %137 = vmatpush1.msra.mxu0 0.0
  %138 = vmatprep.subr.mxu0 0.0
  %139 = vmatpush1.msra.mxu0 0.0
  %140 = vmatprep.subr.mxu0 0.0
  %141 = vmatpush1.msra.mxu0 0.0
  %142 = vmatprep.subr.mxu0 0.0
  %143 = vmatpush1.msra.mxu0 0.0
  %144 = vmatprep.subr.mxu0 0.0
  %145 = vmatpush1.msra.mxu0 0.0
  %146 = vmatprep.subr.mxu0 0.0
  %147 = vmatpush1.msra.mxu0 0.0
  %148 = vmatprep.subr.mxu0 0.0
  %149 = vmatpush1.msra.mxu0 0.0
  %150 = vmatprep.mubr.f32.mxu0 0.0
  %151 = vmatmul.mubr.f32.gmra.mrb[0].mxu0 %v84
  %v152 = vpop.f32.mrb[0].mxu0
  %v153 = vadd.f32 %v80, %v152
  %v154 = vpop.f32.mrb[0].mxu0
  %155 = vdwg.mxu0
  %v157 = vsel %vm82, %v74, 0
  %159 = vmatprep.subr.mxu0 0.0
  %160 = vmatpush1.msra.mxu0 %v63
  %161 = vmatprep.subr.mxu0 0.0
  %162 = vmatpush1.msra.mxu0 %v64
  %163 = vmatprep.subr.mxu0 0.0
  %164 = vmatpush1.msra.mxu0 %v65
  %165 = vmatprep.subr.mxu0 0.0
  %166 = vmatpush1.msra.mxu0 %v66
  %167 = vmatprep.subr.mxu0 0.0
  %168 = vmatpush1.msra.mxu0 %v67
  %169 = vmatprep.subr.mxu0 0.0
  %170 = vmatpush1.msra.mxu0 %v68
  %171 = vmatprep.subr.mxu0 0.0
  %172 = vmatpush1.msra.mxu0 %v69
  %173 = vmatprep.subr.mxu0 0.0
  %174 = vmatpush1.msra.mxu0 %v70
  %175 = vmatprep.subr.mxu0 0.0
  %176 = vmatpush1.msra.mxu0 0.0
  %177 = vmatprep.subr.mxu0 0.0
  %178 = vmatpush1.msra.mxu0 0.0
  %179 = vmatprep.subr.mxu0 0.0
  %180 = vmatpush1.msra.mxu0 0.0
  %181 = vmatprep.subr.mxu0 0.0
  %182 = vmatpush1.msra.mxu0 0.0
  %183 = vmatprep.subr.mxu0 0.0
  %184 = vmatpush1.msra.mxu0 0.0
  %185 = vmatprep.subr.mxu0 0.0
  %186 = vmatpush1.msra.mxu0 0.0
  %187 = vmatprep.subr.mxu0 0.0
  %188 = vmatpush1.msra.mxu0 0.0
  %189 = vmatprep.subr.mxu0 0.0
  %190 = vmatpush1.msra.mxu0 0.0
  %191 = vmatprep.subr.mxu0 0.0
  %192 = vmatpush1.msra.mxu0 0.0
  %193 = vmatprep.subr.mxu0 0.0
  %194 = vmatpush1.msra.mxu0 0.0
  %195 = vmatprep.subr.mxu0 0.0
  %196 = vmatpush1.msra.mxu0 0.0
  %197 = vmatprep.subr.mxu0 0.0
  %198 = vmatpush1.msra.mxu0 0.0
  %199 = vmatprep.subr.mxu0 0.0
  %200 = vmatpush1.msra.mxu0 0.0
  %201 = vmatprep.subr.mxu0 0.0
  %202 = vmatpush1.msra.mxu0 0.0
  %203 = vmatprep.subr.mxu0 0.0
  %204 = vmatpush1.msra.mxu0 0.0
  %205 = vmatprep.subr.mxu0 0.0
  %206 = vmatpush1.msra.mxu0 0.0
  %207 = vmatprep.subr.mxu0 0.0
  %208 = vmatpush1.msra.mxu0 0.0
  %209 = vmatprep.subr.mxu0 0.0
  %210 = vmatpush1.msra.mxu0 0.0
  %211 = vmatprep.subr.mxu0 0.0
  %212 = vmatpush1.msra.mxu0 0.0
  %213 = vmatprep.subr.mxu0 0.0
  %214 = vmatpush1.msra.mxu0 0.0
  %215 = vmatprep.subr.mxu0 0.0
  %216 = vmatpush1.msra.mxu0 0.0
  %217 = vmatprep.subr.mxu0 0.0
  %218 = vmatpush1.msra.mxu0 0.0
  %219 = vmatprep.subr.mxu0 0.0
  %220 = vmatpush1.msra.mxu0 0.0
  %221 = vmatprep.subr.mxu0 0.0
  %222 = vmatpush1.msra.mxu0 0.0
  %223 = vmatprep.mubr.f32.mxu0 0.0
  %224 = vmatmul.mubr.f32.gmra.mrb[0].mxu0 %v157
  %v225 = vpop.f32.mrb[0].mxu0
  %v226 = vadd.f32 %v80, %v225
  %v227 = vpop.f32.mrb[0].mxu0
  %228 = vdwg.mxu0
  %v229 = vld [vmem:[%s0] sm:$0x3]
  %v230 = vld [vmem:[%s0 + $0x2] sm:$0x3]
  %v231 = vlaneseq
  %v232 = vand.u32 %v231, 127
  %vm233 = vcmp.ge.f32.partialorder 0.0, 1.5
  %v234 = vsel %vm233, 0.0, 1.0
  %vm235 = vcmp.eq.s32.totalorder %v232, 1
  %vm236 = vcmp.eq.s32.totalorder %v232, 13
  %vm237 = vmor %vm235, %vm236
  %v238 = vsel %vm237, 1, 0
  %v239 = vcvt.s32.f32 %v238
  %v240 = vld [vmem:[%s5] sm:$0xff]
  %v241 = vld [vmem:[%s5 + $0x8] sm:$0xff]
  %v242 = vld [vmem:[%s5 + $0x10] sm:$0x3f]
  %vm243 = vcmask 179200
  %v245 = vsel %vm243, %v239, 0
  %vm247 = vcmask 1045504
  %v249 = vsel %vm247, %v242, 0
  %251 = vmatprep.subr.mxu0 0.0
  %252 = vmatpush1.msra.mxu0 %v240
  %253 = vmatprep.subr.mxu0 0.0
  %254 = vmatpush1.msra.mxu0 %v241
  %255 = vmatprep.subr.mxu0 0.0
  %256 = vmatpush1.msra.mxu0 %v249
  %257 = vmatprep.subr.mxu0 0.0
  %258 = vmatpush1.msra.mxu0 0.0
  %259 = vmatprep.subr.mxu0 0.0
  %260 = vmatpush1.msra.mxu0 0.0
  %261 = vmatprep.subr.mxu0 0.0
  %262 = vmatpush1.msra.mxu0 0.0
  %263 = vmatprep.subr.mxu0 0.0
  %264 = vmatpush1.msra.mxu0 0.0
  %265 = vmatprep.subr.mxu0 0.0
  %266 = vmatpush1.msra.mxu0 0.0
  %267 = vmatprep.subr.mxu0 0.0
  %268 = vmatpush1.msra.mxu0 0.0
  %269 = vmatprep.subr.mxu0 0.0
  %270 = vmatpush1.msra.mxu0 0.0
  %271 = vmatprep.subr.mxu0 0.0
  %272 = vmatpush1.msra.mxu0 0.0
  %273 = vmatprep.subr.mxu0 0.0
  %274 = vmatpush1.msra.mxu0 0.0
  %275 = vmatprep.subr.mxu0 0.0
  %276 = vmatpush1.msra.mxu0 0.0
  %277 = vmatprep.subr.mxu0 0.0
  %278 = vmatpush1.msra.mxu0 0.0
  %279 = vmatprep.subr.mxu0 0.0
  %280 = vmatpush1.msra.mxu0 0.0
  %281 = vmatprep.subr.mxu0 0.0
  %282 = vmatpush1.msra.mxu0 0.0
  %283 = vmatprep.subr.mxu0 0.0
  %284 = vmatpush1.msra.mxu0 0.0
  %285 = vmatprep.subr.mxu0 0.0
  %286 = vmatpush1.msra.mxu0 0.0
  %287 = vmatprep.subr.mxu0 0.0
  %288 = vmatpush1.msra.mxu0 0.0
  %289 = vmatprep.subr.mxu0 0.0
  %290 = vmatpush1.msra.mxu0 0.0
  %291 = vmatprep.subr.mxu0 0.0
  %292 = vmatpush1.msra.mxu0 0.0
  %293 = vmatprep.subr.mxu0 0.0
  %294 = vmatpush1.msra.mxu0 0.0
  %295 = vmatprep.subr.mxu0 0.0
  %296 = vmatpush1.msra.mxu0 0.0
  %297 = vmatprep.subr.mxu0 0.0
  %298 = vmatpush1.msra.mxu0 0.0
  %299 = vmatprep.subr.mxu0 0.0
  %300 = vmatpush1.msra.mxu0 0.0
  %301 = vmatprep.subr.mxu0 0.0
  %302 = vmatpush1.msra.mxu0 0.0
  %303 = vmatprep.subr.mxu0 0.0
  %304 = vmatpush1.msra.mxu0 0.0
  %305 = vmatprep.subr.mxu0 0.0
  %306 = vmatpush1.msra.mxu0 0.0
  %307 = vmatprep.subr.mxu0 0.0
  %308 = vmatpush1.msra.mxu0 0.0
  %309 = vmatprep.subr.mxu0 0.0
  %310 = vmatpush1.msra.mxu0 0.0
  %311 = vmatprep.subr.mxu0 0.0
  %312 = vmatpush1.msra.mxu0 0.0
  %313 = vmatprep.subr.mxu0 0.0
  %314 = vmatpush1.msra.mxu0 0.0
  %315 = vmatprep.mubr.f32.mxu0 0.0
  %316 = vmatmul.mubr.f32.gmra.mrb[0].mxu0 %v245
  %v317 = vpop.f32.mrb[0].mxu0
  %v318 = vadd.f32 0.0, %v317
  %v319 = vpop.f32.mrb[0].mxu0
  %320 = vdwg.mxu0
  %322 = vrot.lane.b32.xlu0 %v230, 32
  %v323 = vpop.permute.xlu0 %322
  %vm325 = vcmask 261120
  %v326 = vsel %vm325, %v229, %v323
  %v328 = vsel %vm82, %v326, 0
  %330 = vmatprep.subr.mxu0 0.0
  %331 = vmatpush1.msra.mxu0 %v55
  %332 = vmatprep.subr.mxu0 0.0
  %333 = vmatpush1.msra.mxu0 %v56
  %334 = vmatprep.subr.mxu0 0.0
  %335 = vmatpush1.msra.mxu0 %v57
  %336 = vmatprep.subr.mxu0 0.0
  %337 = vmatpush1.msra.mxu0 %v58
  %338 = vmatprep.subr.mxu0 0.0
  %339 = vmatpush1.msra.mxu0 %v59
  %340 = vmatprep.subr.mxu0 0.0
  %341 = vmatpush1.msra.mxu0 %v60
  %342 = vmatprep.subr.mxu0 0.0
  %343 = vmatpush1.msra.mxu0 %v61
  %344 = vmatprep.subr.mxu0 0.0
  %345 = vmatpush1.msra.mxu0 %v62
  %346 = vmatprep.subr.mxu0 0.0
  %347 = vmatpush1.msra.mxu0 0.0
  %348 = vmatprep.subr.mxu0 0.0
  %349 = vmatpush1.msra.mxu0 0.0
  %350 = vmatprep.subr.mxu0 0.0
  %351 = vmatpush1.msra.mxu0 0.0
  %352 = vmatprep.subr.mxu0 0.0
  %353 = vmatpush1.msra.mxu0 0.0
  %354 = vmatprep.subr.mxu0 0.0
  %355 = vmatpush1.msra.mxu0 0.0
  %356 = vmatprep.subr.mxu0 0.0
  %357 = vmatpush1.msra.mxu0 0.0
  %358 = vmatprep.subr.mxu0 0.0
  %359 = vmatpush1.msra.mxu0 0.0
  %360 = vmatprep.subr.mxu0 0.0
  %361 = vmatpush1.msra.mxu0 0.0
  %362 = vmatprep.subr.mxu0 0.0
  %363 = vmatpush1.msra.mxu0 0.0
  %364 = vmatprep.subr.mxu0 0.0
  %365 = vmatpush1.msra.mxu0 0.0
  %366 = vmatprep.subr.mxu0 0.0
  %367 = vmatpush1.msra.mxu0 0.0
  %368 = vmatprep.subr.mxu0 0.0
  %369 = vmatpush1.msra.mxu0 0.0
  %370 = vmatprep.subr.mxu0 0.0
  %371 = vmatpush1.msra.mxu0 0.0
  %372 = vmatprep.subr.mxu0 0.0
  %373 = vmatpush1.msra.mxu0 0.0
  %374 = vmatprep.subr.mxu0 0.0
  %375 = vmatpush1.msra.mxu0 0.0
  %376 = vmatprep.subr.mxu0 0.0
  %377 = vmatpush1.msra.mxu0 0.0
  %378 = vmatprep.subr.mxu0 0.0
  %379 = vmatpush1.msra.mxu0 0.0
  %380 = vmatprep.subr.mxu0 0.0
  %381 = vmatpush1.msra.mxu0 0.0
  %382 = vmatprep.subr.mxu0 0.0
  %383 = vmatpush1.msra.mxu0 0.0
  %384 = vmatprep.subr.mxu0 0.0
  %385 = vmatpush1.msra.mxu0 0.0
  %386 = vmatprep.subr.mxu0 0.0
  %387 = vmatpush1.msra.mxu0 0.0
  %388 = vmatprep.subr.mxu0 0.0
  %389 = vmatpush1.msra.mxu0 0.0
  %390 = vmatprep.subr.mxu0 0.0
  %391 = vmatpush1.msra.mxu0 0.0
  %392 = vmatprep.subr.mxu0 0.0
  %393 = vmatpush1.msra.mxu0 0.0
  %394 = vmatprep.mubr.f32.mxu0 0.0
  %395 = vmatmul.mubr.f32.gmra.mrb[0].mxu0 %v328
  %v396 = vpop.f32.mrb[0].mxu0
  %v397 = vadd.f32 0.0, %v396
  %v398 = vpop.f32.mrb[0].mxu0
  %399 = vdwg.mxu0
  %v400 = vlaneseq
  %v401 = vshrl.u32 %v400, 7
  %v402 = vsub.s32 0, %v401
  %v403 = vrot.slane %v397, %v402
  %v404 = vadd.f32 %v153, %v403
  %v405 = vtanh.pop %v404
  %v407 = vlaneseq
  %v408 = vshrl.u32 %v407, 7
  %v409 = vsub.s32 0, %v408
  %v410 = vrot.slane %v71, %v409
  %v412 = vmul.f32 %v405, %v410
  %v413 = vsel %vm325, %v412, 0.0
  %414 = vadd.xlane.f32.xlu0 %v413
  %v415 = vpop.xlane.xlu0 %414
  %v416 = vrot.slane %v415, 4
  %v417 = vmax.f32 %v415, %v416
  %v418 = vrot.slane %v417, 2
  %v419 = vmax.f32 %v417, %v418
  %v420 = vrot.slane %v419, 1
  %v421 = vmax.f32 %v419, %v420
  %v422 = vsub.f32 %v415, %v421
  %v423 = vmul.f32 %v422, 1.442695
  %v424 = vpow.pop %v423
  %v425 = vrot.slane %v424, 4
  %v426 = vadd.f32 %v424, %v425
  %v427 = vrot.slane %v426, 2
  %v428 = vadd.f32 %v426, %v427
  %v429 = vrot.slane %v428, 1
  %v430 = vadd.f32 %v428, %v429
  %v431 = vrcp.pop %v430
  %v432 = vmul.f32 %v424, %v431
  %v433 = vmul.f32 %v432, %v72
  %v434 = vsel %vm82, %v433, 0.0
  %v435 = vrot.slane %v434, 4
  %v436 = vadd.f32 %v434, %v435
  %v437 = vrot.slane %v436, 2
  %v438 = vadd.f32 %v436, %v437
  %v439 = vrot.slane %v438, 1
  %v440 = vadd.f32 %v438, %v439
  %v441 = vlaneseq
  %v442 = vshrl.u32 %v441, 7
  %v443 = vsub.s32 1, %v442
  %v444 = vrot.slane %v397, %v443
  %v445 = vadd.f32 %v226, %v444
  %v446 = vtanh.pop %v445
  %v447 = vmul.f32 %v446, %v410
  %v448 = vsel %vm325, %v447, 0.0
  %449 = vadd.xlane.f32.xlu0 %v448
  %v450 = vpop.xlane.xlu0 %449
  %v451 = vrot.slane %v450, 4
  %v452 = vmax.f32 %v450, %v451
  %v453 = vrot.slane %v452, 2
  %v454 = vmax.f32 %v452, %v453
  %v455 = vrot.slane %v454, 1
  %v456 = vmax.f32 %v454, %v455
  %v457 = vsub.f32 %v450, %v456
  %v458 = vmul.f32 %v457, 1.442695
  %v459 = vpow.pop %v458
  %v460 = vrot.slane %v459, 4
  %v461 = vadd.f32 %v459, %v460
  %v462 = vrot.slane %v461, 2
  %v463 = vadd.f32 %v461, %v462
  %v464 = vrot.slane %v463, 1
  %v465 = vadd.f32 %v463, %v464
  %v466 = vrcp.pop %v465
  %v467 = vmul.f32 %v459, %v466
  %v468 = vmul.f32 %v467, %v74
  %v469 = vsel %vm82, %v468, 0.0
  %v470 = vrot.slane %v469, 4
  %v471 = vadd.f32 %v469, %v470
  %v472 = vrot.slane %v471, 2
  %v473 = vadd.f32 %v471, %v472
  %v474 = vrot.slane %v473, 1
  %v475 = vadd.f32 %v473, %v474
  %vm476 = vcmask 7168
  %v477 = vsel %vm476, %v432, %v467
  %vm478 = vcmask 1040384
  %v479 = vsel %vm478, %v440, %v475
  %481 = vrot.lane.b32.xlu0 %v479, 10
  %v482 = vpop.permute.xlu0 %481
  %vm484 = vcmask 80896
  %v485 = vsel %vm484, %v318, %v482
  %v486 = vld [vmem:[%s6] sm:$0xff]
  %v487 = vld [vmem:[%s6 + $0x8] sm:$0xff]
  %v488 = vld [vmem:[%s6 + $0x10] sm:$0xff]
  %v489 = vld [vmem:[%s6 + $0x18] sm:$0xff]
  %v490 = vld [vmem:[%s6 + $0x20] sm:$0xff]
  %v491 = vld [vmem:[%s6 + $0x28] sm:$0xff]
  %v492 = vld [vmem:[%s6 + $0x30] sm:$0xff]
  %v493 = vld [vmem:[%s6 + $0x38] sm:$0xff]
  %v494 = vld [vmem:[%s6 + $0x40] sm:$0xff]
  %v495 = vld [vmem:[%s6 + $0x48] sm:$0x3]
  %v496 = vld [vmem:[%s7] sm:$0x1]
  %v498 = vlaneseq
  %v499 = vshrl.u32 %v498, 7
  %v500 = vsub.s32 0, %v499
  %v501 = vrot.slane %v496, %v500
  %vm503 = vcmask 605184
  %v505 = vsel %vm503, %v485, 0
  %vm507 = vcmask 1041408
  %v509 = vsel %vm507, %v495, 0
  %511 = vmatprep.subr.mxu0 0.0
  %512 = vmatpush1.msra.mxu0 %v486
  %513 = vmatprep.subr.mxu0 0.0
  %514 = vmatpush1.msra.mxu0 %v487
  %515 = vmatprep.subr.mxu0 0.0
  %516 = vmatpush1.msra.mxu0 %v488
  %517 = vmatprep.subr.mxu0 0.0
  %518 = vmatpush1.msra.mxu0 %v489
  %519 = vmatprep.subr.mxu0 0.0
  %520 = vmatpush1.msra.mxu0 %v490
  %521 = vmatprep.subr.mxu0 0.0
  %522 = vmatpush1.msra.mxu0 %v491
  %523 = vmatprep.subr.mxu0 0.0
  %524 = vmatpush1.msra.mxu0 %v492
  %525 = vmatprep.subr.mxu0 0.0
  %526 = vmatpush1.msra.mxu0 %v493
  %527 = vmatprep.subr.mxu0 0.0
  %528 = vmatpush1.msra.mxu0 %v494
  %529 = vmatprep.subr.mxu0 0.0
  %530 = vmatpush1.msra.mxu0 %v509
  %531 = vmatprep.subr.mxu0 0.0
  %532 = vmatpush1.msra.mxu0 0.0
  %533 = vmatprep.subr.mxu0 0.0
  %534 = vmatpush1.msra.mxu0 0.0
  %535 = vmatprep.subr.mxu0 0.0
  %536 = vmatpush1.msra.mxu0 0.0
  %537 = vmatprep.subr.mxu0 0.0
  %538 = vmatpush1.msra.mxu0 0.0
  %539 = vmatprep.subr.mxu0 0.0
  %540 = vmatpush1.msra.mxu0 0.0
  %541 = vmatprep.subr.mxu0 0.0
  %542 = vmatpush1.msra.mxu0 0.0
  %543 = vmatprep.subr.mxu0 0.0
  %544 = vmatpush1.msra.mxu0 0.0
  %545 = vmatprep.subr.mxu0 0.0
  %546 = vmatpush1.msra.mxu0 0.0
  %547 = vmatprep.subr.mxu0 0.0
  %548 = vmatpush1.msra.mxu0 0.0
  %549 = vmatprep.subr.mxu0 0.0
  %550 = vmatpush1.msra.mxu0 0.0
  %551 = vmatprep.subr.mxu0 0.0
  %552 = vmatpush1.msra.mxu0 0.0
  %553 = vmatprep.subr.mxu0 0.0
  %554 = vmatpush1.msra.mxu0 0.0
  %555 = vmatprep.subr.mxu0 0.0
  %556 = vmatpush1.msra.mxu0 0.0
  %557 = vmatprep.subr.mxu0 0.0
  %558 = vmatpush1.msra.mxu0 0.0
  %559 = vmatprep.subr.mxu0 0.0
  %560 = vmatpush1.msra.mxu0 0.0
  %561 = vmatprep.subr.mxu0 0.0
  %562 = vmatpush1.msra.mxu0 0.0
  %563 = vmatprep.subr.mxu0 0.0
  %564 = vmatpush1.msra.mxu0 0.0
  %565 = vmatprep.subr.mxu0 0.0
  %566 = vmatpush1.msra.mxu0 0.0
  %567 = vmatprep.subr.mxu0 0.0
  %568 = vmatpush1.msra.mxu0 0.0
  %569 = vmatprep.subr.mxu0 0.0
  %570 = vmatpush1.msra.mxu0 0.0
  %571 = vmatprep.subr.mxu0 0.0
  %572 = vmatpush1.msra.mxu0 0.0
  %573 = vmatprep.subr.mxu0 0.0
  %574 = vmatpush1.msra.mxu0 0.0
  %575 = vmatprep.mubr.f32.mxu0 0.0
  %576 = vmatmul.mubr.f32.gmra.mrb[0].mxu0 %v505
  %v577 = vpop.f32.mrb[0].mxu0
  %v578 = vadd.f32 %v501, %v577
  %v579 = vpop.f32.mrb[0].mxu0
  %580 = vdwg.mxu0
  %v581 = vld [vmem:[%s8] sm:$0xff]
  %v582 = vld [vmem:[%s8 + $0x8] sm:$0xff]
  %v583 = vld [vmem:[%s8 + $0x10] sm:$0xff]
  %v584 = vld [vmem:[%s8 + $0x18] sm:$0xff]
  %v585 = vld [vmem:[%s9] sm:$0x1]
  %v587 = vlaneseq
  %v588 = vshrl.u32 %v587, 7
  %v589 = vsub.s32 0, %v588
  %v590 = vrot.slane %v585, %v589
  %v593 = vsel %vm325, %v229, 0
  %595 = vmatprep.subr.mxu0 0.0
  %596 = vmatpush1.msra.mxu0 %v581
  %597 = vmatprep.subr.mxu0 0.0
  %598 = vmatpush1.msra.mxu0 %v582
  %599 = vmatprep.subr.mxu0 0.0
  %600 = vmatpush1.msra.mxu0 %v583
  %601 = vmatprep.subr.mxu0 0.0
  %602 = vmatpush1.msra.mxu0 %v584
  %603 = vmatprep.subr.mxu0 0.0
  %604 = vmatpush1.msra.mxu0 0.0
  %605 = vmatprep.subr.mxu0 0.0
  %606 = vmatpush1.msra.mxu0 0.0
  %607 = vmatprep.subr.mxu0 0.0
  %608 = vmatpush1.msra.mxu0 0.0
  %609 = vmatprep.subr.mxu0 0.0
  %610 = vmatpush1.msra.mxu0 0.0
  %611 = vmatprep.subr.mxu0 0.0
  %612 = vmatpush1.msra.mxu0 0.0
  %613 = vmatprep.subr.mxu0 0.0
  %614 = vmatpush1.msra.mxu0 0.0
  %615 = vmatprep.subr.mxu0 0.0
  %616 = vmatpush1.msra.mxu0 0.0
  %617 = vmatprep.subr.mxu0 0.0
  %618 = vmatpush1.msra.mxu0 0.0
  %619 = vmatprep.subr.mxu0 0.0
  %620 = vmatpush1.msra.mxu0 0.0
  %621 = vmatprep.subr.mxu0 0.0
  %622 = vmatpush1.msra.mxu0 0.0
  %623 = vmatprep.subr.mxu0 0.0
  %624 = vmatpush1.msra.mxu0 0.0
  %625 = vmatprep.subr.mxu0 0.0
  %626 = vmatpush1.msra.mxu0 0.0
  %627 = vmatprep.subr.mxu0 0.0
  %628 = vmatpush1.msra.mxu0 0.0
  %629 = vmatprep.subr.mxu0 0.0
  %630 = vmatpush1.msra.mxu0 0.0
  %631 = vmatprep.subr.mxu0 0.0
  %632 = vmatpush1.msra.mxu0 0.0
  %633 = vmatprep.subr.mxu0 0.0
  %634 = vmatpush1.msra.mxu0 0.0
  %635 = vmatprep.subr.mxu0 0.0
  %636 = vmatpush1.msra.mxu0 0.0
  %637 = vmatprep.subr.mxu0 0.0
  %638 = vmatpush1.msra.mxu0 0.0
  %639 = vmatprep.subr.mxu0 0.0
  %640 = vmatpush1.msra.mxu0 0.0
  %641 = vmatprep.subr.mxu0 0.0
  %642 = vmatpush1.msra.mxu0 0.0
  %643 = vmatprep.subr.mxu0 0.0
  %644 = vmatpush1.msra.mxu0 0.0
  %645 = vmatprep.subr.mxu0 0.0
  %646 = vmatpush1.msra.mxu0 0.0
  %647 = vmatprep.subr.mxu0 0.0
  %648 = vmatpush1.msra.mxu0 0.0
  %649 = vmatprep.subr.mxu0 0.0
  %650 = vmatpush1.msra.mxu0 0.0
  %651 = vmatprep.subr.mxu0 0.0
  %652 = vmatpush1.msra.mxu0 0.0
  %653 = vmatprep.subr.mxu0 0.0
  %654 = vmatpush1.msra.mxu0 0.0
  %655 = vmatprep.subr.mxu0 0.0
  %656 = vmatpush1.msra.mxu0 0.0
  %657 = vmatprep.subr.mxu0 0.0
  %658 = vmatpush1.msra.mxu0 0.0
  %659 = vmatprep.mubr.f32.mxu0 0.0
  %660 = vmatmul.mubr.f32.gmra.mrb[0].mxu0 %v593
  %v661 = vpop.f32.mrb[0].mxu0
  %v662 = vadd.f32 %v590, %v661
  %v663 = vpop.f32.mrb[0].mxu0
  %664 = vdwg.mxu0
  %v665 = vadd.f32 %v578, %v662
  %v666 = vxor.u32 %v665, 2147483648
  %v667 = vmul.f32 %v666, 1.442695
  %v668 = vpow.pop %v667
  %v669 = vadd.f32 %v668, 1.0
  %v670 = vrcp.pop %v669
  %v671 = vmul.f32 1.0, %v670
  %673 = vrot.lane.b32.xlu0 %v662, 64
  %v674 = vpop.permute.xlu0 %673
  %v676 = vmul.f32 %v671, %v674
  %678 = vrot.lane.b32.xlu0 %v676, 64
  %v679 = vpop.permute.xlu0 %678
  %v681 = vadd.f32 %v578, %v679
  %v682 = vtanh.pop %v681
  %v683 = vsub.f32 1.0, %v671
  %685 = vrot.lane.b32.xlu0 %v682, 96
  %v686 = vpop.permute.xlu0 %685
  %v688 = vmul.f32 %v683, %v686
  %689 = vrot.lane.b32.xlu0 %v229, 32
  %v690 = vpop.permute.xlu0 %689
  %v692 = vmul.f32 %v671, %v690
  %v693 = vadd.f32 %v688, %v692
  %v694 = vld [vmem:[%s10] sm:$0xff]
  %v695 = vld [vmem:[%s10 + $0x8] sm:$0xff]
  %v696 = vld [vmem:[%s10 + $0x10] sm:$0xff]
  %v697 = vld [vmem:[%s10 + $0x18] sm:$0xff]
  %v698 = vld [vmem:[%s11] sm:$0x1]
  %v700 = vlaneseq
  %v701 = vshrl.u32 %v700, 7
  %v702 = vsub.s32 0, %v701
  %v703 = vrot.slane %v698, %v702
  %706 = vrot.lane.b32.xlu0 %v693, 96
  %v707 = vpop.permute.xlu0 %706
  %v708 = vsel %vm325, %v707, 0
  %710 = vmatprep.subr.mxu0 0.0
  %711 = vmatpush1.msra.mxu0 %v694
  %712 = vmatprep.subr.mxu0 0.0
  %713 = vmatpush1.msra.mxu0 %v695
  %714 = vmatprep.subr.mxu0 0.0
  %715 = vmatpush1.msra.mxu0 %v696
  %716 = vmatprep.subr.mxu0 0.0
  %717 = vmatpush1.msra.mxu0 %v697
  %718 = vmatprep.subr.mxu0 0.0
  %719 = vmatpush1.msra.mxu0 0.0
  %720 = vmatprep.subr.mxu0 0.0
  %721 = vmatpush1.msra.mxu0 0.0
  %722 = vmatprep.subr.mxu0 0.0
  %723 = vmatpush1.msra.mxu0 0.0
  %724 = vmatprep.subr.mxu0 0.0
  %725 = vmatpush1.msra.mxu0 0.0
  %726 = vmatprep.subr.mxu0 0.0
  %727 = vmatpush1.msra.mxu0 0.0
  %728 = vmatprep.subr.mxu0 0.0
  %729 = vmatpush1.msra.mxu0 0.0
  %730 = vmatprep.subr.mxu0 0.0
  %731 = vmatpush1.msra.mxu0 0.0
  %732 = vmatprep.subr.mxu0 0.0
  %733 = vmatpush1.msra.mxu0 0.0
  %734 = vmatprep.subr.mxu0 0.0
  %735 = vmatpush1.msra.mxu0 0.0
  %736 = vmatprep.subr.mxu0 0.0
  %737 = vmatpush1.msra.mxu0 0.0
  %738 = vmatprep.subr.mxu0 0.0
  %739 = vmatpush1.msra.mxu0 0.0
  %740 = vmatprep.subr.mxu0 0.0
  %741 = vmatpush1.msra.mxu0 0.0
  %742 = vmatprep.subr.mxu0 0.0
  %743 = vmatpush1.msra.mxu0 0.0
  %744 = vmatprep.subr.mxu0 0.0
  %745 = vmatpush1.msra.mxu0 0.0
  %746 = vmatprep.subr.mxu0 0.0
  %747 = vmatpush1.msra.mxu0 0.0
  %748 = vmatprep.subr.mxu0 0.0
  %749 = vmatpush1.msra.mxu0 0.0
  %750 = vmatprep.subr.mxu0 0.0
  %751 = vmatpush1.msra.mxu0 0.0
  %752 = vmatprep.subr.mxu0 0.0
  %753 = vmatpush1.msra.mxu0 0.0
  %754 = vmatprep.subr.mxu0 0.0
  %755 = vmatpush1.msra.mxu0 0.0
  %756 = vmatprep.subr.mxu0 0.0
  %757 = vmatpush1.msra.mxu0 0.0
  %758 = vmatprep.subr.mxu0 0.0
  %759 = vmatpush1.msra.mxu0 0.0
  %760 = vmatprep.subr.mxu0 0.0
  %761 = vmatpush1.msra.mxu0 0.0
  %762 = vmatprep.subr.mxu0 0.0
  %763 = vmatpush1.msra.mxu0 0.0
  %764 = vmatprep.subr.mxu0 0.0
  %765 = vmatpush1.msra.mxu0 0.0
  %766 = vmatprep.subr.mxu0 0.0
  %767 = vmatpush1.msra.mxu0 0.0
  %768 = vmatprep.subr.mxu0 0.0
  %769 = vmatpush1.msra.mxu0 0.0
  %770 = vmatprep.subr.mxu0 0.0
  %771 = vmatpush1.msra.mxu0 0.0
  %772 = vmatprep.subr.mxu0 0.0
  %773 = vmatpush1.msra.mxu0 0.0
  %774 = vmatprep.mubr.f32.mxu0 0.0
  %775 = vmatmul.mubr.f32.gmra.mrb[0].mxu0 %v708
  %v776 = vpop.f32.mrb[0].mxu0
  %v777 = vadd.f32 %v703, %v776
  %v778 = vpop.f32.mrb[0].mxu0
  %779 = vdwg.mxu0
  %v780 = vld [vmem:[%s12] sm:$0xff]
  %v781 = vld [vmem:[%s12 + $0x8] sm:$0xff]
  %v782 = vld [vmem:[%s12 + $0x10] sm:$0xff]
  %v783 = vld [vmem:[%s12 + $0x18] sm:$0xff]
  %v784 = vld [vmem:[%s13] sm:$0x1]
  %v786 = vlaneseq
  %v787 = vshrl.u32 %v786, 7
  %v788 = vsub.s32 0, %v787
  %v789 = vrot.slane %v784, %v788
  %v791 = vsel %vm325, %v230, 0
  %793 = vmatprep.subr.mxu0 0.0
  %794 = vmatpush1.msra.mxu0 %v780
  %795 = vmatprep.subr.mxu0 0.0
  %796 = vmatpush1.msra.mxu0 %v781
  %797 = vmatprep.subr.mxu0 0.0
  %798 = vmatpush1.msra.mxu0 %v782
  %799 = vmatprep.subr.mxu0 0.0
  %800 = vmatpush1.msra.mxu0 %v783
  %801 = vmatprep.subr.mxu0 0.0
  %802 = vmatpush1.msra.mxu0 0.0
  %803 = vmatprep.subr.mxu0 0.0
  %804 = vmatpush1.msra.mxu0 0.0
  %805 = vmatprep.subr.mxu0 0.0
  %806 = vmatpush1.msra.mxu0 0.0
  %807 = vmatprep.subr.mxu0 0.0
  %808 = vmatpush1.msra.mxu0 0.0
  %809 = vmatprep.subr.mxu0 0.0
  %810 = vmatpush1.msra.mxu0 0.0
  %811 = vmatprep.subr.mxu0 0.0
  %812 = vmatpush1.msra.mxu0 0.0
  %813 = vmatprep.subr.mxu0 0.0
  %814 = vmatpush1.msra.mxu0 0.0
  %815 = vmatprep.subr.mxu0 0.0
  %816 = vmatpush1.msra.mxu0 0.0
  %817 = vmatprep.subr.mxu0 0.0
  %818 = vmatpush1.msra.mxu0 0.0
  %819 = vmatprep.subr.mxu0 0.0
  %820 = vmatpush1.msra.mxu0 0.0
  %821 = vmatprep.subr.mxu0 0.0
  %822 = vmatpush1.msra.mxu0 0.0
  %823 = vmatprep.subr.mxu0 0.0
  %824 = vmatpush1.msra.mxu0 0.0
  %825 = vmatprep.subr.mxu0 0.0
  %826 = vmatpush1.msra.mxu0 0.0
  %827 = vmatprep.subr.mxu0 0.0
  %828 = vmatpush1.msra.mxu0 0.0
  %829 = vmatprep.subr.mxu0 0.0
  %830 = vmatpush1.msra.mxu0 0.0
  %831 = vmatprep.subr.mxu0 0.0
  %832 = vmatpush1.msra.mxu0 0.0
  %833 = vmatprep.subr.mxu0 0.0
  %834 = vmatpush1.msra.mxu0 0.0
  %835 = vmatprep.subr.mxu0 0.0
  %836 = vmatpush1.msra.mxu0 0.0
  %837 = vmatprep.subr.mxu0 0.0
  %838 = vmatpush1.msra.mxu0 0.0
  %839 = vmatprep.subr.mxu0 0.0
  %840 = vmatpush1.msra.mxu0 0.0
  %841 = vmatprep.subr.mxu0 0.0
  %842 = vmatpush1.msra.mxu0 0.0
  %843 = vmatprep.subr.mxu0 0.0
  %844 = vmatpush1.msra.mxu0 0.0
  %845 = vmatprep.subr.mxu0 0.0
  %846 = vmatpush1.msra.mxu0 0.0
  %847 = vmatprep.subr.mxu0 0.0
  %848 = vmatpush1.msra.mxu0 0.0
  %849 = vmatprep.subr.mxu0 0.0
  %850 = vmatpush1.msra.mxu0 0.0
  %851 = vmatprep.subr.mxu0 0.0
  %852 = vmatpush1.msra.mxu0 0.0
  %853 = vmatprep.subr.mxu0 0.0
  %854 = vmatpush1.msra.mxu0 0.0
  %855 = vmatprep.subr.mxu0 0.0
  %856 = vmatpush1.msra.mxu0 0.0
  %857 = vmatprep.mubr.f32.mxu0 0.0
  %858 = vmatmul.mubr.f32.gmra.mrb[0].mxu0 %v791
  %v859 = vpop.f32.mrb[0].mxu0
  %v860 = vadd.f32 %v789, %v859
  %v861 = vpop.f32.mrb[0].mxu0
  %862 = vdwg.mxu0
  %v863 = vadd.f32 %v777, %v860
  %v864 = vxor.u32 %v863, 2147483648
  %v865 = vmul.f32 %v864, 1.442695
  %v866 = vpow.pop %v865
  %v867 = vadd.f32 %v866, 1.0
  %v868 = vrcp.pop %v867
  %v869 = vmul.f32 1.0, %v868
  %871 = vrot.lane.b32.xlu0 %v860, 64
  %v872 = vpop.permute.xlu0 %871
  %v874 = vmul.f32 %v869, %v872
  %876 = vrot.lane.b32.xlu0 %v874, 64
  %v877 = vpop.permute.xlu0 %876
  %v879 = vadd.f32 %v777, %v877
  %v880 = vtanh.pop %v879
  %v881 = vsub.f32 1.0, %v869
  %883 = vrot.lane.b32.xlu0 %v880, 96
  %v884 = vpop.permute.xlu0 %883
  %v886 = vmul.f32 %v881, %v884
  %v887 = vmul.f32 %v869, %v323
  %v888 = vadd.f32 %v886, %v887
  %890 = vrot.lane.b32.xlu0 %v888, 96
  %v891 = vpop.permute.xlu0 %890
  %893 = vrot.lane.b32.xlu0 %v479, 32
  %v894 = vpop.permute.xlu0 %893
  %v896 = vsel %vm325, %v891, %v894
  %v897 = vld [vmem:[%s14] sm:$0xff]
  %v898 = vld [vmem:[%s14 + $0x8] sm:$0xff]
  %v899 = vld [vmem:[%s14 + $0x10] sm:$0xff]
  %v900 = vld [vmem:[%s14 + $0x18] sm:$0xff]
  %v901 = vld [vmem:[%s14 + $0x20] sm:$0xff]
  %v902 = vld [vmem:[%s14 + $0x28] sm:$0xff]
  %v903 = vld [vmem:[%s14 + $0x30] sm:$0xff]
  %v904 = vld [vmem:[%s14 + $0x38] sm:$0xff]
  %v905 = vld [vmem:[%s14 + $0x40] sm:$0xff]
  %v906 = vld [vmem:[%s14 + $0x48] sm:$0xff]
  %v907 = vld [vmem:[%s14 + $0x50] sm:$0xff]
  %v908 = vld [vmem:[%s14 + $0x58] sm:$0xff]
  %v909 = vld [vmem:[%s15] sm:$0x1]
  %v911 = vlaneseq
  %v912 = vshrl.u32 %v911, 7
  %v913 = vsub.s32 0, %v912
  %v914 = vrot.slane %v909, %v913
  %vm916 = vcmask 785408
  %v918 = vsel %vm916, %v896, 0
  %920 = vmatprep.subr.mxu0 0.0
  %921 = vmatpush1.msra.mxu0 %v897
  %922 = vmatprep.subr.mxu0 0.0
  %923 = vmatpush1.msra.mxu0 %v898
  %924 = vmatprep.subr.mxu0 0.0
  %925 = vmatpush1.msra.mxu0 %v899
  %926 = vmatprep.subr.mxu0 0.0
  %927 = vmatpush1.msra.mxu0 %v900
  %928 = vmatprep.subr.mxu0 0.0
  %929 = vmatpush1.msra.mxu0 %v901
  %930 = vmatprep.subr.mxu0 0.0
  %931 = vmatpush1.msra.mxu0 %v902
  %932 = vmatprep.subr.mxu0 0.0
  %933 = vmatpush1.msra.mxu0 %v903
  %934 = vmatprep.subr.mxu0 0.0
  %935 = vmatpush1.msra.mxu0 %v904
  %936 = vmatprep.subr.mxu0 0.0
  %937 = vmatpush1.msra.mxu0 %v905
  %938 = vmatprep.subr.mxu0 0.0
  %939 = vmatpush1.msra.mxu0 %v906
  %940 = vmatprep.subr.mxu0 0.0
  %941 = vmatpush1.msra.mxu0 %v907
  %942 = vmatprep.subr.mxu0 0.0
  %943 = vmatpush1.msra.mxu0 %v908
  %944 = vmatprep.subr.mxu0 0.0
  %945 = vmatpush1.msra.mxu0 0.0
  %946 = vmatprep.subr.mxu0 0.0
  %947 = vmatpush1.msra.mxu0 0.0
  %948 = vmatprep.subr.mxu0 0.0
  %949 = vmatpush1.msra.mxu0 0.0
  %950 = vmatprep.subr.mxu0 0.0
  %951 = vmatpush1.msra.mxu0 0.0
  %952 = vmatprep.subr.mxu0 0.0
  %953 = vmatpush1.msra.mxu0 0.0
  %954 = vmatprep.subr.mxu0 0.0
  %955 = vmatpush1.msra.mxu0 0.0
  %956 = vmatprep.subr.mxu0 0.0
  %957 = vmatpush1.msra.mxu0 0.0
  %958 = vmatprep.subr.mxu0 0.0
  %959 = vmatpush1.msra.mxu0 0.0
  %960 = vmatprep.subr.mxu0 0.0
  %961 = vmatpush1.msra.mxu0 0.0
  %962 = vmatprep.subr.mxu0 0.0
  %963 = vmatpush1.msra.mxu0 0.0
  %964 = vmatprep.subr.mxu0 0.0
  %965 = vmatpush1.msra.mxu0 0.0
  %966 = vmatprep.subr.mxu0 0.0
  %967 = vmatpush1.msra.mxu0 0.0
  %968 = vmatprep.subr.mxu0 0.0
  %969 = vmatpush1.msra.mxu0 0.0
  %970 = vmatprep.subr.mxu0 0.0
  %971 = vmatpush1.msra.mxu0 0.0
  %972 = vmatprep.subr.mxu0 0.0
  %973 = vmatpush1.msra.mxu0 0.0
  %974 = vmatprep.subr.mxu0 0.0
  %975 = vmatpush1.msra.mxu0 0.0
  %976 = vmatprep.subr.mxu0 0.0
  %977 = vmatpush1.msra.mxu0 0.0
  %978 = vmatprep.subr.mxu0 0.0
  %979 = vmatpush1.msra.mxu0 0.0
  %980 = vmatprep.subr.mxu0 0.0
  %981 = vmatpush1.msra.mxu0 0.0
  %982 = vmatprep.subr.mxu0 0.0
  %983 = vmatpush1.msra.mxu0 0.0
  %984 = vmatprep.mubr.f32.mxu0 0.0
  %985 = vmatmul.mubr.f32.gmra.mrb[0].mxu0 %v918
  %v986 = vpop.f32.mrb[0].mxu0
  %v987 = vadd.f32 %v914, %v986
  %v988 = vpop.f32.mrb[0].mxu0
  %989 = vdwg.mxu0
  %vm990 = vcmask 91136
  %v991 = vsel %vm990, %v987, -inf
  %992 = vmax.xlane.f32.xlu0 %v991
  %v993 = vpop.xlane.xlu0 %992
  %v994 = vsub.f32 %v987, %v993
  %v995 = vmul.f32 %v994, 1.442695
  %v996 = vpow.pop %v995
  %v997 = vsel %vm990, %v996, 0.0
  %998 = vadd.xlane.f32.xlu0 %v997
  %v999 = vpop.xlane.xlu0 %998
  %v1000 = vlog2.pop %v999
  %v1001 = vmul.f32 %v1000, 0.6931472
  %v1002 = vsub.f32 %v994, %v1001
  %vm1003 = vcmp.ge.f32.partialorder %v987, %v993
  %v1004 = vsel %vm1003, %v232, 12
  %v1005 = vsel %vm990, %v1004, 2147483647
  %v1006 = vand.u32 %v1005, 65535
  %v1007 = vshra.s32 %v1005, 16
  %v1008 = vcvt.s32.f32 %v1006
  %v1009 = vcvt.s32.f32 %v1007
  %1010 = vmin.xlane.f32.xlu0 %v1009
  %v1011 = vpop.xlane.xlu0 %1010
  %vm1012 = vcmp.eq.f32.partialorder %v1009, %v1011
  %v1013 = vsel %vm1012, %v1008, inf
  %1014 = vmin.xlane.f32.xlu0 %v1013
  %v1015 = vpop.xlane.xlu0 %1014
  %v1016 = vcvt.f32.s32 %v1015
  %v1017 = vcvt.f32.s32 %v1011
  %v1018 = vshll.u32 %v1017, 16
  %v1019 = vadd.s32 %v1018, %v1016
  %vm1020 = vcmask 173152
  %v1021 = vsel %vm1020, %v987, -inf
  %1022 = vmax.xlane.f32.xlu0 %v1021
  %v1023 = vpop.xlane.xlu0 %1022
  %v1024 = vsub.f32 %v987, %v1023
  %v1025 = vmul.f32 %v1024, 1.442695
  %v1026 = vpow.pop %v1025
  %1028 = vrot.lane.b32.xlu0 %v1026, 116
  %v1029 = vpop.permute.xlu0 %1028
  %vm1031 = vcmask 74752
  %v1032 = vsel %vm1031, %v1029, 0.0
  %1033 = vadd.xlane.f32.xlu0 %v1032
  %v1034 = vpop.xlane.xlu0 %1033
  %v1035 = vlog2.pop %v1034
  %v1036 = vmul.f32 %v1035, 0.6931472
  %v1037 = vsub.f32 %v1024, %v1036
  %vm1038 = vcmp.ge.f32.partialorder %v987, %v1023
  %1039 = vrot.lane.b32.xlu0 %v232, 12
  %v1040 = vpop.permute.xlu0 %1039
  %v1041 = vsel %vm1038, %v1040, 10
  %v1042 = vsel %vm1020, %v1041, 2147483647
  %v1043 = vand.u32 %v1042, 65535
  %v1044 = vshra.s32 %v1042, 16
  %v1045 = vcvt.s32.f32 %v1043
  %v1046 = vcvt.s32.f32 %v1044
  %1047 = vmin.xlane.f32.xlu0 %v1046
  %v1048 = vpop.xlane.xlu0 %1047
  %vm1049 = vcmp.eq.f32.partialorder %v1046, %v1048
  %v1050 = vsel %vm1049, %v1045, inf
  %1051 = vmin.xlane.f32.xlu0 %v1050
  %v1052 = vpop.xlane.xlu0 %1051
  %v1053 = vcvt.f32.s32 %v1052
  %v1054 = vcvt.f32.s32 %v1048
  %v1055 = vshll.u32 %v1054, 16
  %v1056 = vadd.s32 %v1055, %v1053
  %vm1057 = vcmask 97280
  %v1058 = vsel %vm1057, %v1002, %v1037
  %v1059 = vmul.f32 %v1058, %v234
  %v1060 = vmul.f32 %v477, %v234
  %vm1061 = vcmp.eq.s32.totalorder %v1056, 2
  %v1062 = vsel %vm1061, 1, 0
  %v1063 = vcvt.s32.f32 %v1062
  %v1064 = vmax.f32 %v1063, 0.0
  %v1065 = vsel %vm507, %v1064, 0.0
  %v1066 = vrot.slane %v1065, 4
  %v1067 = vadd.f32 %v1065, %v1066
  %v1068 = vrot.slane %v1067, 2
  %v1069 = vadd.f32 %v1067, %v1068
  %v1070 = vrot.slane %v1069, 1
  %v1071 = vadd.f32 %v1069, %v1070
  %vm1072 = vcmp.ge.f32.partialorder %v1071, 1.5
  %v1073 = vsel %vm1072, 0.0, 1.0
  %vm1074 = vcmp.eq.s32.totalorder %v232, %v1019
  %v1075 = vadd.s32 %v1056, 12
  %vm1076 = vcmp.eq.s32.totalorder %v232, %v1075
  %vm1077 = vmor %vm1074, %vm1076
  %v1078 = vsel %vm1077, 1, 0
  %v1079 = vcvt.s32.f32 %v1078
  %v1081 = vsel %vm243, %v1079, 0
  %1083 = vmatprep.subr.mxu0 0.0
  %1084 = vmatpush1.msra.mxu0 %v240
  %1085 = vmatprep.subr.mxu0 0.0
  %1086 = vmatpush1.msra.mxu0 %v241
  %1087 = vmatprep.subr.mxu0 0.0
  %1088 = vmatpush1.msra.mxu0 %v249
  %1089 = vmatprep.subr.mxu0 0.0
  %1090 = vmatpush1.msra.mxu0 0.0
  %1091 = vmatprep.subr.mxu0 0.0
  %1092 = vmatpush1.msra.mxu0 0.0
  %1093 = vmatprep.subr.mxu0 0.0
  %1094 = vmatpush1.msra.mxu0 0.0
  %1095 = vmatprep.subr.mxu0 0.0
  %1096 = vmatpush1.msra.mxu0 0.0
  %1097 = vmatprep.subr.mxu0 0.0
  %1098 = vmatpush1.msra.mxu0 0.0
  %1099 = vmatprep.subr.mxu0 0.0
  %1100 = vmatpush1.msra.mxu0 0.0
  %1101 = vmatprep.subr.mxu0 0.0
  %1102 = vmatpush1.msra.mxu0 0.0
  %1103 = vmatprep.subr.mxu0 0.0
  %1104 = vmatpush1.msra.mxu0 0.0
  %1105 = vmatprep.subr.mxu0 0.0
  %1106 = vmatpush1.msra.mxu0 0.0
  %1107 = vmatprep.subr.mxu0 0.0
  %1108 = vmatpush1.msra.mxu0 0.0
  %1109 = vmatprep.subr.mxu0 0.0
  %1110 = vmatpush1.msra.mxu0 0.0
  %1111 = vmatprep.subr.mxu0 0.0
  %1112 = vmatpush1.msra.mxu0 0.0
  %1113 = vmatprep.subr.mxu0 0.0
  %1114 = vmatpush1.msra.mxu0 0.0
  %1115 = vmatprep.subr.mxu0 0.0
  %1116 = vmatpush1.msra.mxu0 0.0
  %1117 = vmatprep.subr.mxu0 0.0
  %1118 = vmatpush1.msra.mxu0 0.0
  %1119 = vmatprep.subr.mxu0 0.0
  %1120 = vmatpush1.msra.mxu0 0.0
  %1121 = vmatprep.subr.mxu0 0.0
  %1122 = vmatpush1.msra.mxu0 0.0
  %1123 = vmatprep.subr.mxu0 0.0
  %1124 = vmatpush1.msra.mxu0 0.0
  %1125 = vmatprep.subr.mxu0 0.0
  %1126 = vmatpush1.msra.mxu0 0.0
  %1127 = vmatprep.subr.mxu0 0.0
  %1128 = vmatpush1.msra.mxu0 0.0
  %1129 = vmatprep.subr.mxu0 0.0
  %1130 = vmatpush1.msra.mxu0 0.0
  %1131 = vmatprep.subr.mxu0 0.0
  %1132 = vmatpush1.msra.mxu0 0.0
  %1133 = vmatprep.subr.mxu0 0.0
  %1134 = vmatpush1.msra.mxu0 0.0
  %1135 = vmatprep.subr.mxu0 0.0
  %1136 = vmatpush1.msra.mxu0 0.0
  %1137 = vmatprep.subr.mxu0 0.0
  %1138 = vmatpush1.msra.mxu0 0.0
  %1139 = vmatprep.subr.mxu0 0.0
  %1140 = vmatpush1.msra.mxu0 0.0
  %1141 = vmatprep.subr.mxu0 0.0
  %1142 = vmatpush1.msra.mxu0 0.0
  %1143 = vmatprep.subr.mxu0 0.0
  %1144 = vmatpush1.msra.mxu0 0.0
  %1145 = vmatprep.subr.mxu0 0.0
  %1146 = vmatpush1.msra.mxu0 0.0
  %1147 = vmatprep.mubr.f32.mxu0 0.0
  %1148 = vmatmul.mubr.f32.gmra.mrb[0].mxu0 %v1081
  %v1149 = vpop.f32.mrb[0].mxu0
  %v1150 = vadd.f32 0.0, %v1149
  %v1151 = vpop.f32.mrb[0].mxu0
  %1152 = vdwg.mxu0
  %v1154 = vsel %vm325, %v707, %v888
  %v1156 = vsel %vm82, %v1154, 0
  %1158 = vmatprep.subr.mxu0 0.0
  %1159 = vmatpush1.msra.mxu0 %v55
  %1160 = vmatprep.subr.mxu0 0.0
  %1161 = vmatpush1.msra.mxu0 %v56
  %1162 = vmatprep.subr.mxu0 0.0
  %1163 = vmatpush1.msra.mxu0 %v57
  %1164 = vmatprep.subr.mxu0 0.0
  %1165 = vmatpush1.msra.mxu0 %v58
  %1166 = vmatprep.subr.mxu0 0.0
  %1167 = vmatpush1.msra.mxu0 %v59
  %1168 = vmatprep.subr.mxu0 0.0
  %1169 = vmatpush1.msra.mxu0 %v60
  %1170 = vmatprep.subr.mxu0 0.0
  %1171 = vmatpush1.msra.mxu0 %v61
  %1172 = vmatprep.subr.mxu0 0.0
  %1173 = vmatpush1.msra.mxu0 %v62
  %1174 = vmatprep.subr.mxu0 0.0
  %1175 = vmatpush1.msra.mxu0 0.0
  %1176 = vmatprep.subr.mxu0 0.0
  %1177 = vmatpush1.msra.mxu0 0.0
  %1178 = vmatprep.subr.mxu0 0.0
  %1179 = vmatpush1.msra.mxu0 0.0
  %1180 = vmatprep.subr.mxu0 0.0
  %1181 = vmatpush1.msra.mxu0 0.0
  %1182 = vmatprep.subr.mxu0 0.0
  %1183 = vmatpush1.msra.mxu0 0.0
  %1184 = vmatprep.subr.mxu0 0.0
  %1185 = vmatpush1.msra.mxu0 0.0
  %1186 = vmatprep.subr.mxu0 0.0
  %1187 = vmatpush1.msra.mxu0 0.0
  %1188 = vmatprep.subr.mxu0 0.0
  %1189 = vmatpush1.msra.mxu0 0.0
  %1190 = vmatprep.subr.mxu0 0.0
  %1191 = vmatpush1.msra.mxu0 0.0
  %1192 = vmatprep.subr.mxu0 0.0
  %1193 = vmatpush1.msra.mxu0 0.0
  %1194 = vmatprep.subr.mxu0 0.0
  %1195 = vmatpush1.msra.mxu0 0.0
  %1196 = vmatprep.subr.mxu0 0.0
  %1197 = vmatpush1.msra.mxu0 0.0
  %1198 = vmatprep.subr.mxu0 0.0
  %1199 = vmatpush1.msra.mxu0 0.0
  %1200 = vmatprep.subr.mxu0 0.0
  %1201 = vmatpush1.msra.mxu0 0.0
  %1202 = vmatprep.subr.mxu0 0.0
  %1203 = vmatpush1.msra.mxu0 0.0
  %1204 = vmatprep.subr.mxu0 0.0
  %1205 = vmatpush1.msra.mxu0 0.0
  %1206 = vmatprep.subr.mxu0 0.0
  %1207 = vmatpush1.msra.mxu0 0.0
  %1208 = vmatprep.subr.mxu0 0.0
  %1209 = vmatpush1.msra.mxu0 0.0
  %1210 = vmatprep.subr.mxu0 0.0
  %1211 = vmatpush1.msra.mxu0 0.0
  %1212 = vmatprep.subr.mxu0 0.0
  %1213 = vmatpush1.msra.mxu0 0.0
  %1214 = vmatprep.subr.mxu0 0.0
  %1215 = vmatpush1.msra.mxu0 0.0
  %1216 = vmatprep.subr.mxu0 0.0
  %1217 = vmatpush1.msra.mxu0 0.0
  %1218 = vmatprep.subr.mxu0 0.0
  %1219 = vmatpush1.msra.mxu0 0.0
  %1220 = vmatprep.subr.mxu0 0.0
  %1221 = vmatpush1.msra.mxu0 0.0
  %1222 = vmatprep.mubr.f32.mxu0 0.0
  %1223 = vmatmul.mubr.f32.gmra.mrb[0].mxu0 %v1156
  %v1224 = vpop.f32.mrb[0].mxu0
  %v1225 = vadd.f32 0.0, %v1224
  %v1226 = vpop.f32.mrb[0].mxu0
  %1227 = vdwg.mxu0
  %v1228 = vlaneseq
  %v1229 = vshrl.u32 %v1228, 7
  %v1230 = vsub.s32 0, %v1229
  %v1231 = vrot.slane %v1225, %v1230
  %v1232 = vadd.f32 %v153, %v1231
  %v1233 = vtanh.pop %v1232
  %v1234 = vmul.f32 %v1233, %v410
  %v1235 = vsel %vm325, %v1234, 0.0
  %1236 = vadd.xlane.f32.xlu0 %v1235
  %v1237 = vpop.xlane.xlu0 %1236
  %v1238 = vrot.slane %v1237, 4
  %v1239 = vmax.f32 %v1237, %v1238
  %v1240 = vrot.slane %v1239, 2
  %v1241 = vmax.f32 %v1239, %v1240
  %v1242 = vrot.slane %v1241, 1
  %v1243 = vmax.f32 %v1241, %v1242
  %v1244 = vsub.f32 %v1237, %v1243
  %v1245 = vmul.f32 %v1244, 1.442695
  %v1246 = vpow.pop %v1245
  %v1247 = vrot.slane %v1246, 4
  %v1248 = vadd.f32 %v1246, %v1247
  %v1249 = vrot.slane %v1248, 2
  %v1250 = vadd.f32 %v1248, %v1249
  %v1251 = vrot.slane %v1250, 1
  %v1252 = vadd.f32 %v1250, %v1251
  %v1253 = vrcp.pop %v1252
  %v1254 = vmul.f32 %v1246, %v1253
  %v1255 = vmul.f32 %v1254, %v72
  %v1256 = vsel %vm82, %v1255, 0.0
  %v1257 = vrot.slane %v1256, 4
  %v1258 = vadd.f32 %v1256, %v1257
  %v1259 = vrot.slane %v1258, 2
  %v1260 = vadd.f32 %v1258, %v1259
  %v1261 = vrot.slane %v1260, 1
  %v1262 = vadd.f32 %v1260, %v1261
  %v1263 = vlaneseq
  %v1264 = vshrl.u32 %v1263, 7
  %v1265 = vsub.s32 1, %v1264
  %v1266 = vrot.slane %v1225, %v1265
  %v1267 = vadd.f32 %v226, %v1266
  %v1268 = vtanh.pop %v1267
  %v1269 = vmul.f32 %v1268, %v410
  %v1270 = vsel %vm325, %v1269, 0.0
  %1271 = vadd.xlane.f32.xlu0 %v1270
  %v1272 = vpop.xlane.xlu0 %1271
  %v1273 = vrot.slane %v1272, 4
  %v1274 = vmax.f32 %v1272, %v1273
  %v1275 = vrot.slane %v1274, 2
  %v1276 = vmax.f32 %v1274, %v1275
  %v1277 = vrot.slane %v1276, 1
  %v1278 = vmax.f32 %v1276, %v1277
  %v1279 = vsub.f32 %v1272, %v1278
  %v1280 = vmul.f32 %v1279, 1.442695
  %v1281 = vpow.pop %v1280
  %v1282 = vrot.slane %v1281, 4
  %v1283 = vadd.f32 %v1281, %v1282
  %v1284 = vrot.slane %v1283, 2
  %v1285 = vadd.f32 %v1283, %v1284
  %v1286 = vrot.slane %v1285, 1
  %v1287 = vadd.f32 %v1285, %v1286
  %v1288 = vrcp.pop %v1287
  %v1289 = vmul.f32 %v1281, %v1288
  %v1290 = vmul.f32 %v1289, %v74
  %v1291 = vsel %vm82, %v1290, 0.0
  %v1292 = vrot.slane %v1291, 4
  %v1293 = vadd.f32 %v1291, %v1292
  %v1294 = vrot.slane %v1293, 2
  %v1295 = vadd.f32 %v1293, %v1294
  %v1296 = vrot.slane %v1295, 1
  %v1297 = vadd.f32 %v1295, %v1296
  %v1298 = vsel %vm476, %v1254, %v1289
  %v1299 = vsel %vm478, %v1262, %v1297
  %1301 = vrot.lane.b32.xlu0 %v1299, 10
  %v1302 = vpop.permute.xlu0 %1301
  %v1304 = vsel %vm484, %v1150, %v1302
  %v1306 = vsel %vm503, %v1304, 0
  %1308 = vmatprep.subr.mxu0 0.0
  %1309 = vmatpush1.msra.mxu0 %v486
  %1310 = vmatprep.subr.mxu0 0.0
  %1311 = vmatpush1.msra.mxu0 %v487
  %1312 = vmatprep.subr.mxu0 0.0
  %1313 = vmatpush1.msra.mxu0 %v488
  %1314 = vmatprep.subr.mxu0 0.0
  %1315 = vmatpush1.msra.mxu0 %v489
  %1316 = vmatprep.subr.mxu0 0.0
  %1317 = vmatpush1.msra.mxu0 %v490
  %1318 = vmatprep.subr.mxu0 0.0
  %1319 = vmatpush1.msra.mxu0 %v491
  %1320 = vmatprep.subr.mxu0 0.0
  %1321 = vmatpush1.msra.mxu0 %v492
  %1322 = vmatprep.subr.mxu0 0.0
  %1323 = vmatpush1.msra.mxu0 %v493
  %1324 = vmatprep.subr.mxu0 0.0
  %1325 = vmatpush1.msra.mxu0 %v494
  %1326 = vmatprep.subr.mxu0 0.0
  %1327 = vmatpush1.msra.mxu0 %v509
  %1328 = vmatprep.subr.mxu0 0.0
  %1329 = vmatpush1.msra.mxu0 0.0
  %1330 = vmatprep.subr.mxu0 0.0
  %1331 = vmatpush1.msra.mxu0 0.0
  %1332 = vmatprep.subr.mxu0 0.0
  %1333 = vmatpush1.msra.mxu0 0.0
  %1334 = vmatprep.subr.mxu0 0.0
  %1335 = vmatpush1.msra.mxu0 0.0
  %1336 = vmatprep.subr.mxu0 0.0
  %1337 = vmatpush1.msra.mxu0 0.0
  %1338 = vmatprep.subr.mxu0 0.0
  %1339 = vmatpush1.msra.mxu0 0.0
  %1340 = vmatprep.subr.mxu0 0.0
  %1341 = vmatpush1.msra.mxu0 0.0
  %1342 = vmatprep.subr.mxu0 0.0
  %1343 = vmatpush1.msra.mxu0 0.0
  %1344 = vmatprep.subr.mxu0 0.0
  %1345 = vmatpush1.msra.mxu0 0.0
  %1346 = vmatprep.subr.mxu0 0.0
  %1347 = vmatpush1.msra.mxu0 0.0
  %1348 = vmatprep.subr.mxu0 0.0
  %1349 = vmatpush1.msra.mxu0 0.0
  %1350 = vmatprep.subr.mxu0 0.0
  %1351 = vmatpush1.msra.mxu0 0.0
  %1352 = vmatprep.subr.mxu0 0.0
  %1353 = vmatpush1.msra.mxu0 0.0
  %1354 = vmatprep.subr.mxu0 0.0
  %1355 = vmatpush1.msra.mxu0 0.0
  %1356 = vmatprep.subr.mxu0 0.0
  %1357 = vmatpush1.msra.mxu0 0.0
  %1358 = vmatprep.subr.mxu0 0.0
  %1359 = vmatpush1.msra.mxu0 0.0
  %1360 = vmatprep.subr.mxu0 0.0
  %1361 = vmatpush1.msra.mxu0 0.0
  %1362 = vmatprep.subr.mxu0 0.0
  %1363 = vmatpush1.msra.mxu0 0.0
  %1364 = vmatprep.subr.mxu0 0.0
  %1365 = vmatpush1.msra.mxu0 0.0
  %1366 = vmatprep.subr.mxu0 0.0
  %1367 = vmatpush1.msra.mxu0 0.0
  %1368 = vmatprep.subr.mxu0 0.0
  %1369 = vmatpush1.msra.mxu0 0.0
  %1370 = vmatprep.subr.mxu0 0.0
  %1371 = vmatpush1.msra.mxu0 0.0
  %1372 = vmatprep.mubr.f32.mxu0 0.0
  %1373 = vmatmul.mubr.f32.gmra.mrb[0].mxu0 %v1306
  %v1374 = vpop.f32.mrb[0].mxu0
  %v1375 = vadd.f32 %v501, %v1374
  %v1376 = vpop.f32.mrb[0].mxu0
  %1377 = vdwg.mxu0
  %1378 = vmatprep.subr.mxu0 0.0
  %1379 = vmatpush1.msra.mxu0 %v581
  %1380 = vmatprep.subr.mxu0 0.0
  %1381 = vmatpush1.msra.mxu0 %v582
  %1382 = vmatprep.subr.mxu0 0.0
  %1383 = vmatpush1.msra.mxu0 %v583
  %1384 = vmatprep.subr.mxu0 0.0
  %1385 = vmatpush1.msra.mxu0 %v584
  %1386 = vmatprep.subr.mxu0 0.0
  %1387 = vmatpush1.msra.mxu0 0.0
  %1388 = vmatprep.subr.mxu0 0.0
  %1389 = vmatpush1.msra.mxu0 0.0
  %1390 = vmatprep.subr.mxu0 0.0
  %1391 = vmatpush1.msra.mxu0 0.0
  %1392 = vmatprep.subr.mxu0 0.0
  %1393 = vmatpush1.msra.mxu0 0.0
  %1394 = vmatprep.subr.mxu0 0.0
  %1395 = vmatpush1.msra.mxu0 0.0
  %1396 = vmatprep.subr.mxu0 0.0
  %1397 = vmatpush1.msra.mxu0 0.0
  %1398 = vmatprep.subr.mxu0 0.0
  %1399 = vmatpush1.msra.mxu0 0.0
  %1400 = vmatprep.subr.mxu0 0.0
  %1401 = vmatpush1.msra.mxu0 0.0
  %1402 = vmatprep.subr.mxu0 0.0
  %1403 = vmatpush1.msra.mxu0 0.0
  %1404 = vmatprep.subr.mxu0 0.0
  %1405 = vmatpush1.msra.mxu0 0.0
  %1406 = vmatprep.subr.mxu0 0.0
  %1407 = vmatpush1.msra.mxu0 0.0
  %1408 = vmatprep.subr.mxu0 0.0
  %1409 = vmatpush1.msra.mxu0 0.0
  %1410 = vmatprep.subr.mxu0 0.0
  %1411 = vmatpush1.msra.mxu0 0.0
  %1412 = vmatprep.subr.mxu0 0.0
  %1413 = vmatpush1.msra.mxu0 0.0
  %1414 = vmatprep.subr.mxu0 0.0
  %1415 = vmatpush1.msra.mxu0 0.0
  %1416 = vmatprep.subr.mxu0 0.0
  %1417 = vmatpush1.msra.mxu0 0.0
  %1418 = vmatprep.subr.mxu0 0.0
  %1419 = vmatpush1.msra.mxu0 0.0
  %1420 = vmatprep.subr.mxu0 0.0
  %1421 = vmatpush1.msra.mxu0 0.0
  %1422 = vmatprep.subr.mxu0 0.0
  %1423 = vmatpush1.msra.mxu0 0.0
  %1424 = vmatprep.subr.mxu0 0.0
  %1425 = vmatpush1.msra.mxu0 0.0
  %1426 = vmatprep.subr.mxu0 0.0
  %1427 = vmatpush1.msra.mxu0 0.0
  %1428 = vmatprep.subr.mxu0 0.0
  %1429 = vmatpush1.msra.mxu0 0.0
  %1430 = vmatprep.subr.mxu0 0.0
  %1431 = vmatpush1.msra.mxu0 0.0
  %1432 = vmatprep.subr.mxu0 0.0
  %1433 = vmatpush1.msra.mxu0 0.0
  %1434 = vmatprep.subr.mxu0 0.0
  %1435 = vmatpush1.msra.mxu0 0.0
  %1436 = vmatprep.subr.mxu0 0.0
  %1437 = vmatpush1.msra.mxu0 0.0
  %1438 = vmatprep.subr.mxu0 0.0
  %1439 = vmatpush1.msra.mxu0 0.0
  %1440 = vmatprep.subr.mxu0 0.0
  %1441 = vmatpush1.msra.mxu0 0.0
  %1442 = vmatprep.mubr.f32.mxu0 0.0
  %1443 = vmatmul.mubr.f32.gmra.mrb[0].mxu0 %v708
  %v1444 = vpop.f32.mrb[0].mxu0
  %v1445 = vadd.f32 %v590, %v1444
  %v1446 = vpop.f32.mrb[0].mxu0
  %1447 = vdwg.mxu0
  %v1448 = vadd.f32 %v1375, %v1445
  %v1449 = vxor.u32 %v1448, 2147483648
  %v1450 = vmul.f32 %v1449, 1.442695
  %v1451 = vpow.pop %v1450
  %v1452 = vadd.f32 %v1451, 1.0
  %v1453 = vrcp.pop %v1452
  %v1454 = vmul.f32 1.0, %v1453
  %1456 = vrot.lane.b32.xlu0 %v1445, 64
  %v1457 = vpop.permute.xlu0 %1456
  %v1459 = vmul.f32 %v1454, %v1457
  %1461 = vrot.lane.b32.xlu0 %v1459, 64
  %v1462 = vpop.permute.xlu0 %1461
  %v1464 = vadd.f32 %v1375, %v1462
  %v1465 = vtanh.pop %v1464
  %v1466 = vsub.f32 1.0, %v1454
  %1468 = vrot.lane.b32.xlu0 %v1465, 96
  %v1469 = vpop.permute.xlu0 %1468
  %v1471 = vmul.f32 %v1466, %v1469
  %v1472 = vmul.f32 %v1454, %v693
  %v1473 = vadd.f32 %v1471, %v1472
  %1475 = vrot.lane.b32.xlu0 %v1473, 96
  %v1476 = vpop.permute.xlu0 %1475
  %v1477 = vsel %vm325, %v1476, 0
  %1479 = vmatprep.subr.mxu0 0.0
  %1480 = vmatpush1.msra.mxu0 %v694
  %1481 = vmatprep.subr.mxu0 0.0
  %1482 = vmatpush1.msra.mxu0 %v695
  %1483 = vmatprep.subr.mxu0 0.0
  %1484 = vmatpush1.msra.mxu0 %v696
  %1485 = vmatprep.subr.mxu0 0.0
  %1486 = vmatpush1.msra.mxu0 %v697
  %1487 = vmatprep.subr.mxu0 0.0
  %1488 = vmatpush1.msra.mxu0 0.0
  %1489 = vmatprep.subr.mxu0 0.0
  %1490 = vmatpush1.msra.mxu0 0.0
  %1491 = vmatprep.subr.mxu0 0.0
  %1492 = vmatpush1.msra.mxu0 0.0
  %1493 = vmatprep.subr.mxu0 0.0
  %1494 = vmatpush1.msra.mxu0 0.0
  %1495 = vmatprep.subr.mxu0 0.0
  %1496 = vmatpush1.msra.mxu0 0.0
  %1497 = vmatprep.subr.mxu0 0.0
  %1498 = vmatpush1.msra.mxu0 0.0
  %1499 = vmatprep.subr.mxu0 0.0
  %1500 = vmatpush1.msra.mxu0 0.0
  %1501 = vmatprep.subr.mxu0 0.0
  %1502 = vmatpush1.msra.mxu0 0.0
  %1503 = vmatprep.subr.mxu0 0.0
  %1504 = vmatpush1.msra.mxu0 0.0
  %1505 = vmatprep.subr.mxu0 0.0
  %1506 = vmatpush1.msra.mxu0 0.0
  %1507 = vmatprep.subr.mxu0 0.0
  %1508 = vmatpush1.msra.mxu0 0.0
  %1509 = vmatprep.subr.mxu0 0.0
  %1510 = vmatpush1.msra.mxu0 0.0
  %1511 = vmatprep.subr.mxu0 0.0
  %1512 = vmatpush1.msra.mxu0 0.0
  %1513 = vmatprep.subr.mxu0 0.0
  %1514 = vmatpush1.msra.mxu0 0.0
  %1515 = vmatprep.subr.mxu0 0.0
  %1516 = vmatpush1.msra.mxu0 0.0
  %1517 = vmatprep.subr.mxu0 0.0
  %1518 = vmatpush1.msra.mxu0 0.0
  %1519 = vmatprep.subr.mxu0 0.0
  %1520 = vmatpush1.msra.mxu0 0.0
  %1521 = vmatprep.subr.mxu0 0.0
  %1522 = vmatpush1.msra.mxu0 0.0
  %1523 = vmatprep.subr.mxu0 0.0
  %1524 = vmatpush1.msra.mxu0 0.0
  %1525 = vmatprep.subr.mxu0 0.0
  %1526 = vmatpush1.msra.mxu0 0.0
  %1527 = vmatprep.subr.mxu0 0.0
  %1528 = vmatpush1.msra.mxu0 0.0
  %1529 = vmatprep.subr.mxu0 0.0
  %1530 = vmatpush1.msra.mxu0 0.0
  %1531 = vmatprep.subr.mxu0 0.0
  %1532 = vmatpush1.msra.mxu0 0.0
  %1533 = vmatprep.subr.mxu0 0.0
  %1534 = vmatpush1.msra.mxu0 0.0
  %1535 = vmatprep.subr.mxu0 0.0
  %1536 = vmatpush1.msra.mxu0 0.0
  %1537 = vmatprep.subr.mxu0 0.0
  %1538 = vmatpush1.msra.mxu0 0.0
  %1539 = vmatprep.subr.mxu0 0.0
  %1540 = vmatpush1.msra.mxu0 0.0
  %1541 = vmatprep.subr.mxu0 0.0
  %1542 = vmatpush1.msra.mxu0 0.0
  %1543 = vmatprep.mubr.f32.mxu0 0.0
  %1544 = vmatmul.mubr.f32.gmra.mrb[0].mxu0 %v1477
  %v1545 = vpop.f32.mrb[0].mxu0
  %v1546 = vadd.f32 %v703, %v1545
  %v1547 = vpop.f32.mrb[0].mxu0
  %1548 = vdwg.mxu0
  %v1549 = vsel %vm325, %v891, 0
  %1551 = vmatprep.subr.mxu0 0.0
  %1552 = vmatpush1.msra.mxu0 %v780
  %1553 = vmatprep.subr.mxu0 0.0
  %1554 = vmatpush1.msra.mxu0 %v781
  %1555 = vmatprep.subr.mxu0 0.0
  %1556 = vmatpush1.msra.mxu0 %v782
  %1557 = vmatprep.subr.mxu0 0.0
  %1558 = vmatpush1.msra.mxu0 %v783
  %1559 = vmatprep.subr.mxu0 0.0
  %1560 = vmatpush1.msra.mxu0 0.0
  %1561 = vmatprep.subr.mxu0 0.0
  %1562 = vmatpush1.msra.mxu0 0.0
  %1563 = vmatprep.subr.mxu0 0.0
  %1564 = vmatpush1.msra.mxu0 0.0
  %1565 = vmatprep.subr.mxu0 0.0
  %1566 = vmatpush1.msra.mxu0 0.0
  %1567 = vmatprep.subr.mxu0 0.0
  %1568 = vmatpush1.msra.mxu0 0.0
  %1569 = vmatprep.subr.mxu0 0.0
  %1570 = vmatpush1.msra.mxu0 0.0
  %1571 = vmatprep.subr.mxu0 0.0
  %1572 = vmatpush1.msra.mxu0 0.0
  %1573 = vmatprep.subr.mxu0 0.0
  %1574 = vmatpush1.msra.mxu0 0.0
  %1575 = vmatprep.subr.mxu0 0.0
  %1576 = vmatpush1.msra.mxu0 0.0
  %1577 = vmatprep.subr.mxu0 0.0
  %1578 = vmatpush1.msra.mxu0 0.0
  %1579 = vmatprep.subr.mxu0 0.0
  %1580 = vmatpush1.msra.mxu0 0.0
  %1581 = vmatprep.subr.mxu0 0.0
  %1582 = vmatpush1.msra.mxu0 0.0
  %1583 = vmatprep.subr.mxu0 0.0
  %1584 = vmatpush1.msra.mxu0 0.0
  %1585 = vmatprep.subr.mxu0 0.0
  %1586 = vmatpush1.msra.mxu0 0.0
  %1587 = vmatprep.subr.mxu0 0.0
  %1588 = vmatpush1.msra.mxu0 0.0
  %1589 = vmatprep.subr.mxu0 0.0
  %1590 = vmatpush1.msra.mxu0 0.0
  %1591 = vmatprep.subr.mxu0 0.0
  %1592 = vmatpush1.msra.mxu0 0.0
  %1593 = vmatprep.subr.mxu0 0.0
  %1594 = vmatpush1.msra.mxu0 0.0
  %1595 = vmatprep.subr.mxu0 0.0
  %1596 = vmatpush1.msra.mxu0 0.0
  %1597 = vmatprep.subr.mxu0 0.0
  %1598 = vmatpush1.msra.mxu0 0.0
  %1599 = vmatprep.subr.mxu0 0.0
  %1600 = vmatpush1.msra.mxu0 0.0
  %1601 = vmatprep.subr.mxu0 0.0
  %1602 = vmatpush1.msra.mxu0 0.0
  %1603 = vmatprep.subr.mxu0 0.0
  %1604 = vmatpush1.msra.mxu0 0.0
  %1605 = vmatprep.subr.mxu0 0.0
  %1606 = vmatpush1.msra.mxu0 0.0
  %1607 = vmatprep.subr.mxu0 0.0
  %1608 = vmatpush1.msra.mxu0 0.0
  %1609 = vmatprep.subr.mxu0 0.0
  %1610 = vmatpush1.msra.mxu0 0.0
  %1611 = vmatprep.subr.mxu0 0.0
  %1612 = vmatpush1.msra.mxu0 0.0
  %1613 = vmatprep.subr.mxu0 0.0
  %1614 = vmatpush1.msra.mxu0 0.0
  %1615 = vmatprep.mubr.f32.mxu0 0.0
  %1616 = vmatmul.mubr.f32.gmra.mrb[0].mxu0 %v1549
  %v1617 = vpop.f32.mrb[0].mxu0
  %v1618 = vadd.f32 %v789, %v1617
  %v1619 = vpop.f32.mrb[0].mxu0
  %1620 = vdwg.mxu0
  %v1621 = vadd.f32 %v1546, %v1618
  %v1622 = vxor.u32 %v1621, 2147483648
  %v1623 = vmul.f32 %v1622, 1.442695
  %v1624 = vpow.pop %v1623
  %v1625 = vadd.f32 %v1624, 1.0
  %v1626 = vrcp.pop %v1625
  %v1627 = vmul.f32 1.0, %v1626
  %1629 = vrot.lane.b32.xlu0 %v1618, 64
  %v1630 = vpop.permute.xlu0 %1629
  %v1632 = vmul.f32 %v1627, %v1630
  %1634 = vrot.lane.b32.xlu0 %v1632, 64
  %v1635 = vpop.permute.xlu0 %1634
  %v1637 = vadd.f32 %v1546, %v1635
  %v1638 = vtanh.pop %v1637
  %v1639 = vsub.f32 1.0, %v1627
  %1641 = vrot.lane.b32.xlu0 %v1638, 96
  %v1642 = vpop.permute.xlu0 %1641
  %v1644 = vmul.f32 %v1639, %v1642
  %v1645 = vmul.f32 %v1627, %v888
  %v1646 = vadd.f32 %v1644, %v1645
  %1648 = vrot.lane.b32.xlu0 %v1646, 96
  %v1649 = vpop.permute.xlu0 %1648
  %1651 = vrot.lane.b32.xlu0 %v1299, 32
  %v1652 = vpop.permute.xlu0 %1651
  %v1654 = vsel %vm325, %v1649, %v1652
  %v1656 = vsel %vm916, %v1654, 0
  %1658 = vmatprep.subr.mxu0 0.0
  %1659 = vmatpush1.msra.mxu0 %v897
  %1660 = vmatprep.subr.mxu0 0.0
  %1661 = vmatpush1.msra.mxu0 %v898
  %1662 = vmatprep.subr.mxu0 0.0
  %1663 = vmatpush1.msra.mxu0 %v899
  %1664 = vmatprep.subr.mxu0 0.0
  %1665 = vmatpush1.msra.mxu0 %v900
  %1666 = vmatprep.subr.mxu0 0.0
  %1667 = vmatpush1.msra.mxu0 %v901
  %1668 = vmatprep.subr.mxu0 0.0
  %1669 = vmatpush1.msra.mxu0 %v902
  %1670 = vmatprep.subr.mxu0 0.0
  %1671 = vmatpush1.msra.mxu0 %v903
  %1672 = vmatprep.subr.mxu0 0.0
  %1673 = vmatpush1.msra.mxu0 %v904
  %1674 = vmatprep.subr.mxu0 0.0
  %1675 = vmatpush1.msra.mxu0 %v905
  %1676 = vmatprep.subr.mxu0 0.0
  %1677 = vmatpush1.msra.mxu0 %v906
  %1678 = vmatprep.subr.mxu0 0.0
  %1679 = vmatpush1.msra.mxu0 %v907
  %1680 = vmatprep.subr.mxu0 0.0
  %1681 = vmatpush1.msra.mxu0 %v908
  %1682 = vmatprep.subr.mxu0 0.0
  %1683 = vmatpush1.msra.mxu0 0.0
  %1684 = vmatprep.subr.mxu0 0.0
  %1685 = vmatpush1.msra.mxu0 0.0
  %1686 = vmatprep.subr.mxu0 0.0
  %1687 = vmatpush1.msra.mxu0 0.0
  %1688 = vmatprep.subr.mxu0 0.0
  %1689 = vmatpush1.msra.mxu0 0.0
  %1690 = vmatprep.subr.mxu0 0.0
  %1691 = vmatpush1.msra.mxu0 0.0
  %1692 = vmatprep.subr.mxu0 0.0
  %1693 = vmatpush1.msra.mxu0 0.0
  %1694 = vmatprep.subr.mxu0 0.0
  %1695 = vmatpush1.msra.mxu0 0.0
  %1696 = vmatprep.subr.mxu0 0.0
  %1697 = vmatpush1.msra.mxu0 0.0
  %1698 = vmatprep.subr.mxu0 0.0
  %1699 = vmatpush1.msra.mxu0 0.0
  %1700 = vmatprep.subr.mxu0 0.0
  %1701 = vmatpush1.msra.mxu0 0.0
  %1702 = vmatprep.subr.mxu0 0.0
  %1703 = vmatpush1.msra.mxu0 0.0
  %1704 = vmatprep.subr.mxu0 0.0
  %1705 = vmatpush1.msra.mxu0 0.0
  %1706 = vmatprep.subr.mxu0 0.0
  %1707 = vmatpush1.msra.mxu0 0.0
  %1708 = vmatprep.subr.mxu0 0.0
  %1709 = vmatpush1.msra.mxu0 0.0
  %1710 = vmatprep.subr.mxu0 0.0
  %1711 = vmatpush1.msra.mxu0 0.0
  %1712 = vmatprep.subr.mxu0 0.0
  %1713 = vmatpush1.msra.mxu0 0.0
  %1714 = vmatprep.subr.mxu0 0.0
  %1715 = vmatpush1.msra.mxu0 0.0
  %1716 = vmatprep.subr.mxu0 0.0
  %1717 = vmatpush1.msra.mxu0 0.0
  %1718 = vmatprep.subr.mxu0 0.0
  %1719 = vmatpush1.msra.mxu0 0.0
  %1720 = vmatprep.subr.mxu0 0.0
  %1721 = vmatpush1.msra.mxu0 0.0
  %1722 = vmatprep.mubr.f32.mxu0 0.0
  %1723 = vmatmul.mubr.f32.gmra.mrb[0].mxu0 %v1656
  %v1724 = vpop.f32.mrb[0].mxu0
  %v1725 = vadd.f32 %v914, %v1724
  %v1726 = vpop.f32.mrb[0].mxu0
  %1727 = vdwg.mxu0
  %v1728 = vsel %vm990, %v1725, -inf
  %1729 = vmax.xlane.f32.xlu0 %v1728
  %v1730 = vpop.xlane.xlu0 %1729
  %v1731 = vsub.f32 %v1725, %v1730
  %v1732 = vmul.f32 %v1731, 1.442695
  %v1733 = vpow.pop %v1732
  %v1734 = vsel %vm990, %v1733, 0.0
  %1735 = vadd.xlane.f32.xlu0 %v1734
  %v1736 = vpop.xlane.xlu0 %1735
  %v1737 = vlog2.pop %v1736
  %v1738 = vmul.f32 %v1737, 0.6931472
  %v1739 = vsub.f32 %v1731, %v1738
  %vm1740 = vcmp.ge.f32.partialorder %v1725, %v1730
  %v1741 = vsel %vm1740, %v232, 12
  %v1742 = vsel %vm990, %v1741, 2147483647
  %v1743 = vand.u32 %v1742, 65535
  %v1744 = vshra.s32 %v1742, 16
  %v1745 = vcvt.s32.f32 %v1743
  %v1746 = vcvt.s32.f32 %v1744
  %1747 = vmin.xlane.f32.xlu0 %v1746
  %v1748 = vpop.xlane.xlu0 %1747
  %vm1749 = vcmp.eq.f32.partialorder %v1746, %v1748
  %v1750 = vsel %vm1749, %v1745, inf
  %1751 = vmin.xlane.f32.xlu0 %v1750
  %v1752 = vpop.xlane.xlu0 %1751
  %v1753 = vcvt.f32.s32 %v1752
  %v1754 = vcvt.f32.s32 %v1748
  %v1755 = vshll.u32 %v1754, 16
  %v1756 = vadd.s32 %v1755, %v1753
  %v1757 = vsel %vm1020, %v1725, -inf
  %1758 = vmax.xlane.f32.xlu0 %v1757
  %v1759 = vpop.xlane.xlu0 %1758
  %v1760 = vsub.f32 %v1725, %v1759
  %v1761 = vmul.f32 %v1760, 1.442695
  %v1762 = vpow.pop %v1761
  %1764 = vrot.lane.b32.xlu0 %v1762, 116
  %v1765 = vpop.permute.xlu0 %1764
  %v1767 = vsel %vm1031, %v1765, 0.0
  %1768 = vadd.xlane.f32.xlu0 %v1767
  %v1769 = vpop.xlane.xlu0 %1768
  %v1770 = vlog2.pop %v1769
  %v1771 = vmul.f32 %v1770, 0.6931472
  %v1772 = vsub.f32 %v1760, %v1771
  %vm1773 = vcmp.ge.f32.partialorder %v1725, %v1759
  %v1774 = vsel %vm1773, %v1040, 10
  %v1775 = vsel %vm1020, %v1774, 2147483647
  %v1776 = vand.u32 %v1775, 65535
  %v1777 = vshra.s32 %v1775, 16
  %v1778 = vcvt.s32.f32 %v1776
  %v1779 = vcvt.s32.f32 %v1777
  %1780 = vmin.xlane.f32.xlu0 %v1779
  %v1781 = vpop.xlane.xlu0 %1780
  %vm1782 = vcmp.eq.f32.partialorder %v1779, %v1781
  %v1783 = vsel %vm1782, %v1778, inf
  %1784 = vmin.xlane.f32.xlu0 %v1783
  %v1785 = vpop.xlane.xlu0 %1784
  %v1786 = vcvt.f32.s32 %v1785
  %v1787 = vcvt.f32.s32 %v1781
  %v1788 = vshll.u32 %v1787, 16
  %v1789 = vadd.s32 %v1788, %v1786
  %v1790 = vsel %vm1057, %v1739, %v1772
  %v1791 = vmul.f32 %v1790, %v1073
  %v1792 = vmul.f32 %v1298, %v1073
  %vm1793 = vcmp.eq.s32.totalorder %v1789, 2
  %v1794 = vsel %vm1793, 1, 0
  %v1795 = vcvt.s32.f32 %v1794
  %v1796 = vmax.f32 %v1064, %v1795
  %v1797 = vsel %vm507, %v1796, 0.0
  %v1798 = vrot.slane %v1797, 4
  %v1799 = vadd.f32 %v1797, %v1798
  %v1800 = vrot.slane %v1799, 2
  %v1801 = vadd.f32 %v1799, %v1800
  %v1802 = vrot.slane %v1801, 1
  %v1803 = vadd.f32 %v1801, %v1802
  %vm1804 = vcmp.ge.f32.partialorder %v1803, 1.5
  %v1805 = vsel %vm1804, 0.0, 1.0
  %vm1806 = vcmp.eq.s32.totalorder %v232, %v1756
  %v1807 = vadd.s32 %v1789, 12
  %vm1808 = vcmp.eq.s32.totalorder %v232, %v1807
  %vm1809 = vmor %vm1806, %vm1808
  %v1810 = vsel %vm1809, 1, 0
  %v1811 = vcvt.s32.f32 %v1810
  %v1813 = vsel %vm243, %v1811, 0
  %1815 = vmatprep.subr.mxu0 0.0
  %1816 = vmatpush1.msra.mxu0 %v240
  %1817 = vmatprep.subr.mxu0 0.0
  %1818 = vmatpush1.msra.mxu0 %v241
  %1819 = vmatprep.subr.mxu0 0.0
  %1820 = vmatpush1.msra.mxu0 %v249
  %1821 = vmatprep.subr.mxu0 0.0
  %1822 = vmatpush1.msra.mxu0 0.0
  %1823 = vmatprep.subr.mxu0 0.0
  %1824 = vmatpush1.msra.mxu0 0.0
  %1825 = vmatprep.subr.mxu0 0.0
  %1826 = vmatpush1.msra.mxu0 0.0
  %1827 = vmatprep.subr.mxu0 0.0
  %1828 = vmatpush1.msra.mxu0 0.0
  %1829 = vmatprep.subr.mxu0 0.0
  %1830 = vmatpush1.msra.mxu0 0.0
  %1831 = vmatprep.subr.mxu0 0.0
  %1832 = vmatpush1.msra.mxu0 0.0
  %1833 = vmatprep.subr.mxu0 0.0
  %1834 = vmatpush1.msra.mxu0 0.0
  %1835 = vmatprep.subr.mxu0 0.0
  %1836 = vmatpush1.msra.mxu0 0.0
  %1837 = vmatprep.subr.mxu0 0.0
  %1838 = vmatpush1.msra.mxu0 0.0
  %1839 = vmatprep.subr.mxu0 0.0
  %1840 = vmatpush1.msra.mxu0 0.0
  %1841 = vmatprep.subr.mxu0 0.0
  %1842 = vmatpush1.msra.mxu0 0.0
  %1843 = vmatprep.subr.mxu0 0.0
  %1844 = vmatpush1.msra.mxu0 0.0
  %1845 = vmatprep.subr.mxu0 0.0
  %1846 = vmatpush1.msra.mxu0 0.0
  %1847 = vmatprep.subr.mxu0 0.0
  %1848 = vmatpush1.msra.mxu0 0.0
  %1849 = vmatprep.subr.mxu0 0.0
  %1850 = vmatpush1.msra.mxu0 0.0
  %1851 = vmatprep.subr.mxu0 0.0
  %1852 = vmatpush1.msra.mxu0 0.0
  %1853 = vmatprep.subr.mxu0 0.0
  %1854 = vmatpush1.msra.mxu0 0.0
  %1855 = vmatprep.subr.mxu0 0.0
  %1856 = vmatpush1.msra.mxu0 0.0
  %1857 = vmatprep.subr.mxu0 0.0
  %1858 = vmatpush1.msra.mxu0 0.0
  %1859 = vmatprep.subr.mxu0 0.0
  %1860 = vmatpush1.msra.mxu0 0.0
  %1861 = vmatprep.subr.mxu0 0.0
  %1862 = vmatpush1.msra.mxu0 0.0
  %1863 = vmatprep.subr.mxu0 0.0
  %1864 = vmatpush1.msra.mxu0 0.0
  %1865 = vmatprep.subr.mxu0 0.0
  %1866 = vmatpush1.msra.mxu0 0.0
  %1867 = vmatprep.subr.mxu0 0.0
  %1868 = vmatpush1.msra.mxu0 0.0
  %1869 = vmatprep.subr.mxu0 0.0
  %1870 = vmatpush1.msra.mxu0 0.0
  %1871 = vmatprep.subr.mxu0 0.0
  %1872 = vmatpush1.msra.mxu0 0.0
  %1873 = vmatprep.subr.mxu0 0.0
  %1874 = vmatpush1.msra.mxu0 0.0
  %1875 = vmatprep.subr.mxu0 0.0
  %1876 = vmatpush1.msra.mxu0 0.0
  %1877 = vmatprep.subr.mxu0 0.0
  %1878 = vmatpush1.msra.mxu0 0.0
  %1879 = vmatprep.mubr.f32.mxu0 0.0
  %1880 = vmatmul.mubr.f32.gmra.mrb[0].mxu0 %v1813
  %v1881 = vpop.f32.mrb[0].mxu0
  %v1882 = vadd.f32 0.0, %v1881
  %v1883 = vpop.f32.mrb[0].mxu0
  %1884 = vdwg.mxu0
  %v1886 = vsel %vm325, %v1476, %v1646
  %v1888 = vsel %vm82, %v1886, 0
  %1890 = vmatprep.subr.mxu0 0.0
  %1891 = vmatpush1.msra.mxu0 %v55
  %1892 = vmatprep.subr.mxu0 0.0
  %1893 = vmatpush1.msra.mxu0 %v56
  %1894 = vmatprep.subr.mxu0 0.0
  %1895 = vmatpush1.msra.mxu0 %v57
  %1896 = vmatprep.subr.mxu0 0.0
  %1897 = vmatpush1.msra.mxu0 %v58
  %1898 = vmatprep.subr.mxu0 0.0
  %1899 = vmatpush1.msra.mxu0 %v59
  %1900 = vmatprep.subr.mxu0 0.0
  %1901 = vmatpush1.msra.mxu0 %v60
  %1902 = vmatprep.subr.mxu0 0.0
  %1903 = vmatpush1.msra.mxu0 %v61
  %1904 = vmatprep.subr.mxu0 0.0
  %1905 = vmatpush1.msra.mxu0 %v62
  %1906 = vmatprep.subr.mxu0 0.0
  %1907 = vmatpush1.msra.mxu0 0.0
  %1908 = vmatprep.subr.mxu0 0.0
  %1909 = vmatpush1.msra.mxu0 0.0
  %1910 = vmatprep.subr.mxu0 0.0
  %1911 = vmatpush1.msra.mxu0 0.0
  %1912 = vmatprep.subr.mxu0 0.0
  %1913 = vmatpush1.msra.mxu0 0.0
  %1914 = vmatprep.subr.mxu0 0.0
  %1915 = vmatpush1.msra.mxu0 0.0
  %1916 = vmatprep.subr.mxu0 0.0
  %1917 = vmatpush1.msra.mxu0 0.0
  %1918 = vmatprep.subr.mxu0 0.0
  %1919 = vmatpush1.msra.mxu0 0.0
  %1920 = vmatprep.subr.mxu0 0.0
  %1921 = vmatpush1.msra.mxu0 0.0
  %1922 = vmatprep.subr.mxu0 0.0
  %1923 = vmatpush1.msra.mxu0 0.0
  %1924 = vmatprep.subr.mxu0 0.0
  %1925 = vmatpush1.msra.mxu0 0.0
  %1926 = vmatprep.subr.mxu0 0.0
  %1927 = vmatpush1.msra.mxu0 0.0
  %1928 = vmatprep.subr.mxu0 0.0
  %1929 = vmatpush1.msra.mxu0 0.0
  %1930 = vmatprep.subr.mxu0 0.0
  %1931 = vmatpush1.msra.mxu0 0.0
  %1932 = vmatprep.subr.mxu0 0.0
  %1933 = vmatpush1.msra.mxu0 0.0
  %1934 = vmatprep.subr.mxu0 0.0
  %1935 = vmatpush1.msra.mxu0 0.0
  %1936 = vmatprep.subr.mxu0 0.0
  %1937 = vmatpush1.msra.mxu0 0.0
  %1938 = vmatprep.subr.mxu0 0.0
  %1939 = vmatpush1.msra.mxu0 0.0
  %1940 = vmatprep.subr.mxu0 0.0
  %1941 = vmatpush1.msra.mxu0 0.0
  %1942 = vmatprep.subr.mxu0 0.0
  %1943 = vmatpush1.msra.mxu0 0.0
  %1944 = vmatprep.subr.mxu0 0.0
  %1945 = vmatpush1.msra.mxu0 0.0
  %1946 = vmatprep.subr.mxu0 0.0
  %1947 = vmatpush1.msra.mxu0 0.0
  %1948 = vmatprep.subr.mxu0 0.0
  %1949 = vmatpush1.msra.mxu0 0.0
  %1950 = vmatprep.subr.mxu0 0.0
  %1951 = vmatpush1.msra.mxu0 0.0
  %1952 = vmatprep.subr.mxu0 0.0
  %1953 = vmatpush1.msra.mxu0 0.0
  %1954 = vmatprep.mubr.f32.mxu0 0.0
  %1955 = vmatmul.mubr.f32.gmra.mrb[0].mxu0 %v1888
  %v1956 = vpop.f32.mrb[0].mxu0
  %v1957 = vadd.f32 0.0, %v1956
  %v1958 = vpop.f32.mrb[0].mxu0
  %1959 = vdwg.mxu0
  %v1960 = vlaneseq
  %v1961 = vshrl.u32 %v1960, 7
  %v1962 = vsub.s32 0, %v1961
  %v1963 = vrot.slane %v1957, %v1962
  %v1964 = vadd.f32 %v153, %v1963
  %v1965 = vtanh.pop %v1964
  %v1966 = vmul.f32 %v1965, %v410
  %v1967 = vsel %vm325, %v1966, 0.0
  %1968 = vadd.xlane.f32.xlu0 %v1967
  %v1969 = vpop.xlane.xlu0 %1968
  %v1970 = vrot.slane %v1969, 4
  %v1971 = vmax.f32 %v1969, %v1970
  %v1972 = vrot.slane %v1971, 2
  %v1973 = vmax.f32 %v1971, %v1972
  %v1974 = vrot.slane %v1973, 1
  %v1975 = vmax.f32 %v1973, %v1974
  %v1976 = vsub.f32 %v1969, %v1975
  %v1977 = vmul.f32 %v1976, 1.442695
  %v1978 = vpow.pop %v1977
  %v1979 = vrot.slane %v1978, 4
  %v1980 = vadd.f32 %v1978, %v1979
  %v1981 = vrot.slane %v1980, 2
  %v1982 = vadd.f32 %v1980, %v1981
  %v1983 = vrot.slane %v1982, 1
  %v1984 = vadd.f32 %v1982, %v1983
  %v1985 = vrcp.pop %v1984
  %v1986 = vmul.f32 %v1978, %v1985
  %v1987 = vmul.f32 %v1986, %v72
  %v1988 = vsel %vm82, %v1987, 0.0
  %v1989 = vrot.slane %v1988, 4
  %v1990 = vadd.f32 %v1988, %v1989
  %v1991 = vrot.slane %v1990, 2
  %v1992 = vadd.f32 %v1990, %v1991
  %v1993 = vrot.slane %v1992, 1
  %v1994 = vadd.f32 %v1992, %v1993
  %v1995 = vlaneseq
  %v1996 = vshrl.u32 %v1995, 7
  %v1997 = vsub.s32 1, %v1996
  %v1998 = vrot.slane %v1957, %v1997
  %v1999 = vadd.f32 %v226, %v1998
  %v2000 = vtanh.pop %v1999
  %v2001 = vmul.f32 %v2000, %v410
  %v2002 = vsel %vm325, %v2001, 0.0
  %2003 = vadd.xlane.f32.xlu0 %v2002
  %v2004 = vpop.xlane.xlu0 %2003
  %v2005 = vrot.slane %v2004, 4
  %v2006 = vmax.f32 %v2004, %v2005
  %v2007 = vrot.slane %v2006, 2
  %v2008 = vmax.f32 %v2006, %v2007
  %v2009 = vrot.slane %v2008, 1
  %v2010 = vmax.f32 %v2008, %v2009
  %v2011 = vsub.f32 %v2004, %v2010
  %v2012 = vmul.f32 %v2011, 1.442695
  %v2013 = vpow.pop %v2012
  %v2014 = vrot.slane %v2013, 4
  %v2015 = vadd.f32 %v2013, %v2014
  %v2016 = vrot.slane %v2015, 2
  %v2017 = vadd.f32 %v2015, %v2016
  %v2018 = vrot.slane %v2017, 1
  %v2019 = vadd.f32 %v2017, %v2018
  %v2020 = vrcp.pop %v2019
  %v2021 = vmul.f32 %v2013, %v2020
  %v2022 = vmul.f32 %v2021, %v74
  %v2023 = vsel %vm82, %v2022, 0.0
  %v2024 = vrot.slane %v2023, 4
  %v2025 = vadd.f32 %v2023, %v2024
  %v2026 = vrot.slane %v2025, 2
  %v2027 = vadd.f32 %v2025, %v2026
  %v2028 = vrot.slane %v2027, 1
  %v2029 = vadd.f32 %v2027, %v2028
  %v2030 = vsel %vm476, %v1986, %v2021
  %v2031 = vsel %vm478, %v1994, %v2029
  %2033 = vrot.lane.b32.xlu0 %v2031, 10
  %v2034 = vpop.permute.xlu0 %2033
  %v2036 = vsel %vm484, %v1882, %v2034
  %v2038 = vsel %vm503, %v2036, 0
  %2040 = vmatprep.subr.mxu0 0.0
  %2041 = vmatpush1.msra.mxu0 %v486
  %2042 = vmatprep.subr.mxu0 0.0
  %2043 = vmatpush1.msra.mxu0 %v487
  %2044 = vmatprep.subr.mxu0 0.0
  %2045 = vmatpush1.msra.mxu0 %v488
  %2046 = vmatprep.subr.mxu0 0.0
  %2047 = vmatpush1.msra.mxu0 %v489
  %2048 = vmatprep.subr.mxu0 0.0
  %2049 = vmatpush1.msra.mxu0 %v490
  %2050 = vmatprep.subr.mxu0 0.0
  %2051 = vmatpush1.msra.mxu0 %v491
  %2052 = vmatprep.subr.mxu0 0.0
  %2053 = vmatpush1.msra.mxu0 %v492
  %2054 = vmatprep.subr.mxu0 0.0
  %2055 = vmatpush1.msra.mxu0 %v493
  %2056 = vmatprep.subr.mxu0 0.0
  %2057 = vmatpush1.msra.mxu0 %v494
  %2058 = vmatprep.subr.mxu0 0.0
  %2059 = vmatpush1.msra.mxu0 %v509
  %2060 = vmatprep.subr.mxu0 0.0
  %2061 = vmatpush1.msra.mxu0 0.0
  %2062 = vmatprep.subr.mxu0 0.0
  %2063 = vmatpush1.msra.mxu0 0.0
  %2064 = vmatprep.subr.mxu0 0.0
  %2065 = vmatpush1.msra.mxu0 0.0
  %2066 = vmatprep.subr.mxu0 0.0
  %2067 = vmatpush1.msra.mxu0 0.0
  %2068 = vmatprep.subr.mxu0 0.0
  %2069 = vmatpush1.msra.mxu0 0.0
  %2070 = vmatprep.subr.mxu0 0.0
  %2071 = vmatpush1.msra.mxu0 0.0
  %2072 = vmatprep.subr.mxu0 0.0
  %2073 = vmatpush1.msra.mxu0 0.0
  %2074 = vmatprep.subr.mxu0 0.0
  %2075 = vmatpush1.msra.mxu0 0.0
  %2076 = vmatprep.subr.mxu0 0.0
  %2077 = vmatpush1.msra.mxu0 0.0
  %2078 = vmatprep.subr.mxu0 0.0
  %2079 = vmatpush1.msra.mxu0 0.0
  %2080 = vmatprep.subr.mxu0 0.0
  %2081 = vmatpush1.msra.mxu0 0.0
  %2082 = vmatprep.subr.mxu0 0.0
  %2083 = vmatpush1.msra.mxu0 0.0
  %2084 = vmatprep.subr.mxu0 0.0
  %2085 = vmatpush1.msra.mxu0 0.0
  %2086 = vmatprep.subr.mxu0 0.0
  %2087 = vmatpush1.msra.mxu0 0.0
  %2088 = vmatprep.subr.mxu0 0.0
  %2089 = vmatpush1.msra.mxu0 0.0
  %2090 = vmatprep.subr.mxu0 0.0
  %2091 = vmatpush1.msra.mxu0 0.0
  %2092 = vmatprep.subr.mxu0 0.0
  %2093 = vmatpush1.msra.mxu0 0.0
  %2094 = vmatprep.subr.mxu0 0.0
  %2095 = vmatpush1.msra.mxu0 0.0
  %2096 = vmatprep.subr.mxu0 0.0
  %2097 = vmatpush1.msra.mxu0 0.0
  %2098 = vmatprep.subr.mxu0 0.0
  %2099 = vmatpush1.msra.mxu0 0.0
  %2100 = vmatprep.subr.mxu0 0.0
  %2101 = vmatpush1.msra.mxu0 0.0
  %2102 = vmatprep.subr.mxu0 0.0
  %2103 = vmatpush1.msra.mxu0 0.0
  %2104 = vmatprep.mubr.f32.mxu0 0.0
  %2105 = vmatmul.mubr.f32.gmra.mrb[0].mxu0 %v2038
  %v2106 = vpop.f32.mrb[0].mxu0
  %v2107 = vadd.f32 %v501, %v2106
  %v2108 = vpop.f32.mrb[0].mxu0
  %2109 = vdwg.mxu0
  %2110 = vmatprep.subr.mxu0 0.0
  %2111 = vmatpush1.msra.mxu0 %v581
  %2112 = vmatprep.subr.mxu0 0.0
  %2113 = vmatpush1.msra.mxu0 %v582
  %2114 = vmatprep.subr.mxu0 0.0
  %2115 = vmatpush1.msra.mxu0 %v583
  %2116 = vmatprep.subr.mxu0 0.0
  %2117 = vmatpush1.msra.mxu0 %v584
  %2118 = vmatprep.subr.mxu0 0.0
  %2119 = vmatpush1.msra.mxu0 0.0
  %2120 = vmatprep.subr.mxu0 0.0
  %2121 = vmatpush1.msra.mxu0 0.0
  %2122 = vmatprep.subr.mxu0 0.0
  %2123 = vmatpush1.msra.mxu0 0.0
  %2124 = vmatprep.subr.mxu0 0.0
  %2125 = vmatpush1.msra.mxu0 0.0
  %2126 = vmatprep.subr.mxu0 0.0
  %2127 = vmatpush1.msra.mxu0 0.0
  %2128 = vmatprep.subr.mxu0 0.0
  %2129 = vmatpush1.msra.mxu0 0.0
  %2130 = vmatprep.subr.mxu0 0.0
  %2131 = vmatpush1.msra.mxu0 0.0
  %2132 = vmatprep.subr.mxu0 0.0
  %2133 = vmatpush1.msra.mxu0 0.0
  %2134 = vmatprep.subr.mxu0 0.0
  %2135 = vmatpush1.msra.mxu0 0.0
  %2136 = vmatprep.subr.mxu0 0.0
  %2137 = vmatpush1.msra.mxu0 0.0
  %2138 = vmatprep.subr.mxu0 0.0
  %2139 = vmatpush1.msra.mxu0 0.0
  %2140 = vmatprep.subr.mxu0 0.0
  %2141 = vmatpush1.msra.mxu0 0.0
  %2142 = vmatprep.subr.mxu0 0.0
  %2143 = vmatpush1.msra.mxu0 0.0
  %2144 = vmatprep.subr.mxu0 0.0
  %2145 = vmatpush1.msra.mxu0 0.0
  %2146 = vmatprep.subr.mxu0 0.0
  %2147 = vmatpush1.msra.mxu0 0.0
  %2148 = vmatprep.subr.mxu0 0.0
  %2149 = vmatpush1.msra.mxu0 0.0
  %2150 = vmatprep.subr.mxu0 0.0
  %2151 = vmatpush1.msra.mxu0 0.0
  %2152 = vmatprep.subr.mxu0 0.0
  %2153 = vmatpush1.msra.mxu0 0.0
  %2154 = vmatprep.subr.mxu0 0.0
  %2155 = vmatpush1.msra.mxu0 0.0
  %2156 = vmatprep.subr.mxu0 0.0
  %2157 = vmatpush1.msra.mxu0 0.0
  %2158 = vmatprep.subr.mxu0 0.0
  %2159 = vmatpush1.msra.mxu0 0.0
  %2160 = vmatprep.subr.mxu0 0.0
  %2161 = vmatpush1.msra.mxu0 0.0
  %2162 = vmatprep.subr.mxu0 0.0
  %2163 = vmatpush1.msra.mxu0 0.0
  %2164 = vmatprep.subr.mxu0 0.0
  %2165 = vmatpush1.msra.mxu0 0.0
  %2166 = vmatprep.subr.mxu0 0.0
  %2167 = vmatpush1.msra.mxu0 0.0
  %2168 = vmatprep.subr.mxu0 0.0
  %2169 = vmatpush1.msra.mxu0 0.0
  %2170 = vmatprep.subr.mxu0 0.0
  %2171 = vmatpush1.msra.mxu0 0.0
  %2172 = vmatprep.subr.mxu0 0.0
  %2173 = vmatpush1.msra.mxu0 0.0
  %2174 = vmatprep.mubr.f32.mxu0 0.0
  %2175 = vmatmul.mubr.f32.gmra.mrb[0].mxu0 %v1477
  %v2176 = vpop.f32.mrb[0].mxu0
  %v2177 = vadd.f32 %v590, %v2176
  %v2178 = vpop.f32.mrb[0].mxu0
  %2179 = vdwg.mxu0
  %v2180 = vadd.f32 %v2107, %v2177
  %v2181 = vxor.u32 %v2180, 2147483648
  %v2182 = vmul.f32 %v2181, 1.442695
  %v2183 = vpow.pop %v2182
  %v2184 = vadd.f32 %v2183, 1.0
  %v2185 = vrcp.pop %v2184
  %v2186 = vmul.f32 1.0, %v2185
  %2188 = vrot.lane.b32.xlu0 %v2177, 64
  %v2189 = vpop.permute.xlu0 %2188
  %v2191 = vmul.f32 %v2186, %v2189
  %2193 = vrot.lane.b32.xlu0 %v2191, 64
  %v2194 = vpop.permute.xlu0 %2193
  %v2196 = vadd.f32 %v2107, %v2194
  %v2197 = vtanh.pop %v2196
  %v2198 = vsub.f32 1.0, %v2186
  %2200 = vrot.lane.b32.xlu0 %v2197, 96
  %v2201 = vpop.permute.xlu0 %2200
  %v2203 = vmul.f32 %v2198, %v2201
  %v2204 = vmul.f32 %v2186, %v1473
  %v2205 = vadd.f32 %v2203, %v2204
  %2207 = vrot.lane.b32.xlu0 %v2205, 96
  %v2208 = vpop.permute.xlu0 %2207
  %v2209 = vsel %vm325, %v2208, 0
  %2211 = vmatprep.subr.mxu0 0.0
  %2212 = vmatpush1.msra.mxu0 %v694
  %2213 = vmatprep.subr.mxu0 0.0
  %2214 = vmatpush1.msra.mxu0 %v695
  %2215 = vmatprep.subr.mxu0 0.0
  %2216 = vmatpush1.msra.mxu0 %v696
  %2217 = vmatprep.subr.mxu0 0.0
  %2218 = vmatpush1.msra.mxu0 %v697
  %2219 = vmatprep.subr.mxu0 0.0
  %2220 = vmatpush1.msra.mxu0 0.0
  %2221 = vmatprep.subr.mxu0 0.0
  %2222 = vmatpush1.msra.mxu0 0.0
  %2223 = vmatprep.subr.mxu0 0.0
  %2224 = vmatpush1.msra.mxu0 0.0
  %2225 = vmatprep.subr.mxu0 0.0
  %2226 = vmatpush1.msra.mxu0 0.0
  %2227 = vmatprep.subr.mxu0 0.0
  %2228 = vmatpush1.msra.mxu0 0.0
  %2229 = vmatprep.subr.mxu0 0.0
  %2230 = vmatpush1.msra.mxu0 0.0
  %2231 = vmatprep.subr.mxu0 0.0
  %2232 = vmatpush1.msra.mxu0 0.0
  %2233 = vmatprep.subr.mxu0 0.0
  %2234 = vmatpush1.msra.mxu0 0.0
  %2235 = vmatprep.subr.mxu0 0.0
  %2236 = vmatpush1.msra.mxu0 0.0
  %2237 = vmatprep.subr.mxu0 0.0
  %2238 = vmatpush1.msra.mxu0 0.0
  %2239 = vmatprep.subr.mxu0 0.0
  %2240 = vmatpush1.msra.mxu0 0.0
  %2241 = vmatprep.subr.mxu0 0.0
  %2242 = vmatpush1.msra.mxu0 0.0
  %2243 = vmatprep.subr.mxu0 0.0
  %2244 = vmatpush1.msra.mxu0 0.0
  %2245 = vmatprep.subr.mxu0 0.0
  %2246 = vmatpush1.msra.mxu0 0.0
  %2247 = vmatprep.subr.mxu0 0.0
  %2248 = vmatpush1.msra.mxu0 0.0
  %2249 = vmatprep.subr.mxu0 0.0
  %2250 = vmatpush1.msra.mxu0 0.0
  %2251 = vmatprep.subr.mxu0 0.0
  %2252 = vmatpush1.msra.mxu0 0.0
  %2253 = vmatprep.subr.mxu0 0.0
  %2254 = vmatpush1.msra.mxu0 0.0
  %2255 = vmatprep.subr.mxu0 0.0
  %2256 = vmatpush1.msra.mxu0 0.0
  %2257 = vmatprep.subr.mxu0 0.0
  %2258 = vmatpush1.msra.mxu0 0.0
  %2259 = vmatprep.subr.mxu0 0.0
  %2260 = vmatpush1.msra.mxu0 0.0
  %2261 = vmatprep.subr.mxu0 0.0
  %2262 = vmatpush1.msra.mxu0 0.0
  %2263 = vmatprep.subr.mxu0 0.0
  %2264 = vmatpush1.msra.mxu0 0.0
  %2265 = vmatprep.subr.mxu0 0.0
  %2266 = vmatpush1.msra.mxu0 0.0
  %2267 = vmatprep.subr.mxu0 0.0
  %2268 = vmatpush1.msra.mxu0 0.0
  %2269 = vmatprep.subr.mxu0 0.0
  %2270 = vmatpush1.msra.mxu0 0.0
  %2271 = vmatprep.subr.mxu0 0.0
  %2272 = vmatpush1.msra.mxu0 0.0
  %2273 = vmatprep.subr.mxu0 0.0
  %2274 = vmatpush1.msra.mxu0 0.0
  %2275 = vmatprep.mubr.f32.mxu0 0.0
  %2276 = vmatmul.mubr.f32.gmra.mrb[0].mxu0 %v2209
  %v2277 = vpop.f32.mrb[0].mxu0
  %v2278 = vadd.f32 %v703, %v2277
  %v2279 = vpop.f32.mrb[0].mxu0
  %2280 = vdwg.mxu0
  %v2281 = vsel %vm325, %v1649, 0
  %2283 = vmatprep.subr.mxu0 0.0
  %2284 = vmatpush1.msra.mxu0 %v780
  %2285 = vmatprep.subr.mxu0 0.0
  %2286 = vmatpush1.msra.mxu0 %v781
  %2287 = vmatprep.subr.mxu0 0.0
  %2288 = vmatpush1.msra.mxu0 %v782
  %2289 = vmatprep.subr.mxu0 0.0
  %2290 = vmatpush1.msra.mxu0 %v783
  %2291 = vmatprep.subr.mxu0 0.0
  %2292 = vmatpush1.msra.mxu0 0.0
  %2293 = vmatprep.subr.mxu0 0.0
  %2294 = vmatpush1.msra.mxu0 0.0
  %2295 = vmatprep.subr.mxu0 0.0
  %2296 = vmatpush1.msra.mxu0 0.0
  %2297 = vmatprep.subr.mxu0 0.0
  %2298 = vmatpush1.msra.mxu0 0.0
  %2299 = vmatprep.subr.mxu0 0.0
  %2300 = vmatpush1.msra.mxu0 0.0
  %2301 = vmatprep.subr.mxu0 0.0
  %2302 = vmatpush1.msra.mxu0 0.0
  %2303 = vmatprep.subr.mxu0 0.0
  %2304 = vmatpush1.msra.mxu0 0.0
  %2305 = vmatprep.subr.mxu0 0.0
  %2306 = vmatpush1.msra.mxu0 0.0
  %2307 = vmatprep.subr.mxu0 0.0
  %2308 = vmatpush1.msra.mxu0 0.0
  %2309 = vmatprep.subr.mxu0 0.0
  %2310 = vmatpush1.msra.mxu0 0.0
  %2311 = vmatprep.subr.mxu0 0.0
  %2312 = vmatpush1.msra.mxu0 0.0
  %2313 = vmatprep.subr.mxu0 0.0
  %2314 = vmatpush1.msra.mxu0 0.0
  %2315 = vmatprep.subr.mxu0 0.0
  %2316 = vmatpush1.msra.mxu0 0.0
  %2317 = vmatprep.subr.mxu0 0.0
  %2318 = vmatpush1.msra.mxu0 0.0
  %2319 = vmatprep.subr.mxu0 0.0
  %2320 = vmatpush1.msra.mxu0 0.0
  %2321 = vmatprep.subr.mxu0 0.0
  %2322 = vmatpush1.msra.mxu0 0.0
  %2323 = vmatprep.subr.mxu0 0.0
  %2324 = vmatpush1.msra.mxu0 0.0
  %2325 = vmatprep.subr.mxu0 0.0
  %2326 = vmatpush1.msra.mxu0 0.0
  %2327 = vmatprep.subr.mxu0 0.0
  %2328 = vmatpush1.msra.mxu0 0.0
  %2329 = vmatprep.subr.mxu0 0.0
  %2330 = vmatpush1.msra.mxu0 0.0
  %2331 = vmatprep.subr.mxu0 0.0
  %2332 = vmatpush1.msra.mxu0 0.0
  %2333 = vmatprep.subr.mxu0 0.0
  %2334 = vmatpush1.msra.mxu0 0.0
  %2335 = vmatprep.subr.mxu0 0.0
  %2336 = vmatpush1.msra.mxu0 0.0
  %2337 = vmatprep.subr.mxu0 0.0
  %2338 = vmatpush1.msra.mxu0 0.0
  %2339 = vmatprep.subr.mxu0 0.0
  %2340 = vmatpush1.msra.mxu0 0.0
  %2341 = vmatprep.subr.mxu0 0.0
  %2342 = vmatpush1.msra.mxu0 0.0
  %2343 = vmatprep.subr.mxu0 0.0
  %2344 = vmatpush1.msra.mxu0 0.0
  %2345 = vmatprep.subr.mxu0 0.0
  %2346 = vmatpush1.msra.mxu0 0.0
  %2347 = vmatprep.mubr.f32.mxu0 0.0
  %2348 = vmatmul.mubr.f32.gmra.mrb[0].mxu0 %v2281
  %v2349 = vpop.f32.mrb[0].mxu0
  %v2350 = vadd.f32 %v789, %v2349
  %v2351 = vpop.f32.mrb[0].mxu0
  %2352 = vdwg.mxu0
  %v2353 = vadd.f32 %v2278, %v2350
  %v2354 = vxor.u32 %v2353, 2147483648
  %v2355 = vmul.f32 %v2354, 1.442695
  %v2356 = vpow.pop %v2355
  %v2357 = vadd.f32 %v2356, 1.0
  %v2358 = vrcp.pop %v2357
  %v2359 = vmul.f32 1.0, %v2358
  %2361 = vrot.lane.b32.xlu0 %v2350, 64
  %v2362 = vpop.permute.xlu0 %2361
  %v2364 = vmul.f32 %v2359, %v2362
  %2366 = vrot.lane.b32.xlu0 %v2364, 64
  %v2367 = vpop.permute.xlu0 %2366
  %v2369 = vadd.f32 %v2278, %v2367
  %v2370 = vtanh.pop %v2369
  %v2371 = vsub.f32 1.0, %v2359
  %2373 = vrot.lane.b32.xlu0 %v2370, 96
  %v2374 = vpop.permute.xlu0 %2373
  %v2376 = vmul.f32 %v2371, %v2374
  %v2377 = vmul.f32 %v2359, %v1646
  %v2378 = vadd.f32 %v2376, %v2377
  %2380 = vrot.lane.b32.xlu0 %v2378, 96
  %v2381 = vpop.permute.xlu0 %2380
  %2383 = vrot.lane.b32.xlu0 %v2031, 32
  %v2384 = vpop.permute.xlu0 %2383
  %v2386 = vsel %vm325, %v2381, %v2384
  %v2388 = vsel %vm916, %v2386, 0
  %2390 = vmatprep.subr.mxu0 0.0
  %2391 = vmatpush1.msra.mxu0 %v897
  %2392 = vmatprep.subr.mxu0 0.0
  %2393 = vmatpush1.msra.mxu0 %v898
  %2394 = vmatprep.subr.mxu0 0.0
  %2395 = vmatpush1.msra.mxu0 %v899
  %2396 = vmatprep.subr.mxu0 0.0
  %2397 = vmatpush1.msra.mxu0 %v900
  %2398 = vmatprep.subr.mxu0 0.0
  %2399 = vmatpush1.msra.mxu0 %v901
  %2400 = vmatprep.subr.mxu0 0.0
  %2401 = vmatpush1.msra.mxu0 %v902
  %2402 = vmatprep.subr.mxu0 0.0
  %2403 = vmatpush1.msra.mxu0 %v903
  %2404 = vmatprep.subr.mxu0 0.0
  %2405 = vmatpush1.msra.mxu0 %v904
  %2406 = vmatprep.subr.mxu0 0.0
  %2407 = vmatpush1.msra.mxu0 %v905
  %2408 = vmatprep.subr.mxu0 0.0
  %2409 = vmatpush1.msra.mxu0 %v906
  %2410 = vmatprep.subr.mxu0 0.0
  %2411 = vmatpush1.msra.mxu0 %v907
  %2412 = vmatprep.subr.mxu0 0.0
  %2413 = vmatpush1.msra.mxu0 %v908
  %2414 = vmatprep.subr.mxu0 0.0
  %2415 = vmatpush1.msra.mxu0 0.0
  %2416 = vmatprep.subr.mxu0 0.0
  %2417 = vmatpush1.msra.mxu0 0.0
  %2418 = vmatprep.subr.mxu0 0.0
  %2419 = vmatpush1.msra.mxu0 0.0
  %2420 = vmatprep.subr.mxu0 0.0
  %2421 = vmatpush1.msra.mxu0 0.0
  %2422 = vmatprep.subr.mxu0 0.0
  %2423 = vmatpush1.msra.mxu0 0.0
  %2424 = vmatprep.subr.mxu0 0.0
  %2425 = vmatpush1.msra.mxu0 0.0
  %2426 = vmatprep.subr.mxu0 0.0
  %2427 = vmatpush1.msra.mxu0 0.0
  %2428 = vmatprep.subr.mxu0 0.0
  %2429 = vmatpush1.msra.mxu0 0.0
  %2430 = vmatprep.subr.mxu0 0.0
  %2431 = vmatpush1.msra.mxu0 0.0
  %2432 = vmatprep.subr.mxu0 0.0
  %2433 = vmatpush1.msra.mxu0 0.0
  %2434 = vmatprep.subr.mxu0 0.0
  %2435 = vmatpush1.msra.mxu0 0.0
  %2436 = vmatprep.subr.mxu0 0.0
  %2437 = vmatpush1.msra.mxu0 0.0
  %2438 = vmatprep.subr.mxu0 0.0
  %2439 = vmatpush1.msra.mxu0 0.0
  %2440 = vmatprep.subr.mxu0 0.0
  %2441 = vmatpush1.msra.mxu0 0.0
  %2442 = vmatprep.subr.mxu0 0.0
  %2443 = vmatpush1.msra.mxu0 0.0
  %2444 = vmatprep.subr.mxu0 0.0
  %2445 = vmatpush1.msra.mxu0 0.0
  %2446 = vmatprep.subr.mxu0 0.0
  %2447 = vmatpush1.msra.mxu0 0.0
  %2448 = vmatprep.subr.mxu0 0.0
  %2449 = vmatpush1.msra.mxu0 0.0
  %2450 = vmatprep.subr.mxu0 0.0
  %2451 = vmatpush1.msra.mxu0 0.0
  %2452 = vmatprep.subr.mxu0 0.0
  %2453 = vmatpush1.msra.mxu0 0.0
  %2454 = vmatprep.mubr.f32.mxu0 0.0
  %2455 = vmatmul.mubr.f32.gmra.mrb[0].mxu0 %v2388
  %v2456 = vpop.f32.mrb[0].mxu0
  %v2457 = vadd.f32 %v914, %v2456
  %v2458 = vpop.f32.mrb[0].mxu0
  %2459 = vdwg.mxu0
  %v2460 = vsel %vm990, %v2457, -inf
  %2461 = vmax.xlane.f32.xlu0 %v2460
  %v2462 = vpop.xlane.xlu0 %2461
  %v2463 = vsub.f32 %v2457, %v2462
  %v2464 = vmul.f32 %v2463, 1.442695
  %v2465 = vpow.pop %v2464
  %v2466 = vsel %vm990, %v2465, 0.0
  %2467 = vadd.xlane.f32.xlu0 %v2466
  %v2468 = vpop.xlane.xlu0 %2467
  %v2469 = vlog2.pop %v2468
  %v2470 = vmul.f32 %v2469, 0.6931472
  %v2471 = vsub.f32 %v2463, %v2470
  %vm2472 = vcmp.ge.f32.partialorder %v2457, %v2462
  %v2473 = vsel %vm2472, %v232, 12
  %v2474 = vsel %vm990, %v2473, 2147483647
  %v2475 = vand.u32 %v2474, 65535
  %v2476 = vshra.s32 %v2474, 16
  %v2477 = vcvt.s32.f32 %v2475
  %v2478 = vcvt.s32.f32 %v2476
  %2479 = vmin.xlane.f32.xlu0 %v2478
  %v2480 = vpop.xlane.xlu0 %2479
  %vm2481 = vcmp.eq.f32.partialorder %v2478, %v2480
  %v2482 = vsel %vm2481, %v2477, inf
  %2483 = vmin.xlane.f32.xlu0 %v2482
  %v2484 = vpop.xlane.xlu0 %2483
  %v2485 = vcvt.f32.s32 %v2484
  %v2486 = vcvt.f32.s32 %v2480
  %v2487 = vshll.u32 %v2486, 16
  %v2488 = vadd.s32 %v2487, %v2485
  %v2489 = vsel %vm1020, %v2457, -inf
  %2490 = vmax.xlane.f32.xlu0 %v2489
  %v2491 = vpop.xlane.xlu0 %2490
  %v2492 = vsub.f32 %v2457, %v2491
  %v2493 = vmul.f32 %v2492, 1.442695
  %v2494 = vpow.pop %v2493
  %2496 = vrot.lane.b32.xlu0 %v2494, 116
  %v2497 = vpop.permute.xlu0 %2496
  %v2499 = vsel %vm1031, %v2497, 0.0
  %2500 = vadd.xlane.f32.xlu0 %v2499
  %v2501 = vpop.xlane.xlu0 %2500
  %v2502 = vlog2.pop %v2501
  %v2503 = vmul.f32 %v2502, 0.6931472
  %v2504 = vsub.f32 %v2492, %v2503
  %vm2505 = vcmp.ge.f32.partialorder %v2457, %v2491
  %v2506 = vsel %vm2505, %v1040, 10
  %v2507 = vsel %vm1020, %v2506, 2147483647
  %v2508 = vand.u32 %v2507, 65535
  %v2509 = vshra.s32 %v2507, 16
  %v2510 = vcvt.s32.f32 %v2508
  %v2511 = vcvt.s32.f32 %v2509
  %2512 = vmin.xlane.f32.xlu0 %v2511
  %v2513 = vpop.xlane.xlu0 %2512
  %vm2514 = vcmp.eq.f32.partialorder %v2511, %v2513
  %v2515 = vsel %vm2514, %v2510, inf
  %2516 = vmin.xlane.f32.xlu0 %v2515
  %v2517 = vpop.xlane.xlu0 %2516
  %v2518 = vcvt.f32.s32 %v2517
  %v2519 = vcvt.f32.s32 %v2513
  %v2520 = vshll.u32 %v2519, 16
  %v2521 = vadd.s32 %v2520, %v2518
  %v2522 = vsel %vm1057, %v2471, %v2504
  %v2523 = vmul.f32 %v2522, %v1805
  %v2524 = vmul.f32 %v2030, %v1805
  %vm2525 = vcmp.eq.s32.totalorder %v2521, 2
  %v2526 = vsel %vm2525, 1, 0
  %v2527 = vcvt.s32.f32 %v2526
  %v2528 = vmax.f32 %v1796, %v2527
  %v2529 = vsel %vm507, %v2528, 0.0
  %v2530 = vrot.slane %v2529, 4
  %v2531 = vadd.f32 %v2529, %v2530
  %v2532 = vrot.slane %v2531, 2
  %v2533 = vadd.f32 %v2531, %v2532
  %v2534 = vrot.slane %v2533, 1
  %v2535 = vadd.f32 %v2533, %v2534
  %vm2536 = vcmp.ge.f32.partialorder %v2535, 1.5
  %v2537 = vsel %vm2536, 0.0, 1.0
  %vm2538 = vcmp.eq.s32.totalorder %v232, %v2488
  %v2539 = vadd.s32 %v2521, 12
  %vm2540 = vcmp.eq.s32.totalorder %v232, %v2539
  %vm2541 = vmor %vm2538, %vm2540
  %v2542 = vsel %vm2541, 1, 0
  %v2543 = vcvt.s32.f32 %v2542
  %v2545 = vsel %vm243, %v2543, 0
  %2547 = vmatprep.subr.mxu0 0.0
  %2548 = vmatpush1.msra.mxu0 %v240
  %2549 = vmatprep.subr.mxu0 0.0
  %2550 = vmatpush1.msra.mxu0 %v241
  %2551 = vmatprep.subr.mxu0 0.0
  %2552 = vmatpush1.msra.mxu0 %v249
  %2553 = vmatprep.subr.mxu0 0.0
  %2554 = vmatpush1.msra.mxu0 0.0
  %2555 = vmatprep.subr.mxu0 0.0
  %2556 = vmatpush1.msra.mxu0 0.0
  %2557 = vmatprep.subr.mxu0 0.0
  %2558 = vmatpush1.msra.mxu0 0.0
  %2559 = vmatprep.subr.mxu0 0.0
  %2560 = vmatpush1.msra.mxu0 0.0
  %2561 = vmatprep.subr.mxu0 0.0
  %2562 = vmatpush1.msra.mxu0 0.0
  %2563 = vmatprep.subr.mxu0 0.0
  %2564 = vmatpush1.msra.mxu0 0.0
  %2565 = vmatprep.subr.mxu0 0.0
  %2566 = vmatpush1.msra.mxu0 0.0
  %2567 = vmatprep.subr.mxu0 0.0
  %2568 = vmatpush1.msra.mxu0 0.0
  %2569 = vmatprep.subr.mxu0 0.0
  %2570 = vmatpush1.msra.mxu0 0.0
  %2571 = vmatprep.subr.mxu0 0.0
  %2572 = vmatpush1.msra.mxu0 0.0
  %2573 = vmatprep.subr.mxu0 0.0
  %2574 = vmatpush1.msra.mxu0 0.0
  %2575 = vmatprep.subr.mxu0 0.0
  %2576 = vmatpush1.msra.mxu0 0.0
  %2577 = vmatprep.subr.mxu0 0.0
  %2578 = vmatpush1.msra.mxu0 0.0
  %2579 = vmatprep.subr.mxu0 0.0
  %2580 = vmatpush1.msra.mxu0 0.0
  %2581 = vmatprep.subr.mxu0 0.0
  %2582 = vmatpush1.msra.mxu0 0.0
  %2583 = vmatprep.subr.mxu0 0.0
  %2584 = vmatpush1.msra.mxu0 0.0
  %2585 = vmatprep.subr.mxu0 0.0
  %2586 = vmatpush1.msra.mxu0 0.0
  %2587 = vmatprep.subr.mxu0 0.0
  %2588 = vmatpush1.msra.mxu0 0.0
  %2589 = vmatprep.subr.mxu0 0.0
  %2590 = vmatpush1.msra.mxu0 0.0
  %2591 = vmatprep.subr.mxu0 0.0
  %2592 = vmatpush1.msra.mxu0 0.0
  %2593 = vmatprep.subr.mxu0 0.0
  %2594 = vmatpush1.msra.mxu0 0.0
  %2595 = vmatprep.subr.mxu0 0.0
  %2596 = vmatpush1.msra.mxu0 0.0
  %2597 = vmatprep.subr.mxu0 0.0
  %2598 = vmatpush1.msra.mxu0 0.0
  %2599 = vmatprep.subr.mxu0 0.0
  %2600 = vmatpush1.msra.mxu0 0.0
  %2601 = vmatprep.subr.mxu0 0.0
  %2602 = vmatpush1.msra.mxu0 0.0
  %2603 = vmatprep.subr.mxu0 0.0
  %2604 = vmatpush1.msra.mxu0 0.0
  %2605 = vmatprep.subr.mxu0 0.0
  %2606 = vmatpush1.msra.mxu0 0.0
  %2607 = vmatprep.subr.mxu0 0.0
  %2608 = vmatpush1.msra.mxu0 0.0
  %2609 = vmatprep.subr.mxu0 0.0
  %2610 = vmatpush1.msra.mxu0 0.0
  %2611 = vmatprep.mubr.f32.mxu0 0.0
  %2612 = vmatmul.mubr.f32.gmra.mrb[0].mxu0 %v2545
  %v2613 = vpop.f32.mrb[0].mxu0
  %v2614 = vadd.f32 0.0, %v2613
  %v2615 = vpop.f32.mrb[0].mxu0
  %2616 = vdwg.mxu0
  %v2618 = vsel %vm325, %v2208, %v2378
  %v2620 = vsel %vm82, %v2618, 0
  %2622 = vmatprep.subr.mxu0 0.0
  %2623 = vmatpush1.msra.mxu0 %v55
  %2624 = vmatprep.subr.mxu0 0.0
  %2625 = vmatpush1.msra.mxu0 %v56
  %2626 = vmatprep.subr.mxu0 0.0
  %2627 = vmatpush1.msra.mxu0 %v57
  %2628 = vmatprep.subr.mxu0 0.0
  %2629 = vmatpush1.msra.mxu0 %v58
  %2630 = vmatprep.subr.mxu0 0.0
  %2631 = vmatpush1.msra.mxu0 %v59
  %2632 = vmatprep.subr.mxu0 0.0
  %2633 = vmatpush1.msra.mxu0 %v60
  %2634 = vmatprep.subr.mxu0 0.0
  %2635 = vmatpush1.msra.mxu0 %v61
  %2636 = vmatprep.subr.mxu0 0.0
  %2637 = vmatpush1.msra.mxu0 %v62
  %2638 = vmatprep.subr.mxu0 0.0
  %2639 = vmatpush1.msra.mxu0 0.0
  %2640 = vmatprep.subr.mxu0 0.0
  %2641 = vmatpush1.msra.mxu0 0.0
  %2642 = vmatprep.subr.mxu0 0.0
  %2643 = vmatpush1.msra.mxu0 0.0
  %2644 = vmatprep.subr.mxu0 0.0
  %2645 = vmatpush1.msra.mxu0 0.0
  %2646 = vmatprep.subr.mxu0 0.0
  %2647 = vmatpush1.msra.mxu0 0.0
  %2648 = vmatprep.subr.mxu0 0.0
  %2649 = vmatpush1.msra.mxu0 0.0
  %2650 = vmatprep.subr.mxu0 0.0
  %2651 = vmatpush1.msra.mxu0 0.0
  %2652 = vmatprep.subr.mxu0 0.0
  %2653 = vmatpush1.msra.mxu0 0.0
  %2654 = vmatprep.subr.mxu0 0.0
  %2655 = vmatpush1.msra.mxu0 0.0
  %2656 = vmatprep.subr.mxu0 0.0
  %2657 = vmatpush1.msra.mxu0 0.0
  %2658 = vmatprep.subr.mxu0 0.0
  %2659 = vmatpush1.msra.mxu0 0.0
  %2660 = vmatprep.subr.mxu0 0.0
  %2661 = vmatpush1.msra.mxu0 0.0
  %2662 = vmatprep.subr.mxu0 0.0
  %2663 = vmatpush1.msra.mxu0 0.0
  %2664 = vmatprep.subr.mxu0 0.0
  %2665 = vmatpush1.msra.mxu0 0.0
  %2666 = vmatprep.subr.mxu0 0.0
  %2667 = vmatpush1.msra.mxu0 0.0
  %2668 = vmatprep.subr.mxu0 0.0
  %2669 = vmatpush1.msra.mxu0 0.0
  %2670 = vmatprep.subr.mxu0 0.0
  %2671 = vmatpush1.msra.mxu0 0.0
  %2672 = vmatprep.subr.mxu0 0.0
  %2673 = vmatpush1.msra.mxu0 0.0
  %2674 = vmatprep.subr.mxu0 0.0
  %2675 = vmatpush1.msra.mxu0 0.0
  %2676 = vmatprep.subr.mxu0 0.0
  %2677 = vmatpush1.msra.mxu0 0.0
  %2678 = vmatprep.subr.mxu0 0.0
  %2679 = vmatpush1.msra.mxu0 0.0
  %2680 = vmatprep.subr.mxu0 0.0
  %2681 = vmatpush1.msra.mxu0 0.0
  %2682 = vmatprep.subr.mxu0 0.0
  %2683 = vmatpush1.msra.mxu0 0.0
  %2684 = vmatprep.subr.mxu0 0.0
  %2685 = vmatpush1.msra.mxu0 0.0
  %2686 = vmatprep.mubr.f32.mxu0 0.0
  %2687 = vmatmul.mubr.f32.gmra.mrb[0].mxu0 %v2620
  %v2688 = vpop.f32.mrb[0].mxu0
  %v2689 = vadd.f32 0.0, %v2688
  %v2690 = vpop.f32.mrb[0].mxu0
  %2691 = vdwg.mxu0
  %v2692 = vlaneseq
  %v2693 = vshrl.u32 %v2692, 7
  %v2694 = vsub.s32 0, %v2693
  %v2695 = vrot.slane %v2689, %v2694
  %v2696 = vadd.f32 %v153, %v2695
  %v2697 = vtanh.pop %v2696
  %v2698 = vmul.f32 %v2697, %v410
  %v2699 = vsel %vm325, %v2698, 0.0
  %2700 = vadd.xlane.f32.xlu0 %v2699
  %v2701 = vpop.xlane.xlu0 %2700
  %v2702 = vrot.slane %v2701, 4
  %v2703 = vmax.f32 %v2701, %v2702
  %v2704 = vrot.slane %v2703, 2
  %v2705 = vmax.f32 %v2703, %v2704
  %v2706 = vrot.slane %v2705, 1
  %v2707 = vmax.f32 %v2705, %v2706
  %v2708 = vsub.f32 %v2701, %v2707
  %v2709 = vmul.f32 %v2708, 1.442695
  %v2710 = vpow.pop %v2709
  %v2711 = vrot.slane %v2710, 4
  %v2712 = vadd.f32 %v2710, %v2711
  %v2713 = vrot.slane %v2712, 2
  %v2714 = vadd.f32 %v2712, %v2713
  %v2715 = vrot.slane %v2714, 1
  %v2716 = vadd.f32 %v2714, %v2715
  %v2717 = vrcp.pop %v2716
  %v2718 = vmul.f32 %v2710, %v2717
  %v2719 = vmul.f32 %v2718, %v72
  %v2720 = vsel %vm82, %v2719, 0.0
  %v2721 = vrot.slane %v2720, 4
  %v2722 = vadd.f32 %v2720, %v2721
  %v2723 = vrot.slane %v2722, 2
  %v2724 = vadd.f32 %v2722, %v2723
  %v2725 = vrot.slane %v2724, 1
  %v2726 = vadd.f32 %v2724, %v2725
  %v2727 = vlaneseq
  %v2728 = vshrl.u32 %v2727, 7
  %v2729 = vsub.s32 1, %v2728
  %v2730 = vrot.slane %v2689, %v2729
  %v2731 = vadd.f32 %v226, %v2730
  %v2732 = vtanh.pop %v2731
  %v2733 = vmul.f32 %v2732, %v410
  %v2734 = vsel %vm325, %v2733, 0.0
  %2735 = vadd.xlane.f32.xlu0 %v2734
  %v2736 = vpop.xlane.xlu0 %2735
  %v2737 = vrot.slane %v2736, 4
  %v2738 = vmax.f32 %v2736, %v2737
  %v2739 = vrot.slane %v2738, 2
  %v2740 = vmax.f32 %v2738, %v2739
  %v2741 = vrot.slane %v2740, 1
  %v2742 = vmax.f32 %v2740, %v2741
  %v2743 = vsub.f32 %v2736, %v2742
  %v2744 = vmul.f32 %v2743, 1.442695
  %v2745 = vpow.pop %v2744
  %v2746 = vrot.slane %v2745, 4
  %v2747 = vadd.f32 %v2745, %v2746
  %v2748 = vrot.slane %v2747, 2
  %v2749 = vadd.f32 %v2747, %v2748
  %v2750 = vrot.slane %v2749, 1
  %v2751 = vadd.f32 %v2749, %v2750
  %v2752 = vrcp.pop %v2751
  %v2753 = vmul.f32 %v2745, %v2752
  %v2754 = vmul.f32 %v2753, %v74
  %v2755 = vsel %vm82, %v2754, 0.0
  %v2756 = vrot.slane %v2755, 4
  %v2757 = vadd.f32 %v2755, %v2756
  %v2758 = vrot.slane %v2757, 2
  %v2759 = vadd.f32 %v2757, %v2758
  %v2760 = vrot.slane %v2759, 1
  %v2761 = vadd.f32 %v2759, %v2760
  %v2762 = vsel %vm476, %v2718, %v2753
  %v2763 = vsel %vm478, %v2726, %v2761
  %2765 = vrot.lane.b32.xlu0 %v2763, 10
  %v2766 = vpop.permute.xlu0 %2765
  %v2768 = vsel %vm484, %v2614, %v2766
  %v2770 = vsel %vm503, %v2768, 0
  %2772 = vmatprep.subr.mxu0 0.0
  %2773 = vmatpush1.msra.mxu0 %v486
  %2774 = vmatprep.subr.mxu0 0.0
  %2775 = vmatpush1.msra.mxu0 %v487
  %2776 = vmatprep.subr.mxu0 0.0
  %2777 = vmatpush1.msra.mxu0 %v488
  %2778 = vmatprep.subr.mxu0 0.0
  %2779 = vmatpush1.msra.mxu0 %v489
  %2780 = vmatprep.subr.mxu0 0.0
  %2781 = vmatpush1.msra.mxu0 %v490
  %2782 = vmatprep.subr.mxu0 0.0
  %2783 = vmatpush1.msra.mxu0 %v491
  %2784 = vmatprep.subr.mxu0 0.0
  %2785 = vmatpush1.msra.mxu0 %v492
  %2786 = vmatprep.subr.mxu0 0.0
  %2787 = vmatpush1.msra.mxu0 %v493
  %2788 = vmatprep.subr.mxu0 0.0
  %2789 = vmatpush1.msra.mxu0 %v494
  %2790 = vmatprep.subr.mxu0 0.0
  %2791 = vmatpush1.msra.mxu0 %v509
  %2792 = vmatprep.subr.mxu0 0.0
  %2793 = vmatpush1.msra.mxu0 0.0
  %2794 = vmatprep.subr.mxu0 0.0
  %2795 = vmatpush1.msra.mxu0 0.0
  %2796 = vmatprep.subr.mxu0 0.0
  %2797 = vmatpush1.msra.mxu0 0.0
  %2798 = vmatprep.subr.mxu0 0.0
  %2799 = vmatpush1.msra.mxu0 0.0
  %2800 = vmatprep.subr.mxu0 0.0
  %2801 = vmatpush1.msra.mxu0 0.0
  %2802 = vmatprep.subr.mxu0 0.0
  %2803 = vmatpush1.msra.mxu0 0.0
  %2804 = vmatprep.subr.mxu0 0.0
  %2805 = vmatpush1.msra.mxu0 0.0
  %2806 = vmatprep.subr.mxu0 0.0
  %2807 = vmatpush1.msra.mxu0 0.0
  %2808 = vmatprep.subr.mxu0 0.0
  %2809 = vmatpush1.msra.mxu0 0.0
  %2810 = vmatprep.subr.mxu0 0.0
  %2811 = vmatpush1.msra.mxu0 0.0
  %2812 = vmatprep.subr.mxu0 0.0
  %2813 = vmatpush1.msra.mxu0 0.0
  %2814 = vmatprep.subr.mxu0 0.0
  %2815 = vmatpush1.msra.mxu0 0.0
  %2816 = vmatprep.subr.mxu0 0.0
  %2817 = vmatpush1.msra.mxu0 0.0
  %2818 = vmatprep.subr.mxu0 0.0
  %2819 = vmatpush1.msra.mxu0 0.0
  %2820 = vmatprep.subr.mxu0 0.0
  %2821 = vmatpush1.msra.mxu0 0.0
  %2822 = vmatprep.subr.mxu0 0.0
  %2823 = vmatpush1.msra.mxu0 0.0
  %2824 = vmatprep.subr.mxu0 0.0
  %2825 = vmatpush1.msra.mxu0 0.0
  %2826 = vmatprep.subr.mxu0 0.0
  %2827 = vmatpush1.msra.mxu0 0.0
  %2828 = vmatprep.subr.mxu0 0.0
  %2829 = vmatpush1.msra.mxu0 0.0
  %2830 = vmatprep.subr.mxu0 0.0
  %2831 = vmatpush1.msra.mxu0 0.0
  %2832 = vmatprep.subr.mxu0 0.0
  %2833 = vmatpush1.msra.mxu0 0.0
  %2834 = vmatprep.subr.mxu0 0.0
  %2835 = vmatpush1.msra.mxu0 0.0
  %2836 = vmatprep.mubr.f32.mxu0 0.0
  %2837 = vmatmul.mubr.f32.gmra.mrb[0].mxu0 %v2770
  %v2838 = vpop.f32.mrb[0].mxu0
  %v2839 = vadd.f32 %v501, %v2838
  %v2840 = vpop.f32.mrb[0].mxu0
  %2841 = vdwg.mxu0
  %2842 = vmatprep.subr.mxu0 0.0
  %2843 = vmatpush1.msra.mxu0 %v581
  %2844 = vmatprep.subr.mxu0 0.0
  %2845 = vmatpush1.msra.mxu0 %v582
  %2846 = vmatprep.subr.mxu0 0.0
  %2847 = vmatpush1.msra.mxu0 %v583
  %2848 = vmatprep.subr.mxu0 0.0
  %2849 = vmatpush1.msra.mxu0 %v584
  %2850 = vmatprep.subr.mxu0 0.0
  %2851 = vmatpush1.msra.mxu0 0.0
  %2852 = vmatprep.subr.mxu0 0.0
  %2853 = vmatpush1.msra.mxu0 0.0
  %2854 = vmatprep.subr.mxu0 0.0
  %2855 = vmatpush1.msra.mxu0 0.0
  %2856 = vmatprep.subr.mxu0 0.0
  %2857 = vmatpush1.msra.mxu0 0.0
  %2858 = vmatprep.subr.mxu0 0.0
  %2859 = vmatpush1.msra.mxu0 0.0
  %2860 = vmatprep.subr.mxu0 0.0
  %2861 = vmatpush1.msra.mxu0 0.0
  %2862 = vmatprep.subr.mxu0 0.0
  %2863 = vmatpush1.msra.mxu0 0.0
  %2864 = vmatprep.subr.mxu0 0.0
  %2865 = vmatpush1.msra.mxu0 0.0
  %2866 = vmatprep.subr.mxu0 0.0
  %2867 = vmatpush1.msra.mxu0 0.0
  %2868 = vmatprep.subr.mxu0 0.0
  %2869 = vmatpush1.msra.mxu0 0.0
  %2870 = vmatprep.subr.mxu0 0.0
  %2871 = vmatpush1.msra.mxu0 0.0
  %2872 = vmatprep.subr.mxu0 0.0
  %2873 = vmatpush1.msra.mxu0 0.0
  %2874 = vmatprep.subr.mxu0 0.0
  %2875 = vmatpush1.msra.mxu0 0.0
  %2876 = vmatprep.subr.mxu0 0.0
  %2877 = vmatpush1.msra.mxu0 0.0
  %2878 = vmatprep.subr.mxu0 0.0
  %2879 = vmatpush1.msra.mxu0 0.0
  %2880 = vmatprep.subr.mxu0 0.0
  %2881 = vmatpush1.msra.mxu0 0.0
  %2882 = vmatprep.subr.mxu0 0.0
  %2883 = vmatpush1.msra.mxu0 0.0
  %2884 = vmatprep.subr.mxu0 0.0
  %2885 = vmatpush1.msra.mxu0 0.0
  %2886 = vmatprep.subr.mxu0 0.0
  %2887 = vmatpush1.msra.mxu0 0.0
  %2888 = vmatprep.subr.mxu0 0.0
  %2889 = vmatpush1.msra.mxu0 0.0
  %2890 = vmatprep.subr.mxu0 0.0
  %2891 = vmatpush1.msra.mxu0 0.0
  %2892 = vmatprep.subr.mxu0 0.0
  %2893 = vmatpush1.msra.mxu0 0.0
  %2894 = vmatprep.subr.mxu0 0.0
  %2895 = vmatpush1.msra.mxu0 0.0
  %2896 = vmatprep.subr.mxu0 0.0
  %2897 = vmatpush1.msra.mxu0 0.0
  %2898 = vmatprep.subr.mxu0 0.0
  %2899 = vmatpush1.msra.mxu0 0.0
  %2900 = vmatprep.subr.mxu0 0.0
  %2901 = vmatpush1.msra.mxu0 0.0
  %2902 = vmatprep.subr.mxu0 0.0
  %2903 = vmatpush1.msra.mxu0 0.0
  %2904 = vmatprep.subr.mxu0 0.0
  %2905 = vmatpush1.msra.mxu0 0.0
  %2906 = vmatprep.mubr.f32.mxu0 0.0
  %2907 = vmatmul.mubr.f32.gmra.mrb[0].mxu0 %v2209
  %v2908 = vpop.f32.mrb[0].mxu0
  %v2909 = vadd.f32 %v590, %v2908
  %v2910 = vpop.f32.mrb[0].mxu0
  %2911 = vdwg.mxu0
  %v2912 = vadd.f32 %v2839, %v2909
  %v2913 = vxor.u32 %v2912, 2147483648
  %v2914 = vmul.f32 %v2913, 1.442695
  %v2915 = vpow.pop %v2914
  %v2916 = vadd.f32 %v2915, 1.0
  %v2917 = vrcp.pop %v2916
  %v2918 = vmul.f32 1.0, %v2917
  %2920 = vrot.lane.b32.xlu0 %v2909, 64
  %v2921 = vpop.permute.xlu0 %2920
  %v2923 = vmul.f32 %v2918, %v2921
  %2925 = vrot.lane.b32.xlu0 %v2923, 64
  %v2926 = vpop.permute.xlu0 %2925
  %v2928 = vadd.f32 %v2839, %v2926
  %v2929 = vtanh.pop %v2928
  %v2930 = vsub.f32 1.0, %v2918
  %2932 = vrot.lane.b32.xlu0 %v2929, 96
  %v2933 = vpop.permute.xlu0 %2932
  %v2935 = vmul.f32 %v2930, %v2933
  %v2936 = vmul.f32 %v2918, %v2205
  %v2937 = vadd.f32 %v2935, %v2936
  %2939 = vrot.lane.b32.xlu0 %v2937, 96
  %v2940 = vpop.permute.xlu0 %2939
  %v2941 = vsel %vm325, %v2940, 0
  %2943 = vmatprep.subr.mxu0 0.0
  %2944 = vmatpush1.msra.mxu0 %v694
  %2945 = vmatprep.subr.mxu0 0.0
  %2946 = vmatpush1.msra.mxu0 %v695
  %2947 = vmatprep.subr.mxu0 0.0
  %2948 = vmatpush1.msra.mxu0 %v696
  %2949 = vmatprep.subr.mxu0 0.0
  %2950 = vmatpush1.msra.mxu0 %v697
  %2951 = vmatprep.subr.mxu0 0.0
  %2952 = vmatpush1.msra.mxu0 0.0
  %2953 = vmatprep.subr.mxu0 0.0
  %2954 = vmatpush1.msra.mxu0 0.0
  %2955 = vmatprep.subr.mxu0 0.0
  %2956 = vmatpush1.msra.mxu0 0.0
  %2957 = vmatprep.subr.mxu0 0.0
  %2958 = vmatpush1.msra.mxu0 0.0
  %2959 = vmatprep.subr.mxu0 0.0
  %2960 = vmatpush1.msra.mxu0 0.0
  %2961 = vmatprep.subr.mxu0 0.0
  %2962 = vmatpush1.msra.mxu0 0.0
  %2963 = vmatprep.subr.mxu0 0.0
  %2964 = vmatpush1.msra.mxu0 0.0
  %2965 = vmatprep.subr.mxu0 0.0
  %2966 = vmatpush1.msra.mxu0 0.0
  %2967 = vmatprep.subr.mxu0 0.0
  %2968 = vmatpush1.msra.mxu0 0.0
  %2969 = vmatprep.subr.mxu0 0.0
  %2970 = vmatpush1.msra.mxu0 0.0
  %2971 = vmatprep.subr.mxu0 0.0
  %2972 = vmatpush1.msra.mxu0 0.0
  %2973 = vmatprep.subr.mxu0 0.0
  %2974 = vmatpush1.msra.mxu0 0.0
  %2975 = vmatprep.subr.mxu0 0.0
  %2976 = vmatpush1.msra.mxu0 0.0
  %2977 = vmatprep.subr.mxu0 0.0
  %2978 = vmatpush1.msra.mxu0 0.0
  %2979 = vmatprep.subr.mxu0 0.0
  %2980 = vmatpush1.msra.mxu0 0.0
  %2981 = vmatprep.subr.mxu0 0.0
  %2982 = vmatpush1.msra.mxu0 0.0
  %2983 = vmatprep.subr.mxu0 0.0
  %2984 = vmatpush1.msra.mxu0 0.0
  %2985 = vmatprep.subr.mxu0 0.0
  %2986 = vmatpush1.msra.mxu0 0.0
  %2987 = vmatprep.subr.mxu0 0.0
  %2988 = vmatpush1.msra.mxu0 0.0
  %2989 = vmatprep.subr.mxu0 0.0
  %2990 = vmatpush1.msra.mxu0 0.0
  %2991 = vmatprep.subr.mxu0 0.0
  %2992 = vmatpush1.msra.mxu0 0.0
  %2993 = vmatprep.subr.mxu0 0.0
  %2994 = vmatpush1.msra.mxu0 0.0
  %2995 = vmatprep.subr.mxu0 0.0
  %2996 = vmatpush1.msra.mxu0 0.0
  %2997 = vmatprep.subr.mxu0 0.0
  %2998 = vmatpush1.msra.mxu0 0.0
  %2999 = vmatprep.subr.mxu0 0.0
  %3000 = vmatpush1.msra.mxu0 0.0
  %3001 = vmatprep.subr.mxu0 0.0
  %3002 = vmatpush1.msra.mxu0 0.0
  %3003 = vmatprep.subr.mxu0 0.0
  %3004 = vmatpush1.msra.mxu0 0.0
  %3005 = vmatprep.subr.mxu0 0.0
  %3006 = vmatpush1.msra.mxu0 0.0
  %3007 = vmatprep.mubr.f32.mxu0 0.0
  %3008 = vmatmul.mubr.f32.gmra.mrb[0].mxu0 %v2941
  %v3009 = vpop.f32.mrb[0].mxu0
  %v3010 = vadd.f32 %v703, %v3009
  %v3011 = vpop.f32.mrb[0].mxu0
  %3012 = vdwg.mxu0
  %v3013 = vsel %vm325, %v2381, 0
  %3015 = vmatprep.subr.mxu0 0.0
  %3016 = vmatpush1.msra.mxu0 %v780
  %3017 = vmatprep.subr.mxu0 0.0
  %3018 = vmatpush1.msra.mxu0 %v781
  %3019 = vmatprep.subr.mxu0 0.0
  %3020 = vmatpush1.msra.mxu0 %v782
  %3021 = vmatprep.subr.mxu0 0.0
  %3022 = vmatpush1.msra.mxu0 %v783
  %3023 = vmatprep.subr.mxu0 0.0
  %3024 = vmatpush1.msra.mxu0 0.0
  %3025 = vmatprep.subr.mxu0 0.0
  %3026 = vmatpush1.msra.mxu0 0.0
  %3027 = vmatprep.subr.mxu0 0.0
  %3028 = vmatpush1.msra.mxu0 0.0
  %3029 = vmatprep.subr.mxu0 0.0
  %3030 = vmatpush1.msra.mxu0 0.0
  %3031 = vmatprep.subr.mxu0 0.0
  %3032 = vmatpush1.msra.mxu0 0.0
  %3033 = vmatprep.subr.mxu0 0.0
  %3034 = vmatpush1.msra.mxu0 0.0
  %3035 = vmatprep.subr.mxu0 0.0
  %3036 = vmatpush1.msra.mxu0 0.0
  %3037 = vmatprep.subr.mxu0 0.0
  %3038 = vmatpush1.msra.mxu0 0.0
  %3039 = vmatprep.subr.mxu0 0.0
  %3040 = vmatpush1.msra.mxu0 0.0
  %3041 = vmatprep.subr.mxu0 0.0
  %3042 = vmatpush1.msra.mxu0 0.0
  %3043 = vmatprep.subr.mxu0 0.0
  %3044 = vmatpush1.msra.mxu0 0.0
  %3045 = vmatprep.subr.mxu0 0.0
  %3046 = vmatpush1.msra.mxu0 0.0
  %3047 = vmatprep.subr.mxu0 0.0
  %3048 = vmatpush1.msra.mxu0 0.0
  %3049 = vmatprep.subr.mxu0 0.0
  %3050 = vmatpush1.msra.mxu0 0.0
  %3051 = vmatprep.subr.mxu0 0.0
  %3052 = vmatpush1.msra.mxu0 0.0
  %3053 = vmatprep.subr.mxu0 0.0
  %3054 = vmatpush1.msra.mxu0 0.0
  %3055 = vmatprep.subr.mxu0 0.0
  %3056 = vmatpush1.msra.mxu0 0.0
  %3057 = vmatprep.subr.mxu0 0.0
  %3058 = vmatpush1.msra.mxu0 0.0
  %3059 = vmatprep.subr.mxu0 0.0
  %3060 = vmatpush1.msra.mxu0 0.0
  %3061 = vmatprep.subr.mxu0 0.0
  %3062 = vmatpush1.msra.mxu0 0.0
  %3063 = vmatprep.subr.mxu0 0.0
  %3064 = vmatpush1.msra.mxu0 0.0
  %3065 = vmatprep.subr.mxu0 0.0
  %3066 = vmatpush1.msra.mxu0 0.0
  %3067 = vmatprep.subr.mxu0 0.0
  %3068 = vmatpush1.msra.mxu0 0.0
  %3069 = vmatprep.subr.mxu0 0.0
  %3070 = vmatpush1.msra.mxu0 0.0
  %3071 = vmatprep.subr.mxu0 0.0
  %3072 = vmatpush1.msra.mxu0 0.0
  %3073 = vmatprep.subr.mxu0 0.0
  %3074 = vmatpush1.msra.mxu0 0.0
  %3075 = vmatprep.subr.mxu0 0.0
  %3076 = vmatpush1.msra.mxu0 0.0
  %3077 = vmatprep.subr.mxu0 0.0
  %3078 = vmatpush1.msra.mxu0 0.0
  %3079 = vmatprep.mubr.f32.mxu0 0.0
  %3080 = vmatmul.mubr.f32.gmra.mrb[0].mxu0 %v3013
  %v3081 = vpop.f32.mrb[0].mxu0
  %v3082 = vadd.f32 %v789, %v3081
  %v3083 = vpop.f32.mrb[0].mxu0
  %3084 = vdwg.mxu0
  %v3085 = vadd.f32 %v3010, %v3082
  %v3086 = vxor.u32 %v3085, 2147483648
  %v3087 = vmul.f32 %v3086, 1.442695
  %v3088 = vpow.pop %v3087
  %v3089 = vadd.f32 %v3088, 1.0
  %v3090 = vrcp.pop %v3089
  %v3091 = vmul.f32 1.0, %v3090
  %3093 = vrot.lane.b32.xlu0 %v3082, 64
  %v3094 = vpop.permute.xlu0 %3093
  %v3096 = vmul.f32 %v3091, %v3094
  %3098 = vrot.lane.b32.xlu0 %v3096, 64
  %v3099 = vpop.permute.xlu0 %3098
  %v3101 = vadd.f32 %v3010, %v3099
  %v3102 = vtanh.pop %v3101
  %v3103 = vsub.f32 1.0, %v3091
  %3105 = vrot.lane.b32.xlu0 %v3102, 96
  %v3106 = vpop.permute.xlu0 %3105
  %v3108 = vmul.f32 %v3103, %v3106
  %v3109 = vmul.f32 %v3091, %v2378
  %v3110 = vadd.f32 %v3108, %v3109
  %3112 = vrot.lane.b32.xlu0 %v3110, 96
  %v3113 = vpop.permute.xlu0 %3112
  %3115 = vrot.lane.b32.xlu0 %v2763, 32
  %v3116 = vpop.permute.xlu0 %3115
  %v3118 = vsel %vm325, %v3113, %v3116
  %v3120 = vsel %vm916, %v3118, 0
  %3122 = vmatprep.subr.mxu0 0.0
  %3123 = vmatpush1.msra.mxu0 %v897
  %3124 = vmatprep.subr.mxu0 0.0
  %3125 = vmatpush1.msra.mxu0 %v898
  %3126 = vmatprep.subr.mxu0 0.0
  %3127 = vmatpush1.msra.mxu0 %v899
  %3128 = vmatprep.subr.mxu0 0.0
  %3129 = vmatpush1.msra.mxu0 %v900
  %3130 = vmatprep.subr.mxu0 0.0
  %3131 = vmatpush1.msra.mxu0 %v901
  %3132 = vmatprep.subr.mxu0 0.0
  %3133 = vmatpush1.msra.mxu0 %v902
  %3134 = vmatprep.subr.mxu0 0.0
  %3135 = vmatpush1.msra.mxu0 %v903
  %3136 = vmatprep.subr.mxu0 0.0
  %3137 = vmatpush1.msra.mxu0 %v904
  %3138 = vmatprep.subr.mxu0 0.0
  %3139 = vmatpush1.msra.mxu0 %v905
  %3140 = vmatprep.subr.mxu0 0.0
  %3141 = vmatpush1.msra.mxu0 %v906
  %3142 = vmatprep.subr.mxu0 0.0
  %3143 = vmatpush1.msra.mxu0 %v907
  %3144 = vmatprep.subr.mxu0 0.0
  %3145 = vmatpush1.msra.mxu0 %v908
  %3146 = vmatprep.subr.mxu0 0.0
  %3147 = vmatpush1.msra.mxu0 0.0
  %3148 = vmatprep.subr.mxu0 0.0
  %3149 = vmatpush1.msra.mxu0 0.0
  %3150 = vmatprep.subr.mxu0 0.0
  %3151 = vmatpush1.msra.mxu0 0.0
  %3152 = vmatprep.subr.mxu0 0.0
  %3153 = vmatpush1.msra.mxu0 0.0
  %3154 = vmatprep.subr.mxu0 0.0
  %3155 = vmatpush1.msra.mxu0 0.0
  %3156 = vmatprep.subr.mxu0 0.0
  %3157 = vmatpush1.msra.mxu0 0.0
  %3158 = vmatprep.subr.mxu0 0.0
  %3159 = vmatpush1.msra.mxu0 0.0
  %3160 = vmatprep.subr.mxu0 0.0
  %3161 = vmatpush1.msra.mxu0 0.0
  %3162 = vmatprep.subr.mxu0 0.0
  %3163 = vmatpush1.msra.mxu0 0.0
  %3164 = vmatprep.subr.mxu0 0.0
  %3165 = vmatpush1.msra.mxu0 0.0
  %3166 = vmatprep.subr.mxu0 0.0
  %3167 = vmatpush1.msra.mxu0 0.0
  %3168 = vmatprep.subr.mxu0 0.0
  %3169 = vmatpush1.msra.mxu0 0.0
  %3170 = vmatprep.subr.mxu0 0.0
  %3171 = vmatpush1.msra.mxu0 0.0
  %3172 = vmatprep.subr.mxu0 0.0
  %3173 = vmatpush1.msra.mxu0 0.0
  %3174 = vmatprep.subr.mxu0 0.0
  %3175 = vmatpush1.msra.mxu0 0.0
  %3176 = vmatprep.subr.mxu0 0.0
  %3177 = vmatpush1.msra.mxu0 0.0
  %3178 = vmatprep.subr.mxu0 0.0
  %3179 = vmatpush1.msra.mxu0 0.0
  %3180 = vmatprep.subr.mxu0 0.0
  %3181 = vmatpush1.msra.mxu0 0.0
  %3182 = vmatprep.subr.mxu0 0.0
  %3183 = vmatpush1.msra.mxu0 0.0
  %3184 = vmatprep.subr.mxu0 0.0
  %3185 = vmatpush1.msra.mxu0 0.0
  %3186 = vmatprep.mubr.f32.mxu0 0.0
  %3187 = vmatmul.mubr.f32.gmra.mrb[0].mxu0 %v3120
  %v3188 = vpop.f32.mrb[0].mxu0
  %v3189 = vadd.f32 %v914, %v3188
  %v3190 = vpop.f32.mrb[0].mxu0
  %3191 = vdwg.mxu0
  %v3192 = vsel %vm990, %v3189, -inf
  %3193 = vmax.xlane.f32.xlu0 %v3192
  %v3194 = vpop.xlane.xlu0 %3193
  %v3195 = vsub.f32 %v3189, %v3194
  %v3196 = vmul.f32 %v3195, 1.442695
  %v3197 = vpow.pop %v3196
  %v3198 = vsel %vm990, %v3197, 0.0
  %3199 = vadd.xlane.f32.xlu0 %v3198
  %v3200 = vpop.xlane.xlu0 %3199
  %v3201 = vlog2.pop %v3200
  %v3202 = vmul.f32 %v3201, 0.6931472
  %v3203 = vsub.f32 %v3195, %v3202
  %v3204 = vsel %vm1020, %v3189, -inf
  %3205 = vmax.xlane.f32.xlu0 %v3204
  %v3206 = vpop.xlane.xlu0 %3205
  %v3207 = vsub.f32 %v3189, %v3206
  %v3208 = vmul.f32 %v3207, 1.442695
  %v3209 = vpow.pop %v3208
  %3211 = vrot.lane.b32.xlu0 %v3209, 116
  %v3212 = vpop.permute.xlu0 %3211
  %v3214 = vsel %vm1031, %v3212, 0.0
  %3215 = vadd.xlane.f32.xlu0 %v3214
  %v3216 = vpop.xlane.xlu0 %3215
  %v3217 = vlog2.pop %v3216
  %v3218 = vmul.f32 %v3217, 0.6931472
  %v3219 = vsub.f32 %v3207, %v3218
  %v3220 = vsel %vm1057, %v3203, %v3219
  %v3221 = vmul.f32 %v3220, %v2537
  %v3222 = vmul.f32 %v2762, %v2537
  %vm3223 = vcmask 173056
  %3224 = vst.msk [vmem:[%s16] sm:$0x3] %vm3223, %v1059
  %3225 = vst.msk [vmem:[%s16 + $0x2] sm:$0x3] %vm3223, %v1791
  %3226 = vst.msk [vmem:[%s16 + $0x4] sm:$0x3] %vm3223, %v2523
  %3227 = vst.msk [vmem:[%s16 + $0x6] sm:$0x3] %vm3223, %v3221
  %vm3228 = vcmask 15360
  %3229 = vst.msk [vmem:[%s17] sm:$0xff] %vm3228, %v1060
  %3230 = vst.msk [vmem:[%s17 + $0x8] sm:$0xff] %vm3228, %v1792
  %3231 = vst.msk [vmem:[%s17 + $0x10] sm:$0xff] %vm3228, %v2524
  %3232 = vst.msk [vmem:[%s17 + $0x18] sm:$0xff] %vm3228, %v3222
  // Predicated region
  $region66: #{seq2seq_forward.3} parent=0 // pred_check
    _
  $region67: #{seq2seq_forward.3} parent=0 // pred_check_branch
    %3234 = sbr.rel (0) target = $region69
  $region68: #{seq2seq_forward.3} parent=0 // pred_region
    _
  $region69: #{seq2seq_forward.3} parent=0 // pred_fallthru
    _
  // Predicated region
  $region70: #{seq2seq_forward.3} parent=0 // pred_check
    _
  $region71: #{seq2seq_forward.3} parent=0 // pred_check_branch
    %3236 = sbr.rel (0) target = $region73
  $region72: #{seq2seq_forward.3} parent=0 // pred_region
    _
  $region73: #{seq2seq_forward.3} parent=0 // pred_fallthru
    _
  // Predicated region
  $region74: #{seq2seq_forward.3} parent=0 // pred_check
    _
  $region75: #{seq2seq_forward.3} parent=0 // pred_check_branch
    %3238 = sbr.rel (0) target = $region77
  $region76: #{seq2seq_forward.3} parent=0 // pred_region
    _
  $region77: #{seq2seq_forward.3} parent=0 // pred_fallthru
    _
  // Predicated region
  $region78: #{seq2seq_forward.3} parent=0 // pred_check
    _
  $region79: #{seq2seq_forward.3} parent=0 // pred_check_branch
    %3240 = sbr.rel (0) target = $region81
  $region80: #{seq2seq_forward.3} parent=0 // pred_region
    _
  $region81: #{seq2seq_forward.3} parent=0 // pred_fallthru
    _

</llo_original>
